<compile_context>
chip_gen: v7x
topology: tpu7x:2x2x1
jax: 0.10.0
libtpu: 0.0.40
codegen_flags: <defaults>
</compile_context>

<pallas_src>
import functools

import jax
import jax.numpy as jnp
import numpy as np
from jax.experimental import pallas as pl
from jax.experimental.pallas import tpu as pltpu

EPS = 1e-5


def _round_up(v, m):
    return (v + m - 1) // m * m


def _bottleneck_kernel(x_ref, w1_ref, g1_ref, b1_ref, w2_ref, g2_ref, b2_ref,
                       w3_ref, g3_ref, b3_ref, w4s_ref,
                       out_ref, pad_ref, patch_ref,
                       *, n, h, w, c, md):
    nhw = n * h * w
    hw = h * w

    def bn(z, g_ref, b_ref):
        # training-mode BatchNorm2d: batch stats, biased variance, two-pass
        # form (reuses z - mu, more stable than E[x^2] - mu^2).
        mu = jnp.mean(z, axis=0, keepdims=True)
        d = z - mu
        var = jnp.mean(d * d, axis=0, keepdims=True)
        return d * jax.lax.rsqrt(var + EPS) * g_ref[...] + b_ref[...]

    # ---- conv1 (1x1) -> bn1 -> relu  (md MXU operands, f32 accumulation) ----
    o = jnp.dot(x_ref[...].astype(md), w1_ref[...],
                preferred_element_type=jnp.float32)              # (NHW, Cp_mid)
    o = jnp.maximum(bn(o, g1_ref, b1_ref), 0.0)

    # ---- conv2 (3x3, stride 1, pad 1) -> bn2 -> relu -------------------------
    # Packed im2col: only the 9*c real channels form the K dimension (a single
    # 128-lane K group).  The activation is cast to the matmul dtype exactly
    # once when written into the (tiny) zero-padded buffer.
    pad_ref[...] = jnp.zeros_like(pad_ref)            # tiny buffer: zero it all
    pad_ref[:, 1:h + 1, 1:w + 1, :] = o[:, :c].astype(md).reshape(n, h, w, c)
    patch_ref[...] = jnp.zeros_like(patch_ref)        # zero K tail lanes >= 9c
    for t in range(9):                                # static unrolled tap loop
        ky, kx = t // 3, t % 3
        patch_ref[:, t * c:(t + 1) * c] = (
            pad_ref[:, ky:ky + h, kx:kx + w, :].reshape(nhw, c))
    acc = jnp.dot(patch_ref[...], w2_ref[...],
                  preferred_element_type=jnp.float32)            # (NHW, Cp_mid)
    o = jnp.maximum(bn(acc, g2_ref, b2_ref), 0.0)

    # ---- conv3 (1x1) -> bn3 (no relu yet) ------------------------------------
    o = jnp.dot(o.astype(md), w3_ref[...],
                preferred_element_type=jnp.float32)              # (NHW, Cp_in)
    o = bn(o, g3_ref, b3_ref)

    # ---- hard attention mask on the residual (mask(x, soft=False)) -----------
    # rep = conv4(x) summed over its 2 output channels; w4 was folded on the
    # host so this is one per-pixel lane reduce.  Per-sample threshold is
    # vectorized: (NHW,1) -> (N,HW,1), one sublane reduce + one select.
    rep = jnp.sum(x_ref[...] * w4s_ref[...], axis=1, keepdims=True)   # (NHW, 1)
    m = 1.0 / (1.0 + jnp.exp(-rep))                                   # sigmoid
    m3 = m.reshape(n, hw, 1)
    thr = jnp.mean(m3, axis=1, keepdims=True)                         # (N, 1, 1)
    hard = jnp.where(m3 * m3 - thr > 0.0, 1.0, 0.0).reshape(nhw, 1)

    # ---- residual add + relu --------------------------------------------------
    out_ref[...] = jnp.maximum(o + x_ref[...] * hard, 0.0)


def bottleneck_forward(x_nchw, params, *, matmul_dtype=jnp.bfloat16):
    """x_nchw: (N, 4*C, H, W) float32. Returns (N, 4*C, H, W) float32.

    matmul_dtype controls the MXU operand dtype only (bf16 by default; f32
    accumulation via preferred_element_type; BN / mask / ReLU math stays f32).
    Pass jnp.float32 for a bit-for-bit strict comparison against an f32 ref.
    """
    w1, g1, b1, w2, g2, b2, w3, g3, b3, w4 = params
    N, Cin, H, W = x_nchw.shape
    C = w1.shape[1]
    assert Cin == 4 * C, "downsample is None => in_channels must be 4*out_channels"
    nhw = N * H * W

    md = jnp.dtype(matmul_dtype)
    cp_in = _round_up(Cin, 128)          # lane-dense padded channel widths
    cp_mid = _round_up(C, 128)
    kp = _round_up(9 * C, 128)           # packed im2col K (real taps only)
    wp2 = _round_up(W + 2, 8)            # sublane-aligned padded width

    # ---- host-side layout: NCHW -> NHWC -> (NHW, Cp_in), zero-pad channels --
    x = jnp.transpose(x_nchw, (0, 2, 3, 1)).astype(jnp.float32)
    x_p = jnp.pad(x, ((0, 0), (0, 0), (0, 0), (0, cp_in - Cin))).reshape(nhw, cp_in)

    def pad2(a, rows, cols):
        return jnp.pad(a, ((0, rows - a.shape[0]), (0, cols - a.shape[1])))

    w1_p = pad2(w1, cp_in, cp_mid).astype(md)
    w2_p = pad2(w2.reshape(9 * C, C), kp, cp_mid).astype(md)   # packed-K weight
    w3_p = pad2(w3, cp_mid, cp_in).astype(md)
    w4s = pad2(w4.sum(axis=1, keepdims=True).T, 1, cp_in)      # folded, f32
    g1_p, b1_p = pad2(g1, 1, cp_mid), pad2(b1, 1, cp_mid)
    g2_p, b2_p = pad2(g2, 1, cp_mid), pad2(b2, 1, cp_mid)
    g3_p, b3_p = pad2(g3, 1, cp_in), pad2(b3, 1, cp_in)

    # ---- VMEM budget: accurate buffer sum (lane-tile padded), 2x headroom, ---
    # capped below v7x's 64 MiB physical per-core VMEM.
    md_b = md.itemsize
    est = 4 * (2 * nhw * cp_in + 6 * max(cp_in, cp_mid) + cp_in)      # f32 bufs
    est += md_b * (cp_in * cp_mid + kp * cp_mid + cp_mid * cp_in)     # weights
    est += md_b * (N * (H + 2) * wp2 * 128 + nhw * kp)                # scratch
    vmem_limit = int(min(56 * 2**20, max(16 * 2**20, 2 * est)))

    kernel = functools.partial(_bottleneck_kernel, n=N, h=H, w=W, c=C, md=md)
    out_p = pl.pallas_call(
        kernel,
        out_shape=jax.ShapeDtypeStruct((nhw, cp_in), jnp.float32),
        in_specs=[pl.BlockSpec(memory_space=pltpu.MemorySpace.VMEM)] * 11,
        out_specs=pl.BlockSpec(memory_space=pltpu.MemorySpace.VMEM),
        scratch_shapes=[
            pltpu.VMEM((N, H + 2, wp2, C), md),    # conv2 zero-padded activation
            pltpu.VMEM((nhw, kp), md),             # packed im2col patch matrix
        ],
        compiler_params=pltpu.CompilerParams(vmem_limit_bytes=vmem_limit),
    )(x_p, w1_p, g1_p, b1_p, w2_p, g2_p, b2_p, w3_p, g3_p, b3_p, w4s)

    out = out_p[:, :Cin].reshape(N, H, W, Cin)
    return jnp.transpose(out, (0, 3, 1, 2))                       # back to NCHW


def bottleneck_reference(x_nchw, params):
    """Plain-JAX f32 reference (same math, HIGHEST-precision dots)."""
    w1, g1, b1, w2, g2, b2, w3, g3, b3, w4 = params
    hp = jax.lax.Precision.HIGHEST
    N, Cin, H, W = x_nchw.shape
    C = w1.shape[1]
    x = jnp.transpose(x_nchw, (0, 2, 3, 1)).astype(jnp.float32)

    def bn(z, g, b):
        mu = jnp.mean(z, axis=(0, 1, 2))
        var = jnp.mean((z - mu) ** 2, axis=(0, 1, 2))
        return (z - mu) / jnp.sqrt(var + EPS) * g.reshape(-1) + b.reshape(-1)

    o = jnp.einsum('nhwc,cd->nhwd', x, w1, precision=hp)
    o = jax.nn.relu(bn(o, g1, b1))
    pad = jnp.pad(o, ((0, 0), (1, 1), (1, 1), (0, 0)))
    acc = jnp.zeros((N, H, W, C), jnp.float32)
    for ky in range(3):
        for kx in range(3):
            acc = acc + jnp.einsum('nhwc,cd->nhwd',
                                   pad[:, ky:ky + H, kx:kx + W, :],
                                   w2[ky * 3 + kx], precision=hp)
    o = jax.nn.relu(bn(acc, g2, b2))
    o = jnp.einsum('nhwc,cd->nhwd', o, w3, precision=hp)
    o = bn(o, g3, b3)
    rep = jnp.einsum('nhwc,cd->nhwd', x, w4, precision=hp).sum(axis=-1)
    m = jax.nn.sigmoid(rep)
    thr = jnp.mean(m.reshape(N, -1), axis=1).reshape(N, 1, 1)
    hard = jnp.where(m ** 2 - thr > 0, 1.0, 0.0)[..., None]
    out = jax.nn.relu(o + x * hard)
    return jnp.transpose(out, (0, 3, 1, 2))


def init_params(key, in_channels, out_channels):
    """Deterministic synthetic parameters matching the module's shapes."""
    C, C4 = out_channels, out_channels * 4
    assert C4 == in_channels
    ks = jax.random.split(key, 8)
    # conv weights stored already transposed for channels-last matmuls
    w1 = 0.2 * jax.random.normal(ks[0], (in_channels, C), jnp.float32)   # conv1: Cin->C
    w2 = 0.2 * jax.random.normal(ks[1], (9, C, C), jnp.float32)          # conv2: (kh*kw, Cin, Cout)
    w3 = 0.2 * jax.random.normal(ks[2], (C, C4), jnp.float32)            # conv3: C->4C
    w4 = 0.2 * jax.random.normal(ks[3], (in_channels, 2), jnp.float32)   # conv4: 4C->2
    g1 = 1.0 + 0.1 * jax.random.normal(ks[4], (1, C), jnp.float32)
    b1 = 0.1 * jax.random.normal(ks[5], (1, C), jnp.float32)
    g2 = jnp.ones((1, C), jnp.float32)
    b2 = jnp.zeros((1, C), jnp.float32)
    g3 = 1.0 + 0.1 * jax.random.normal(ks[6], (1, C4), jnp.float32)
    b3 = 0.1 * jax.random.normal(ks[7], (1, C4), jnp.float32)
    return (w1, g1, b1, w2, g2, b2, w3, g3, b3, w4)


if __name__ == "__main__":
    key = jax.random.PRNGKey(0)
    k_x, k_p = jax.random.split(key)

    out_channels = 4
    in_channels = out_channels * 4          # 16 (required by residual add)
    N, H, W = 2, 16, 16

    x = jax.random.normal(k_x, (N, in_channels, H, W), jnp.float32)   # NCHW
    params = init_params(k_p, in_channels, out_channels)

    ref = jax.block_until_ready(bottleneck_reference(x, params))

    # Strict check of the kernel structure (packed im2col / BN / mask) in f32.
    out_f32 = jax.block_until_ready(
        bottleneck_forward(x, params, matmul_dtype=jnp.float32))
    np.testing.assert_allclose(np.asarray(out_f32), np.asarray(ref),
                               atol=1e-3, rtol=1e-3)

    # Default fast path: bf16 MXU operands (f32 accumulation); bf16-appropriate
    # tolerance against the f32 reference.
    out_bf16 = jax.block_until_ready(bottleneck_forward(x, params))
    np.testing.assert_allclose(np.asarray(out_bf16), np.asarray(ref),
                               atol=5e-2, rtol=5e-2)

    print("KERNEL_OK")
</pallas_src>

<mosaic_0001>
module attributes {stable_mosaic.version = 11 : i64} {
  func.func @_bottleneck_kernel(%arg0: memref<512x128xf32, #tpu.memory_space<vmem>>, %arg1: memref<128x128xf32, #tpu.memory_space<vmem>>, %arg2: memref<1x128xf32, #tpu.memory_space<vmem>>, %arg3: memref<1x128xf32, #tpu.memory_space<vmem>>, %arg4: memref<128x128xf32, #tpu.memory_space<vmem>>, %arg5: memref<1x128xf32, #tpu.memory_space<vmem>>, %arg6: memref<1x128xf32, #tpu.memory_space<vmem>>, %arg7: memref<128x128xf32, #tpu.memory_space<vmem>>, %arg8: memref<1x128xf32, #tpu.memory_space<vmem>>, %arg9: memref<1x128xf32, #tpu.memory_space<vmem>>, %arg10: memref<1x128xf32, #tpu.memory_space<vmem>>, %arg11: memref<512x128xf32, #tpu.memory_space<vmem>>, %arg12: memref<2x18x24x4xf32, #tpu.memory_space<vmem>>, %arg13: memref<512x128xf32, #tpu.memory_space<vmem>>) attributes {dimension_semantics = [], scalar_prefetch = 0 : i64, scratch_operands = 2 : i64, tpu.core_type = #tpu.core_type<tc>} {
    %c0 = arith.constant 0 : index
    %c0_0 = arith.constant 0 : index
    %0 = vector.load %arg0[%c0, %c0_0] : memref<512x128xf32, #tpu.memory_space<vmem>>, vector<512x128xf32>
    %c0_1 = arith.constant 0 : index
    %c0_2 = arith.constant 0 : index
    %1 = vector.load %arg1[%c0_1, %c0_2] : memref<128x128xf32, #tpu.memory_space<vmem>>, vector<128x128xf32>
    %cst = arith.constant dense<0.000000e+00> : vector<512x128xf32>
    %2 = tpu.matmul %0, %1, %cst {dimension_numbers = #tpu.dot_dimension_numbers<[1], [0], [0], [1], [0, 0, 1, 1], [], []>} : vector<512x128xf32>, vector<128x128xf32>, vector<512x128xf32> -> vector<512x128xf32>
    %cst_3 = arith.constant dense<0.000000e+00> : vector<128xf32>
    %3 = vector.multi_reduction <add>, %2, %cst_3 [0] : vector<512x128xf32> to vector<128xf32>
    %4 = vector.shape_cast %3 : vector<128xf32> to vector<1x128xf32>
    %cst_4 = arith.constant 5.120000e+02 : f32
    %5 = vector.broadcast %cst_4 : f32 to vector<1x128xf32>
    %6 = arith.divf %4, %5 : vector<1x128xf32>
    %7 = vector.broadcast %6 : vector<1x128xf32> to vector<512x128xf32>
    %8 = arith.subf %2, %7 : vector<512x128xf32>
    %9 = arith.mulf %8, %8 : vector<512x128xf32>
    %cst_5 = arith.constant dense<0.000000e+00> : vector<128xf32>
    %10 = vector.multi_reduction <add>, %9, %cst_5 [0] : vector<512x128xf32> to vector<128xf32>
    %11 = vector.shape_cast %10 : vector<128xf32> to vector<1x128xf32>
    %cst_6 = arith.constant 5.120000e+02 : f32
    %12 = vector.broadcast %cst_6 : f32 to vector<1x128xf32>
    %13 = arith.divf %11, %12 : vector<1x128xf32>
    %cst_7 = arith.constant 9.99999974E-6 : f32
    %14 = vector.broadcast %cst_7 : f32 to vector<1x128xf32>
    %15 = arith.addf %13, %14 : vector<1x128xf32>
    %16 = math.rsqrt %15 : vector<1x128xf32>
    %17 = vector.broadcast %16 : vector<1x128xf32> to vector<512x128xf32>
    %18 = arith.mulf %8, %17 : vector<512x128xf32>
    %c0_8 = arith.constant 0 : index
    %c0_9 = arith.constant 0 : index
    %19 = vector.load %arg2[%c0_8, %c0_9] : memref<1x128xf32, #tpu.memory_space<vmem>>, vector<1x128xf32>
    %20 = vector.broadcast %19 : vector<1x128xf32> to vector<512x128xf32>
    %21 = arith.mulf %18, %20 : vector<512x128xf32>
    %c0_10 = arith.constant 0 : index
    %c0_11 = arith.constant 0 : index
    %22 = vector.load %arg3[%c0_10, %c0_11] : memref<1x128xf32, #tpu.memory_space<vmem>>, vector<1x128xf32>
    %23 = vector.broadcast %22 : vector<1x128xf32> to vector<512x128xf32>
    %24 = arith.addf %21, %23 : vector<512x128xf32>
    %cst_12 = arith.constant 0.000000e+00 : f32
    %25 = vector.broadcast %cst_12 : f32 to vector<512x128xf32>
    %26 = arith.maximumf %24, %25 : vector<512x128xf32>
    %cst_13 = arith.constant 0.000000e+00 : f32
    %27 = vector.broadcast %cst_13 : f32 to vector<2x18x24x4xf32>
    %c0_14 = arith.constant 0 : index
    %c0_15 = arith.constant 0 : index
    %c0_16 = arith.constant 0 : index
    %c0_17 = arith.constant 0 : index
    %28 = vector.load %arg12[%c0_14, %c0_15, %c0_16, %c0_17] : memref<2x18x24x4xf32, #tpu.memory_space<vmem>>, vector<2x18x24x4xf32>
    tpu.vector_store %arg12[%c0_14, %c0_15, %c0_16, %c0_17], %27 {strides = array<i32>} : memref<2x18x24x4xf32, #tpu.memory_space<vmem>>, vector<2x18x24x4xf32>,
    %29 = vector.extract_strided_slice %26 {offsets = [0, 0], sizes = [512, 4], strides = [1, 1]} : vector<512x128xf32> to vector<512x4xf32>
    %30 = vector.shape_cast %29 : vector<512x4xf32> to vector<2x16x16x4xf32>
    %c0_18 = arith.constant 0 : index
    %c1 = arith.constant 1 : index
    %c1_19 = arith.constant 1 : index
    %c0_20 = arith.constant 0 : index
    %31 = vector.load %arg12[%c0_18, %c1, %c1_19, %c0_20] : memref<2x18x24x4xf32, #tpu.memory_space<vmem>>, vector<2x16x16x4xf32>
    tpu.vector_store %arg12[%c0_18, %c1, %c1_19, %c0_20], %30 {strides = array<i32>} : memref<2x18x24x4xf32, #tpu.memory_space<vmem>>, vector<2x16x16x4xf32>,
    %cst_21 = arith.constant 0.000000e+00 : f32
    %32 = vector.broadcast %cst_21 : f32 to vector<512x128xf32>
    %c0_22 = arith.constant 0 : index
    %c0_23 = arith.constant 0 : index
    %33 = vector.load %arg13[%c0_22, %c0_23] : memref<512x128xf32, #tpu.memory_space<vmem>>, vector<512x128xf32>
    tpu.vector_store %arg13[%c0_22, %c0_23], %32 {strides = array<i32>} : memref<512x128xf32, #tpu.memory_space<vmem>>, vector<512x128xf32>,
    %c0_24 = arith.constant 0 : index
    %c0_25 = arith.constant 0 : index
    %c0_26 = arith.constant 0 : index
    %c0_27 = arith.constant 0 : index
    %34 = vector.load %arg12[%c0_24, %c0_25, %c0_26, %c0_27] : memref<2x18x24x4xf32, #tpu.memory_space<vmem>>, vector<2x16x16x4xf32>
    %35 = vector.shape_cast %34 : vector<2x16x16x4xf32> to vector<512x4xf32>
    %c0_28 = arith.constant 0 : index
    %c0_29 = arith.constant 0 : index
    %36 = vector.load %arg13[%c0_28, %c0_29] : memref<512x128xf32, #tpu.memory_space<vmem>>, vector<512x4xf32>
    tpu.vector_store %arg13[%c0_28, %c0_29], %35 {strides = array<i32>} : memref<512x128xf32, #tpu.memory_space<vmem>>, vector<512x4xf32>,
    %c0_30 = arith.constant 0 : index
    %c0_31 = arith.constant 0 : index
    %c1_32 = arith.constant 1 : index
    %c0_33 = arith.constant 0 : index
    %37 = vector.load %arg12[%c0_30, %c0_31, %c1_32, %c0_33] : memref<2x18x24x4xf32, #tpu.memory_space<vmem>>, vector<2x16x16x4xf32>
    %38 = vector.shape_cast %37 : vector<2x16x16x4xf32> to vector<512x4xf32>
    %c0_34 = arith.constant 0 : index
    %c4 = arith.constant 4 : index
    %39 = vector.load %arg13[%c0_34, %c4] : memref<512x128xf32, #tpu.memory_space<vmem>>, vector<512x4xf32>
    tpu.vector_store %arg13[%c0_34, %c4], %38 {strides = array<i32>} : memref<512x128xf32, #tpu.memory_space<vmem>>, vector<512x4xf32>,
    %c0_35 = arith.constant 0 : index
    %c0_36 = arith.constant 0 : index
    %c2 = arith.constant 2 : index
    %c0_37 = arith.constant 0 : index
    %40 = vector.load %arg12[%c0_35, %c0_36, %c2, %c0_37] : memref<2x18x24x4xf32, #tpu.memory_space<vmem>>, vector<2x16x16x4xf32>
    %41 = vector.shape_cast %40 : vector<2x16x16x4xf32> to vector<512x4xf32>
    %c0_38 = arith.constant 0 : index
    %c8 = arith.constant 8 : index
    %42 = vector.load %arg13[%c0_38, %c8] : memref<512x128xf32, #tpu.memory_space<vmem>>, vector<512x4xf32>
    tpu.vector_store %arg13[%c0_38, %c8], %41 {strides = array<i32>} : memref<512x128xf32, #tpu.memory_space<vmem>>, vector<512x4xf32>,
    %c0_39 = arith.constant 0 : index
    %c1_40 = arith.constant 1 : index
    %c0_41 = arith.constant 0 : index
    %c0_42 = arith.constant 0 : index
    %43 = vector.load %arg12[%c0_39, %c1_40, %c0_41, %c0_42] : memref<2x18x24x4xf32, #tpu.memory_space<vmem>>, vector<2x16x16x4xf32>
    %44 = vector.shape_cast %43 : vector<2x16x16x4xf32> to vector<512x4xf32>
    %c0_43 = arith.constant 0 : index
    %c12 = arith.constant 12 : index
    %45 = vector.load %arg13[%c0_43, %c12] : memref<512x128xf32, #tpu.memory_space<vmem>>, vector<512x4xf32>
    tpu.vector_store %arg13[%c0_43, %c12], %44 {strides = array<i32>} : memref<512x128xf32, #tpu.memory_space<vmem>>, vector<512x4xf32>,
    %c0_44 = arith.constant 0 : index
    %c1_45 = arith.constant 1 : index
    %c1_46 = arith.constant 1 : index
    %c0_47 = arith.constant 0 : index
    %46 = vector.load %arg12[%c0_44, %c1_45, %c1_46, %c0_47] : memref<2x18x24x4xf32, #tpu.memory_space<vmem>>, vector<2x16x16x4xf32>
    %47 = vector.shape_cast %46 : vector<2x16x16x4xf32> to vector<512x4xf32>
    %c0_48 = arith.constant 0 : index
    %c16 = arith.constant 16 : index
    %48 = vector.load %arg13[%c0_48, %c16] : memref<512x128xf32, #tpu.memory_space<vmem>>, vector<512x4xf32>
    tpu.vector_store %arg13[%c0_48, %c16], %47 {strides = array<i32>} : memref<512x128xf32, #tpu.memory_space<vmem>>, vector<512x4xf32>,
    %c0_49 = arith.constant 0 : index
    %c1_50 = arith.constant 1 : index
    %c2_51 = arith.constant 2 : index
    %c0_52 = arith.constant 0 : index
    %49 = vector.load %arg12[%c0_49, %c1_50, %c2_51, %c0_52] : memref<2x18x24x4xf32, #tpu.memory_space<vmem>>, vector<2x16x16x4xf32>
    %50 = vector.shape_cast %49 : vector<2x16x16x4xf32> to vector<512x4xf32>
    %c0_53 = arith.constant 0 : index
    %c20 = arith.constant 20 : index
    %51 = vector.load %arg13[%c0_53, %c20] : memref<512x128xf32, #tpu.memory_space<vmem>>, vector<512x4xf32>
    tpu.vector_store %arg13[%c0_53, %c20], %50 {strides = array<i32>} : memref<512x128xf32, #tpu.memory_space<vmem>>, vector<512x4xf32>,
    %c0_54 = arith.constant 0 : index
    %c2_55 = arith.constant 2 : index
    %c0_56 = arith.constant 0 : index
    %c0_57 = arith.constant 0 : index
    %52 = vector.load %arg12[%c0_54, %c2_55, %c0_56, %c0_57] : memref<2x18x24x4xf32, #tpu.memory_space<vmem>>, vector<2x16x16x4xf32>
    %53 = vector.shape_cast %52 : vector<2x16x16x4xf32> to vector<512x4xf32>
    %c0_58 = arith.constant 0 : index
    %c24 = arith.constant 24 : index
    %54 = vector.load %arg13[%c0_58, %c24] : memref<512x128xf32, #tpu.memory_space<vmem>>, vector<512x4xf32>
    tpu.vector_store %arg13[%c0_58, %c24], %53 {strides = array<i32>} : memref<512x128xf32, #tpu.memory_space<vmem>>, vector<512x4xf32>,
    %c0_59 = arith.constant 0 : index
    %c2_60 = arith.constant 2 : index
    %c1_61 = arith.constant 1 : index
    %c0_62 = arith.constant 0 : index
    %55 = vector.load %arg12[%c0_59, %c2_60, %c1_61, %c0_62] : memref<2x18x24x4xf32, #tpu.memory_space<vmem>>, vector<2x16x16x4xf32>
    %56 = vector.shape_cast %55 : vector<2x16x16x4xf32> to vector<512x4xf32>
    %c0_63 = arith.constant 0 : index
    %c28 = arith.constant 28 : index
    %57 = vector.load %arg13[%c0_63, %c28] : memref<512x128xf32, #tpu.memory_space<vmem>>, vector<512x4xf32>
    tpu.vector_store %arg13[%c0_63, %c28], %56 {strides = array<i32>} : memref<512x128xf32, #tpu.memory_space<vmem>>, vector<512x4xf32>,
    %c0_64 = arith.constant 0 : index
    %c2_65 = arith.constant 2 : index
    %c2_66 = arith.constant 2 : index
    %c0_67 = arith.constant 0 : index
    %58 = vector.load %arg12[%c0_64, %c2_65, %c2_66, %c0_67] : memref<2x18x24x4xf32, #tpu.memory_space<vmem>>, vector<2x16x16x4xf32>
    %59 = vector.shape_cast %58 : vector<2x16x16x4xf32> to vector<512x4xf32>
    %c0_68 = arith.constant 0 : index
    %c32 = arith.constant 32 : index
    %60 = vector.load %arg13[%c0_68, %c32] : memref<512x128xf32, #tpu.memory_space<vmem>>, vector<512x4xf32>
    tpu.vector_store %arg13[%c0_68, %c32], %59 {strides = array<i32>} : memref<512x128xf32, #tpu.memory_space<vmem>>, vector<512x4xf32>,
    %c0_69 = arith.constant 0 : index
    %c0_70 = arith.constant 0 : index
    %61 = vector.load %arg13[%c0_69, %c0_70] : memref<512x128xf32, #tpu.memory_space<vmem>>, vector<512x128xf32>
    %c0_71 = arith.constant 0 : index
    %c0_72 = arith.constant 0 : index
    %62 = vector.load %arg4[%c0_71, %c0_72] : memref<128x128xf32, #tpu.memory_space<vmem>>, vector<128x128xf32>
    %cst_73 = arith.constant dense<0.000000e+00> : vector<512x128xf32>
    %63 = tpu.matmul %61, %62, %cst_73 {dimension_numbers = #tpu.dot_dimension_numbers<[1], [0], [0], [1], [0, 0, 1, 1], [], []>} : vector<512x128xf32>, vector<128x128xf32>, vector<512x128xf32> -> vector<512x128xf32>
    %cst_74 = arith.constant dense<0.000000e+00> : vector<128xf32>
    %64 = vector.multi_reduction <add>, %63, %cst_74 [0] : vector<512x128xf32> to vector<128xf32>
    %65 = vector.shape_cast %64 : vector<128xf32> to vector<1x128xf32>
    %cst_75 = arith.constant 5.120000e+02 : f32
    %66 = vector.broadcast %cst_75 : f32 to vector<1x128xf32>
    %67 = arith.divf %65, %66 : vector<1x128xf32>
    %68 = vector.broadcast %67 : vector<1x128xf32> to vector<512x128xf32>
    %69 = arith.subf %63, %68 : vector<512x128xf32>
    %70 = arith.mulf %69, %69 : vector<512x128xf32>
    %cst_76 = arith.constant dense<0.000000e+00> : vector<128xf32>
    %71 = vector.multi_reduction <add>, %70, %cst_76 [0] : vector<512x128xf32> to vector<128xf32>
    %72 = vector.shape_cast %71 : vector<128xf32> to vector<1x128xf32>
    %cst_77 = arith.constant 5.120000e+02 : f32
    %73 = vector.broadcast %cst_77 : f32 to vector<1x128xf32>
    %74 = arith.divf %72, %73 : vector<1x128xf32>
    %cst_78 = arith.constant 9.99999974E-6 : f32
    %75 = vector.broadcast %cst_78 : f32 to vector<1x128xf32>
    %76 = arith.addf %74, %75 : vector<1x128xf32>
    %77 = math.rsqrt %76 : vector<1x128xf32>
    %78 = vector.broadcast %77 : vector<1x128xf32> to vector<512x128xf32>
    %79 = arith.mulf %69, %78 : vector<512x128xf32>
    %c0_79 = arith.constant 0 : index
    %c0_80 = arith.constant 0 : index
    %80 = vector.load %arg5[%c0_79, %c0_80] : memref<1x128xf32, #tpu.memory_space<vmem>>, vector<1x128xf32>
    %81 = vector.broadcast %80 : vector<1x128xf32> to vector<512x128xf32>
    %82 = arith.mulf %79, %81 : vector<512x128xf32>
    %c0_81 = arith.constant 0 : index
    %c0_82 = arith.constant 0 : index
    %83 = vector.load %arg6[%c0_81, %c0_82] : memref<1x128xf32, #tpu.memory_space<vmem>>, vector<1x128xf32>
    %84 = vector.broadcast %83 : vector<1x128xf32> to vector<512x128xf32>
    %85 = arith.addf %82, %84 : vector<512x128xf32>
    %cst_83 = arith.constant 0.000000e+00 : f32
    %86 = vector.broadcast %cst_83 : f32 to vector<512x128xf32>
    %87 = arith.maximumf %85, %86 : vector<512x128xf32>
    %c0_84 = arith.constant 0 : index
    %c0_85 = arith.constant 0 : index
    %88 = vector.load %arg7[%c0_84, %c0_85] : memref<128x128xf32, #tpu.memory_space<vmem>>, vector<128x128xf32>
    %cst_86 = arith.constant dense<0.000000e+00> : vector<512x128xf32>
    %89 = tpu.matmul %87, %88, %cst_86 {dimension_numbers = #tpu.dot_dimension_numbers<[1], [0], [0], [1], [0, 0, 1, 1], [], []>} : vector<512x128xf32>, vector<128x128xf32>, vector<512x128xf32> -> vector<512x128xf32>
    %cst_87 = arith.constant dense<0.000000e+00> : vector<128xf32>
    %90 = vector.multi_reduction <add>, %89, %cst_87 [0] : vector<512x128xf32> to vector<128xf32>
    %91 = vector.shape_cast %90 : vector<128xf32> to vector<1x128xf32>
    %cst_88 = arith.constant 5.120000e+02 : f32
    %92 = vector.broadcast %cst_88 : f32 to vector<1x128xf32>
    %93 = arith.divf %91, %92 : vector<1x128xf32>
    %94 = vector.broadcast %93 : vector<1x128xf32> to vector<512x128xf32>
    %95 = arith.subf %89, %94 : vector<512x128xf32>
    %96 = arith.mulf %95, %95 : vector<512x128xf32>
    %cst_89 = arith.constant dense<0.000000e+00> : vector<128xf32>
    %97 = vector.multi_reduction <add>, %96, %cst_89 [0] : vector<512x128xf32> to vector<128xf32>
    %98 = vector.shape_cast %97 : vector<128xf32> to vector<1x128xf32>
    %cst_90 = arith.constant 5.120000e+02 : f32
    %99 = vector.broadcast %cst_90 : f32 to vector<1x128xf32>
    %100 = arith.divf %98, %99 : vector<1x128xf32>
    %cst_91 = arith.constant 9.99999974E-6 : f32
    %101 = vector.broadcast %cst_91 : f32 to vector<1x128xf32>
    %102 = arith.addf %100, %101 : vector<1x128xf32>
    %103 = math.rsqrt %102 : vector<1x128xf32>
    %104 = vector.broadcast %103 : vector<1x128xf32> to vector<512x128xf32>
    %105 = arith.mulf %95, %104 : vector<512x128xf32>
    %c0_92 = arith.constant 0 : index
    %c0_93 = arith.constant 0 : index
    %106 = vector.load %arg8[%c0_92, %c0_93] : memref<1x128xf32, #tpu.memory_space<vmem>>, vector<1x128xf32>
    %107 = vector.broadcast %106 : vector<1x128xf32> to vector<512x128xf32>
    %108 = arith.mulf %105, %107 : vector<512x128xf32>
    %c0_94 = arith.constant 0 : index
    %c0_95 = arith.constant 0 : index
    %109 = vector.load %arg9[%c0_94, %c0_95] : memref<1x128xf32, #tpu.memory_space<vmem>>, vector<1x128xf32>
    %110 = vector.broadcast %109 : vector<1x128xf32> to vector<512x128xf32>
    %111 = arith.addf %108, %110 : vector<512x128xf32>
    %c0_96 = arith.constant 0 : index
    %c0_97 = arith.constant 0 : index
    %112 = vector.load %arg0[%c0_96, %c0_97] : memref<512x128xf32, #tpu.memory_space<vmem>>, vector<512x128xf32>
    %c0_98 = arith.constant 0 : index
    %c0_99 = arith.constant 0 : index
    %113 = vector.load %arg10[%c0_98, %c0_99] : memref<1x128xf32, #tpu.memory_space<vmem>>, vector<1x128xf32>
    %114 = vector.broadcast %113 : vector<1x128xf32> to vector<512x128xf32>
    %115 = arith.mulf %112, %114 : vector<512x128xf32>
    %cst_100 = arith.constant dense<0.000000e+00> : vector<512xf32>
    %116 = vector.multi_reduction <add>, %115, %cst_100 [1] : vector<512x128xf32> to vector<512xf32>
    %117 = vector.shape_cast %116 : vector<512xf32> to vector<512x1xf32>
    %cst_101 = arith.constant 0.000000e+00 : f32
    %118 = vector.broadcast %cst_101 : f32 to vector<512x1xf32>
    %119 = arith.subf %118, %117 : vector<512x1xf32>
    %120 = math.exp %119 : vector<512x1xf32>
    %cst_102 = arith.constant 1.000000e+00 : f32
    %121 = vector.broadcast %cst_102 : f32 to vector<512x1xf32>
    %122 = arith.addf %121, %120 : vector<512x1xf32>
    %cst_103 = arith.constant 1.000000e+00 : f32
    %123 = vector.broadcast %cst_103 : f32 to vector<512x1xf32>
    %124 = arith.divf %123, %122 : vector<512x1xf32>
    %125 = vector.shape_cast %124 : vector<512x1xf32> to vector<2x256x1xf32>
    %cst_104 = arith.constant dense<0.000000e+00> : vector<2x1xf32>
    %126 = vector.multi_reduction <add>, %125, %cst_104 [1] : vector<2x256x1xf32> to vector<2x1xf32>
    %127 = vector.shape_cast %126 : vector<2x1xf32> to vector<2x1x1xf32>
    %cst_105 = arith.constant 2.560000e+02 : f32
    %128 = vector.broadcast %cst_105 : f32 to vector<2x1x1xf32>
    %129 = arith.divf %127, %128 : vector<2x1x1xf32>
    %130 = arith.mulf %125, %125 : vector<2x256x1xf32>
    %131 = vector.broadcast %129 : vector<2x1x1xf32> to vector<2x256x1xf32>
    %132 = arith.subf %130, %131 : vector<2x256x1xf32>
    %cst_106 = arith.constant 0.000000e+00 : f32
    %133 = vector.broadcast %cst_106 : f32 to vector<2x256x1xf32>
    %134 = arith.cmpf ogt, %132, %133 : vector<2x256x1xf32>
    %cst_107 = arith.constant 1.000000e+00 : f32
    %cst_108 = arith.constant 0.000000e+00 : f32
    %135 = vector.broadcast %cst_107 : f32 to vector<2x256x1xf32>
    %136 = vector.broadcast %cst_108 : f32 to vector<2x256x1xf32>
    %137 = arith.select %134, %135, %136 : vector<2x256x1xi1>, vector<2x256x1xf32>
    %138 = vector.shape_cast %137 : vector<2x256x1xf32> to vector<512x1xf32>
    %c0_109 = arith.constant 0 : index
    %c0_110 = arith.constant 0 : index
    %139 = vector.load %arg0[%c0_109, %c0_110] : memref<512x128xf32, #tpu.memory_space<vmem>>, vector<512x128xf32>
    %140 = vector.broadcast %138 : vector<512x1xf32> to vector<512x128xf32>
    %141 = arith.mulf %139, %140 : vector<512x128xf32>
    %142 = arith.addf %111, %141 : vector<512x128xf32>
    %cst_111 = arith.constant 0.000000e+00 : f32
    %143 = vector.broadcast %cst_111 : f32 to vector<512x128xf32>
    %144 = arith.maximumf %142, %143 : vector<512x128xf32>
    %c0_112 = arith.constant 0 : index
    %c0_113 = arith.constant 0 : index
    %145 = vector.load %arg11[%c0_112, %c0_113] : memref<512x128xf32, #tpu.memory_space<vmem>>, vector<512x128xf32>
    tpu.vector_store %arg11[%c0_112, %c0_113], %144 {strides = array<i32>} : memref<512x128xf32, #tpu.memory_space<vmem>>, vector<512x128xf32>,
    return
  }
}

</mosaic_0001>

<llo_original>
// kernel: tpu_custom_call.1
$region0: #{tpu_custom_call.1}
  #allocation0 [shape = 'u32[]', space=smem, size = 0x4, offset = 0x4, fixed_abs, tag = 'smem constant byte address 0x4 - core index']
  #allocation1 [shape = 'u32[144,128]{1,0:T(1,128)}', space=vmem, size = 0x12000, scoped, tag = 'internal scratch']
  #allocation2 [shape = 'f32[2,18,24,4]{3,2,1,0:T(8,128)}', space=vmem, size = 0x6c000, scoped, tag = 'scratch operand']
  #allocation3 [shape = 'f32[512,128]{1,0:T(8,128)}', space=vmem, size = 0x40000, scoped, tag = 'scratch operand']
  %s0 = inlined_call_operand.hbm [shape: f32[512,128], index: 0, kind: input, shape index: {}]
  %s1 = inlined_call_operand.hbm [shape: f32[128,128], index: 1, kind: input, shape index: {}]
  %s2 = inlined_call_operand.vmem [shape: f32[1,128], index: 2, kind: input, shape index: {}]
  %s3 = inlined_call_operand.vmem [shape: f32[1,128], index: 3, kind: input, shape index: {}]
  %s4 = inlined_call_operand.hbm [shape: f32[128,128], index: 4, kind: input, shape index: {}]
  %s5 = inlined_call_operand.vmem [shape: f32[1,128], index: 5, kind: input, shape index: {}]
  %s6 = inlined_call_operand.vmem [shape: f32[1,128], index: 6, kind: input, shape index: {}]
  %s7 = inlined_call_operand.hbm [shape: f32[128,128], index: 7, kind: input, shape index: {}]
  %s8 = inlined_call_operand.vmem [shape: f32[1,128], index: 8, kind: input, shape index: {}]
  %s9 = inlined_call_operand.vmem [shape: f32[1,128], index: 9, kind: input, shape index: {}]
  %s10 = inlined_call_operand.vmem [shape: f32[1,128], index: 10, kind: input, shape index: {}]
  %s11 = inlined_call_operand.hbm [shape: f32[512,128], index: 11, kind: output, shape index: {}]
  %s12 = sld [smem:[#allocation0]]
  $region70: #{tpu_custom_call.1} parent=0
    _
  %s14 = ssub.s32 1, %s12
  %s15 = scalar_select 0, %s14, %s12
  $region1: #{tpu_custom_call.1} parent=0
    #allocation4 [shape = 'u8[262144]{0}', space=vmem, size = 0x40000, scoped, tag = 'input window, operand 0, single buffered']
    #allocation5 [shape = 's32[1]{0}', space=sflag, size = 0x4, scoped, tag = 'scoped memory for tpu_custom_call.1']
    #allocation6 [shape = 's32[1]{0}', space=sflag, size = 0x4, scoped, tag = 'scoped memory for tpu_custom_call.1']
    #allocation7 [shape = 'u8[65536]{0}', space=vmem, size = 0x10000, scoped, tag = 'input window, operand 1, single buffered']
    #allocation8 [shape = 's32[1]{0}', space=sflag, size = 0x4, scoped, tag = 'scoped memory for tpu_custom_call.1']
    #allocation9 [shape = 'u8[65536]{0}', space=vmem, size = 0x10000, scoped, tag = 'input window, operand 4, single buffered']
    #allocation10 [shape = 'u8[65536]{0}', space=vmem, size = 0x10000, scoped, tag = 'input window, operand 7, single buffered']
    #allocation11 [shape = 's32[1]{0}', space=sflag, size = 0x4, scoped, tag = 'scoped memory for tpu_custom_call.1']
    #allocation12 [shape = 'u8[262144]{0}', space=vmem, size = 0x40000, scoped, tag = 'output window, operand 0, single buffered']
    %16 = vsyncpa [#allocation5], 0
    %17 = vsyncpa [#allocation8], 0
    %18 = vsyncpa [#allocation11], 0
    %19 = vsyncpa [#allocation6], 0
    // Predicated region
    $region2: #{tpu_custom_call.1} parent=1 // pred_check
      _
    $region3: #{tpu_custom_call.1} parent=1 // pred_check_branch
      %21 = sbr.rel (0) target = $region5
    $region4: #{tpu_custom_call.1} parent=1 // pred_region
      %s23 = ssub.s32 8192, 8192
      %24 = vsyncadd [#allocation5], %s23
      %s25 = sshll.u32 [#allocation4], 4
      %s26 = int_to_ptr.vmem [resolvable:$true] %s25
      %31 = dma.hbm_to_vmem [thread:$0]  %s0, 8192, %s26, [#allocation5], 128, 128, 8
    $region5: #{tpu_custom_call.1} parent=1 // pred_fallthru
      _
    // Predicated region
    $region6: #{tpu_custom_call.1} parent=1 // pred_check
      _
    $region7: #{tpu_custom_call.1} parent=1 // pred_check_branch
      %33 = sbr.rel (0) target = $region9
    $region8: #{tpu_custom_call.1} parent=1 // pred_region
      %s35 = ssub.s32 2048, 2048
      %36 = vsyncadd [#allocation8], %s35
      %s37 = sshll.u32 [#allocation7], 4
      %s38 = int_to_ptr.vmem [resolvable:$true] %s37
      %43 = dma.hbm_to_vmem [thread:$0]  %s1, 2048, %s38, [#allocation8], 128, 128, 8
    $region9: #{tpu_custom_call.1} parent=1 // pred_fallthru
      _
    // Predicated region
    $region10: #{tpu_custom_call.1} parent=1 // pred_check
      _
    $region11: #{tpu_custom_call.1} parent=1 // pred_check_branch
      %45 = sbr.rel (0) target = $region13
    $region12: #{tpu_custom_call.1} parent=1 // pred_region
      _
    $region13: #{tpu_custom_call.1} parent=1 // pred_fallthru
      _
    // Predicated region
    $region14: #{tpu_custom_call.1} parent=1 // pred_check
      _
    $region15: #{tpu_custom_call.1} parent=1 // pred_check_branch
      %47 = sbr.rel (0) target = $region17
    $region16: #{tpu_custom_call.1} parent=1 // pred_region
      _
    $region17: #{tpu_custom_call.1} parent=1 // pred_fallthru
      _
    // Predicated region
    $region18: #{tpu_custom_call.1} parent=1 // pred_check
      _
    $region19: #{tpu_custom_call.1} parent=1 // pred_check_branch
      %49 = sbr.rel (0) target = $region21
    $region20: #{tpu_custom_call.1} parent=1 // pred_region
      %s51 = ssub.s32 2048, 2048
      %52 = vsyncadd [#allocation8], %s51
      %s53 = sshll.u32 [#allocation9], 4
      %s54 = int_to_ptr.vmem [resolvable:$true] %s53
      %59 = dma.hbm_to_vmem [thread:$0]  %s4, 2048, %s54, [#allocation8], 128, 128, 8
    $region21: #{tpu_custom_call.1} parent=1 // pred_fallthru
      _
    // Predicated region
    $region22: #{tpu_custom_call.1} parent=1 // pred_check
      _
    $region23: #{tpu_custom_call.1} parent=1 // pred_check_branch
      %61 = sbr.rel (0) target = $region25
    $region24: #{tpu_custom_call.1} parent=1 // pred_region
      _
    $region25: #{tpu_custom_call.1} parent=1 // pred_fallthru
      _
    // Predicated region
    $region26: #{tpu_custom_call.1} parent=1 // pred_check
      _
    $region27: #{tpu_custom_call.1} parent=1 // pred_check_branch
      %63 = sbr.rel (0) target = $region29
    $region28: #{tpu_custom_call.1} parent=1 // pred_region
      _
    $region29: #{tpu_custom_call.1} parent=1 // pred_fallthru
      _
    // Predicated region
    $region30: #{tpu_custom_call.1} parent=1 // pred_check
      _
    $region31: #{tpu_custom_call.1} parent=1 // pred_check_branch
      %65 = sbr.rel (0) target = $region33
    $region32: #{tpu_custom_call.1} parent=1 // pred_region
      %s67 = ssub.s32 2048, 2048
      %68 = vsyncadd [#allocation11], %s67
      %s69 = sshll.u32 [#allocation10], 4
      %s70 = int_to_ptr.vmem [resolvable:$true] %s69
      %75 = dma.hbm_to_vmem [thread:$0]  %s7, 2048, %s70, [#allocation11], 128, 128, 8
    $region33: #{tpu_custom_call.1} parent=1 // pred_fallthru
      _
    // Predicated region
    $region34: #{tpu_custom_call.1} parent=1 // pred_check
      _
    $region35: #{tpu_custom_call.1} parent=1 // pred_check_branch
      %77 = sbr.rel (0) target = $region37
    $region36: #{tpu_custom_call.1} parent=1 // pred_region
      _
    $region37: #{tpu_custom_call.1} parent=1 // pred_fallthru
      _
    // Predicated region
    $region38: #{tpu_custom_call.1} parent=1 // pred_check
      _
    $region39: #{tpu_custom_call.1} parent=1 // pred_check_branch
      %79 = sbr.rel (0) target = $region41
    $region40: #{tpu_custom_call.1} parent=1 // pred_region
      _
    $region41: #{tpu_custom_call.1} parent=1 // pred_fallthru
      _
    // Predicated region
    $region42: #{tpu_custom_call.1} parent=1 // pred_check
      _
    $region43: #{tpu_custom_call.1} parent=1 // pred_check_branch
      %81 = sbr.rel (0) target = $region45
    $region44: #{tpu_custom_call.1} parent=1 // pred_region
      _
    $region45: #{tpu_custom_call.1} parent=1 // pred_fallthru
      _
    // Predicated region
    $region46: #{tpu_custom_call.1} parent=1 // pred_check
      _
    $region47: #{tpu_custom_call.1} parent=1 // pred_check_branch
      %83 = sbr.rel (0) target = $region49
    $region48: #{tpu_custom_call.1} parent=1 // pred_region
      %84 = dma.done [#allocation5], 8192
    $region49: #{tpu_custom_call.1} parent=1 // pred_fallthru
      _
    // Predicated region
    $region50: #{tpu_custom_call.1} parent=1 // pred_check
      _
    $region51: #{tpu_custom_call.1} parent=1 // pred_check_branch
      %86 = sbr.rel (0) target = $region53
    $region52: #{tpu_custom_call.1} parent=1 // pred_region
      %87 = dma.done [#allocation8], 2048
    $region53: #{tpu_custom_call.1} parent=1 // pred_fallthru
      _
    // Predicated region
    $region54: #{tpu_custom_call.1} parent=1 // pred_check
      _
    $region55: #{tpu_custom_call.1} parent=1 // pred_check_branch
      %89 = sbr.rel (0) target = $region57
    $region56: #{tpu_custom_call.1} parent=1 // pred_region
      %90 = dma.done [#allocation8], 2048
    $region57: #{tpu_custom_call.1} parent=1 // pred_fallthru
      _
    // Predicated region
    $region58: #{tpu_custom_call.1} parent=1 // pred_check
      _
    $region59: #{tpu_custom_call.1} parent=1 // pred_check_branch
      %92 = sbr.rel (0) target = $region61
    $region60: #{tpu_custom_call.1} parent=1 // pred_region
      %93 = dma.done [#allocation11], 2048
    $region61: #{tpu_custom_call.1} parent=1 // pred_fallthru
      _
    %v94 = vld [vmem:[#allocation4] sm:$0xff]
    %v95 = vld [vmem:[#allocation4 + $0x8] sm:$0xff]
    %v96 = vld [vmem:[#allocation4 + $0x10] sm:$0xff]
    %v97 = vld [vmem:[#allocation4 + $0x18] sm:$0xff]
    %v98 = vld [vmem:[#allocation4 + $0x20] sm:$0xff]
    %v99 = vld [vmem:[#allocation4 + $0x28] sm:$0xff]
    %v100 = vld [vmem:[#allocation4 + $0x30] sm:$0xff]
    %v101 = vld [vmem:[#allocation4 + $0x38] sm:$0xff]
    %v102 = vld [vmem:[#allocation4 + $0x40] sm:$0xff]
    %v103 = vld [vmem:[#allocation4 + $0x48] sm:$0xff]
    %v104 = vld [vmem:[#allocation4 + $0x50] sm:$0xff]
    %v105 = vld [vmem:[#allocation4 + $0x58] sm:$0xff]
    %v106 = vld [vmem:[#allocation4 + $0x60] sm:$0xff]
    %v107 = vld [vmem:[#allocation4 + $0x68] sm:$0xff]
    %v108 = vld [vmem:[#allocation4 + $0x70] sm:$0xff]
    %v109 = vld [vmem:[#allocation4 + $0x78] sm:$0xff]
    %v110 = vld [vmem:[#allocation4 + $0x80] sm:$0xff]
    %v111 = vld [vmem:[#allocation4 + $0x88] sm:$0xff]
    %v112 = vld [vmem:[#allocation4 + $0x90] sm:$0xff]
    %v113 = vld [vmem:[#allocation4 + $0x98] sm:$0xff]
    %v114 = vld [vmem:[#allocation4 + $0xa0] sm:$0xff]
    %v115 = vld [vmem:[#allocation4 + $0xa8] sm:$0xff]
    %v116 = vld [vmem:[#allocation4 + $0xb0] sm:$0xff]
    %v117 = vld [vmem:[#allocation4 + $0xb8] sm:$0xff]
    %v118 = vld [vmem:[#allocation4 + $0xc0] sm:$0xff]
    %v119 = vld [vmem:[#allocation4 + $0xc8] sm:$0xff]
    %v120 = vld [vmem:[#allocation4 + $0xd0] sm:$0xff]
    %v121 = vld [vmem:[#allocation4 + $0xd8] sm:$0xff]
    %v122 = vld [vmem:[#allocation4 + $0xe0] sm:$0xff]
    %v123 = vld [vmem:[#allocation4 + $0xe8] sm:$0xff]
    %v124 = vld [vmem:[#allocation4 + $0xf0] sm:$0xff]
    %v125 = vld [vmem:[#allocation4 + $0xf8] sm:$0xff]
    %v126 = vld [vmem:[#allocation4 + $0x100] sm:$0xff]
    %v127 = vld [vmem:[#allocation4 + $0x108] sm:$0xff]
    %v128 = vld [vmem:[#allocation4 + $0x110] sm:$0xff]
    %v129 = vld [vmem:[#allocation4 + $0x118] sm:$0xff]
    %v130 = vld [vmem:[#allocation4 + $0x120] sm:$0xff]
    %v131 = vld [vmem:[#allocation4 + $0x128] sm:$0xff]
    %v132 = vld [vmem:[#allocation4 + $0x130] sm:$0xff]
    %v133 = vld [vmem:[#allocation4 + $0x138] sm:$0xff]
    %v134 = vld [vmem:[#allocation4 + $0x140] sm:$0xff]
    %v135 = vld [vmem:[#allocation4 + $0x148] sm:$0xff]
    %v136 = vld [vmem:[#allocation4 + $0x150] sm:$0xff]
    %v137 = vld [vmem:[#allocation4 + $0x158] sm:$0xff]
    %v138 = vld [vmem:[#allocation4 + $0x160] sm:$0xff]
    %v139 = vld [vmem:[#allocation4 + $0x168] sm:$0xff]
    %v140 = vld [vmem:[#allocation4 + $0x170] sm:$0xff]
    %v141 = vld [vmem:[#allocation4 + $0x178] sm:$0xff]
    %v142 = vld [vmem:[#allocation4 + $0x180] sm:$0xff]
    %v143 = vld [vmem:[#allocation4 + $0x188] sm:$0xff]
    %v144 = vld [vmem:[#allocation4 + $0x190] sm:$0xff]
    %v145 = vld [vmem:[#allocation4 + $0x198] sm:$0xff]
    %v146 = vld [vmem:[#allocation4 + $0x1a0] sm:$0xff]
    %v147 = vld [vmem:[#allocation4 + $0x1a8] sm:$0xff]
    %v148 = vld [vmem:[#allocation4 + $0x1b0] sm:$0xff]
    %v149 = vld [vmem:[#allocation4 + $0x1b8] sm:$0xff]
    %v150 = vld [vmem:[#allocation4 + $0x1c0] sm:$0xff]
    %v151 = vld [vmem:[#allocation4 + $0x1c8] sm:$0xff]
    %v152 = vld [vmem:[#allocation4 + $0x1d0] sm:$0xff]
    %v153 = vld [vmem:[#allocation4 + $0x1d8] sm:$0xff]
    %v154 = vld [vmem:[#allocation4 + $0x1e0] sm:$0xff]
    %v155 = vld [vmem:[#allocation4 + $0x1e8] sm:$0xff]
    %v156 = vld [vmem:[#allocation4 + $0x1f0] sm:$0xff]
    %v157 = vld [vmem:[#allocation4 + $0x1f8] sm:$0xff]
    %v158 = vld [vmem:[#allocation7] sm:$0xff]
    %v159 = vld [vmem:[#allocation7 + $0x8] sm:$0xff]
    %v160 = vld [vmem:[#allocation7 + $0x10] sm:$0xff]
    %v161 = vld [vmem:[#allocation7 + $0x18] sm:$0xff]
    %v162 = vld [vmem:[#allocation7 + $0x20] sm:$0xff]
    %v163 = vld [vmem:[#allocation7 + $0x28] sm:$0xff]
    %v164 = vld [vmem:[#allocation7 + $0x30] sm:$0xff]
    %v165 = vld [vmem:[#allocation7 + $0x38] sm:$0xff]
    %v166 = vld [vmem:[#allocation7 + $0x40] sm:$0xff]
    %v167 = vld [vmem:[#allocation7 + $0x48] sm:$0xff]
    %v168 = vld [vmem:[#allocation7 + $0x50] sm:$0xff]
    %v169 = vld [vmem:[#allocation7 + $0x58] sm:$0xff]
    %v170 = vld [vmem:[#allocation7 + $0x60] sm:$0xff]
    %v171 = vld [vmem:[#allocation7 + $0x68] sm:$0xff]
    %v172 = vld [vmem:[#allocation7 + $0x70] sm:$0xff]
    %v173 = vld [vmem:[#allocation7 + $0x78] sm:$0xff]
    %174 = vmatprep.subr.mxu0 0.0
    %175 = vmatpush1.msra.mxu0 %v158
    %176 = vmatprep.subr.mxu0 0.0
    %177 = vmatpush1.msra.mxu0 %v159
    %178 = vmatprep.subr.mxu0 0.0
    %179 = vmatpush1.msra.mxu0 %v160
    %180 = vmatprep.subr.mxu0 0.0
    %181 = vmatpush1.msra.mxu0 %v161
    %182 = vmatprep.subr.mxu0 0.0
    %183 = vmatpush1.msra.mxu0 %v162
    %184 = vmatprep.subr.mxu0 0.0
    %185 = vmatpush1.msra.mxu0 %v163
    %186 = vmatprep.subr.mxu0 0.0
    %187 = vmatpush1.msra.mxu0 %v164
    %188 = vmatprep.subr.mxu0 0.0
    %189 = vmatpush1.msra.mxu0 %v165
    %190 = vmatprep.subr.mxu0 0.0
    %191 = vmatpush1.msra.mxu0 %v166
    %192 = vmatprep.subr.mxu0 0.0
    %193 = vmatpush1.msra.mxu0 %v167
    %194 = vmatprep.subr.mxu0 0.0
    %195 = vmatpush1.msra.mxu0 %v168
    %196 = vmatprep.subr.mxu0 0.0
    %197 = vmatpush1.msra.mxu0 %v169
    %198 = vmatprep.subr.mxu0 0.0
    %199 = vmatpush1.msra.mxu0 %v170
    %200 = vmatprep.subr.mxu0 0.0
    %201 = vmatpush1.msra.mxu0 %v171
    %202 = vmatprep.subr.mxu0 0.0
    %203 = vmatpush1.msra.mxu0 %v172
    %204 = vmatprep.subr.mxu0 0.0
    %205 = vmatpush1.msra.mxu0 %v173
    %206 = vmatprep.subr.mxu0 0.0
    %207 = vmatpush1.msra.mxu0 0.0
    %208 = vmatprep.subr.mxu0 0.0
    %209 = vmatpush1.msra.mxu0 0.0
    %210 = vmatprep.subr.mxu0 0.0
    %211 = vmatpush1.msra.mxu0 0.0
    %212 = vmatprep.subr.mxu0 0.0
    %213 = vmatpush1.msra.mxu0 0.0
    %214 = vmatprep.subr.mxu0 0.0
    %215 = vmatpush1.msra.mxu0 0.0
    %216 = vmatprep.subr.mxu0 0.0
    %217 = vmatpush1.msra.mxu0 0.0
    %218 = vmatprep.subr.mxu0 0.0
    %219 = vmatpush1.msra.mxu0 0.0
    %220 = vmatprep.subr.mxu0 0.0
    %221 = vmatpush1.msra.mxu0 0.0
    %222 = vmatprep.subr.mxu0 0.0
    %223 = vmatpush1.msra.mxu0 0.0
    %224 = vmatprep.subr.mxu0 0.0
    %225 = vmatpush1.msra.mxu0 0.0
    %226 = vmatprep.subr.mxu0 0.0
    %227 = vmatpush1.msra.mxu0 0.0
    %228 = vmatprep.subr.mxu0 0.0
    %229 = vmatpush1.msra.mxu0 0.0
    %230 = vmatprep.subr.mxu0 0.0
    %231 = vmatpush1.msra.mxu0 0.0
    %232 = vmatprep.subr.mxu0 0.0
    %233 = vmatpush1.msra.mxu0 0.0
    %234 = vmatprep.subr.mxu0 0.0
    %235 = vmatpush1.msra.mxu0 0.0
    %236 = vmatprep.subr.mxu0 0.0
    %237 = vmatpush1.msra.mxu0 0.0
    %238 = vmatprep.mubr.f32.mxu0 0.0
    %239 = vmatmul.mubr.f32.gmra.mrb[0].mxu0 %v94
    %v240 = vpop.f32.mrb[0].mxu0
    %v241 = vadd.f32 0.0, %v240
    %v242 = vpop.f32.mrb[0].mxu0
    %243 = vmatprep.mubr.f32.mxu0 0.0
    %244 = vmatmul.mubr.f32.gmra.mrb[0].mxu0 %v95
    %v245 = vpop.f32.mrb[0].mxu0
    %v246 = vadd.f32 0.0, %v245
    %v247 = vpop.f32.mrb[0].mxu0
    %248 = vmatprep.mubr.f32.mxu0 0.0
    %249 = vmatmul.mubr.f32.gmra.mrb[0].mxu0 %v96
    %v250 = vpop.f32.mrb[0].mxu0
    %v251 = vadd.f32 0.0, %v250
    %v252 = vpop.f32.mrb[0].mxu0
    %253 = vmatprep.mubr.f32.mxu0 0.0
    %254 = vmatmul.mubr.f32.gmra.mrb[0].mxu0 %v97
    %v255 = vpop.f32.mrb[0].mxu0
    %v256 = vadd.f32 0.0, %v255
    %v257 = vpop.f32.mrb[0].mxu0
    %258 = vmatprep.mubr.f32.mxu0 0.0
    %259 = vmatmul.mubr.f32.gmra.mrb[0].mxu0 %v98
    %v260 = vpop.f32.mrb[0].mxu0
    %v261 = vadd.f32 0.0, %v260
    %v262 = vpop.f32.mrb[0].mxu0
    %263 = vmatprep.mubr.f32.mxu0 0.0
    %264 = vmatmul.mubr.f32.gmra.mrb[0].mxu0 %v99
    %v265 = vpop.f32.mrb[0].mxu0
    %v266 = vadd.f32 0.0, %v265
    %v267 = vpop.f32.mrb[0].mxu0
    %268 = vmatprep.mubr.f32.mxu0 0.0
    %269 = vmatmul.mubr.f32.gmra.mrb[0].mxu0 %v100
    %v270 = vpop.f32.mrb[0].mxu0
    %v271 = vadd.f32 0.0, %v270
    %v272 = vpop.f32.mrb[0].mxu0
    %273 = vmatprep.mubr.f32.mxu0 0.0
    %274 = vmatmul.mubr.f32.gmra.mrb[0].mxu0 %v101
    %v275 = vpop.f32.mrb[0].mxu0
    %v276 = vadd.f32 0.0, %v275
    %v277 = vpop.f32.mrb[0].mxu0
    %278 = vmatprep.mubr.f32.mxu0 0.0
    %279 = vmatmul.mubr.f32.gmra.mrb[0].mxu0 %v102
    %v280 = vpop.f32.mrb[0].mxu0
    %v281 = vadd.f32 0.0, %v280
    %v282 = vpop.f32.mrb[0].mxu0
    %283 = vmatprep.mubr.f32.mxu0 0.0
    %284 = vmatmul.mubr.f32.gmra.mrb[0].mxu0 %v103
    %v285 = vpop.f32.mrb[0].mxu0
    %v286 = vadd.f32 0.0, %v285
    %v287 = vpop.f32.mrb[0].mxu0
    %288 = vmatprep.mubr.f32.mxu0 0.0
    %289 = vmatmul.mubr.f32.gmra.mrb[0].mxu0 %v104
    %v290 = vpop.f32.mrb[0].mxu0
    %v291 = vadd.f32 0.0, %v290
    %v292 = vpop.f32.mrb[0].mxu0
    %293 = vmatprep.mubr.f32.mxu0 0.0
    %294 = vmatmul.mubr.f32.gmra.mrb[0].mxu0 %v105
    %v295 = vpop.f32.mrb[0].mxu0
    %v296 = vadd.f32 0.0, %v295
    %v297 = vpop.f32.mrb[0].mxu0
    %298 = vmatprep.mubr.f32.mxu0 0.0
    %299 = vmatmul.mubr.f32.gmra.mrb[0].mxu0 %v106
    %v300 = vpop.f32.mrb[0].mxu0
    %v301 = vadd.f32 0.0, %v300
    %v302 = vpop.f32.mrb[0].mxu0
    %303 = vmatprep.mubr.f32.mxu0 0.0
    %304 = vmatmul.mubr.f32.gmra.mrb[0].mxu0 %v107
    %v305 = vpop.f32.mrb[0].mxu0
    %v306 = vadd.f32 0.0, %v305
    %v307 = vpop.f32.mrb[0].mxu0
    %308 = vmatprep.mubr.f32.mxu0 0.0
    %309 = vmatmul.mubr.f32.gmra.mrb[0].mxu0 %v108
    %v310 = vpop.f32.mrb[0].mxu0
    %v311 = vadd.f32 0.0, %v310
    %v312 = vpop.f32.mrb[0].mxu0
    %313 = vmatprep.mubr.f32.mxu0 0.0
    %314 = vmatmul.mubr.f32.gmra.mrb[0].mxu0 %v109
    %v315 = vpop.f32.mrb[0].mxu0
    %v316 = vadd.f32 0.0, %v315
    %v317 = vpop.f32.mrb[0].mxu0
    %318 = vmatprep.mubr.f32.mxu0 0.0
    %319 = vmatmul.mubr.f32.gmra.mrb[0].mxu0 %v110
    %v320 = vpop.f32.mrb[0].mxu0
    %v321 = vadd.f32 0.0, %v320
    %v322 = vpop.f32.mrb[0].mxu0
    %323 = vmatprep.mubr.f32.mxu0 0.0
    %324 = vmatmul.mubr.f32.gmra.mrb[0].mxu0 %v111
    %v325 = vpop.f32.mrb[0].mxu0
    %v326 = vadd.f32 0.0, %v325
    %v327 = vpop.f32.mrb[0].mxu0
    %328 = vmatprep.mubr.f32.mxu0 0.0
    %329 = vmatmul.mubr.f32.gmra.mrb[0].mxu0 %v112
    %v330 = vpop.f32.mrb[0].mxu0
    %v331 = vadd.f32 0.0, %v330
    %v332 = vpop.f32.mrb[0].mxu0
    %333 = vmatprep.mubr.f32.mxu0 0.0
    %334 = vmatmul.mubr.f32.gmra.mrb[0].mxu0 %v113
    %v335 = vpop.f32.mrb[0].mxu0
    %v336 = vadd.f32 0.0, %v335
    %v337 = vpop.f32.mrb[0].mxu0
    %338 = vmatprep.mubr.f32.mxu0 0.0
    %339 = vmatmul.mubr.f32.gmra.mrb[0].mxu0 %v114
    %v340 = vpop.f32.mrb[0].mxu0
    %v341 = vadd.f32 0.0, %v340
    %v342 = vpop.f32.mrb[0].mxu0
    %343 = vmatprep.mubr.f32.mxu0 0.0
    %344 = vmatmul.mubr.f32.gmra.mrb[0].mxu0 %v115
    %v345 = vpop.f32.mrb[0].mxu0
    %v346 = vadd.f32 0.0, %v345
    %v347 = vpop.f32.mrb[0].mxu0
    %348 = vmatprep.mubr.f32.mxu0 0.0
    %349 = vmatmul.mubr.f32.gmra.mrb[0].mxu0 %v116
    %v350 = vpop.f32.mrb[0].mxu0
    %v351 = vadd.f32 0.0, %v350
    %v352 = vpop.f32.mrb[0].mxu0
    %353 = vmatprep.mubr.f32.mxu0 0.0
    %354 = vmatmul.mubr.f32.gmra.mrb[0].mxu0 %v117
    %v355 = vpop.f32.mrb[0].mxu0
    %v356 = vadd.f32 0.0, %v355
    %v357 = vpop.f32.mrb[0].mxu0
    %358 = vmatprep.mubr.f32.mxu0 0.0
    %359 = vmatmul.mubr.f32.gmra.mrb[0].mxu0 %v118
    %v360 = vpop.f32.mrb[0].mxu0
    %v361 = vadd.f32 0.0, %v360
    %v362 = vpop.f32.mrb[0].mxu0
    %363 = vmatprep.mubr.f32.mxu0 0.0
    %364 = vmatmul.mubr.f32.gmra.mrb[0].mxu0 %v119
    %v365 = vpop.f32.mrb[0].mxu0
    %v366 = vadd.f32 0.0, %v365
    %v367 = vpop.f32.mrb[0].mxu0
    %368 = vmatprep.mubr.f32.mxu0 0.0
    %369 = vmatmul.mubr.f32.gmra.mrb[0].mxu0 %v120
    %v370 = vpop.f32.mrb[0].mxu0
    %v371 = vadd.f32 0.0, %v370
    %v372 = vpop.f32.mrb[0].mxu0
    %373 = vmatprep.mubr.f32.mxu0 0.0
    %374 = vmatmul.mubr.f32.gmra.mrb[0].mxu0 %v121
    %v375 = vpop.f32.mrb[0].mxu0
    %v376 = vadd.f32 0.0, %v375
    %v377 = vpop.f32.mrb[0].mxu0
    %378 = vmatprep.mubr.f32.mxu0 0.0
    %379 = vmatmul.mubr.f32.gmra.mrb[0].mxu0 %v122
    %v380 = vpop.f32.mrb[0].mxu0
    %v381 = vadd.f32 0.0, %v380
    %v382 = vpop.f32.mrb[0].mxu0
    %383 = vmatprep.mubr.f32.mxu0 0.0
    %384 = vmatmul.mubr.f32.gmra.mrb[0].mxu0 %v123
    %v385 = vpop.f32.mrb[0].mxu0
    %v386 = vadd.f32 0.0, %v385
    %v387 = vpop.f32.mrb[0].mxu0
    %388 = vmatprep.mubr.f32.mxu0 0.0
    %389 = vmatmul.mubr.f32.gmra.mrb[0].mxu0 %v124
    %v390 = vpop.f32.mrb[0].mxu0
    %v391 = vadd.f32 0.0, %v390
    %v392 = vpop.f32.mrb[0].mxu0
    %393 = vmatprep.mubr.f32.mxu0 0.0
    %394 = vmatmul.mubr.f32.gmra.mrb[0].mxu0 %v125
    %v395 = vpop.f32.mrb[0].mxu0
    %v396 = vadd.f32 0.0, %v395
    %v397 = vpop.f32.mrb[0].mxu0
    %398 = vmatprep.mubr.f32.mxu0 0.0
    %399 = vmatmul.mubr.f32.gmra.mrb[0].mxu0 %v126
    %v400 = vpop.f32.mrb[0].mxu0
    %v401 = vadd.f32 0.0, %v400
    %v402 = vpop.f32.mrb[0].mxu0
    %403 = vmatprep.mubr.f32.mxu0 0.0
    %404 = vmatmul.mubr.f32.gmra.mrb[0].mxu0 %v127
    %v405 = vpop.f32.mrb[0].mxu0
    %v406 = vadd.f32 0.0, %v405
    %v407 = vpop.f32.mrb[0].mxu0
    %408 = vmatprep.mubr.f32.mxu0 0.0
    %409 = vmatmul.mubr.f32.gmra.mrb[0].mxu0 %v128
    %v410 = vpop.f32.mrb[0].mxu0
    %v411 = vadd.f32 0.0, %v410
    %v412 = vpop.f32.mrb[0].mxu0
    %413 = vmatprep.mubr.f32.mxu0 0.0
    %414 = vmatmul.mubr.f32.gmra.mrb[0].mxu0 %v129
    %v415 = vpop.f32.mrb[0].mxu0
    %v416 = vadd.f32 0.0, %v415
    %v417 = vpop.f32.mrb[0].mxu0
    %418 = vmatprep.mubr.f32.mxu0 0.0
    %419 = vmatmul.mubr.f32.gmra.mrb[0].mxu0 %v130
    %v420 = vpop.f32.mrb[0].mxu0
    %v421 = vadd.f32 0.0, %v420
    %v422 = vpop.f32.mrb[0].mxu0
    %423 = vmatprep.mubr.f32.mxu0 0.0
    %424 = vmatmul.mubr.f32.gmra.mrb[0].mxu0 %v131
    %v425 = vpop.f32.mrb[0].mxu0
    %v426 = vadd.f32 0.0, %v425
    %v427 = vpop.f32.mrb[0].mxu0
    %428 = vmatprep.mubr.f32.mxu0 0.0
    %429 = vmatmul.mubr.f32.gmra.mrb[0].mxu0 %v132
    %v430 = vpop.f32.mrb[0].mxu0
    %v431 = vadd.f32 0.0, %v430
    %v432 = vpop.f32.mrb[0].mxu0
    %433 = vmatprep.mubr.f32.mxu0 0.0
    %434 = vmatmul.mubr.f32.gmra.mrb[0].mxu0 %v133
    %v435 = vpop.f32.mrb[0].mxu0
    %v436 = vadd.f32 0.0, %v435
    %v437 = vpop.f32.mrb[0].mxu0
    %438 = vmatprep.mubr.f32.mxu0 0.0
    %439 = vmatmul.mubr.f32.gmra.mrb[0].mxu0 %v134
    %v440 = vpop.f32.mrb[0].mxu0
    %v441 = vadd.f32 0.0, %v440
    %v442 = vpop.f32.mrb[0].mxu0
    %443 = vmatprep.mubr.f32.mxu0 0.0
    %444 = vmatmul.mubr.f32.gmra.mrb[0].mxu0 %v135
    %v445 = vpop.f32.mrb[0].mxu0
    %v446 = vadd.f32 0.0, %v445
    %v447 = vpop.f32.mrb[0].mxu0
    %448 = vmatprep.mubr.f32.mxu0 0.0
    %449 = vmatmul.mubr.f32.gmra.mrb[0].mxu0 %v136
    %v450 = vpop.f32.mrb[0].mxu0
    %v451 = vadd.f32 0.0, %v450
    %v452 = vpop.f32.mrb[0].mxu0
    %453 = vmatprep.mubr.f32.mxu0 0.0
    %454 = vmatmul.mubr.f32.gmra.mrb[0].mxu0 %v137
    %v455 = vpop.f32.mrb[0].mxu0
    %v456 = vadd.f32 0.0, %v455
    %v457 = vpop.f32.mrb[0].mxu0
    %458 = vmatprep.mubr.f32.mxu0 0.0
    %459 = vmatmul.mubr.f32.gmra.mrb[0].mxu0 %v138
    %v460 = vpop.f32.mrb[0].mxu0
    %v461 = vadd.f32 0.0, %v460
    %v462 = vpop.f32.mrb[0].mxu0
    %463 = vmatprep.mubr.f32.mxu0 0.0
    %464 = vmatmul.mubr.f32.gmra.mrb[0].mxu0 %v139
    %v465 = vpop.f32.mrb[0].mxu0
    %v466 = vadd.f32 0.0, %v465
    %v467 = vpop.f32.mrb[0].mxu0
    %468 = vmatprep.mubr.f32.mxu0 0.0
    %469 = vmatmul.mubr.f32.gmra.mrb[0].mxu0 %v140
    %v470 = vpop.f32.mrb[0].mxu0
    %v471 = vadd.f32 0.0, %v470
    %v472 = vpop.f32.mrb[0].mxu0
    %473 = vmatprep.mubr.f32.mxu0 0.0
    %474 = vmatmul.mubr.f32.gmra.mrb[0].mxu0 %v141
    %v475 = vpop.f32.mrb[0].mxu0
    %v476 = vadd.f32 0.0, %v475
    %v477 = vpop.f32.mrb[0].mxu0
    %478 = vmatprep.mubr.f32.mxu0 0.0
    %479 = vmatmul.mubr.f32.gmra.mrb[0].mxu0 %v142
    %v480 = vpop.f32.mrb[0].mxu0
    %v481 = vadd.f32 0.0, %v480
    %v482 = vpop.f32.mrb[0].mxu0
    %483 = vmatprep.mubr.f32.mxu0 0.0
    %484 = vmatmul.mubr.f32.gmra.mrb[0].mxu0 %v143
    %v485 = vpop.f32.mrb[0].mxu0
    %v486 = vadd.f32 0.0, %v485
    %v487 = vpop.f32.mrb[0].mxu0
    %488 = vmatprep.mubr.f32.mxu0 0.0
    %489 = vmatmul.mubr.f32.gmra.mrb[0].mxu0 %v144
    %v490 = vpop.f32.mrb[0].mxu0
    %v491 = vadd.f32 0.0, %v490
    %v492 = vpop.f32.mrb[0].mxu0
    %493 = vmatprep.mubr.f32.mxu0 0.0
    %494 = vmatmul.mubr.f32.gmra.mrb[0].mxu0 %v145
    %v495 = vpop.f32.mrb[0].mxu0
    %v496 = vadd.f32 0.0, %v495
    %v497 = vpop.f32.mrb[0].mxu0
    %498 = vmatprep.mubr.f32.mxu0 0.0
    %499 = vmatmul.mubr.f32.gmra.mrb[0].mxu0 %v146
    %v500 = vpop.f32.mrb[0].mxu0
    %v501 = vadd.f32 0.0, %v500
    %v502 = vpop.f32.mrb[0].mxu0
    %503 = vmatprep.mubr.f32.mxu0 0.0
    %504 = vmatmul.mubr.f32.gmra.mrb[0].mxu0 %v147
    %v505 = vpop.f32.mrb[0].mxu0
    %v506 = vadd.f32 0.0, %v505
    %v507 = vpop.f32.mrb[0].mxu0
    %508 = vmatprep.mubr.f32.mxu0 0.0
    %509 = vmatmul.mubr.f32.gmra.mrb[0].mxu0 %v148
    %v510 = vpop.f32.mrb[0].mxu0
    %v511 = vadd.f32 0.0, %v510
    %v512 = vpop.f32.mrb[0].mxu0
    %513 = vmatprep.mubr.f32.mxu0 0.0
    %514 = vmatmul.mubr.f32.gmra.mrb[0].mxu0 %v149
    %v515 = vpop.f32.mrb[0].mxu0
    %v516 = vadd.f32 0.0, %v515
    %v517 = vpop.f32.mrb[0].mxu0
    %518 = vmatprep.mubr.f32.mxu0 0.0
    %519 = vmatmul.mubr.f32.gmra.mrb[0].mxu0 %v150
    %v520 = vpop.f32.mrb[0].mxu0
    %v521 = vadd.f32 0.0, %v520
    %v522 = vpop.f32.mrb[0].mxu0
    %523 = vmatprep.mubr.f32.mxu0 0.0
    %524 = vmatmul.mubr.f32.gmra.mrb[0].mxu0 %v151
    %v525 = vpop.f32.mrb[0].mxu0
    %v526 = vadd.f32 0.0, %v525
    %v527 = vpop.f32.mrb[0].mxu0
    %528 = vmatprep.mubr.f32.mxu0 0.0
    %529 = vmatmul.mubr.f32.gmra.mrb[0].mxu0 %v152
    %v530 = vpop.f32.mrb[0].mxu0
    %v531 = vadd.f32 0.0, %v530
    %v532 = vpop.f32.mrb[0].mxu0
    %533 = vmatprep.mubr.f32.mxu0 0.0
    %534 = vmatmul.mubr.f32.gmra.mrb[0].mxu0 %v153
    %v535 = vpop.f32.mrb[0].mxu0
    %v536 = vadd.f32 0.0, %v535
    %v537 = vpop.f32.mrb[0].mxu0
    %538 = vmatprep.mubr.f32.mxu0 0.0
    %539 = vmatmul.mubr.f32.gmra.mrb[0].mxu0 %v154
    %v540 = vpop.f32.mrb[0].mxu0
    %v541 = vadd.f32 0.0, %v540
    %v542 = vpop.f32.mrb[0].mxu0
    %543 = vmatprep.mubr.f32.mxu0 0.0
    %544 = vmatmul.mubr.f32.gmra.mrb[0].mxu0 %v155
    %v545 = vpop.f32.mrb[0].mxu0
    %v546 = vadd.f32 0.0, %v545
    %v547 = vpop.f32.mrb[0].mxu0
    %548 = vmatprep.mubr.f32.mxu0 0.0
    %549 = vmatmul.mubr.f32.gmra.mrb[0].mxu0 %v156
    %v550 = vpop.f32.mrb[0].mxu0
    %v551 = vadd.f32 0.0, %v550
    %v552 = vpop.f32.mrb[0].mxu0
    %553 = vmatprep.mubr.f32.mxu0 0.0
    %554 = vmatmul.mubr.f32.gmra.mrb[0].mxu0 %v157
    %v555 = vpop.f32.mrb[0].mxu0
    %v556 = vadd.f32 0.0, %v555
    %v557 = vpop.f32.mrb[0].mxu0
    %558 = vdwg.mxu0
    %v559 = vadd.f32 %v241, %v246
    %v560 = vadd.f32 %v559, %v251
    %v561 = vadd.f32 %v560, %v256
    %v562 = vadd.f32 %v561, %v261
    %v563 = vadd.f32 %v562, %v266
    %v564 = vadd.f32 %v563, %v271
    %v565 = vadd.f32 %v564, %v276
    %v566 = vadd.f32 %v565, %v281
    %v567 = vadd.f32 %v566, %v286
    %v568 = vadd.f32 %v567, %v291
    %v569 = vadd.f32 %v568, %v296
    %v570 = vadd.f32 %v569, %v301
    %v571 = vadd.f32 %v570, %v306
    %v572 = vadd.f32 %v571, %v311
    %v573 = vadd.f32 %v572, %v316
    %v574 = vadd.f32 %v573, %v321
    %v575 = vadd.f32 %v574, %v326
    %v576 = vadd.f32 %v575, %v331
    %v577 = vadd.f32 %v576, %v336
    %v578 = vadd.f32 %v577, %v341
    %v579 = vadd.f32 %v578, %v346
    %v580 = vadd.f32 %v579, %v351
    %v581 = vadd.f32 %v580, %v356
    %v582 = vadd.f32 %v581, %v361
    %v583 = vadd.f32 %v582, %v366
    %v584 = vadd.f32 %v583, %v371
    %v585 = vadd.f32 %v584, %v376
    %v586 = vadd.f32 %v585, %v381
    %v587 = vadd.f32 %v586, %v386
    %v588 = vadd.f32 %v587, %v391
    %v589 = vadd.f32 %v588, %v396
    %v590 = vadd.f32 %v589, %v401
    %v591 = vadd.f32 %v590, %v406
    %v592 = vadd.f32 %v591, %v411
    %v593 = vadd.f32 %v592, %v416
    %v594 = vadd.f32 %v593, %v421
    %v595 = vadd.f32 %v594, %v426
    %v596 = vadd.f32 %v595, %v431
    %v597 = vadd.f32 %v596, %v436
    %v598 = vadd.f32 %v597, %v441
    %v599 = vadd.f32 %v598, %v446
    %v600 = vadd.f32 %v599, %v451
    %v601 = vadd.f32 %v600, %v456
    %v602 = vadd.f32 %v601, %v461
    %v603 = vadd.f32 %v602, %v466
    %v604 = vadd.f32 %v603, %v471
    %v605 = vadd.f32 %v604, %v476
    %v606 = vadd.f32 %v605, %v481
    %v607 = vadd.f32 %v606, %v486
    %v608 = vadd.f32 %v607, %v491
    %v609 = vadd.f32 %v608, %v496
    %v610 = vadd.f32 %v609, %v501
    %v611 = vadd.f32 %v610, %v506
    %v612 = vadd.f32 %v611, %v511
    %v613 = vadd.f32 %v612, %v516
    %v614 = vadd.f32 %v613, %v521
    %v615 = vadd.f32 %v614, %v526
    %v616 = vadd.f32 %v615, %v531
    %v617 = vadd.f32 %v616, %v536
    %v618 = vadd.f32 %v617, %v541
    %v619 = vadd.f32 %v618, %v546
    %v620 = vadd.f32 %v619, %v551
    %v621 = vadd.f32 %v620, %v556
    %v622 = vrot.slane %v621, 4
    %v623 = vadd.f32 %v621, %v622
    %v624 = vrot.slane %v623, 2
    %v625 = vadd.f32 %v623, %v624
    %v626 = vrot.slane %v625, 1
    %v627 = vadd.f32 %v625, %v626
    %v628 = vrcp.pop 512.0
    %v629 = vmul.f32 %v627, %v628
    %v630 = vsub.f32 %v241, %v629
    %v631 = vsub.f32 %v246, %v629
    %v632 = vsub.f32 %v251, %v629
    %v633 = vsub.f32 %v256, %v629
    %v634 = vsub.f32 %v261, %v629
    %v635 = vsub.f32 %v266, %v629
    %v636 = vsub.f32 %v271, %v629
    %v637 = vsub.f32 %v276, %v629
    %v638 = vsub.f32 %v281, %v629
    %v639 = vsub.f32 %v286, %v629
    %v640 = vsub.f32 %v291, %v629
    %v641 = vsub.f32 %v296, %v629
    %v642 = vsub.f32 %v301, %v629
    %v643 = vsub.f32 %v306, %v629
    %v644 = vsub.f32 %v311, %v629
    %v645 = vsub.f32 %v316, %v629
    %v646 = vsub.f32 %v321, %v629
    %v647 = vsub.f32 %v326, %v629
    %v648 = vsub.f32 %v331, %v629
    %v649 = vsub.f32 %v336, %v629
    %v650 = vsub.f32 %v341, %v629
    %v651 = vsub.f32 %v346, %v629
    %v652 = vsub.f32 %v351, %v629
    %v653 = vsub.f32 %v356, %v629
    %v654 = vsub.f32 %v361, %v629
    %v655 = vsub.f32 %v366, %v629
    %v656 = vsub.f32 %v371, %v629
    %v657 = vsub.f32 %v376, %v629
    %v658 = vsub.f32 %v381, %v629
    %v659 = vsub.f32 %v386, %v629
    %v660 = vsub.f32 %v391, %v629
    %v661 = vsub.f32 %v396, %v629
    %v662 = vsub.f32 %v401, %v629
    %v663 = vsub.f32 %v406, %v629
    %v664 = vsub.f32 %v411, %v629
    %v665 = vsub.f32 %v416, %v629
    %v666 = vsub.f32 %v421, %v629
    %v667 = vsub.f32 %v426, %v629
    %v668 = vsub.f32 %v431, %v629
    %v669 = vsub.f32 %v436, %v629
    %v670 = vsub.f32 %v441, %v629
    %v671 = vsub.f32 %v446, %v629
    %v672 = vsub.f32 %v451, %v629
    %v673 = vsub.f32 %v456, %v629
    %v674 = vsub.f32 %v461, %v629
    %v675 = vsub.f32 %v466, %v629
    %v676 = vsub.f32 %v471, %v629
    %v677 = vsub.f32 %v476, %v629
    %v678 = vsub.f32 %v481, %v629
    %v679 = vsub.f32 %v486, %v629
    %v680 = vsub.f32 %v491, %v629
    %v681 = vsub.f32 %v496, %v629
    %v682 = vsub.f32 %v501, %v629
    %v683 = vsub.f32 %v506, %v629
    %v684 = vsub.f32 %v511, %v629
    %v685 = vsub.f32 %v516, %v629
    %v686 = vsub.f32 %v521, %v629
    %v687 = vsub.f32 %v526, %v629
    %v688 = vsub.f32 %v531, %v629
    %v689 = vsub.f32 %v536, %v629
    %v690 = vsub.f32 %v541, %v629
    %v691 = vsub.f32 %v546, %v629
    %v692 = vsub.f32 %v551, %v629
    %v693 = vsub.f32 %v556, %v629
    %v694 = vmul.f32 %v630, %v630
    %v695 = vmul.f32 %v631, %v631
    %v696 = vmul.f32 %v632, %v632
    %v697 = vmul.f32 %v633, %v633
    %v698 = vmul.f32 %v634, %v634
    %v699 = vmul.f32 %v635, %v635
    %v700 = vmul.f32 %v636, %v636
    %v701 = vmul.f32 %v637, %v637
    %v702 = vmul.f32 %v638, %v638
    %v703 = vmul.f32 %v639, %v639
    %v704 = vmul.f32 %v640, %v640
    %v705 = vmul.f32 %v641, %v641
    %v706 = vmul.f32 %v642, %v642
    %v707 = vmul.f32 %v643, %v643
    %v708 = vmul.f32 %v644, %v644
    %v709 = vmul.f32 %v645, %v645
    %v710 = vmul.f32 %v646, %v646
    %v711 = vmul.f32 %v647, %v647
    %v712 = vmul.f32 %v648, %v648
    %v713 = vmul.f32 %v649, %v649
    %v714 = vmul.f32 %v650, %v650
    %v715 = vmul.f32 %v651, %v651
    %v716 = vmul.f32 %v652, %v652
    %v717 = vmul.f32 %v653, %v653
    %v718 = vmul.f32 %v654, %v654
    %v719 = vmul.f32 %v655, %v655
    %v720 = vmul.f32 %v656, %v656
    %v721 = vmul.f32 %v657, %v657
    %v722 = vmul.f32 %v658, %v658
    %v723 = vmul.f32 %v659, %v659
    %v724 = vmul.f32 %v660, %v660
    %v725 = vmul.f32 %v661, %v661
    %v726 = vmul.f32 %v662, %v662
    %v727 = vmul.f32 %v663, %v663
    %v728 = vmul.f32 %v664, %v664
    %v729 = vmul.f32 %v665, %v665
    %v730 = vmul.f32 %v666, %v666
    %v731 = vmul.f32 %v667, %v667
    %v732 = vmul.f32 %v668, %v668
    %v733 = vmul.f32 %v669, %v669
    %v734 = vmul.f32 %v670, %v670
    %v735 = vmul.f32 %v671, %v671
    %v736 = vmul.f32 %v672, %v672
    %v737 = vmul.f32 %v673, %v673
    %v738 = vmul.f32 %v674, %v674
    %v739 = vmul.f32 %v675, %v675
    %v740 = vmul.f32 %v676, %v676
    %v741 = vmul.f32 %v677, %v677
    %v742 = vmul.f32 %v678, %v678
    %v743 = vmul.f32 %v679, %v679
    %v744 = vmul.f32 %v680, %v680
    %v745 = vmul.f32 %v681, %v681
    %v746 = vmul.f32 %v682, %v682
    %v747 = vmul.f32 %v683, %v683
    %v748 = vmul.f32 %v684, %v684
    %v749 = vmul.f32 %v685, %v685
    %v750 = vmul.f32 %v686, %v686
    %v751 = vmul.f32 %v687, %v687
    %v752 = vmul.f32 %v688, %v688
    %v753 = vmul.f32 %v689, %v689
    %v754 = vmul.f32 %v690, %v690
    %v755 = vmul.f32 %v691, %v691
    %v756 = vmul.f32 %v692, %v692
    %v757 = vmul.f32 %v693, %v693
    %v758 = vadd.f32 %v694, %v695
    %v759 = vadd.f32 %v758, %v696
    %v760 = vadd.f32 %v759, %v697
    %v761 = vadd.f32 %v760, %v698
    %v762 = vadd.f32 %v761, %v699
    %v763 = vadd.f32 %v762, %v700
    %v764 = vadd.f32 %v763, %v701
    %v765 = vadd.f32 %v764, %v702
    %v766 = vadd.f32 %v765, %v703
    %v767 = vadd.f32 %v766, %v704
    %v768 = vadd.f32 %v767, %v705
    %v769 = vadd.f32 %v768, %v706
    %v770 = vadd.f32 %v769, %v707
    %v771 = vadd.f32 %v770, %v708
    %v772 = vadd.f32 %v771, %v709
    %v773 = vadd.f32 %v772, %v710
    %v774 = vadd.f32 %v773, %v711
    %v775 = vadd.f32 %v774, %v712
    %v776 = vadd.f32 %v775, %v713
    %v777 = vadd.f32 %v776, %v714
    %v778 = vadd.f32 %v777, %v715
    %v779 = vadd.f32 %v778, %v716
    %v780 = vadd.f32 %v779, %v717
    %v781 = vadd.f32 %v780, %v718
    %v782 = vadd.f32 %v781, %v719
    %v783 = vadd.f32 %v782, %v720
    %v784 = vadd.f32 %v783, %v721
    %v785 = vadd.f32 %v784, %v722
    %v786 = vadd.f32 %v785, %v723
    %v787 = vadd.f32 %v786, %v724
    %v788 = vadd.f32 %v787, %v725
    %v789 = vadd.f32 %v788, %v726
    %v790 = vadd.f32 %v789, %v727
    %v791 = vadd.f32 %v790, %v728
    %v792 = vadd.f32 %v791, %v729
    %v793 = vadd.f32 %v792, %v730
    %v794 = vadd.f32 %v793, %v731
    %v795 = vadd.f32 %v794, %v732
    %v796 = vadd.f32 %v795, %v733
    %v797 = vadd.f32 %v796, %v734
    %v798 = vadd.f32 %v797, %v735
    %v799 = vadd.f32 %v798, %v736
    %v800 = vadd.f32 %v799, %v737
    %v801 = vadd.f32 %v800, %v738
    %v802 = vadd.f32 %v801, %v739
    %v803 = vadd.f32 %v802, %v740
    %v804 = vadd.f32 %v803, %v741
    %v805 = vadd.f32 %v804, %v742
    %v806 = vadd.f32 %v805, %v743
    %v807 = vadd.f32 %v806, %v744
    %v808 = vadd.f32 %v807, %v745
    %v809 = vadd.f32 %v808, %v746
    %v810 = vadd.f32 %v809, %v747
    %v811 = vadd.f32 %v810, %v748
    %v812 = vadd.f32 %v811, %v749
    %v813 = vadd.f32 %v812, %v750
    %v814 = vadd.f32 %v813, %v751
    %v815 = vadd.f32 %v814, %v752
    %v816 = vadd.f32 %v815, %v753
    %v817 = vadd.f32 %v816, %v754
    %v818 = vadd.f32 %v817, %v755
    %v819 = vadd.f32 %v818, %v756
    %v820 = vadd.f32 %v819, %v757
    %v821 = vrot.slane %v820, 4
    %v822 = vadd.f32 %v820, %v821
    %v823 = vrot.slane %v822, 2
    %v824 = vadd.f32 %v822, %v823
    %v825 = vrot.slane %v824, 1
    %v826 = vadd.f32 %v824, %v825
    %v827 = vmul.f32 %v826, %v628
    %v828 = vadd.f32 %v827, 1e-05
    %v829 = vrsqrt.pop %v828
    %v830 = vmul.f32 %v630, %v829
    %v831 = vmul.f32 %v631, %v829
    %v832 = vmul.f32 %v632, %v829
    %v833 = vmul.f32 %v633, %v829
    %v834 = vmul.f32 %v634, %v829
    %v835 = vmul.f32 %v635, %v829
    %v836 = vmul.f32 %v636, %v829
    %v837 = vmul.f32 %v637, %v829
    %v838 = vmul.f32 %v638, %v829
    %v839 = vmul.f32 %v639, %v829
    %v840 = vmul.f32 %v640, %v829
    %v841 = vmul.f32 %v641, %v829
    %v842 = vmul.f32 %v642, %v829
    %v843 = vmul.f32 %v643, %v829
    %v844 = vmul.f32 %v644, %v829
    %v845 = vmul.f32 %v645, %v829
    %v846 = vmul.f32 %v646, %v829
    %v847 = vmul.f32 %v647, %v829
    %v848 = vmul.f32 %v648, %v829
    %v849 = vmul.f32 %v649, %v829
    %v850 = vmul.f32 %v650, %v829
    %v851 = vmul.f32 %v651, %v829
    %v852 = vmul.f32 %v652, %v829
    %v853 = vmul.f32 %v653, %v829
    %v854 = vmul.f32 %v654, %v829
    %v855 = vmul.f32 %v655, %v829
    %v856 = vmul.f32 %v656, %v829
    %v857 = vmul.f32 %v657, %v829
    %v858 = vmul.f32 %v658, %v829
    %v859 = vmul.f32 %v659, %v829
    %v860 = vmul.f32 %v660, %v829
    %v861 = vmul.f32 %v661, %v829
    %v862 = vmul.f32 %v662, %v829
    %v863 = vmul.f32 %v663, %v829
    %v864 = vmul.f32 %v664, %v829
    %v865 = vmul.f32 %v665, %v829
    %v866 = vmul.f32 %v666, %v829
    %v867 = vmul.f32 %v667, %v829
    %v868 = vmul.f32 %v668, %v829
    %v869 = vmul.f32 %v669, %v829
    %v870 = vmul.f32 %v670, %v829
    %v871 = vmul.f32 %v671, %v829
    %v872 = vmul.f32 %v672, %v829
    %v873 = vmul.f32 %v673, %v829
    %v874 = vmul.f32 %v674, %v829
    %v875 = vmul.f32 %v675, %v829
    %v876 = vmul.f32 %v676, %v829
    %v877 = vmul.f32 %v677, %v829
    %v878 = vmul.f32 %v678, %v829
    %v879 = vmul.f32 %v679, %v829
    %v880 = vmul.f32 %v680, %v829
    %v881 = vmul.f32 %v681, %v829
    %v882 = vmul.f32 %v682, %v829
    %v883 = vmul.f32 %v683, %v829
    %v884 = vmul.f32 %v684, %v829
    %v885 = vmul.f32 %v685, %v829
    %v886 = vmul.f32 %v686, %v829
    %v887 = vmul.f32 %v687, %v829
    %v888 = vmul.f32 %v688, %v829
    %v889 = vmul.f32 %v689, %v829
    %v890 = vmul.f32 %v690, %v829
    %v891 = vmul.f32 %v691, %v829
    %v892 = vmul.f32 %v692, %v829
    %v893 = vmul.f32 %v693, %v829
    %v894 = vld [vmem:[%s2] sm:$0x1]
    %v896 = vlaneseq
    %v897 = vshrl.u32 %v896, 7
    %v898 = vsub.s32 0, %v897
    %v899 = vrot.slane %v894, %v898
    %v901 = vmul.f32 %v830, %v899
    %v902 = vmul.f32 %v831, %v899
    %v903 = vmul.f32 %v832, %v899
    %v904 = vmul.f32 %v833, %v899
    %v905 = vmul.f32 %v834, %v899
    %v906 = vmul.f32 %v835, %v899
    %v907 = vmul.f32 %v836, %v899
    %v908 = vmul.f32 %v837, %v899
    %v909 = vmul.f32 %v838, %v899
    %v910 = vmul.f32 %v839, %v899
    %v911 = vmul.f32 %v840, %v899
    %v912 = vmul.f32 %v841, %v899
    %v913 = vmul.f32 %v842, %v899
    %v914 = vmul.f32 %v843, %v899
    %v915 = vmul.f32 %v844, %v899
    %v916 = vmul.f32 %v845, %v899
    %v917 = vmul.f32 %v846, %v899
    %v918 = vmul.f32 %v847, %v899
    %v919 = vmul.f32 %v848, %v899
    %v920 = vmul.f32 %v849, %v899
    %v921 = vmul.f32 %v850, %v899
    %v922 = vmul.f32 %v851, %v899
    %v923 = vmul.f32 %v852, %v899
    %v924 = vmul.f32 %v853, %v899
    %v925 = vmul.f32 %v854, %v899
    %v926 = vmul.f32 %v855, %v899
    %v927 = vmul.f32 %v856, %v899
    %v928 = vmul.f32 %v857, %v899
    %v929 = vmul.f32 %v858, %v899
    %v930 = vmul.f32 %v859, %v899
    %v931 = vmul.f32 %v860, %v899
    %v932 = vmul.f32 %v861, %v899
    %v933 = vmul.f32 %v862, %v899
    %v934 = vmul.f32 %v863, %v899
    %v935 = vmul.f32 %v864, %v899
    %v936 = vmul.f32 %v865, %v899
    %v937 = vmul.f32 %v866, %v899
    %v938 = vmul.f32 %v867, %v899
    %v939 = vmul.f32 %v868, %v899
    %v940 = vmul.f32 %v869, %v899
    %v941 = vmul.f32 %v870, %v899
    %v942 = vmul.f32 %v871, %v899
    %v943 = vmul.f32 %v872, %v899
    %v944 = vmul.f32 %v873, %v899
    %v945 = vmul.f32 %v874, %v899
    %v946 = vmul.f32 %v875, %v899
    %v947 = vmul.f32 %v876, %v899
    %v948 = vmul.f32 %v877, %v899
    %v949 = vmul.f32 %v878, %v899
    %v950 = vmul.f32 %v879, %v899
    %v951 = vmul.f32 %v880, %v899
    %v952 = vmul.f32 %v881, %v899
    %v953 = vmul.f32 %v882, %v899
    %v954 = vmul.f32 %v883, %v899
    %v955 = vmul.f32 %v884, %v899
    %v956 = vmul.f32 %v885, %v899
    %v957 = vmul.f32 %v886, %v899
    %v958 = vmul.f32 %v887, %v899
    %v959 = vmul.f32 %v888, %v899
    %v960 = vmul.f32 %v889, %v899
    %v961 = vmul.f32 %v890, %v899
    %v962 = vmul.f32 %v891, %v899
    %v963 = vmul.f32 %v892, %v899
    %v964 = vmul.f32 %v893, %v899
    %v965 = vld [vmem:[%s3] sm:$0x1]
    %v967 = vlaneseq
    %v968 = vshrl.u32 %v967, 7
    %v969 = vsub.s32 0, %v968
    %v970 = vrot.slane %v965, %v969
    %v972 = vadd.f32 %v901, %v970
    %v973 = vadd.f32 %v902, %v970
    %v974 = vadd.f32 %v903, %v970
    %v975 = vadd.f32 %v904, %v970
    %v976 = vadd.f32 %v905, %v970
    %v977 = vadd.f32 %v906, %v970
    %v978 = vadd.f32 %v907, %v970
    %v979 = vadd.f32 %v908, %v970
    %v980 = vadd.f32 %v909, %v970
    %v981 = vadd.f32 %v910, %v970
    %v982 = vadd.f32 %v911, %v970
    %v983 = vadd.f32 %v912, %v970
    %v984 = vadd.f32 %v913, %v970
    %v985 = vadd.f32 %v914, %v970
    %v986 = vadd.f32 %v915, %v970
    %v987 = vadd.f32 %v916, %v970
    %v988 = vadd.f32 %v917, %v970
    %v989 = vadd.f32 %v918, %v970
    %v990 = vadd.f32 %v919, %v970
    %v991 = vadd.f32 %v920, %v970
    %v992 = vadd.f32 %v921, %v970
    %v993 = vadd.f32 %v922, %v970
    %v994 = vadd.f32 %v923, %v970
    %v995 = vadd.f32 %v924, %v970
    %v996 = vadd.f32 %v925, %v970
    %v997 = vadd.f32 %v926, %v970
    %v998 = vadd.f32 %v927, %v970
    %v999 = vadd.f32 %v928, %v970
    %v1000 = vadd.f32 %v929, %v970
    %v1001 = vadd.f32 %v930, %v970
    %v1002 = vadd.f32 %v931, %v970
    %v1003 = vadd.f32 %v932, %v970
    %v1004 = vadd.f32 %v933, %v970
    %v1005 = vadd.f32 %v934, %v970
    %v1006 = vadd.f32 %v935, %v970
    %v1007 = vadd.f32 %v936, %v970
    %v1008 = vadd.f32 %v937, %v970
    %v1009 = vadd.f32 %v938, %v970
    %v1010 = vadd.f32 %v939, %v970
    %v1011 = vadd.f32 %v940, %v970
    %v1012 = vadd.f32 %v941, %v970
    %v1013 = vadd.f32 %v942, %v970
    %v1014 = vadd.f32 %v943, %v970
    %v1015 = vadd.f32 %v944, %v970
    %v1016 = vadd.f32 %v945, %v970
    %v1017 = vadd.f32 %v946, %v970
    %v1018 = vadd.f32 %v947, %v970
    %v1019 = vadd.f32 %v948, %v970
    %v1020 = vadd.f32 %v949, %v970
    %v1021 = vadd.f32 %v950, %v970
    %v1022 = vadd.f32 %v951, %v970
    %v1023 = vadd.f32 %v952, %v970
    %v1024 = vadd.f32 %v953, %v970
    %v1025 = vadd.f32 %v954, %v970
    %v1026 = vadd.f32 %v955, %v970
    %v1027 = vadd.f32 %v956, %v970
    %v1028 = vadd.f32 %v957, %v970
    %v1029 = vadd.f32 %v958, %v970
    %v1030 = vadd.f32 %v959, %v970
    %v1031 = vadd.f32 %v960, %v970
    %v1032 = vadd.f32 %v961, %v970
    %v1033 = vadd.f32 %v962, %v970
    %v1034 = vadd.f32 %v963, %v970
    %v1035 = vadd.f32 %v964, %v970
    %v1036 = vmax.f32 %v972, 0.0
    %v1037 = vmax.f32 %v973, 0.0
    %v1038 = vmax.f32 %v974, 0.0
    %v1039 = vmax.f32 %v975, 0.0
    %v1040 = vmax.f32 %v976, 0.0
    %v1041 = vmax.f32 %v977, 0.0
    %v1042 = vmax.f32 %v978, 0.0
    %v1043 = vmax.f32 %v979, 0.0
    %v1044 = vmax.f32 %v980, 0.0
    %v1045 = vmax.f32 %v981, 0.0
    %v1046 = vmax.f32 %v982, 0.0
    %v1047 = vmax.f32 %v983, 0.0
    %v1048 = vmax.f32 %v984, 0.0
    %v1049 = vmax.f32 %v985, 0.0
    %v1050 = vmax.f32 %v986, 0.0
    %v1051 = vmax.f32 %v987, 0.0
    %v1052 = vmax.f32 %v988, 0.0
    %v1053 = vmax.f32 %v989, 0.0
    %v1054 = vmax.f32 %v990, 0.0
    %v1055 = vmax.f32 %v991, 0.0
    %v1056 = vmax.f32 %v992, 0.0
    %v1057 = vmax.f32 %v993, 0.0
    %v1058 = vmax.f32 %v994, 0.0
    %v1059 = vmax.f32 %v995, 0.0
    %v1060 = vmax.f32 %v996, 0.0
    %v1061 = vmax.f32 %v997, 0.0
    %v1062 = vmax.f32 %v998, 0.0
    %v1063 = vmax.f32 %v999, 0.0
    %v1064 = vmax.f32 %v1000, 0.0
    %v1065 = vmax.f32 %v1001, 0.0
    %v1066 = vmax.f32 %v1002, 0.0
    %v1067 = vmax.f32 %v1003, 0.0
    %v1068 = vmax.f32 %v1004, 0.0
    %v1069 = vmax.f32 %v1005, 0.0
    %v1070 = vmax.f32 %v1006, 0.0
    %v1071 = vmax.f32 %v1007, 0.0
    %v1072 = vmax.f32 %v1008, 0.0
    %v1073 = vmax.f32 %v1009, 0.0
    %v1074 = vmax.f32 %v1010, 0.0
    %v1075 = vmax.f32 %v1011, 0.0
    %v1076 = vmax.f32 %v1012, 0.0
    %v1077 = vmax.f32 %v1013, 0.0
    %v1078 = vmax.f32 %v1014, 0.0
    %v1079 = vmax.f32 %v1015, 0.0
    %v1080 = vmax.f32 %v1016, 0.0
    %v1081 = vmax.f32 %v1017, 0.0
    %v1082 = vmax.f32 %v1018, 0.0
    %v1083 = vmax.f32 %v1019, 0.0
    %v1084 = vmax.f32 %v1020, 0.0
    %v1085 = vmax.f32 %v1021, 0.0
    %v1086 = vmax.f32 %v1022, 0.0
    %v1087 = vmax.f32 %v1023, 0.0
    %v1088 = vmax.f32 %v1024, 0.0
    %v1089 = vmax.f32 %v1025, 0.0
    %v1090 = vmax.f32 %v1026, 0.0
    %v1091 = vmax.f32 %v1027, 0.0
    %v1092 = vmax.f32 %v1028, 0.0
    %v1093 = vmax.f32 %v1029, 0.0
    %v1094 = vmax.f32 %v1030, 0.0
    %v1095 = vmax.f32 %v1031, 0.0
    %v1096 = vmax.f32 %v1032, 0.0
    %v1097 = vmax.f32 %v1033, 0.0
    %v1098 = vmax.f32 %v1034, 0.0
    %v1099 = vmax.f32 %v1035, 0.0
    %vm1100 = vcmask 31744
    %1101 = vst.msk [vmem:[#allocation2] sm:$0xff] %vm1100, 0.0
    %1102 = vst.msk [vmem:[#allocation2 + $0x8] sm:$0xff] %vm1100, 0.0
    %1103 = vst.msk [vmem:[#allocation2 + $0x10] sm:$0xff] %vm1100, 0.0
    %1104 = vst.msk [vmem:[#allocation2 + $0x18] sm:$0xff] %vm1100, 0.0
    %1105 = vst.msk [vmem:[#allocation2 + $0x20] sm:$0xff] %vm1100, 0.0
    %1106 = vst.msk [vmem:[#allocation2 + $0x28] sm:$0xff] %vm1100, 0.0
    %1107 = vst.msk [vmem:[#allocation2 + $0x30] sm:$0xff] %vm1100, 0.0
    %1108 = vst.msk [vmem:[#allocation2 + $0x38] sm:$0xff] %vm1100, 0.0
    %1109 = vst.msk [vmem:[#allocation2 + $0x40] sm:$0xff] %vm1100, 0.0
    %1110 = vst.msk [vmem:[#allocation2 + $0x48] sm:$0xff] %vm1100, 0.0
    %1111 = vst.msk [vmem:[#allocation2 + $0x50] sm:$0xff] %vm1100, 0.0
    %1112 = vst.msk [vmem:[#allocation2 + $0x58] sm:$0xff] %vm1100, 0.0
    %1113 = vst.msk [vmem:[#allocation2 + $0x60] sm:$0xff] %vm1100, 0.0
    %1114 = vst.msk [vmem:[#allocation2 + $0x68] sm:$0xff] %vm1100, 0.0
    %1115 = vst.msk [vmem:[#allocation2 + $0x70] sm:$0xff] %vm1100, 0.0
    %1116 = vst.msk [vmem:[#allocation2 + $0x78] sm:$0xff] %vm1100, 0.0
    %1117 = vst.msk [vmem:[#allocation2 + $0x80] sm:$0xff] %vm1100, 0.0
    %1118 = vst.msk [vmem:[#allocation2 + $0x88] sm:$0xff] %vm1100, 0.0
    %1119 = vst.msk [vmem:[#allocation2 + $0x90] sm:$0xff] %vm1100, 0.0
    %1120 = vst.msk [vmem:[#allocation2 + $0x98] sm:$0xff] %vm1100, 0.0
    %1121 = vst.msk [vmem:[#allocation2 + $0xa0] sm:$0xff] %vm1100, 0.0
    %1122 = vst.msk [vmem:[#allocation2 + $0xa8] sm:$0xff] %vm1100, 0.0
    %1123 = vst.msk [vmem:[#allocation2 + $0xb0] sm:$0xff] %vm1100, 0.0
    %1124 = vst.msk [vmem:[#allocation2 + $0xb8] sm:$0xff] %vm1100, 0.0
    %1125 = vst.msk [vmem:[#allocation2 + $0xc0] sm:$0xff] %vm1100, 0.0
    %1126 = vst.msk [vmem:[#allocation2 + $0xc8] sm:$0xff] %vm1100, 0.0
    %1127 = vst.msk [vmem:[#allocation2 + $0xd0] sm:$0xff] %vm1100, 0.0
    %1128 = vst.msk [vmem:[#allocation2 + $0xd8] sm:$0xff] %vm1100, 0.0
    %1129 = vst.msk [vmem:[#allocation2 + $0xe0] sm:$0xff] %vm1100, 0.0
    %1130 = vst.msk [vmem:[#allocation2 + $0xe8] sm:$0xff] %vm1100, 0.0
    %1131 = vst.msk [vmem:[#allocation2 + $0xf0] sm:$0xff] %vm1100, 0.0
    %1132 = vst.msk [vmem:[#allocation2 + $0xf8] sm:$0xff] %vm1100, 0.0
    %1133 = vst.msk [vmem:[#allocation2 + $0x100] sm:$0xff] %vm1100, 0.0
    %1134 = vst.msk [vmem:[#allocation2 + $0x108] sm:$0xff] %vm1100, 0.0
    %1135 = vst.msk [vmem:[#allocation2 + $0x110] sm:$0xff] %vm1100, 0.0
    %1136 = vst.msk [vmem:[#allocation2 + $0x118] sm:$0xff] %vm1100, 0.0
    %1137 = vst.msk [vmem:[#allocation2 + $0x120] sm:$0xff] %vm1100, 0.0
    %1138 = vst.msk [vmem:[#allocation2 + $0x128] sm:$0xff] %vm1100, 0.0
    %1139 = vst.msk [vmem:[#allocation2 + $0x130] sm:$0xff] %vm1100, 0.0
    %1140 = vst.msk [vmem:[#allocation2 + $0x138] sm:$0xff] %vm1100, 0.0
    %1141 = vst.msk [vmem:[#allocation2 + $0x140] sm:$0xff] %vm1100, 0.0
    %1142 = vst.msk [vmem:[#allocation2 + $0x148] sm:$0xff] %vm1100, 0.0
    %1143 = vst.msk [vmem:[#allocation2 + $0x150] sm:$0xff] %vm1100, 0.0
    %1144 = vst.msk [vmem:[#allocation2 + $0x158] sm:$0xff] %vm1100, 0.0
    %1145 = vst.msk [vmem:[#allocation2 + $0x160] sm:$0xff] %vm1100, 0.0
    %1146 = vst.msk [vmem:[#allocation2 + $0x168] sm:$0xff] %vm1100, 0.0
    %1147 = vst.msk [vmem:[#allocation2 + $0x170] sm:$0xff] %vm1100, 0.0
    %1148 = vst.msk [vmem:[#allocation2 + $0x178] sm:$0xff] %vm1100, 0.0
    %1149 = vst.msk [vmem:[#allocation2 + $0x180] sm:$0xff] %vm1100, 0.0
    %1150 = vst.msk [vmem:[#allocation2 + $0x188] sm:$0xff] %vm1100, 0.0
    %1151 = vst.msk [vmem:[#allocation2 + $0x190] sm:$0xff] %vm1100, 0.0
    %1152 = vst.msk [vmem:[#allocation2 + $0x198] sm:$0xff] %vm1100, 0.0
    %1153 = vst.msk [vmem:[#allocation2 + $0x1a0] sm:$0xff] %vm1100, 0.0
    %1154 = vst.msk [vmem:[#allocation2 + $0x1a8] sm:$0xff] %vm1100, 0.0
    %1155 = vst.msk [vmem:[#allocation2 + $0x1b0] sm:$0xff] %vm1100, 0.0
    %1156 = vst.msk [vmem:[#allocation2 + $0x1b8] sm:$0xff] %vm1100, 0.0
    %1157 = vst.msk [vmem:[#allocation2 + $0x1c0] sm:$0xff] %vm1100, 0.0
    %1158 = vst.msk [vmem:[#allocation2 + $0x1c8] sm:$0xff] %vm1100, 0.0
    %1159 = vst.msk [vmem:[#allocation2 + $0x1d0] sm:$0xff] %vm1100, 0.0
    %1160 = vst.msk [vmem:[#allocation2 + $0x1d8] sm:$0xff] %vm1100, 0.0
    %1161 = vst.msk [vmem:[#allocation2 + $0x1e0] sm:$0xff] %vm1100, 0.0
    %1162 = vst.msk [vmem:[#allocation2 + $0x1e8] sm:$0xff] %vm1100, 0.0
    %1163 = vst.msk [vmem:[#allocation2 + $0x1f0] sm:$0xff] %vm1100, 0.0
    %1164 = vst.msk [vmem:[#allocation2 + $0x1f8] sm:$0xff] %vm1100, 0.0
    %1165 = vst.msk [vmem:[#allocation2 + $0x200] sm:$0xff] %vm1100, 0.0
    %1166 = vst.msk [vmem:[#allocation2 + $0x208] sm:$0xff] %vm1100, 0.0
    %1167 = vst.msk [vmem:[#allocation2 + $0x210] sm:$0xff] %vm1100, 0.0
    %1168 = vst.msk [vmem:[#allocation2 + $0x218] sm:$0xff] %vm1100, 0.0
    %1169 = vst.msk [vmem:[#allocation2 + $0x220] sm:$0xff] %vm1100, 0.0
    %1170 = vst.msk [vmem:[#allocation2 + $0x228] sm:$0xff] %vm1100, 0.0
    %1171 = vst.msk [vmem:[#allocation2 + $0x230] sm:$0xff] %vm1100, 0.0
    %1172 = vst.msk [vmem:[#allocation2 + $0x238] sm:$0xff] %vm1100, 0.0
    %1173 = vst.msk [vmem:[#allocation2 + $0x240] sm:$0xff] %vm1100, 0.0
    %1174 = vst.msk [vmem:[#allocation2 + $0x248] sm:$0xff] %vm1100, 0.0
    %1175 = vst.msk [vmem:[#allocation2 + $0x250] sm:$0xff] %vm1100, 0.0
    %1176 = vst.msk [vmem:[#allocation2 + $0x258] sm:$0xff] %vm1100, 0.0
    %1177 = vst.msk [vmem:[#allocation2 + $0x260] sm:$0xff] %vm1100, 0.0
    %1178 = vst.msk [vmem:[#allocation2 + $0x268] sm:$0xff] %vm1100, 0.0
    %1179 = vst.msk [vmem:[#allocation2 + $0x270] sm:$0xff] %vm1100, 0.0
    %1180 = vst.msk [vmem:[#allocation2 + $0x278] sm:$0xff] %vm1100, 0.0
    %1181 = vst.msk [vmem:[#allocation2 + $0x280] sm:$0xff] %vm1100, 0.0
    %1182 = vst.msk [vmem:[#allocation2 + $0x288] sm:$0xff] %vm1100, 0.0
    %1183 = vst.msk [vmem:[#allocation2 + $0x290] sm:$0xff] %vm1100, 0.0
    %1184 = vst.msk [vmem:[#allocation2 + $0x298] sm:$0xff] %vm1100, 0.0
    %1185 = vst.msk [vmem:[#allocation2 + $0x2a0] sm:$0xff] %vm1100, 0.0
    %1186 = vst.msk [vmem:[#allocation2 + $0x2a8] sm:$0xff] %vm1100, 0.0
    %1187 = vst.msk [vmem:[#allocation2 + $0x2b0] sm:$0xff] %vm1100, 0.0
    %1188 = vst.msk [vmem:[#allocation2 + $0x2b8] sm:$0xff] %vm1100, 0.0
    %1189 = vst.msk [vmem:[#allocation2 + $0x2c0] sm:$0xff] %vm1100, 0.0
    %1190 = vst.msk [vmem:[#allocation2 + $0x2c8] sm:$0xff] %vm1100, 0.0
    %1191 = vst.msk [vmem:[#allocation2 + $0x2d0] sm:$0xff] %vm1100, 0.0
    %1192 = vst.msk [vmem:[#allocation2 + $0x2d8] sm:$0xff] %vm1100, 0.0
    %1193 = vst.msk [vmem:[#allocation2 + $0x2e0] sm:$0xff] %vm1100, 0.0
    %1194 = vst.msk [vmem:[#allocation2 + $0x2e8] sm:$0xff] %vm1100, 0.0
    %1195 = vst.msk [vmem:[#allocation2 + $0x2f0] sm:$0xff] %vm1100, 0.0
    %1196 = vst.msk [vmem:[#allocation2 + $0x2f8] sm:$0xff] %vm1100, 0.0
    %1197 = vst.msk [vmem:[#allocation2 + $0x300] sm:$0xff] %vm1100, 0.0
    %1198 = vst.msk [vmem:[#allocation2 + $0x308] sm:$0xff] %vm1100, 0.0
    %1199 = vst.msk [vmem:[#allocation2 + $0x310] sm:$0xff] %vm1100, 0.0
    %1200 = vst.msk [vmem:[#allocation2 + $0x318] sm:$0xff] %vm1100, 0.0
    %1201 = vst.msk [vmem:[#allocation2 + $0x320] sm:$0xff] %vm1100, 0.0
    %1202 = vst.msk [vmem:[#allocation2 + $0x328] sm:$0xff] %vm1100, 0.0
    %1203 = vst.msk [vmem:[#allocation2 + $0x330] sm:$0xff] %vm1100, 0.0
    %1204 = vst.msk [vmem:[#allocation2 + $0x338] sm:$0xff] %vm1100, 0.0
    %1205 = vst.msk [vmem:[#allocation2 + $0x340] sm:$0xff] %vm1100, 0.0
    %1206 = vst.msk [vmem:[#allocation2 + $0x348] sm:$0xff] %vm1100, 0.0
    %1207 = vst.msk [vmem:[#allocation2 + $0x350] sm:$0xff] %vm1100, 0.0
    %1208 = vst.msk [vmem:[#allocation2 + $0x358] sm:$0xff] %vm1100, 0.0
    %s1209 = scalar_lea.vmem [#allocation2], 24
    %1210 = vst.msk [vmem:[%s1209 + $0x1] sm:$0xff] %vm1100, %v1036
    %1211 = vst.msk [vmem:[%s1209 + $0x9] sm:$0xff] %vm1100, %v1037
    %1212 = vst.msk [vmem:[%s1209 + $0x19] sm:$0xff] %vm1100, %v1038
    %1213 = vst.msk [vmem:[%s1209 + $0x21] sm:$0xff] %vm1100, %v1039
    %1214 = vst.msk [vmem:[%s1209 + $0x31] sm:$0xff] %vm1100, %v1040
    %1215 = vst.msk [vmem:[%s1209 + $0x39] sm:$0xff] %vm1100, %v1041
    %1216 = vst.msk [vmem:[%s1209 + $0x49] sm:$0xff] %vm1100, %v1042
    %1217 = vst.msk [vmem:[%s1209 + $0x51] sm:$0xff] %vm1100, %v1043
    %1218 = vst.msk [vmem:[%s1209 + $0x61] sm:$0xff] %vm1100, %v1044
    %1219 = vst.msk [vmem:[%s1209 + $0x69] sm:$0xff] %vm1100, %v1045
    %1220 = vst.msk [vmem:[%s1209 + $0x79] sm:$0xff] %vm1100, %v1046
    %1221 = vst.msk [vmem:[%s1209 + $0x81] sm:$0xff] %vm1100, %v1047
    %1222 = vst.msk [vmem:[%s1209 + $0x91] sm:$0xff] %vm1100, %v1048
    %1223 = vst.msk [vmem:[%s1209 + $0x99] sm:$0xff] %vm1100, %v1049
    %1224 = vst.msk [vmem:[%s1209 + $0xa9] sm:$0xff] %vm1100, %v1050
    %1225 = vst.msk [vmem:[%s1209 + $0xb1] sm:$0xff] %vm1100, %v1051
    %1226 = vst.msk [vmem:[%s1209 + $0xc1] sm:$0xff] %vm1100, %v1052
    %1227 = vst.msk [vmem:[%s1209 + $0xc9] sm:$0xff] %vm1100, %v1053
    %1228 = vst.msk [vmem:[%s1209 + $0xd9] sm:$0xff] %vm1100, %v1054
    %1229 = vst.msk [vmem:[%s1209 + $0xe1] sm:$0xff] %vm1100, %v1055
    %1230 = vst.msk [vmem:[%s1209 + $0xf1] sm:$0xff] %vm1100, %v1056
    %1231 = vst.msk [vmem:[%s1209 + $0xf9] sm:$0xff] %vm1100, %v1057
    %1232 = vst.msk [vmem:[%s1209 + $0x109] sm:$0xff] %vm1100, %v1058
    %1233 = vst.msk [vmem:[%s1209 + $0x111] sm:$0xff] %vm1100, %v1059
    %1234 = vst.msk [vmem:[%s1209 + $0x121] sm:$0xff] %vm1100, %v1060
    %1235 = vst.msk [vmem:[%s1209 + $0x129] sm:$0xff] %vm1100, %v1061
    %1236 = vst.msk [vmem:[%s1209 + $0x139] sm:$0xff] %vm1100, %v1062
    %1237 = vst.msk [vmem:[%s1209 + $0x141] sm:$0xff] %vm1100, %v1063
    %1238 = vst.msk [vmem:[%s1209 + $0x151] sm:$0xff] %vm1100, %v1064
    %1239 = vst.msk [vmem:[%s1209 + $0x159] sm:$0xff] %vm1100, %v1065
    %1240 = vst.msk [vmem:[%s1209 + $0x169] sm:$0xff] %vm1100, %v1066
    %1241 = vst.msk [vmem:[%s1209 + $0x171] sm:$0xff] %vm1100, %v1067
    %1242 = vst.msk [vmem:[%s1209 + $0x1b1] sm:$0xff] %vm1100, %v1068
    %1243 = vst.msk [vmem:[%s1209 + $0x1b9] sm:$0xff] %vm1100, %v1069
    %1244 = vst.msk [vmem:[%s1209 + $0x1c9] sm:$0xff] %vm1100, %v1070
    %1245 = vst.msk [vmem:[%s1209 + $0x1d1] sm:$0xff] %vm1100, %v1071
    %1246 = vst.msk [vmem:[%s1209 + $0x1e1] sm:$0xff] %vm1100, %v1072
    %1247 = vst.msk [vmem:[%s1209 + $0x1e9] sm:$0xff] %vm1100, %v1073
    %1248 = vst.msk [vmem:[%s1209 + $0x1f9] sm:$0xff] %vm1100, %v1074
    %1249 = vst.msk [vmem:[%s1209 + $0x201] sm:$0xff] %vm1100, %v1075
    %1250 = vst.msk [vmem:[%s1209 + $0x211] sm:$0xff] %vm1100, %v1076
    %1251 = vst.msk [vmem:[%s1209 + $0x219] sm:$0xff] %vm1100, %v1077
    %1252 = vst.msk [vmem:[%s1209 + $0x229] sm:$0xff] %vm1100, %v1078
    %1253 = vst.msk [vmem:[%s1209 + $0x231] sm:$0xff] %vm1100, %v1079
    %1254 = vst.msk [vmem:[%s1209 + $0x241] sm:$0xff] %vm1100, %v1080
    %1255 = vst.msk [vmem:[%s1209 + $0x249] sm:$0xff] %vm1100, %v1081
    %1256 = vst.msk [vmem:[%s1209 + $0x259] sm:$0xff] %vm1100, %v1082
    %1257 = vst.msk [vmem:[%s1209 + $0x261] sm:$0xff] %vm1100, %v1083
    %1258 = vst.msk [vmem:[%s1209 + $0x271] sm:$0xff] %vm1100, %v1084
    %1259 = vst.msk [vmem:[%s1209 + $0x279] sm:$0xff] %vm1100, %v1085
    %1260 = vst.msk [vmem:[%s1209 + $0x289] sm:$0xff] %vm1100, %v1086
    %1261 = vst.msk [vmem:[%s1209 + $0x291] sm:$0xff] %vm1100, %v1087
    %1262 = vst.msk [vmem:[%s1209 + $0x2a1] sm:$0xff] %vm1100, %v1088
    %1263 = vst.msk [vmem:[%s1209 + $0x2a9] sm:$0xff] %vm1100, %v1089
    %1264 = vst.msk [vmem:[%s1209 + $0x2b9] sm:$0xff] %vm1100, %v1090
    %1265 = vst.msk [vmem:[%s1209 + $0x2c1] sm:$0xff] %vm1100, %v1091
    %1266 = vst.msk [vmem:[%s1209 + $0x2d1] sm:$0xff] %vm1100, %v1092
    %1267 = vst.msk [vmem:[%s1209 + $0x2d9] sm:$0xff] %vm1100, %v1093
    %1268 = vst.msk [vmem:[%s1209 + $0x2e9] sm:$0xff] %vm1100, %v1094
    %1269 = vst.msk [vmem:[%s1209 + $0x2f1] sm:$0xff] %vm1100, %v1095
    %1270 = vst.msk [vmem:[%s1209 + $0x301] sm:$0xff] %vm1100, %v1096
    %1271 = vst.msk [vmem:[%s1209 + $0x309] sm:$0xff] %vm1100, %v1097
    %1272 = vst.msk [vmem:[%s1209 + $0x319] sm:$0xff] %vm1100, %v1098
    %1273 = vst.msk [vmem:[%s1209 + $0x321] sm:$0xff] %vm1100, %v1099
    %1274 = vst [vmem:[#allocation3] sm:$0xff] 0.0
    %1275 = vst [vmem:[#allocation3 + $0x8] sm:$0xff] 0.0
    %1276 = vst [vmem:[#allocation3 + $0x10] sm:$0xff] 0.0
    %1277 = vst [vmem:[#allocation3 + $0x18] sm:$0xff] 0.0
    %1278 = vst [vmem:[#allocation3 + $0x20] sm:$0xff] 0.0
    %1279 = vst [vmem:[#allocation3 + $0x28] sm:$0xff] 0.0
    %1280 = vst [vmem:[#allocation3 + $0x30] sm:$0xff] 0.0
    %1281 = vst [vmem:[#allocation3 + $0x38] sm:$0xff] 0.0
    %1282 = vst [vmem:[#allocation3 + $0x40] sm:$0xff] 0.0
    %1283 = vst [vmem:[#allocation3 + $0x48] sm:$0xff] 0.0
    %1284 = vst [vmem:[#allocation3 + $0x50] sm:$0xff] 0.0
    %1285 = vst [vmem:[#allocation3 + $0x58] sm:$0xff] 0.0
    %1286 = vst [vmem:[#allocation3 + $0x60] sm:$0xff] 0.0
    %1287 = vst [vmem:[#allocation3 + $0x68] sm:$0xff] 0.0
    %1288 = vst [vmem:[#allocation3 + $0x70] sm:$0xff] 0.0
    %1289 = vst [vmem:[#allocation3 + $0x78] sm:$0xff] 0.0
    %1290 = vst [vmem:[#allocation3 + $0x80] sm:$0xff] 0.0
    %1291 = vst [vmem:[#allocation3 + $0x88] sm:$0xff] 0.0
    %1292 = vst [vmem:[#allocation3 + $0x90] sm:$0xff] 0.0
    %1293 = vst [vmem:[#allocation3 + $0x98] sm:$0xff] 0.0
    %1294 = vst [vmem:[#allocation3 + $0xa0] sm:$0xff] 0.0
    %1295 = vst [vmem:[#allocation3 + $0xa8] sm:$0xff] 0.0
    %1296 = vst [vmem:[#allocation3 + $0xb0] sm:$0xff] 0.0
    %1297 = vst [vmem:[#allocation3 + $0xb8] sm:$0xff] 0.0
    %1298 = vst [vmem:[#allocation3 + $0xc0] sm:$0xff] 0.0
    %1299 = vst [vmem:[#allocation3 + $0xc8] sm:$0xff] 0.0
    %1300 = vst [vmem:[#allocation3 + $0xd0] sm:$0xff] 0.0
    %1301 = vst [vmem:[#allocation3 + $0xd8] sm:$0xff] 0.0
    %1302 = vst [vmem:[#allocation3 + $0xe0] sm:$0xff] 0.0
    %1303 = vst [vmem:[#allocation3 + $0xe8] sm:$0xff] 0.0
    %1304 = vst [vmem:[#allocation3 + $0xf0] sm:$0xff] 0.0
    %1305 = vst [vmem:[#allocation3 + $0xf8] sm:$0xff] 0.0
    %1306 = vst [vmem:[#allocation3 + $0x100] sm:$0xff] 0.0
    %1307 = vst [vmem:[#allocation3 + $0x108] sm:$0xff] 0.0
    %1308 = vst [vmem:[#allocation3 + $0x110] sm:$0xff] 0.0
    %1309 = vst [vmem:[#allocation3 + $0x118] sm:$0xff] 0.0
    %1310 = vst [vmem:[#allocation3 + $0x120] sm:$0xff] 0.0
    %1311 = vst [vmem:[#allocation3 + $0x128] sm:$0xff] 0.0
    %1312 = vst [vmem:[#allocation3 + $0x130] sm:$0xff] 0.0
    %1313 = vst [vmem:[#allocation3 + $0x138] sm:$0xff] 0.0
    %1314 = vst [vmem:[#allocation3 + $0x140] sm:$0xff] 0.0
    %1315 = vst [vmem:[#allocation3 + $0x148] sm:$0xff] 0.0
    %1316 = vst [vmem:[#allocation3 + $0x150] sm:$0xff] 0.0
    %1317 = vst [vmem:[#allocation3 + $0x158] sm:$0xff] 0.0
    %1318 = vst [vmem:[#allocation3 + $0x160] sm:$0xff] 0.0
    %1319 = vst [vmem:[#allocation3 + $0x168] sm:$0xff] 0.0
    %1320 = vst [vmem:[#allocation3 + $0x170] sm:$0xff] 0.0
    %1321 = vst [vmem:[#allocation3 + $0x178] sm:$0xff] 0.0
    %1322 = vst [vmem:[#allocation3 + $0x180] sm:$0xff] 0.0
    %1323 = vst [vmem:[#allocation3 + $0x188] sm:$0xff] 0.0
    %1324 = vst [vmem:[#allocation3 + $0x190] sm:$0xff] 0.0
    %1325 = vst [vmem:[#allocation3 + $0x198] sm:$0xff] 0.0
    %1326 = vst [vmem:[#allocation3 + $0x1a0] sm:$0xff] 0.0
    %1327 = vst [vmem:[#allocation3 + $0x1a8] sm:$0xff] 0.0
    %1328 = vst [vmem:[#allocation3 + $0x1b0] sm:$0xff] 0.0
    %1329 = vst [vmem:[#allocation3 + $0x1b8] sm:$0xff] 0.0
    %1330 = vst [vmem:[#allocation3 + $0x1c0] sm:$0xff] 0.0
    %1331 = vst [vmem:[#allocation3 + $0x1c8] sm:$0xff] 0.0
    %1332 = vst [vmem:[#allocation3 + $0x1d0] sm:$0xff] 0.0
    %1333 = vst [vmem:[#allocation3 + $0x1d8] sm:$0xff] 0.0
    %1334 = vst [vmem:[#allocation3 + $0x1e0] sm:$0xff] 0.0
    %1335 = vst [vmem:[#allocation3 + $0x1e8] sm:$0xff] 0.0
    %1336 = vst [vmem:[#allocation3 + $0x1f0] sm:$0xff] 0.0
    %1337 = vst [vmem:[#allocation3 + $0x1f8] sm:$0xff] 0.0
    %v1338 = vld [vmem:[#allocation2] sm:$0xff]
    %v1339 = vld [vmem:[#allocation2 + $0x8] sm:$0xff]
    %v1340 = vld [vmem:[#allocation2 + $0x18] sm:$0xff]
    %v1341 = vld [vmem:[#allocation2 + $0x20] sm:$0xff]
    %v1342 = vld [vmem:[#allocation2 + $0x30] sm:$0xff]
    %v1343 = vld [vmem:[#allocation2 + $0x38] sm:$0xff]
    %v1344 = vld [vmem:[#allocation2 + $0x48] sm:$0xff]
    %v1345 = vld [vmem:[#allocation2 + $0x50] sm:$0xff]
    %v1346 = vld [vmem:[#allocation2 + $0x60] sm:$0xff]
    %v1347 = vld [vmem:[#allocation2 + $0x68] sm:$0xff]
    %v1348 = vld [vmem:[#allocation2 + $0x78] sm:$0xff]
    %v1349 = vld [vmem:[#allocation2 + $0x80] sm:$0xff]
    %v1350 = vld [vmem:[#allocation2 + $0x90] sm:$0xff]
    %v1351 = vld [vmem:[#allocation2 + $0x98] sm:$0xff]
    %v1352 = vld [vmem:[#allocation2 + $0xa8] sm:$0xff]
    %v1353 = vld [vmem:[#allocation2 + $0xb0] sm:$0xff]
    %v1354 = vld [vmem:[#allocation2 + $0xc0] sm:$0xff]
    %v1355 = vld [vmem:[#allocation2 + $0xc8] sm:$0xff]
    %v1356 = vld [vmem:[#allocation2 + $0xd8] sm:$0xff]
    %v1357 = vld [vmem:[#allocation2 + $0xe0] sm:$0xff]
    %v1358 = vld [vmem:[#allocation2 + $0xf0] sm:$0xff]
    %v1359 = vld [vmem:[#allocation2 + $0xf8] sm:$0xff]
    %v1360 = vld [vmem:[#allocation2 + $0x108] sm:$0xff]
    %v1361 = vld [vmem:[#allocation2 + $0x110] sm:$0xff]
    %v1362 = vld [vmem:[#allocation2 + $0x120] sm:$0xff]
    %v1363 = vld [vmem:[#allocation2 + $0x128] sm:$0xff]
    %v1364 = vld [vmem:[#allocation2 + $0x138] sm:$0xff]
    %v1365 = vld [vmem:[#allocation2 + $0x140] sm:$0xff]
    %v1366 = vld [vmem:[#allocation2 + $0x150] sm:$0xff]
    %v1367 = vld [vmem:[#allocation2 + $0x158] sm:$0xff]
    %v1368 = vld [vmem:[#allocation2 + $0x168] sm:$0xff]
    %v1369 = vld [vmem:[#allocation2 + $0x170] sm:$0xff]
    %v1370 = vld [vmem:[#allocation2 + $0x1b0] sm:$0xff]
    %v1371 = vld [vmem:[#allocation2 + $0x1b8] sm:$0xff]
    %v1372 = vld [vmem:[#allocation2 + $0x1c8] sm:$0xff]
    %v1373 = vld [vmem:[#allocation2 + $0x1d0] sm:$0xff]
    %v1374 = vld [vmem:[#allocation2 + $0x1e0] sm:$0xff]
    %v1375 = vld [vmem:[#allocation2 + $0x1e8] sm:$0xff]
    %v1376 = vld [vmem:[#allocation2 + $0x1f8] sm:$0xff]
    %v1377 = vld [vmem:[#allocation2 + $0x200] sm:$0xff]
    %v1378 = vld [vmem:[#allocation2 + $0x210] sm:$0xff]
    %v1379 = vld [vmem:[#allocation2 + $0x218] sm:$0xff]
    %v1380 = vld [vmem:[#allocation2 + $0x228] sm:$0xff]
    %v1381 = vld [vmem:[#allocation2 + $0x230] sm:$0xff]
    %v1382 = vld [vmem:[#allocation2 + $0x240] sm:$0xff]
    %v1383 = vld [vmem:[#allocation2 + $0x248] sm:$0xff]
    %v1384 = vld [vmem:[#allocation2 + $0x258] sm:$0xff]
    %v1385 = vld [vmem:[#allocation2 + $0x260] sm:$0xff]
    %v1386 = vld [vmem:[#allocation2 + $0x270] sm:$0xff]
    %v1387 = vld [vmem:[#allocation2 + $0x278] sm:$0xff]
    %v1388 = vld [vmem:[#allocation2 + $0x288] sm:$0xff]
    %v1389 = vld [vmem:[#allocation2 + $0x290] sm:$0xff]
    %v1390 = vld [vmem:[#allocation2 + $0x2a0] sm:$0xff]
    %v1391 = vld [vmem:[#allocation2 + $0x2a8] sm:$0xff]
    %v1392 = vld [vmem:[#allocation2 + $0x2b8] sm:$0xff]
    %v1393 = vld [vmem:[#allocation2 + $0x2c0] sm:$0xff]
    %v1394 = vld [vmem:[#allocation2 + $0x2d0] sm:$0xff]
    %v1395 = vld [vmem:[#allocation2 + $0x2d8] sm:$0xff]
    %v1396 = vld [vmem:[#allocation2 + $0x2e8] sm:$0xff]
    %v1397 = vld [vmem:[#allocation2 + $0x2f0] sm:$0xff]
    %v1398 = vld [vmem:[#allocation2 + $0x300] sm:$0xff]
    %v1399 = vld [vmem:[#allocation2 + $0x308] sm:$0xff]
    %v1400 = vld [vmem:[#allocation2 + $0x318] sm:$0xff]
    %v1401 = vld [vmem:[#allocation2 + $0x320] sm:$0xff]
    %1402 = vst.msk [vmem:[#allocation3] sm:$0xff] %vm1100, %v1338
    %1403 = vst.msk [vmem:[#allocation3 + $0x8] sm:$0xff] %vm1100, %v1339
    %1404 = vst.msk [vmem:[#allocation3 + $0x10] sm:$0xff] %vm1100, %v1340
    %1405 = vst.msk [vmem:[#allocation3 + $0x18] sm:$0xff] %vm1100, %v1341
    %1406 = vst.msk [vmem:[#allocation3 + $0x20] sm:$0xff] %vm1100, %v1342
    %1407 = vst.msk [vmem:[#allocation3 + $0x28] sm:$0xff] %vm1100, %v1343
    %1408 = vst.msk [vmem:[#allocation3 + $0x30] sm:$0xff] %vm1100, %v1344
    %1409 = vst.msk [vmem:[#allocation3 + $0x38] sm:$0xff] %vm1100, %v1345
    %1410 = vst.msk [vmem:[#allocation3 + $0x40] sm:$0xff] %vm1100, %v1346
    %1411 = vst.msk [vmem:[#allocation3 + $0x48] sm:$0xff] %vm1100, %v1347
    %1412 = vst.msk [vmem:[#allocation3 + $0x50] sm:$0xff] %vm1100, %v1348
    %1413 = vst.msk [vmem:[#allocation3 + $0x58] sm:$0xff] %vm1100, %v1349
    %1414 = vst.msk [vmem:[#allocation3 + $0x60] sm:$0xff] %vm1100, %v1350
    %1415 = vst.msk [vmem:[#allocation3 + $0x68] sm:$0xff] %vm1100, %v1351
    %1416 = vst.msk [vmem:[#allocation3 + $0x70] sm:$0xff] %vm1100, %v1352
    %1417 = vst.msk [vmem:[#allocation3 + $0x78] sm:$0xff] %vm1100, %v1353
    %1418 = vst.msk [vmem:[#allocation3 + $0x80] sm:$0xff] %vm1100, %v1354
    %1419 = vst.msk [vmem:[#allocation3 + $0x88] sm:$0xff] %vm1100, %v1355
    %1420 = vst.msk [vmem:[#allocation3 + $0x90] sm:$0xff] %vm1100, %v1356
    %1421 = vst.msk [vmem:[#allocation3 + $0x98] sm:$0xff] %vm1100, %v1357
    %1422 = vst.msk [vmem:[#allocation3 + $0xa0] sm:$0xff] %vm1100, %v1358
    %1423 = vst.msk [vmem:[#allocation3 + $0xa8] sm:$0xff] %vm1100, %v1359
    %1424 = vst.msk [vmem:[#allocation3 + $0xb0] sm:$0xff] %vm1100, %v1360
    %1425 = vst.msk [vmem:[#allocation3 + $0xb8] sm:$0xff] %vm1100, %v1361
    %1426 = vst.msk [vmem:[#allocation3 + $0xc0] sm:$0xff] %vm1100, %v1362
    %1427 = vst.msk [vmem:[#allocation3 + $0xc8] sm:$0xff] %vm1100, %v1363
    %1428 = vst.msk [vmem:[#allocation3 + $0xd0] sm:$0xff] %vm1100, %v1364
    %1429 = vst.msk [vmem:[#allocation3 + $0xd8] sm:$0xff] %vm1100, %v1365
    %1430 = vst.msk [vmem:[#allocation3 + $0xe0] sm:$0xff] %vm1100, %v1366
    %1431 = vst.msk [vmem:[#allocation3 + $0xe8] sm:$0xff] %vm1100, %v1367
    %1432 = vst.msk [vmem:[#allocation3 + $0xf0] sm:$0xff] %vm1100, %v1368
    %1433 = vst.msk [vmem:[#allocation3 + $0xf8] sm:$0xff] %vm1100, %v1369
    %1434 = vst.msk [vmem:[#allocation3 + $0x100] sm:$0xff] %vm1100, %v1370
    %1435 = vst.msk [vmem:[#allocation3 + $0x108] sm:$0xff] %vm1100, %v1371
    %1436 = vst.msk [vmem:[#allocation3 + $0x110] sm:$0xff] %vm1100, %v1372
    %1437 = vst.msk [vmem:[#allocation3 + $0x118] sm:$0xff] %vm1100, %v1373
    %1438 = vst.msk [vmem:[#allocation3 + $0x120] sm:$0xff] %vm1100, %v1374
    %1439 = vst.msk [vmem:[#allocation3 + $0x128] sm:$0xff] %vm1100, %v1375
    %1440 = vst.msk [vmem:[#allocation3 + $0x130] sm:$0xff] %vm1100, %v1376
    %1441 = vst.msk [vmem:[#allocation3 + $0x138] sm:$0xff] %vm1100, %v1377
    %1442 = vst.msk [vmem:[#allocation3 + $0x140] sm:$0xff] %vm1100, %v1378
    %1443 = vst.msk [vmem:[#allocation3 + $0x148] sm:$0xff] %vm1100, %v1379
    %1444 = vst.msk [vmem:[#allocation3 + $0x150] sm:$0xff] %vm1100, %v1380
    %1445 = vst.msk [vmem:[#allocation3 + $0x158] sm:$0xff] %vm1100, %v1381
    %1446 = vst.msk [vmem:[#allocation3 + $0x160] sm:$0xff] %vm1100, %v1382
    %1447 = vst.msk [vmem:[#allocation3 + $0x168] sm:$0xff] %vm1100, %v1383
    %1448 = vst.msk [vmem:[#allocation3 + $0x170] sm:$0xff] %vm1100, %v1384
    %1449 = vst.msk [vmem:[#allocation3 + $0x178] sm:$0xff] %vm1100, %v1385
    %1450 = vst.msk [vmem:[#allocation3 + $0x180] sm:$0xff] %vm1100, %v1386
    %1451 = vst.msk [vmem:[#allocation3 + $0x188] sm:$0xff] %vm1100, %v1387
    %1452 = vst.msk [vmem:[#allocation3 + $0x190] sm:$0xff] %vm1100, %v1388
    %1453 = vst.msk [vmem:[#allocation3 + $0x198] sm:$0xff] %vm1100, %v1389
    %1454 = vst.msk [vmem:[#allocation3 + $0x1a0] sm:$0xff] %vm1100, %v1390
    %1455 = vst.msk [vmem:[#allocation3 + $0x1a8] sm:$0xff] %vm1100, %v1391
    %1456 = vst.msk [vmem:[#allocation3 + $0x1b0] sm:$0xff] %vm1100, %v1392
    %1457 = vst.msk [vmem:[#allocation3 + $0x1b8] sm:$0xff] %vm1100, %v1393
    %1458 = vst.msk [vmem:[#allocation3 + $0x1c0] sm:$0xff] %vm1100, %v1394
    %1459 = vst.msk [vmem:[#allocation3 + $0x1c8] sm:$0xff] %vm1100, %v1395
    %1460 = vst.msk [vmem:[#allocation3 + $0x1d0] sm:$0xff] %vm1100, %v1396
    %1461 = vst.msk [vmem:[#allocation3 + $0x1d8] sm:$0xff] %vm1100, %v1397
    %1462 = vst.msk [vmem:[#allocation3 + $0x1e0] sm:$0xff] %vm1100, %v1398
    %1463 = vst.msk [vmem:[#allocation3 + $0x1e8] sm:$0xff] %vm1100, %v1399
    %1464 = vst.msk [vmem:[#allocation3 + $0x1f0] sm:$0xff] %vm1100, %v1400
    %1465 = vst.msk [vmem:[#allocation3 + $0x1f8] sm:$0xff] %vm1100, %v1401
    %v1466 = vld [vmem:[#allocation2 + $0x1] sm:$0xff]
    %v1467 = vld [vmem:[#allocation2 + $0x9] sm:$0xff]
    %v1468 = vld [vmem:[#allocation2 + $0x19] sm:$0xff]
    %v1469 = vld [vmem:[#allocation2 + $0x21] sm:$0xff]
    %v1470 = vld [vmem:[#allocation2 + $0x31] sm:$0xff]
    %v1471 = vld [vmem:[#allocation2 + $0x39] sm:$0xff]
    %v1472 = vld [vmem:[#allocation2 + $0x49] sm:$0xff]
    %v1473 = vld [vmem:[#allocation2 + $0x51] sm:$0xff]
    %v1474 = vld [vmem:[#allocation2 + $0x61] sm:$0xff]
    %v1475 = vld [vmem:[#allocation2 + $0x69] sm:$0xff]
    %v1476 = vld [vmem:[#allocation2 + $0x79] sm:$0xff]
    %v1477 = vld [vmem:[#allocation2 + $0x81] sm:$0xff]
    %v1478 = vld [vmem:[#allocation2 + $0x91] sm:$0xff]
    %v1479 = vld [vmem:[#allocation2 + $0x99] sm:$0xff]
    %v1480 = vld [vmem:[#allocation2 + $0xa9] sm:$0xff]
    %v1481 = vld [vmem:[#allocation2 + $0xb1] sm:$0xff]
    %v1482 = vld [vmem:[#allocation2 + $0xc1] sm:$0xff]
    %v1483 = vld [vmem:[#allocation2 + $0xc9] sm:$0xff]
    %v1484 = vld [vmem:[#allocation2 + $0xd9] sm:$0xff]
    %v1485 = vld [vmem:[#allocation2 + $0xe1] sm:$0xff]
    %v1486 = vld [vmem:[#allocation2 + $0xf1] sm:$0xff]
    %v1487 = vld [vmem:[#allocation2 + $0xf9] sm:$0xff]
    %v1488 = vld [vmem:[#allocation2 + $0x109] sm:$0xff]
    %v1489 = vld [vmem:[#allocation2 + $0x111] sm:$0xff]
    %v1490 = vld [vmem:[#allocation2 + $0x121] sm:$0xff]
    %v1491 = vld [vmem:[#allocation2 + $0x129] sm:$0xff]
    %v1492 = vld [vmem:[#allocation2 + $0x139] sm:$0xff]
    %v1493 = vld [vmem:[#allocation2 + $0x141] sm:$0xff]
    %v1494 = vld [vmem:[#allocation2 + $0x151] sm:$0xff]
    %v1495 = vld [vmem:[#allocation2 + $0x159] sm:$0xff]
    %v1496 = vld [vmem:[#allocation2 + $0x169] sm:$0xff]
    %v1497 = vld [vmem:[#allocation2 + $0x171] sm:$0xff]
    %v1498 = vld [vmem:[#allocation2 + $0x1b1] sm:$0xff]
    %v1499 = vld [vmem:[#allocation2 + $0x1b9] sm:$0xff]
    %v1500 = vld [vmem:[#allocation2 + $0x1c9] sm:$0xff]
    %v1501 = vld [vmem:[#allocation2 + $0x1d1] sm:$0xff]
    %v1502 = vld [vmem:[#allocation2 + $0x1e1] sm:$0xff]
    %v1503 = vld [vmem:[#allocation2 + $0x1e9] sm:$0xff]
    %v1504 = vld [vmem:[#allocation2 + $0x1f9] sm:$0xff]
    %v1505 = vld [vmem:[#allocation2 + $0x201] sm:$0xff]
    %v1506 = vld [vmem:[#allocation2 + $0x211] sm:$0xff]
    %v1507 = vld [vmem:[#allocation2 + $0x219] sm:$0xff]
    %v1508 = vld [vmem:[#allocation2 + $0x229] sm:$0xff]
    %v1509 = vld [vmem:[#allocation2 + $0x231] sm:$0xff]
    %v1510 = vld [vmem:[#allocation2 + $0x241] sm:$0xff]
    %v1511 = vld [vmem:[#allocation2 + $0x249] sm:$0xff]
    %v1512 = vld [vmem:[#allocation2 + $0x259] sm:$0xff]
    %v1513 = vld [vmem:[#allocation2 + $0x261] sm:$0xff]
    %v1514 = vld [vmem:[#allocation2 + $0x271] sm:$0xff]
    %v1515 = vld [vmem:[#allocation2 + $0x279] sm:$0xff]
    %v1516 = vld [vmem:[#allocation2 + $0x289] sm:$0xff]
    %v1517 = vld [vmem:[#allocation2 + $0x291] sm:$0xff]
    %v1518 = vld [vmem:[#allocation2 + $0x2a1] sm:$0xff]
    %v1519 = vld [vmem:[#allocation2 + $0x2a9] sm:$0xff]
    %v1520 = vld [vmem:[#allocation2 + $0x2b9] sm:$0xff]
    %v1521 = vld [vmem:[#allocation2 + $0x2c1] sm:$0xff]
    %v1522 = vld [vmem:[#allocation2 + $0x2d1] sm:$0xff]
    %v1523 = vld [vmem:[#allocation2 + $0x2d9] sm:$0xff]
    %v1524 = vld [vmem:[#allocation2 + $0x2e9] sm:$0xff]
    %v1525 = vld [vmem:[#allocation2 + $0x2f1] sm:$0xff]
    %v1526 = vld [vmem:[#allocation2 + $0x301] sm:$0xff]
    %v1527 = vld [vmem:[#allocation2 + $0x309] sm:$0xff]
    %v1528 = vld [vmem:[#allocation2 + $0x319] sm:$0xff]
    %v1529 = vld [vmem:[#allocation2 + $0x321] sm:$0xff]
    %1594 = vrot.lane.b32.xlu0 %v1466, 4
    %v1595 = vpop.permute.xlu0 %1594
    %1596 = vrot.lane.b32.xlu0 %v1467, 4
    %v1597 = vpop.permute.xlu0 %1596
    %1598 = vrot.lane.b32.xlu0 %v1468, 4
    %v1599 = vpop.permute.xlu0 %1598
    %1600 = vrot.lane.b32.xlu0 %v1469, 4
    %v1601 = vpop.permute.xlu0 %1600
    %1602 = vrot.lane.b32.xlu0 %v1470, 4
    %v1603 = vpop.permute.xlu0 %1602
    %1604 = vrot.lane.b32.xlu0 %v1471, 4
    %v1605 = vpop.permute.xlu0 %1604
    %1606 = vrot.lane.b32.xlu0 %v1472, 4
    %v1607 = vpop.permute.xlu0 %1606
    %1608 = vrot.lane.b32.xlu0 %v1473, 4
    %v1609 = vpop.permute.xlu0 %1608
    %1610 = vrot.lane.b32.xlu0 %v1474, 4
    %v1611 = vpop.permute.xlu0 %1610
    %1612 = vrot.lane.b32.xlu0 %v1475, 4
    %v1613 = vpop.permute.xlu0 %1612
    %1614 = vrot.lane.b32.xlu0 %v1476, 4
    %v1615 = vpop.permute.xlu0 %1614
    %1616 = vrot.lane.b32.xlu0 %v1477, 4
    %v1617 = vpop.permute.xlu0 %1616
    %1618 = vrot.lane.b32.xlu0 %v1478, 4
    %v1619 = vpop.permute.xlu0 %1618
    %1620 = vrot.lane.b32.xlu0 %v1479, 4
    %v1621 = vpop.permute.xlu0 %1620
    %1622 = vrot.lane.b32.xlu0 %v1480, 4
    %v1623 = vpop.permute.xlu0 %1622
    %1624 = vrot.lane.b32.xlu0 %v1481, 4
    %v1625 = vpop.permute.xlu0 %1624
    %1626 = vrot.lane.b32.xlu0 %v1482, 4
    %v1627 = vpop.permute.xlu0 %1626
    %1628 = vrot.lane.b32.xlu0 %v1483, 4
    %v1629 = vpop.permute.xlu0 %1628
    %1630 = vrot.lane.b32.xlu0 %v1484, 4
    %v1631 = vpop.permute.xlu0 %1630
    %1632 = vrot.lane.b32.xlu0 %v1485, 4
    %v1633 = vpop.permute.xlu0 %1632
    %1634 = vrot.lane.b32.xlu0 %v1486, 4
    %v1635 = vpop.permute.xlu0 %1634
    %1636 = vrot.lane.b32.xlu0 %v1487, 4
    %v1637 = vpop.permute.xlu0 %1636
    %1638 = vrot.lane.b32.xlu0 %v1488, 4
    %v1639 = vpop.permute.xlu0 %1638
    %1640 = vrot.lane.b32.xlu0 %v1489, 4
    %v1641 = vpop.permute.xlu0 %1640
    %1642 = vrot.lane.b32.xlu0 %v1490, 4
    %v1643 = vpop.permute.xlu0 %1642
    %1644 = vrot.lane.b32.xlu0 %v1491, 4
    %v1645 = vpop.permute.xlu0 %1644
    %1646 = vrot.lane.b32.xlu0 %v1492, 4
    %v1647 = vpop.permute.xlu0 %1646
    %1648 = vrot.lane.b32.xlu0 %v1493, 4
    %v1649 = vpop.permute.xlu0 %1648
    %1650 = vrot.lane.b32.xlu0 %v1494, 4
    %v1651 = vpop.permute.xlu0 %1650
    %1652 = vrot.lane.b32.xlu0 %v1495, 4
    %v1653 = vpop.permute.xlu0 %1652
    %1654 = vrot.lane.b32.xlu0 %v1496, 4
    %v1655 = vpop.permute.xlu0 %1654
    %1656 = vrot.lane.b32.xlu0 %v1497, 4
    %v1657 = vpop.permute.xlu0 %1656
    %1658 = vrot.lane.b32.xlu0 %v1498, 4
    %v1659 = vpop.permute.xlu0 %1658
    %1660 = vrot.lane.b32.xlu0 %v1499, 4
    %v1661 = vpop.permute.xlu0 %1660
    %1662 = vrot.lane.b32.xlu0 %v1500, 4
    %v1663 = vpop.permute.xlu0 %1662
    %1664 = vrot.lane.b32.xlu0 %v1501, 4
    %v1665 = vpop.permute.xlu0 %1664
    %1666 = vrot.lane.b32.xlu0 %v1502, 4
    %v1667 = vpop.permute.xlu0 %1666
    %1668 = vrot.lane.b32.xlu0 %v1503, 4
    %v1669 = vpop.permute.xlu0 %1668
    %1670 = vrot.lane.b32.xlu0 %v1504, 4
    %v1671 = vpop.permute.xlu0 %1670
    %1672 = vrot.lane.b32.xlu0 %v1505, 4
    %v1673 = vpop.permute.xlu0 %1672
    %1674 = vrot.lane.b32.xlu0 %v1506, 4
    %v1675 = vpop.permute.xlu0 %1674
    %1676 = vrot.lane.b32.xlu0 %v1507, 4
    %v1677 = vpop.permute.xlu0 %1676
    %1678 = vrot.lane.b32.xlu0 %v1508, 4
    %v1679 = vpop.permute.xlu0 %1678
    %1680 = vrot.lane.b32.xlu0 %v1509, 4
    %v1681 = vpop.permute.xlu0 %1680
    %1682 = vrot.lane.b32.xlu0 %v1510, 4
    %v1683 = vpop.permute.xlu0 %1682
    %1684 = vrot.lane.b32.xlu0 %v1511, 4
    %v1685 = vpop.permute.xlu0 %1684
    %1686 = vrot.lane.b32.xlu0 %v1512, 4
    %v1687 = vpop.permute.xlu0 %1686
    %1688 = vrot.lane.b32.xlu0 %v1513, 4
    %v1689 = vpop.permute.xlu0 %1688
    %1690 = vrot.lane.b32.xlu0 %v1514, 4
    %v1691 = vpop.permute.xlu0 %1690
    %1692 = vrot.lane.b32.xlu0 %v1515, 4
    %v1693 = vpop.permute.xlu0 %1692
    %1694 = vrot.lane.b32.xlu0 %v1516, 4
    %v1695 = vpop.permute.xlu0 %1694
    %1696 = vrot.lane.b32.xlu0 %v1517, 4
    %v1697 = vpop.permute.xlu0 %1696
    %1698 = vrot.lane.b32.xlu0 %v1518, 4
    %v1699 = vpop.permute.xlu0 %1698
    %1700 = vrot.lane.b32.xlu0 %v1519, 4
    %v1701 = vpop.permute.xlu0 %1700
    %1702 = vrot.lane.b32.xlu0 %v1520, 4
    %v1703 = vpop.permute.xlu0 %1702
    %1704 = vrot.lane.b32.xlu0 %v1521, 4
    %v1705 = vpop.permute.xlu0 %1704
    %1706 = vrot.lane.b32.xlu0 %v1522, 4
    %v1707 = vpop.permute.xlu0 %1706
    %1708 = vrot.lane.b32.xlu0 %v1523, 4
    %v1709 = vpop.permute.xlu0 %1708
    %1710 = vrot.lane.b32.xlu0 %v1524, 4
    %v1711 = vpop.permute.xlu0 %1710
    %1712 = vrot.lane.b32.xlu0 %v1525, 4
    %v1713 = vpop.permute.xlu0 %1712
    %1714 = vrot.lane.b32.xlu0 %v1526, 4
    %v1715 = vpop.permute.xlu0 %1714
    %1716 = vrot.lane.b32.xlu0 %v1527, 4
    %v1717 = vpop.permute.xlu0 %1716
    %1718 = vrot.lane.b32.xlu0 %v1528, 4
    %v1719 = vpop.permute.xlu0 %1718
    %1720 = vrot.lane.b32.xlu0 %v1529, 4
    %v1721 = vpop.permute.xlu0 %1720
    %vm1786 = vcmask 64544
    %1787 = vst.msk [vmem:[#allocation3] sm:$0xff] %vm1786, %v1595
    %1788 = vst.msk [vmem:[#allocation3 + $0x8] sm:$0xff] %vm1786, %v1597
    %1789 = vst.msk [vmem:[#allocation3 + $0x10] sm:$0xff] %vm1786, %v1599
    %1790 = vst.msk [vmem:[#allocation3 + $0x18] sm:$0xff] %vm1786, %v1601
    %1791 = vst.msk [vmem:[#allocation3 + $0x20] sm:$0xff] %vm1786, %v1603
    %1792 = vst.msk [vmem:[#allocation3 + $0x28] sm:$0xff] %vm1786, %v1605
    %1793 = vst.msk [vmem:[#allocation3 + $0x30] sm:$0xff] %vm1786, %v1607
    %1794 = vst.msk [vmem:[#allocation3 + $0x38] sm:$0xff] %vm1786, %v1609
    %1795 = vst.msk [vmem:[#allocation3 + $0x40] sm:$0xff] %vm1786, %v1611
    %1796 = vst.msk [vmem:[#allocation3 + $0x48] sm:$0xff] %vm1786, %v1613
    %1797 = vst.msk [vmem:[#allocation3 + $0x50] sm:$0xff] %vm1786, %v1615
    %1798 = vst.msk [vmem:[#allocation3 + $0x58] sm:$0xff] %vm1786, %v1617
    %1799 = vst.msk [vmem:[#allocation3 + $0x60] sm:$0xff] %vm1786, %v1619
    %1800 = vst.msk [vmem:[#allocation3 + $0x68] sm:$0xff] %vm1786, %v1621
    %1801 = vst.msk [vmem:[#allocation3 + $0x70] sm:$0xff] %vm1786, %v1623
    %1802 = vst.msk [vmem:[#allocation3 + $0x78] sm:$0xff] %vm1786, %v1625
    %1803 = vst.msk [vmem:[#allocation3 + $0x80] sm:$0xff] %vm1786, %v1627
    %1804 = vst.msk [vmem:[#allocation3 + $0x88] sm:$0xff] %vm1786, %v1629
    %1805 = vst.msk [vmem:[#allocation3 + $0x90] sm:$0xff] %vm1786, %v1631
    %1806 = vst.msk [vmem:[#allocation3 + $0x98] sm:$0xff] %vm1786, %v1633
    %1807 = vst.msk [vmem:[#allocation3 + $0xa0] sm:$0xff] %vm1786, %v1635
    %1808 = vst.msk [vmem:[#allocation3 + $0xa8] sm:$0xff] %vm1786, %v1637
    %1809 = vst.msk [vmem:[#allocation3 + $0xb0] sm:$0xff] %vm1786, %v1639
    %1810 = vst.msk [vmem:[#allocation3 + $0xb8] sm:$0xff] %vm1786, %v1641
    %1811 = vst.msk [vmem:[#allocation3 + $0xc0] sm:$0xff] %vm1786, %v1643
    %1812 = vst.msk [vmem:[#allocation3 + $0xc8] sm:$0xff] %vm1786, %v1645
    %1813 = vst.msk [vmem:[#allocation3 + $0xd0] sm:$0xff] %vm1786, %v1647
    %1814 = vst.msk [vmem:[#allocation3 + $0xd8] sm:$0xff] %vm1786, %v1649
    %1815 = vst.msk [vmem:[#allocation3 + $0xe0] sm:$0xff] %vm1786, %v1651
    %1816 = vst.msk [vmem:[#allocation3 + $0xe8] sm:$0xff] %vm1786, %v1653
    %1817 = vst.msk [vmem:[#allocation3 + $0xf0] sm:$0xff] %vm1786, %v1655
    %1818 = vst.msk [vmem:[#allocation3 + $0xf8] sm:$0xff] %vm1786, %v1657
    %1819 = vst.msk [vmem:[#allocation3 + $0x100] sm:$0xff] %vm1786, %v1659
    %1820 = vst.msk [vmem:[#allocation3 + $0x108] sm:$0xff] %vm1786, %v1661
    %1821 = vst.msk [vmem:[#allocation3 + $0x110] sm:$0xff] %vm1786, %v1663
    %1822 = vst.msk [vmem:[#allocation3 + $0x118] sm:$0xff] %vm1786, %v1665
    %1823 = vst.msk [vmem:[#allocation3 + $0x120] sm:$0xff] %vm1786, %v1667
    %1824 = vst.msk [vmem:[#allocation3 + $0x128] sm:$0xff] %vm1786, %v1669
    %1825 = vst.msk [vmem:[#allocation3 + $0x130] sm:$0xff] %vm1786, %v1671
    %1826 = vst.msk [vmem:[#allocation3 + $0x138] sm:$0xff] %vm1786, %v1673
    %1827 = vst.msk [vmem:[#allocation3 + $0x140] sm:$0xff] %vm1786, %v1675
    %1828 = vst.msk [vmem:[#allocation3 + $0x148] sm:$0xff] %vm1786, %v1677
    %1829 = vst.msk [vmem:[#allocation3 + $0x150] sm:$0xff] %vm1786, %v1679
    %1830 = vst.msk [vmem:[#allocation3 + $0x158] sm:$0xff] %vm1786, %v1681
    %1831 = vst.msk [vmem:[#allocation3 + $0x160] sm:$0xff] %vm1786, %v1683
    %1832 = vst.msk [vmem:[#allocation3 + $0x168] sm:$0xff] %vm1786, %v1685
    %1833 = vst.msk [vmem:[#allocation3 + $0x170] sm:$0xff] %vm1786, %v1687
    %1834 = vst.msk [vmem:[#allocation3 + $0x178] sm:$0xff] %vm1786, %v1689
    %1835 = vst.msk [vmem:[#allocation3 + $0x180] sm:$0xff] %vm1786, %v1691
    %1836 = vst.msk [vmem:[#allocation3 + $0x188] sm:$0xff] %vm1786, %v1693
    %1837 = vst.msk [vmem:[#allocation3 + $0x190] sm:$0xff] %vm1786, %v1695
    %1838 = vst.msk [vmem:[#allocation3 + $0x198] sm:$0xff] %vm1786, %v1697
    %1839 = vst.msk [vmem:[#allocation3 + $0x1a0] sm:$0xff] %vm1786, %v1699
    %1840 = vst.msk [vmem:[#allocation3 + $0x1a8] sm:$0xff] %vm1786, %v1701
    %1841 = vst.msk [vmem:[#allocation3 + $0x1b0] sm:$0xff] %vm1786, %v1703
    %1842 = vst.msk [vmem:[#allocation3 + $0x1b8] sm:$0xff] %vm1786, %v1705
    %1843 = vst.msk [vmem:[#allocation3 + $0x1c0] sm:$0xff] %vm1786, %v1707
    %1844 = vst.msk [vmem:[#allocation3 + $0x1c8] sm:$0xff] %vm1786, %v1709
    %1845 = vst.msk [vmem:[#allocation3 + $0x1d0] sm:$0xff] %vm1786, %v1711
    %1846 = vst.msk [vmem:[#allocation3 + $0x1d8] sm:$0xff] %vm1786, %v1713
    %1847 = vst.msk [vmem:[#allocation3 + $0x1e0] sm:$0xff] %vm1786, %v1715
    %1848 = vst.msk [vmem:[#allocation3 + $0x1e8] sm:$0xff] %vm1786, %v1717
    %1849 = vst.msk [vmem:[#allocation3 + $0x1f0] sm:$0xff] %vm1786, %v1719
    %1850 = vst.msk [vmem:[#allocation3 + $0x1f8] sm:$0xff] %vm1786, %v1721
    %v1851 = vld [vmem:[#allocation2 + $0x2] sm:$0xff]
    %v1852 = vld [vmem:[#allocation2 + $0xa] sm:$0xff]
    %v1853 = vld [vmem:[#allocation2 + $0x1a] sm:$0xff]
    %v1854 = vld [vmem:[#allocation2 + $0x22] sm:$0xff]
    %v1855 = vld [vmem:[#allocation2 + $0x32] sm:$0xff]
    %v1856 = vld [vmem:[#allocation2 + $0x3a] sm:$0xff]
    %v1857 = vld [vmem:[#allocation2 + $0x4a] sm:$0xff]
    %v1858 = vld [vmem:[#allocation2 + $0x52] sm:$0xff]
    %v1859 = vld [vmem:[#allocation2 + $0x62] sm:$0xff]
    %v1860 = vld [vmem:[#allocation2 + $0x6a] sm:$0xff]
    %v1861 = vld [vmem:[#allocation2 + $0x7a] sm:$0xff]
    %v1862 = vld [vmem:[#allocation2 + $0x82] sm:$0xff]
    %v1863 = vld [vmem:[#allocation2 + $0x92] sm:$0xff]
    %v1864 = vld [vmem:[#allocation2 + $0x9a] sm:$0xff]
    %v1865 = vld [vmem:[#allocation2 + $0xaa] sm:$0xff]
    %v1866 = vld [vmem:[#allocation2 + $0xb2] sm:$0xff]
    %v1867 = vld [vmem:[#allocation2 + $0xc2] sm:$0xff]
    %v1868 = vld [vmem:[#allocation2 + $0xca] sm:$0xff]
    %v1869 = vld [vmem:[#allocation2 + $0xda] sm:$0xff]
    %v1870 = vld [vmem:[#allocation2 + $0xe2] sm:$0xff]
    %v1871 = vld [vmem:[#allocation2 + $0xf2] sm:$0xff]
    %v1872 = vld [vmem:[#allocation2 + $0xfa] sm:$0xff]
    %v1873 = vld [vmem:[#allocation2 + $0x10a] sm:$0xff]
    %v1874 = vld [vmem:[#allocation2 + $0x112] sm:$0xff]
    %v1875 = vld [vmem:[#allocation2 + $0x122] sm:$0xff]
    %v1876 = vld [vmem:[#allocation2 + $0x12a] sm:$0xff]
    %v1877 = vld [vmem:[#allocation2 + $0x13a] sm:$0xff]
    %v1878 = vld [vmem:[#allocation2 + $0x142] sm:$0xff]
    %v1879 = vld [vmem:[#allocation2 + $0x152] sm:$0xff]
    %v1880 = vld [vmem:[#allocation2 + $0x15a] sm:$0xff]
    %v1881 = vld [vmem:[#allocation2 + $0x16a] sm:$0xff]
    %v1882 = vld [vmem:[#allocation2 + $0x172] sm:$0xff]
    %v1883 = vld [vmem:[#allocation2 + $0x1b2] sm:$0xff]
    %v1884 = vld [vmem:[#allocation2 + $0x1ba] sm:$0xff]
    %v1885 = vld [vmem:[#allocation2 + $0x1ca] sm:$0xff]
    %v1886 = vld [vmem:[#allocation2 + $0x1d2] sm:$0xff]
    %v1887 = vld [vmem:[#allocation2 + $0x1e2] sm:$0xff]
    %v1888 = vld [vmem:[#allocation2 + $0x1ea] sm:$0xff]
    %v1889 = vld [vmem:[#allocation2 + $0x1fa] sm:$0xff]
    %v1890 = vld [vmem:[#allocation2 + $0x202] sm:$0xff]
    %v1891 = vld [vmem:[#allocation2 + $0x212] sm:$0xff]
    %v1892 = vld [vmem:[#allocation2 + $0x21a] sm:$0xff]
    %v1893 = vld [vmem:[#allocation2 + $0x22a] sm:$0xff]
    %v1894 = vld [vmem:[#allocation2 + $0x232] sm:$0xff]
    %v1895 = vld [vmem:[#allocation2 + $0x242] sm:$0xff]
    %v1896 = vld [vmem:[#allocation2 + $0x24a] sm:$0xff]
    %v1897 = vld [vmem:[#allocation2 + $0x25a] sm:$0xff]
    %v1898 = vld [vmem:[#allocation2 + $0x262] sm:$0xff]
    %v1899 = vld [vmem:[#allocation2 + $0x272] sm:$0xff]
    %v1900 = vld [vmem:[#allocation2 + $0x27a] sm:$0xff]
    %v1901 = vld [vmem:[#allocation2 + $0x28a] sm:$0xff]
    %v1902 = vld [vmem:[#allocation2 + $0x292] sm:$0xff]
    %v1903 = vld [vmem:[#allocation2 + $0x2a2] sm:$0xff]
    %v1904 = vld [vmem:[#allocation2 + $0x2aa] sm:$0xff]
    %v1905 = vld [vmem:[#allocation2 + $0x2ba] sm:$0xff]
    %v1906 = vld [vmem:[#allocation2 + $0x2c2] sm:$0xff]
    %v1907 = vld [vmem:[#allocation2 + $0x2d2] sm:$0xff]
    %v1908 = vld [vmem:[#allocation2 + $0x2da] sm:$0xff]
    %v1909 = vld [vmem:[#allocation2 + $0x2ea] sm:$0xff]
    %v1910 = vld [vmem:[#allocation2 + $0x2f2] sm:$0xff]
    %v1911 = vld [vmem:[#allocation2 + $0x302] sm:$0xff]
    %v1912 = vld [vmem:[#allocation2 + $0x30a] sm:$0xff]
    %v1913 = vld [vmem:[#allocation2 + $0x31a] sm:$0xff]
    %v1914 = vld [vmem:[#allocation2 + $0x322] sm:$0xff]
    %1979 = vrot.lane.b32.xlu0 %v1851, 8
    %v1980 = vpop.permute.xlu0 %1979
    %1981 = vrot.lane.b32.xlu0 %v1852, 8
    %v1982 = vpop.permute.xlu0 %1981
    %1983 = vrot.lane.b32.xlu0 %v1853, 8
    %v1984 = vpop.permute.xlu0 %1983
    %1985 = vrot.lane.b32.xlu0 %v1854, 8
    %v1986 = vpop.permute.xlu0 %1985
    %1987 = vrot.lane.b32.xlu0 %v1855, 8
    %v1988 = vpop.permute.xlu0 %1987
    %1989 = vrot.lane.b32.xlu0 %v1856, 8
    %v1990 = vpop.permute.xlu0 %1989
    %1991 = vrot.lane.b32.xlu0 %v1857, 8
    %v1992 = vpop.permute.xlu0 %1991
    %1993 = vrot.lane.b32.xlu0 %v1858, 8
    %v1994 = vpop.permute.xlu0 %1993
    %1995 = vrot.lane.b32.xlu0 %v1859, 8
    %v1996 = vpop.permute.xlu0 %1995
    %1997 = vrot.lane.b32.xlu0 %v1860, 8
    %v1998 = vpop.permute.xlu0 %1997
    %1999 = vrot.lane.b32.xlu0 %v1861, 8
    %v2000 = vpop.permute.xlu0 %1999
    %2001 = vrot.lane.b32.xlu0 %v1862, 8
    %v2002 = vpop.permute.xlu0 %2001
    %2003 = vrot.lane.b32.xlu0 %v1863, 8
    %v2004 = vpop.permute.xlu0 %2003
    %2005 = vrot.lane.b32.xlu0 %v1864, 8
    %v2006 = vpop.permute.xlu0 %2005
    %2007 = vrot.lane.b32.xlu0 %v1865, 8
    %v2008 = vpop.permute.xlu0 %2007
    %2009 = vrot.lane.b32.xlu0 %v1866, 8
    %v2010 = vpop.permute.xlu0 %2009
    %2011 = vrot.lane.b32.xlu0 %v1867, 8
    %v2012 = vpop.permute.xlu0 %2011
    %2013 = vrot.lane.b32.xlu0 %v1868, 8
    %v2014 = vpop.permute.xlu0 %2013
    %2015 = vrot.lane.b32.xlu0 %v1869, 8
    %v2016 = vpop.permute.xlu0 %2015
    %2017 = vrot.lane.b32.xlu0 %v1870, 8
    %v2018 = vpop.permute.xlu0 %2017
    %2019 = vrot.lane.b32.xlu0 %v1871, 8
    %v2020 = vpop.permute.xlu0 %2019
    %2021 = vrot.lane.b32.xlu0 %v1872, 8
    %v2022 = vpop.permute.xlu0 %2021
    %2023 = vrot.lane.b32.xlu0 %v1873, 8
    %v2024 = vpop.permute.xlu0 %2023
    %2025 = vrot.lane.b32.xlu0 %v1874, 8
    %v2026 = vpop.permute.xlu0 %2025
    %2027 = vrot.lane.b32.xlu0 %v1875, 8
    %v2028 = vpop.permute.xlu0 %2027
    %2029 = vrot.lane.b32.xlu0 %v1876, 8
    %v2030 = vpop.permute.xlu0 %2029
    %2031 = vrot.lane.b32.xlu0 %v1877, 8
    %v2032 = vpop.permute.xlu0 %2031
    %2033 = vrot.lane.b32.xlu0 %v1878, 8
    %v2034 = vpop.permute.xlu0 %2033
    %2035 = vrot.lane.b32.xlu0 %v1879, 8
    %v2036 = vpop.permute.xlu0 %2035
    %2037 = vrot.lane.b32.xlu0 %v1880, 8
    %v2038 = vpop.permute.xlu0 %2037
    %2039 = vrot.lane.b32.xlu0 %v1881, 8
    %v2040 = vpop.permute.xlu0 %2039
    %2041 = vrot.lane.b32.xlu0 %v1882, 8
    %v2042 = vpop.permute.xlu0 %2041
    %2043 = vrot.lane.b32.xlu0 %v1883, 8
    %v2044 = vpop.permute.xlu0 %2043
    %2045 = vrot.lane.b32.xlu0 %v1884, 8
    %v2046 = vpop.permute.xlu0 %2045
    %2047 = vrot.lane.b32.xlu0 %v1885, 8
    %v2048 = vpop.permute.xlu0 %2047
    %2049 = vrot.lane.b32.xlu0 %v1886, 8
    %v2050 = vpop.permute.xlu0 %2049
    %2051 = vrot.lane.b32.xlu0 %v1887, 8
    %v2052 = vpop.permute.xlu0 %2051
    %2053 = vrot.lane.b32.xlu0 %v1888, 8
    %v2054 = vpop.permute.xlu0 %2053
    %2055 = vrot.lane.b32.xlu0 %v1889, 8
    %v2056 = vpop.permute.xlu0 %2055
    %2057 = vrot.lane.b32.xlu0 %v1890, 8
    %v2058 = vpop.permute.xlu0 %2057
    %2059 = vrot.lane.b32.xlu0 %v1891, 8
    %v2060 = vpop.permute.xlu0 %2059
    %2061 = vrot.lane.b32.xlu0 %v1892, 8
    %v2062 = vpop.permute.xlu0 %2061
    %2063 = vrot.lane.b32.xlu0 %v1893, 8
    %v2064 = vpop.permute.xlu0 %2063
    %2065 = vrot.lane.b32.xlu0 %v1894, 8
    %v2066 = vpop.permute.xlu0 %2065
    %2067 = vrot.lane.b32.xlu0 %v1895, 8
    %v2068 = vpop.permute.xlu0 %2067
    %2069 = vrot.lane.b32.xlu0 %v1896, 8
    %v2070 = vpop.permute.xlu0 %2069
    %2071 = vrot.lane.b32.xlu0 %v1897, 8
    %v2072 = vpop.permute.xlu0 %2071
    %2073 = vrot.lane.b32.xlu0 %v1898, 8
    %v2074 = vpop.permute.xlu0 %2073
    %2075 = vrot.lane.b32.xlu0 %v1899, 8
    %v2076 = vpop.permute.xlu0 %2075
    %2077 = vrot.lane.b32.xlu0 %v1900, 8
    %v2078 = vpop.permute.xlu0 %2077
    %2079 = vrot.lane.b32.xlu0 %v1901, 8
    %v2080 = vpop.permute.xlu0 %2079
    %2081 = vrot.lane.b32.xlu0 %v1902, 8
    %v2082 = vpop.permute.xlu0 %2081
    %2083 = vrot.lane.b32.xlu0 %v1903, 8
    %v2084 = vpop.permute.xlu0 %2083
    %2085 = vrot.lane.b32.xlu0 %v1904, 8
    %v2086 = vpop.permute.xlu0 %2085
    %2087 = vrot.lane.b32.xlu0 %v1905, 8
    %v2088 = vpop.permute.xlu0 %2087
    %2089 = vrot.lane.b32.xlu0 %v1906, 8
    %v2090 = vpop.permute.xlu0 %2089
    %2091 = vrot.lane.b32.xlu0 %v1907, 8
    %v2092 = vpop.permute.xlu0 %2091
    %2093 = vrot.lane.b32.xlu0 %v1908, 8
    %v2094 = vpop.permute.xlu0 %2093
    %2095 = vrot.lane.b32.xlu0 %v1909, 8
    %v2096 = vpop.permute.xlu0 %2095
    %2097 = vrot.lane.b32.xlu0 %v1910, 8
    %v2098 = vpop.permute.xlu0 %2097
    %2099 = vrot.lane.b32.xlu0 %v1911, 8
    %v2100 = vpop.permute.xlu0 %2099
    %2101 = vrot.lane.b32.xlu0 %v1912, 8
    %v2102 = vpop.permute.xlu0 %2101
    %2103 = vrot.lane.b32.xlu0 %v1913, 8
    %v2104 = vpop.permute.xlu0 %2103
    %2105 = vrot.lane.b32.xlu0 %v1914, 8
    %v2106 = vpop.permute.xlu0 %2105
    %vm2171 = vcmask 97344
    %2172 = vst.msk [vmem:[#allocation3] sm:$0xff] %vm2171, %v1980
    %2173 = vst.msk [vmem:[#allocation3 + $0x8] sm:$0xff] %vm2171, %v1982
    %2174 = vst.msk [vmem:[#allocation3 + $0x10] sm:$0xff] %vm2171, %v1984
    %2175 = vst.msk [vmem:[#allocation3 + $0x18] sm:$0xff] %vm2171, %v1986
    %2176 = vst.msk [vmem:[#allocation3 + $0x20] sm:$0xff] %vm2171, %v1988
    %2177 = vst.msk [vmem:[#allocation3 + $0x28] sm:$0xff] %vm2171, %v1990
    %2178 = vst.msk [vmem:[#allocation3 + $0x30] sm:$0xff] %vm2171, %v1992
    %2179 = vst.msk [vmem:[#allocation3 + $0x38] sm:$0xff] %vm2171, %v1994
    %2180 = vst.msk [vmem:[#allocation3 + $0x40] sm:$0xff] %vm2171, %v1996
    %2181 = vst.msk [vmem:[#allocation3 + $0x48] sm:$0xff] %vm2171, %v1998
    %2182 = vst.msk [vmem:[#allocation3 + $0x50] sm:$0xff] %vm2171, %v2000
    %2183 = vst.msk [vmem:[#allocation3 + $0x58] sm:$0xff] %vm2171, %v2002
    %2184 = vst.msk [vmem:[#allocation3 + $0x60] sm:$0xff] %vm2171, %v2004
    %2185 = vst.msk [vmem:[#allocation3 + $0x68] sm:$0xff] %vm2171, %v2006
    %2186 = vst.msk [vmem:[#allocation3 + $0x70] sm:$0xff] %vm2171, %v2008
    %2187 = vst.msk [vmem:[#allocation3 + $0x78] sm:$0xff] %vm2171, %v2010
    %2188 = vst.msk [vmem:[#allocation3 + $0x80] sm:$0xff] %vm2171, %v2012
    %2189 = vst.msk [vmem:[#allocation3 + $0x88] sm:$0xff] %vm2171, %v2014
    %2190 = vst.msk [vmem:[#allocation3 + $0x90] sm:$0xff] %vm2171, %v2016
    %2191 = vst.msk [vmem:[#allocation3 + $0x98] sm:$0xff] %vm2171, %v2018
    %2192 = vst.msk [vmem:[#allocation3 + $0xa0] sm:$0xff] %vm2171, %v2020
    %2193 = vst.msk [vmem:[#allocation3 + $0xa8] sm:$0xff] %vm2171, %v2022
    %2194 = vst.msk [vmem:[#allocation3 + $0xb0] sm:$0xff] %vm2171, %v2024
    %2195 = vst.msk [vmem:[#allocation3 + $0xb8] sm:$0xff] %vm2171, %v2026
    %2196 = vst.msk [vmem:[#allocation3 + $0xc0] sm:$0xff] %vm2171, %v2028
    %2197 = vst.msk [vmem:[#allocation3 + $0xc8] sm:$0xff] %vm2171, %v2030
    %2198 = vst.msk [vmem:[#allocation3 + $0xd0] sm:$0xff] %vm2171, %v2032
    %2199 = vst.msk [vmem:[#allocation3 + $0xd8] sm:$0xff] %vm2171, %v2034
    %2200 = vst.msk [vmem:[#allocation3 + $0xe0] sm:$0xff] %vm2171, %v2036
    %2201 = vst.msk [vmem:[#allocation3 + $0xe8] sm:$0xff] %vm2171, %v2038
    %2202 = vst.msk [vmem:[#allocation3 + $0xf0] sm:$0xff] %vm2171, %v2040
    %2203 = vst.msk [vmem:[#allocation3 + $0xf8] sm:$0xff] %vm2171, %v2042
    %2204 = vst.msk [vmem:[#allocation3 + $0x100] sm:$0xff] %vm2171, %v2044
    %2205 = vst.msk [vmem:[#allocation3 + $0x108] sm:$0xff] %vm2171, %v2046
    %2206 = vst.msk [vmem:[#allocation3 + $0x110] sm:$0xff] %vm2171, %v2048
    %2207 = vst.msk [vmem:[#allocation3 + $0x118] sm:$0xff] %vm2171, %v2050
    %2208 = vst.msk [vmem:[#allocation3 + $0x120] sm:$0xff] %vm2171, %v2052
    %2209 = vst.msk [vmem:[#allocation3 + $0x128] sm:$0xff] %vm2171, %v2054
    %2210 = vst.msk [vmem:[#allocation3 + $0x130] sm:$0xff] %vm2171, %v2056
    %2211 = vst.msk [vmem:[#allocation3 + $0x138] sm:$0xff] %vm2171, %v2058
    %2212 = vst.msk [vmem:[#allocation3 + $0x140] sm:$0xff] %vm2171, %v2060
    %2213 = vst.msk [vmem:[#allocation3 + $0x148] sm:$0xff] %vm2171, %v2062
    %2214 = vst.msk [vmem:[#allocation3 + $0x150] sm:$0xff] %vm2171, %v2064
    %2215 = vst.msk [vmem:[#allocation3 + $0x158] sm:$0xff] %vm2171, %v2066
    %2216 = vst.msk [vmem:[#allocation3 + $0x160] sm:$0xff] %vm2171, %v2068
    %2217 = vst.msk [vmem:[#allocation3 + $0x168] sm:$0xff] %vm2171, %v2070
    %2218 = vst.msk [vmem:[#allocation3 + $0x170] sm:$0xff] %vm2171, %v2072
    %2219 = vst.msk [vmem:[#allocation3 + $0x178] sm:$0xff] %vm2171, %v2074
    %2220 = vst.msk [vmem:[#allocation3 + $0x180] sm:$0xff] %vm2171, %v2076
    %2221 = vst.msk [vmem:[#allocation3 + $0x188] sm:$0xff] %vm2171, %v2078
    %2222 = vst.msk [vmem:[#allocation3 + $0x190] sm:$0xff] %vm2171, %v2080
    %2223 = vst.msk [vmem:[#allocation3 + $0x198] sm:$0xff] %vm2171, %v2082
    %2224 = vst.msk [vmem:[#allocation3 + $0x1a0] sm:$0xff] %vm2171, %v2084
    %2225 = vst.msk [vmem:[#allocation3 + $0x1a8] sm:$0xff] %vm2171, %v2086
    %2226 = vst.msk [vmem:[#allocation3 + $0x1b0] sm:$0xff] %vm2171, %v2088
    %2227 = vst.msk [vmem:[#allocation3 + $0x1b8] sm:$0xff] %vm2171, %v2090
    %2228 = vst.msk [vmem:[#allocation3 + $0x1c0] sm:$0xff] %vm2171, %v2092
    %2229 = vst.msk [vmem:[#allocation3 + $0x1c8] sm:$0xff] %vm2171, %v2094
    %2230 = vst.msk [vmem:[#allocation3 + $0x1d0] sm:$0xff] %vm2171, %v2096
    %2231 = vst.msk [vmem:[#allocation3 + $0x1d8] sm:$0xff] %vm2171, %v2098
    %2232 = vst.msk [vmem:[#allocation3 + $0x1e0] sm:$0xff] %vm2171, %v2100
    %2233 = vst.msk [vmem:[#allocation3 + $0x1e8] sm:$0xff] %vm2171, %v2102
    %2234 = vst.msk [vmem:[#allocation3 + $0x1f0] sm:$0xff] %vm2171, %v2104
    %2235 = vst.msk [vmem:[#allocation3 + $0x1f8] sm:$0xff] %vm2171, %v2106
    %v2236 = vld [vmem:[%s1209] sm:$0xff]
    %v2237 = vld [vmem:[%s1209 + $0x8] sm:$0xff]
    %v2238 = vld [vmem:[%s1209 + $0x18] sm:$0xff]
    %v2239 = vld [vmem:[%s1209 + $0x20] sm:$0xff]
    %v2240 = vld [vmem:[%s1209 + $0x30] sm:$0xff]
    %v2241 = vld [vmem:[%s1209 + $0x38] sm:$0xff]
    %v2242 = vld [vmem:[%s1209 + $0x48] sm:$0xff]
    %v2243 = vld [vmem:[%s1209 + $0x50] sm:$0xff]
    %v2244 = vld [vmem:[%s1209 + $0x60] sm:$0xff]
    %v2245 = vld [vmem:[%s1209 + $0x68] sm:$0xff]
    %v2246 = vld [vmem:[%s1209 + $0x78] sm:$0xff]
    %v2247 = vld [vmem:[%s1209 + $0x80] sm:$0xff]
    %v2248 = vld [vmem:[%s1209 + $0x90] sm:$0xff]
    %v2249 = vld [vmem:[%s1209 + $0x98] sm:$0xff]
    %v2250 = vld [vmem:[%s1209 + $0xa8] sm:$0xff]
    %v2251 = vld [vmem:[%s1209 + $0xb0] sm:$0xff]
    %v2252 = vld [vmem:[%s1209 + $0xc0] sm:$0xff]
    %v2253 = vld [vmem:[%s1209 + $0xc8] sm:$0xff]
    %v2254 = vld [vmem:[%s1209 + $0xd8] sm:$0xff]
    %v2255 = vld [vmem:[%s1209 + $0xe0] sm:$0xff]
    %v2256 = vld [vmem:[%s1209 + $0xf0] sm:$0xff]
    %v2257 = vld [vmem:[%s1209 + $0xf8] sm:$0xff]
    %v2258 = vld [vmem:[%s1209 + $0x108] sm:$0xff]
    %v2259 = vld [vmem:[%s1209 + $0x110] sm:$0xff]
    %v2260 = vld [vmem:[%s1209 + $0x120] sm:$0xff]
    %v2261 = vld [vmem:[%s1209 + $0x128] sm:$0xff]
    %v2262 = vld [vmem:[%s1209 + $0x138] sm:$0xff]
    %v2263 = vld [vmem:[%s1209 + $0x140] sm:$0xff]
    %v2264 = vld [vmem:[%s1209 + $0x150] sm:$0xff]
    %v2265 = vld [vmem:[%s1209 + $0x158] sm:$0xff]
    %v2266 = vld [vmem:[%s1209 + $0x168] sm:$0xff]
    %v2267 = vld [vmem:[%s1209 + $0x170] sm:$0xff]
    %v2268 = vld [vmem:[%s1209 + $0x1b0] sm:$0xff]
    %v2269 = vld [vmem:[%s1209 + $0x1b8] sm:$0xff]
    %v2270 = vld [vmem:[%s1209 + $0x1c8] sm:$0xff]
    %v2271 = vld [vmem:[%s1209 + $0x1d0] sm:$0xff]
    %v2272 = vld [vmem:[%s1209 + $0x1e0] sm:$0xff]
    %v2273 = vld [vmem:[%s1209 + $0x1e8] sm:$0xff]
    %v2274 = vld [vmem:[%s1209 + $0x1f8] sm:$0xff]
    %v2275 = vld [vmem:[%s1209 + $0x200] sm:$0xff]
    %v2276 = vld [vmem:[%s1209 + $0x210] sm:$0xff]
    %v2277 = vld [vmem:[%s1209 + $0x218] sm:$0xff]
    %v2278 = vld [vmem:[%s1209 + $0x228] sm:$0xff]
    %v2279 = vld [vmem:[%s1209 + $0x230] sm:$0xff]
    %v2280 = vld [vmem:[%s1209 + $0x240] sm:$0xff]
    %v2281 = vld [vmem:[%s1209 + $0x248] sm:$0xff]
    %v2282 = vld [vmem:[%s1209 + $0x258] sm:$0xff]
    %v2283 = vld [vmem:[%s1209 + $0x260] sm:$0xff]
    %v2284 = vld [vmem:[%s1209 + $0x270] sm:$0xff]
    %v2285 = vld [vmem:[%s1209 + $0x278] sm:$0xff]
    %v2286 = vld [vmem:[%s1209 + $0x288] sm:$0xff]
    %v2287 = vld [vmem:[%s1209 + $0x290] sm:$0xff]
    %v2288 = vld [vmem:[%s1209 + $0x2a0] sm:$0xff]
    %v2289 = vld [vmem:[%s1209 + $0x2a8] sm:$0xff]
    %v2290 = vld [vmem:[%s1209 + $0x2b8] sm:$0xff]
    %v2291 = vld [vmem:[%s1209 + $0x2c0] sm:$0xff]
    %v2292 = vld [vmem:[%s1209 + $0x2d0] sm:$0xff]
    %v2293 = vld [vmem:[%s1209 + $0x2d8] sm:$0xff]
    %v2294 = vld [vmem:[%s1209 + $0x2e8] sm:$0xff]
    %v2295 = vld [vmem:[%s1209 + $0x2f0] sm:$0xff]
    %v2296 = vld [vmem:[%s1209 + $0x300] sm:$0xff]
    %v2297 = vld [vmem:[%s1209 + $0x308] sm:$0xff]
    %v2298 = vld [vmem:[%s1209 + $0x318] sm:$0xff]
    %v2299 = vld [vmem:[%s1209 + $0x320] sm:$0xff]
    %2364 = vrot.lane.b32.xlu0 %v2236, 12
    %v2365 = vpop.permute.xlu0 %2364
    %2366 = vrot.lane.b32.xlu0 %v2237, 12
    %v2367 = vpop.permute.xlu0 %2366
    %2368 = vrot.lane.b32.xlu0 %v2238, 12
    %v2369 = vpop.permute.xlu0 %2368
    %2370 = vrot.lane.b32.xlu0 %v2239, 12
    %v2371 = vpop.permute.xlu0 %2370
    %2372 = vrot.lane.b32.xlu0 %v2240, 12
    %v2373 = vpop.permute.xlu0 %2372
    %2374 = vrot.lane.b32.xlu0 %v2241, 12
    %v2375 = vpop.permute.xlu0 %2374
    %2376 = vrot.lane.b32.xlu0 %v2242, 12
    %v2377 = vpop.permute.xlu0 %2376
    %2378 = vrot.lane.b32.xlu0 %v2243, 12
    %v2379 = vpop.permute.xlu0 %2378
    %2380 = vrot.lane.b32.xlu0 %v2244, 12
    %v2381 = vpop.permute.xlu0 %2380
    %2382 = vrot.lane.b32.xlu0 %v2245, 12
    %v2383 = vpop.permute.xlu0 %2382
    %2384 = vrot.lane.b32.xlu0 %v2246, 12
    %v2385 = vpop.permute.xlu0 %2384
    %2386 = vrot.lane.b32.xlu0 %v2247, 12
    %v2387 = vpop.permute.xlu0 %2386
    %2388 = vrot.lane.b32.xlu0 %v2248, 12
    %v2389 = vpop.permute.xlu0 %2388
    %2390 = vrot.lane.b32.xlu0 %v2249, 12
    %v2391 = vpop.permute.xlu0 %2390
    %2392 = vrot.lane.b32.xlu0 %v2250, 12
    %v2393 = vpop.permute.xlu0 %2392
    %2394 = vrot.lane.b32.xlu0 %v2251, 12
    %v2395 = vpop.permute.xlu0 %2394
    %2396 = vrot.lane.b32.xlu0 %v2252, 12
    %v2397 = vpop.permute.xlu0 %2396
    %2398 = vrot.lane.b32.xlu0 %v2253, 12
    %v2399 = vpop.permute.xlu0 %2398
    %2400 = vrot.lane.b32.xlu0 %v2254, 12
    %v2401 = vpop.permute.xlu0 %2400
    %2402 = vrot.lane.b32.xlu0 %v2255, 12
    %v2403 = vpop.permute.xlu0 %2402
    %2404 = vrot.lane.b32.xlu0 %v2256, 12
    %v2405 = vpop.permute.xlu0 %2404
    %2406 = vrot.lane.b32.xlu0 %v2257, 12
    %v2407 = vpop.permute.xlu0 %2406
    %2408 = vrot.lane.b32.xlu0 %v2258, 12
    %v2409 = vpop.permute.xlu0 %2408
    %2410 = vrot.lane.b32.xlu0 %v2259, 12
    %v2411 = vpop.permute.xlu0 %2410
    %2412 = vrot.lane.b32.xlu0 %v2260, 12
    %v2413 = vpop.permute.xlu0 %2412
    %2414 = vrot.lane.b32.xlu0 %v2261, 12
    %v2415 = vpop.permute.xlu0 %2414
    %2416 = vrot.lane.b32.xlu0 %v2262, 12
    %v2417 = vpop.permute.xlu0 %2416
    %2418 = vrot.lane.b32.xlu0 %v2263, 12
    %v2419 = vpop.permute.xlu0 %2418
    %2420 = vrot.lane.b32.xlu0 %v2264, 12
    %v2421 = vpop.permute.xlu0 %2420
    %2422 = vrot.lane.b32.xlu0 %v2265, 12
    %v2423 = vpop.permute.xlu0 %2422
    %2424 = vrot.lane.b32.xlu0 %v2266, 12
    %v2425 = vpop.permute.xlu0 %2424
    %2426 = vrot.lane.b32.xlu0 %v2267, 12
    %v2427 = vpop.permute.xlu0 %2426
    %2428 = vrot.lane.b32.xlu0 %v2268, 12
    %v2429 = vpop.permute.xlu0 %2428
    %2430 = vrot.lane.b32.xlu0 %v2269, 12
    %v2431 = vpop.permute.xlu0 %2430
    %2432 = vrot.lane.b32.xlu0 %v2270, 12
    %v2433 = vpop.permute.xlu0 %2432
    %2434 = vrot.lane.b32.xlu0 %v2271, 12
    %v2435 = vpop.permute.xlu0 %2434
    %2436 = vrot.lane.b32.xlu0 %v2272, 12
    %v2437 = vpop.permute.xlu0 %2436
    %2438 = vrot.lane.b32.xlu0 %v2273, 12
    %v2439 = vpop.permute.xlu0 %2438
    %2440 = vrot.lane.b32.xlu0 %v2274, 12
    %v2441 = vpop.permute.xlu0 %2440
    %2442 = vrot.lane.b32.xlu0 %v2275, 12
    %v2443 = vpop.permute.xlu0 %2442
    %2444 = vrot.lane.b32.xlu0 %v2276, 12
    %v2445 = vpop.permute.xlu0 %2444
    %2446 = vrot.lane.b32.xlu0 %v2277, 12
    %v2447 = vpop.permute.xlu0 %2446
    %2448 = vrot.lane.b32.xlu0 %v2278, 12
    %v2449 = vpop.permute.xlu0 %2448
    %2450 = vrot.lane.b32.xlu0 %v2279, 12
    %v2451 = vpop.permute.xlu0 %2450
    %2452 = vrot.lane.b32.xlu0 %v2280, 12
    %v2453 = vpop.permute.xlu0 %2452
    %2454 = vrot.lane.b32.xlu0 %v2281, 12
    %v2455 = vpop.permute.xlu0 %2454
    %2456 = vrot.lane.b32.xlu0 %v2282, 12
    %v2457 = vpop.permute.xlu0 %2456
    %2458 = vrot.lane.b32.xlu0 %v2283, 12
    %v2459 = vpop.permute.xlu0 %2458
    %2460 = vrot.lane.b32.xlu0 %v2284, 12
    %v2461 = vpop.permute.xlu0 %2460
    %2462 = vrot.lane.b32.xlu0 %v2285, 12
    %v2463 = vpop.permute.xlu0 %2462
    %2464 = vrot.lane.b32.xlu0 %v2286, 12
    %v2465 = vpop.permute.xlu0 %2464
    %2466 = vrot.lane.b32.xlu0 %v2287, 12
    %v2467 = vpop.permute.xlu0 %2466
    %2468 = vrot.lane.b32.xlu0 %v2288, 12
    %v2469 = vpop.permute.xlu0 %2468
    %2470 = vrot.lane.b32.xlu0 %v2289, 12
    %v2471 = vpop.permute.xlu0 %2470
    %2472 = vrot.lane.b32.xlu0 %v2290, 12
    %v2473 = vpop.permute.xlu0 %2472
    %2474 = vrot.lane.b32.xlu0 %v2291, 12
    %v2475 = vpop.permute.xlu0 %2474
    %2476 = vrot.lane.b32.xlu0 %v2292, 12
    %v2477 = vpop.permute.xlu0 %2476
    %2478 = vrot.lane.b32.xlu0 %v2293, 12
    %v2479 = vpop.permute.xlu0 %2478
    %2480 = vrot.lane.b32.xlu0 %v2294, 12
    %v2481 = vpop.permute.xlu0 %2480
    %2482 = vrot.lane.b32.xlu0 %v2295, 12
    %v2483 = vpop.permute.xlu0 %2482
    %2484 = vrot.lane.b32.xlu0 %v2296, 12
    %v2485 = vpop.permute.xlu0 %2484
    %2486 = vrot.lane.b32.xlu0 %v2297, 12
    %v2487 = vpop.permute.xlu0 %2486
    %2488 = vrot.lane.b32.xlu0 %v2298, 12
    %v2489 = vpop.permute.xlu0 %2488
    %2490 = vrot.lane.b32.xlu0 %v2299, 12
    %v2491 = vpop.permute.xlu0 %2490
    %vm2556 = vcmask 130144
    %2557 = vst.msk [vmem:[#allocation3] sm:$0xff] %vm2556, %v2365
    %2558 = vst.msk [vmem:[#allocation3 + $0x8] sm:$0xff] %vm2556, %v2367
    %2559 = vst.msk [vmem:[#allocation3 + $0x10] sm:$0xff] %vm2556, %v2369
    %2560 = vst.msk [vmem:[#allocation3 + $0x18] sm:$0xff] %vm2556, %v2371
    %2561 = vst.msk [vmem:[#allocation3 + $0x20] sm:$0xff] %vm2556, %v2373
    %2562 = vst.msk [vmem:[#allocation3 + $0x28] sm:$0xff] %vm2556, %v2375
    %2563 = vst.msk [vmem:[#allocation3 + $0x30] sm:$0xff] %vm2556, %v2377
    %2564 = vst.msk [vmem:[#allocation3 + $0x38] sm:$0xff] %vm2556, %v2379
    %2565 = vst.msk [vmem:[#allocation3 + $0x40] sm:$0xff] %vm2556, %v2381
    %2566 = vst.msk [vmem:[#allocation3 + $0x48] sm:$0xff] %vm2556, %v2383
    %2567 = vst.msk [vmem:[#allocation3 + $0x50] sm:$0xff] %vm2556, %v2385
    %2568 = vst.msk [vmem:[#allocation3 + $0x58] sm:$0xff] %vm2556, %v2387
    %2569 = vst.msk [vmem:[#allocation3 + $0x60] sm:$0xff] %vm2556, %v2389
    %2570 = vst.msk [vmem:[#allocation3 + $0x68] sm:$0xff] %vm2556, %v2391
    %2571 = vst.msk [vmem:[#allocation3 + $0x70] sm:$0xff] %vm2556, %v2393
    %2572 = vst.msk [vmem:[#allocation3 + $0x78] sm:$0xff] %vm2556, %v2395
    %2573 = vst.msk [vmem:[#allocation3 + $0x80] sm:$0xff] %vm2556, %v2397
    %2574 = vst.msk [vmem:[#allocation3 + $0x88] sm:$0xff] %vm2556, %v2399
    %2575 = vst.msk [vmem:[#allocation3 + $0x90] sm:$0xff] %vm2556, %v2401
    %2576 = vst.msk [vmem:[#allocation3 + $0x98] sm:$0xff] %vm2556, %v2403
    %2577 = vst.msk [vmem:[#allocation3 + $0xa0] sm:$0xff] %vm2556, %v2405
    %2578 = vst.msk [vmem:[#allocation3 + $0xa8] sm:$0xff] %vm2556, %v2407
    %2579 = vst.msk [vmem:[#allocation3 + $0xb0] sm:$0xff] %vm2556, %v2409
    %2580 = vst.msk [vmem:[#allocation3 + $0xb8] sm:$0xff] %vm2556, %v2411
    %2581 = vst.msk [vmem:[#allocation3 + $0xc0] sm:$0xff] %vm2556, %v2413
    %2582 = vst.msk [vmem:[#allocation3 + $0xc8] sm:$0xff] %vm2556, %v2415
    %2583 = vst.msk [vmem:[#allocation3 + $0xd0] sm:$0xff] %vm2556, %v2417
    %2584 = vst.msk [vmem:[#allocation3 + $0xd8] sm:$0xff] %vm2556, %v2419
    %2585 = vst.msk [vmem:[#allocation3 + $0xe0] sm:$0xff] %vm2556, %v2421
    %2586 = vst.msk [vmem:[#allocation3 + $0xe8] sm:$0xff] %vm2556, %v2423
    %2587 = vst.msk [vmem:[#allocation3 + $0xf0] sm:$0xff] %vm2556, %v2425
    %2588 = vst.msk [vmem:[#allocation3 + $0xf8] sm:$0xff] %vm2556, %v2427
    %2589 = vst.msk [vmem:[#allocation3 + $0x100] sm:$0xff] %vm2556, %v2429
    %2590 = vst.msk [vmem:[#allocation3 + $0x108] sm:$0xff] %vm2556, %v2431
    %2591 = vst.msk [vmem:[#allocation3 + $0x110] sm:$0xff] %vm2556, %v2433
    %2592 = vst.msk [vmem:[#allocation3 + $0x118] sm:$0xff] %vm2556, %v2435
    %2593 = vst.msk [vmem:[#allocation3 + $0x120] sm:$0xff] %vm2556, %v2437
    %2594 = vst.msk [vmem:[#allocation3 + $0x128] sm:$0xff] %vm2556, %v2439
    %2595 = vst.msk [vmem:[#allocation3 + $0x130] sm:$0xff] %vm2556, %v2441
    %2596 = vst.msk [vmem:[#allocation3 + $0x138] sm:$0xff] %vm2556, %v2443
    %2597 = vst.msk [vmem:[#allocation3 + $0x140] sm:$0xff] %vm2556, %v2445
    %2598 = vst.msk [vmem:[#allocation3 + $0x148] sm:$0xff] %vm2556, %v2447
    %2599 = vst.msk [vmem:[#allocation3 + $0x150] sm:$0xff] %vm2556, %v2449
    %2600 = vst.msk [vmem:[#allocation3 + $0x158] sm:$0xff] %vm2556, %v2451
    %2601 = vst.msk [vmem:[#allocation3 + $0x160] sm:$0xff] %vm2556, %v2453
    %2602 = vst.msk [vmem:[#allocation3 + $0x168] sm:$0xff] %vm2556, %v2455
    %2603 = vst.msk [vmem:[#allocation3 + $0x170] sm:$0xff] %vm2556, %v2457
    %2604 = vst.msk [vmem:[#allocation3 + $0x178] sm:$0xff] %vm2556, %v2459
    %2605 = vst.msk [vmem:[#allocation3 + $0x180] sm:$0xff] %vm2556, %v2461
    %2606 = vst.msk [vmem:[#allocation3 + $0x188] sm:$0xff] %vm2556, %v2463
    %2607 = vst.msk [vmem:[#allocation3 + $0x190] sm:$0xff] %vm2556, %v2465
    %2608 = vst.msk [vmem:[#allocation3 + $0x198] sm:$0xff] %vm2556, %v2467
    %2609 = vst.msk [vmem:[#allocation3 + $0x1a0] sm:$0xff] %vm2556, %v2469
    %2610 = vst.msk [vmem:[#allocation3 + $0x1a8] sm:$0xff] %vm2556, %v2471
    %2611 = vst.msk [vmem:[#allocation3 + $0x1b0] sm:$0xff] %vm2556, %v2473
    %2612 = vst.msk [vmem:[#allocation3 + $0x1b8] sm:$0xff] %vm2556, %v2475
    %2613 = vst.msk [vmem:[#allocation3 + $0x1c0] sm:$0xff] %vm2556, %v2477
    %2614 = vst.msk [vmem:[#allocation3 + $0x1c8] sm:$0xff] %vm2556, %v2479
    %2615 = vst.msk [vmem:[#allocation3 + $0x1d0] sm:$0xff] %vm2556, %v2481
    %2616 = vst.msk [vmem:[#allocation3 + $0x1d8] sm:$0xff] %vm2556, %v2483
    %2617 = vst.msk [vmem:[#allocation3 + $0x1e0] sm:$0xff] %vm2556, %v2485
    %2618 = vst.msk [vmem:[#allocation3 + $0x1e8] sm:$0xff] %vm2556, %v2487
    %2619 = vst.msk [vmem:[#allocation3 + $0x1f0] sm:$0xff] %vm2556, %v2489
    %2620 = vst.msk [vmem:[#allocation3 + $0x1f8] sm:$0xff] %vm2556, %v2491
    %v2621 = vld [vmem:[%s1209 + $0x1] sm:$0xff]
    %v2622 = vld [vmem:[%s1209 + $0x9] sm:$0xff]
    %v2623 = vld [vmem:[%s1209 + $0x19] sm:$0xff]
    %v2624 = vld [vmem:[%s1209 + $0x21] sm:$0xff]
    %v2625 = vld [vmem:[%s1209 + $0x31] sm:$0xff]
    %v2626 = vld [vmem:[%s1209 + $0x39] sm:$0xff]
    %v2627 = vld [vmem:[%s1209 + $0x49] sm:$0xff]
    %v2628 = vld [vmem:[%s1209 + $0x51] sm:$0xff]
    %v2629 = vld [vmem:[%s1209 + $0x61] sm:$0xff]
    %v2630 = vld [vmem:[%s1209 + $0x69] sm:$0xff]
    %v2631 = vld [vmem:[%s1209 + $0x79] sm:$0xff]
    %v2632 = vld [vmem:[%s1209 + $0x81] sm:$0xff]
    %v2633 = vld [vmem:[%s1209 + $0x91] sm:$0xff]
    %v2634 = vld [vmem:[%s1209 + $0x99] sm:$0xff]
    %v2635 = vld [vmem:[%s1209 + $0xa9] sm:$0xff]
    %v2636 = vld [vmem:[%s1209 + $0xb1] sm:$0xff]
    %v2637 = vld [vmem:[%s1209 + $0xc1] sm:$0xff]
    %v2638 = vld [vmem:[%s1209 + $0xc9] sm:$0xff]
    %v2639 = vld [vmem:[%s1209 + $0xd9] sm:$0xff]
    %v2640 = vld [vmem:[%s1209 + $0xe1] sm:$0xff]
    %v2641 = vld [vmem:[%s1209 + $0xf1] sm:$0xff]
    %v2642 = vld [vmem:[%s1209 + $0xf9] sm:$0xff]
    %v2643 = vld [vmem:[%s1209 + $0x109] sm:$0xff]
    %v2644 = vld [vmem:[%s1209 + $0x111] sm:$0xff]
    %v2645 = vld [vmem:[%s1209 + $0x121] sm:$0xff]
    %v2646 = vld [vmem:[%s1209 + $0x129] sm:$0xff]
    %v2647 = vld [vmem:[%s1209 + $0x139] sm:$0xff]
    %v2648 = vld [vmem:[%s1209 + $0x141] sm:$0xff]
    %v2649 = vld [vmem:[%s1209 + $0x151] sm:$0xff]
    %v2650 = vld [vmem:[%s1209 + $0x159] sm:$0xff]
    %v2651 = vld [vmem:[%s1209 + $0x169] sm:$0xff]
    %v2652 = vld [vmem:[%s1209 + $0x171] sm:$0xff]
    %v2653 = vld [vmem:[%s1209 + $0x1b1] sm:$0xff]
    %v2654 = vld [vmem:[%s1209 + $0x1b9] sm:$0xff]
    %v2655 = vld [vmem:[%s1209 + $0x1c9] sm:$0xff]
    %v2656 = vld [vmem:[%s1209 + $0x1d1] sm:$0xff]
    %v2657 = vld [vmem:[%s1209 + $0x1e1] sm:$0xff]
    %v2658 = vld [vmem:[%s1209 + $0x1e9] sm:$0xff]
    %v2659 = vld [vmem:[%s1209 + $0x1f9] sm:$0xff]
    %v2660 = vld [vmem:[%s1209 + $0x201] sm:$0xff]
    %v2661 = vld [vmem:[%s1209 + $0x211] sm:$0xff]
    %v2662 = vld [vmem:[%s1209 + $0x219] sm:$0xff]
    %v2663 = vld [vmem:[%s1209 + $0x229] sm:$0xff]
    %v2664 = vld [vmem:[%s1209 + $0x231] sm:$0xff]
    %v2665 = vld [vmem:[%s1209 + $0x241] sm:$0xff]
    %v2666 = vld [vmem:[%s1209 + $0x249] sm:$0xff]
    %v2667 = vld [vmem:[%s1209 + $0x259] sm:$0xff]
    %v2668 = vld [vmem:[%s1209 + $0x261] sm:$0xff]
    %v2669 = vld [vmem:[%s1209 + $0x271] sm:$0xff]
    %v2670 = vld [vmem:[%s1209 + $0x279] sm:$0xff]
    %v2671 = vld [vmem:[%s1209 + $0x289] sm:$0xff]
    %v2672 = vld [vmem:[%s1209 + $0x291] sm:$0xff]
    %v2673 = vld [vmem:[%s1209 + $0x2a1] sm:$0xff]
    %v2674 = vld [vmem:[%s1209 + $0x2a9] sm:$0xff]
    %v2675 = vld [vmem:[%s1209 + $0x2b9] sm:$0xff]
    %v2676 = vld [vmem:[%s1209 + $0x2c1] sm:$0xff]
    %v2677 = vld [vmem:[%s1209 + $0x2d1] sm:$0xff]
    %v2678 = vld [vmem:[%s1209 + $0x2d9] sm:$0xff]
    %v2679 = vld [vmem:[%s1209 + $0x2e9] sm:$0xff]
    %v2680 = vld [vmem:[%s1209 + $0x2f1] sm:$0xff]
    %v2681 = vld [vmem:[%s1209 + $0x301] sm:$0xff]
    %v2682 = vld [vmem:[%s1209 + $0x309] sm:$0xff]
    %v2683 = vld [vmem:[%s1209 + $0x319] sm:$0xff]
    %v2684 = vld [vmem:[%s1209 + $0x321] sm:$0xff]
    %2749 = vrot.lane.b32.xlu0 %v2621, 16
    %v2750 = vpop.permute.xlu0 %2749
    %2751 = vrot.lane.b32.xlu0 %v2622, 16
    %v2752 = vpop.permute.xlu0 %2751
    %2753 = vrot.lane.b32.xlu0 %v2623, 16
    %v2754 = vpop.permute.xlu0 %2753
    %2755 = vrot.lane.b32.xlu0 %v2624, 16
    %v2756 = vpop.permute.xlu0 %2755
    %2757 = vrot.lane.b32.xlu0 %v2625, 16
    %v2758 = vpop.permute.xlu0 %2757
    %2759 = vrot.lane.b32.xlu0 %v2626, 16
    %v2760 = vpop.permute.xlu0 %2759
    %2761 = vrot.lane.b32.xlu0 %v2627, 16
    %v2762 = vpop.permute.xlu0 %2761
    %2763 = vrot.lane.b32.xlu0 %v2628, 16
    %v2764 = vpop.permute.xlu0 %2763
    %2765 = vrot.lane.b32.xlu0 %v2629, 16
    %v2766 = vpop.permute.xlu0 %2765
    %2767 = vrot.lane.b32.xlu0 %v2630, 16
    %v2768 = vpop.permute.xlu0 %2767
    %2769 = vrot.lane.b32.xlu0 %v2631, 16
    %v2770 = vpop.permute.xlu0 %2769
    %2771 = vrot.lane.b32.xlu0 %v2632, 16
    %v2772 = vpop.permute.xlu0 %2771
    %2773 = vrot.lane.b32.xlu0 %v2633, 16
    %v2774 = vpop.permute.xlu0 %2773
    %2775 = vrot.lane.b32.xlu0 %v2634, 16
    %v2776 = vpop.permute.xlu0 %2775
    %2777 = vrot.lane.b32.xlu0 %v2635, 16
    %v2778 = vpop.permute.xlu0 %2777
    %2779 = vrot.lane.b32.xlu0 %v2636, 16
    %v2780 = vpop.permute.xlu0 %2779
    %2781 = vrot.lane.b32.xlu0 %v2637, 16
    %v2782 = vpop.permute.xlu0 %2781
    %2783 = vrot.lane.b32.xlu0 %v2638, 16
    %v2784 = vpop.permute.xlu0 %2783
    %2785 = vrot.lane.b32.xlu0 %v2639, 16
    %v2786 = vpop.permute.xlu0 %2785
    %2787 = vrot.lane.b32.xlu0 %v2640, 16
    %v2788 = vpop.permute.xlu0 %2787
    %2789 = vrot.lane.b32.xlu0 %v2641, 16
    %v2790 = vpop.permute.xlu0 %2789
    %2791 = vrot.lane.b32.xlu0 %v2642, 16
    %v2792 = vpop.permute.xlu0 %2791
    %2793 = vrot.lane.b32.xlu0 %v2643, 16
    %v2794 = vpop.permute.xlu0 %2793
    %2795 = vrot.lane.b32.xlu0 %v2644, 16
    %v2796 = vpop.permute.xlu0 %2795
    %2797 = vrot.lane.b32.xlu0 %v2645, 16
    %v2798 = vpop.permute.xlu0 %2797
    %2799 = vrot.lane.b32.xlu0 %v2646, 16
    %v2800 = vpop.permute.xlu0 %2799
    %2801 = vrot.lane.b32.xlu0 %v2647, 16
    %v2802 = vpop.permute.xlu0 %2801
    %2803 = vrot.lane.b32.xlu0 %v2648, 16
    %v2804 = vpop.permute.xlu0 %2803
    %2805 = vrot.lane.b32.xlu0 %v2649, 16
    %v2806 = vpop.permute.xlu0 %2805
    %2807 = vrot.lane.b32.xlu0 %v2650, 16
    %v2808 = vpop.permute.xlu0 %2807
    %2809 = vrot.lane.b32.xlu0 %v2651, 16
    %v2810 = vpop.permute.xlu0 %2809
    %2811 = vrot.lane.b32.xlu0 %v2652, 16
    %v2812 = vpop.permute.xlu0 %2811
    %2813 = vrot.lane.b32.xlu0 %v2653, 16
    %v2814 = vpop.permute.xlu0 %2813
    %2815 = vrot.lane.b32.xlu0 %v2654, 16
    %v2816 = vpop.permute.xlu0 %2815
    %2817 = vrot.lane.b32.xlu0 %v2655, 16
    %v2818 = vpop.permute.xlu0 %2817
    %2819 = vrot.lane.b32.xlu0 %v2656, 16
    %v2820 = vpop.permute.xlu0 %2819
    %2821 = vrot.lane.b32.xlu0 %v2657, 16
    %v2822 = vpop.permute.xlu0 %2821
    %2823 = vrot.lane.b32.xlu0 %v2658, 16
    %v2824 = vpop.permute.xlu0 %2823
    %2825 = vrot.lane.b32.xlu0 %v2659, 16
    %v2826 = vpop.permute.xlu0 %2825
    %2827 = vrot.lane.b32.xlu0 %v2660, 16
    %v2828 = vpop.permute.xlu0 %2827
    %2829 = vrot.lane.b32.xlu0 %v2661, 16
    %v2830 = vpop.permute.xlu0 %2829
    %2831 = vrot.lane.b32.xlu0 %v2662, 16
    %v2832 = vpop.permute.xlu0 %2831
    %2833 = vrot.lane.b32.xlu0 %v2663, 16
    %v2834 = vpop.permute.xlu0 %2833
    %2835 = vrot.lane.b32.xlu0 %v2664, 16
    %v2836 = vpop.permute.xlu0 %2835
    %2837 = vrot.lane.b32.xlu0 %v2665, 16
    %v2838 = vpop.permute.xlu0 %2837
    %2839 = vrot.lane.b32.xlu0 %v2666, 16
    %v2840 = vpop.permute.xlu0 %2839
    %2841 = vrot.lane.b32.xlu0 %v2667, 16
    %v2842 = vpop.permute.xlu0 %2841
    %2843 = vrot.lane.b32.xlu0 %v2668, 16
    %v2844 = vpop.permute.xlu0 %2843
    %2845 = vrot.lane.b32.xlu0 %v2669, 16
    %v2846 = vpop.permute.xlu0 %2845
    %2847 = vrot.lane.b32.xlu0 %v2670, 16
    %v2848 = vpop.permute.xlu0 %2847
    %2849 = vrot.lane.b32.xlu0 %v2671, 16
    %v2850 = vpop.permute.xlu0 %2849
    %2851 = vrot.lane.b32.xlu0 %v2672, 16
    %v2852 = vpop.permute.xlu0 %2851
    %2853 = vrot.lane.b32.xlu0 %v2673, 16
    %v2854 = vpop.permute.xlu0 %2853
    %2855 = vrot.lane.b32.xlu0 %v2674, 16
    %v2856 = vpop.permute.xlu0 %2855
    %2857 = vrot.lane.b32.xlu0 %v2675, 16
    %v2858 = vpop.permute.xlu0 %2857
    %2859 = vrot.lane.b32.xlu0 %v2676, 16
    %v2860 = vpop.permute.xlu0 %2859
    %2861 = vrot.lane.b32.xlu0 %v2677, 16
    %v2862 = vpop.permute.xlu0 %2861
    %2863 = vrot.lane.b32.xlu0 %v2678, 16
    %v2864 = vpop.permute.xlu0 %2863
    %2865 = vrot.lane.b32.xlu0 %v2679, 16
    %v2866 = vpop.permute.xlu0 %2865
    %2867 = vrot.lane.b32.xlu0 %v2680, 16
    %v2868 = vpop.permute.xlu0 %2867
    %2869 = vrot.lane.b32.xlu0 %v2681, 16
    %v2870 = vpop.permute.xlu0 %2869
    %2871 = vrot.lane.b32.xlu0 %v2682, 16
    %v2872 = vpop.permute.xlu0 %2871
    %2873 = vrot.lane.b32.xlu0 %v2683, 16
    %v2874 = vpop.permute.xlu0 %2873
    %2875 = vrot.lane.b32.xlu0 %v2684, 16
    %v2876 = vpop.permute.xlu0 %2875
    %vm2941 = vcmask 162944
    %2942 = vst.msk [vmem:[#allocation3] sm:$0xff] %vm2941, %v2750
    %2943 = vst.msk [vmem:[#allocation3 + $0x8] sm:$0xff] %vm2941, %v2752
    %2944 = vst.msk [vmem:[#allocation3 + $0x10] sm:$0xff] %vm2941, %v2754
    %2945 = vst.msk [vmem:[#allocation3 + $0x18] sm:$0xff] %vm2941, %v2756
    %2946 = vst.msk [vmem:[#allocation3 + $0x20] sm:$0xff] %vm2941, %v2758
    %2947 = vst.msk [vmem:[#allocation3 + $0x28] sm:$0xff] %vm2941, %v2760
    %2948 = vst.msk [vmem:[#allocation3 + $0x30] sm:$0xff] %vm2941, %v2762
    %2949 = vst.msk [vmem:[#allocation3 + $0x38] sm:$0xff] %vm2941, %v2764
    %2950 = vst.msk [vmem:[#allocation3 + $0x40] sm:$0xff] %vm2941, %v2766
    %2951 = vst.msk [vmem:[#allocation3 + $0x48] sm:$0xff] %vm2941, %v2768
    %2952 = vst.msk [vmem:[#allocation3 + $0x50] sm:$0xff] %vm2941, %v2770
    %2953 = vst.msk [vmem:[#allocation3 + $0x58] sm:$0xff] %vm2941, %v2772
    %2954 = vst.msk [vmem:[#allocation3 + $0x60] sm:$0xff] %vm2941, %v2774
    %2955 = vst.msk [vmem:[#allocation3 + $0x68] sm:$0xff] %vm2941, %v2776
    %2956 = vst.msk [vmem:[#allocation3 + $0x70] sm:$0xff] %vm2941, %v2778
    %2957 = vst.msk [vmem:[#allocation3 + $0x78] sm:$0xff] %vm2941, %v2780
    %2958 = vst.msk [vmem:[#allocation3 + $0x80] sm:$0xff] %vm2941, %v2782
    %2959 = vst.msk [vmem:[#allocation3 + $0x88] sm:$0xff] %vm2941, %v2784
    %2960 = vst.msk [vmem:[#allocation3 + $0x90] sm:$0xff] %vm2941, %v2786
    %2961 = vst.msk [vmem:[#allocation3 + $0x98] sm:$0xff] %vm2941, %v2788
    %2962 = vst.msk [vmem:[#allocation3 + $0xa0] sm:$0xff] %vm2941, %v2790
    %2963 = vst.msk [vmem:[#allocation3 + $0xa8] sm:$0xff] %vm2941, %v2792
    %2964 = vst.msk [vmem:[#allocation3 + $0xb0] sm:$0xff] %vm2941, %v2794
    %2965 = vst.msk [vmem:[#allocation3 + $0xb8] sm:$0xff] %vm2941, %v2796
    %2966 = vst.msk [vmem:[#allocation3 + $0xc0] sm:$0xff] %vm2941, %v2798
    %2967 = vst.msk [vmem:[#allocation3 + $0xc8] sm:$0xff] %vm2941, %v2800
    %2968 = vst.msk [vmem:[#allocation3 + $0xd0] sm:$0xff] %vm2941, %v2802
    %2969 = vst.msk [vmem:[#allocation3 + $0xd8] sm:$0xff] %vm2941, %v2804
    %2970 = vst.msk [vmem:[#allocation3 + $0xe0] sm:$0xff] %vm2941, %v2806
    %2971 = vst.msk [vmem:[#allocation3 + $0xe8] sm:$0xff] %vm2941, %v2808
    %2972 = vst.msk [vmem:[#allocation3 + $0xf0] sm:$0xff] %vm2941, %v2810
    %2973 = vst.msk [vmem:[#allocation3 + $0xf8] sm:$0xff] %vm2941, %v2812
    %2974 = vst.msk [vmem:[#allocation3 + $0x100] sm:$0xff] %vm2941, %v2814
    %2975 = vst.msk [vmem:[#allocation3 + $0x108] sm:$0xff] %vm2941, %v2816
    %2976 = vst.msk [vmem:[#allocation3 + $0x110] sm:$0xff] %vm2941, %v2818
    %2977 = vst.msk [vmem:[#allocation3 + $0x118] sm:$0xff] %vm2941, %v2820
    %2978 = vst.msk [vmem:[#allocation3 + $0x120] sm:$0xff] %vm2941, %v2822
    %2979 = vst.msk [vmem:[#allocation3 + $0x128] sm:$0xff] %vm2941, %v2824
    %2980 = vst.msk [vmem:[#allocation3 + $0x130] sm:$0xff] %vm2941, %v2826
    %2981 = vst.msk [vmem:[#allocation3 + $0x138] sm:$0xff] %vm2941, %v2828
    %2982 = vst.msk [vmem:[#allocation3 + $0x140] sm:$0xff] %vm2941, %v2830
    %2983 = vst.msk [vmem:[#allocation3 + $0x148] sm:$0xff] %vm2941, %v2832
    %2984 = vst.msk [vmem:[#allocation3 + $0x150] sm:$0xff] %vm2941, %v2834
    %2985 = vst.msk [vmem:[#allocation3 + $0x158] sm:$0xff] %vm2941, %v2836
    %2986 = vst.msk [vmem:[#allocation3 + $0x160] sm:$0xff] %vm2941, %v2838
    %2987 = vst.msk [vmem:[#allocation3 + $0x168] sm:$0xff] %vm2941, %v2840
    %2988 = vst.msk [vmem:[#allocation3 + $0x170] sm:$0xff] %vm2941, %v2842
    %2989 = vst.msk [vmem:[#allocation3 + $0x178] sm:$0xff] %vm2941, %v2844
    %2990 = vst.msk [vmem:[#allocation3 + $0x180] sm:$0xff] %vm2941, %v2846
    %2991 = vst.msk [vmem:[#allocation3 + $0x188] sm:$0xff] %vm2941, %v2848
    %2992 = vst.msk [vmem:[#allocation3 + $0x190] sm:$0xff] %vm2941, %v2850
    %2993 = vst.msk [vmem:[#allocation3 + $0x198] sm:$0xff] %vm2941, %v2852
    %2994 = vst.msk [vmem:[#allocation3 + $0x1a0] sm:$0xff] %vm2941, %v2854
    %2995 = vst.msk [vmem:[#allocation3 + $0x1a8] sm:$0xff] %vm2941, %v2856
    %2996 = vst.msk [vmem:[#allocation3 + $0x1b0] sm:$0xff] %vm2941, %v2858
    %2997 = vst.msk [vmem:[#allocation3 + $0x1b8] sm:$0xff] %vm2941, %v2860
    %2998 = vst.msk [vmem:[#allocation3 + $0x1c0] sm:$0xff] %vm2941, %v2862
    %2999 = vst.msk [vmem:[#allocation3 + $0x1c8] sm:$0xff] %vm2941, %v2864
    %3000 = vst.msk [vmem:[#allocation3 + $0x1d0] sm:$0xff] %vm2941, %v2866
    %3001 = vst.msk [vmem:[#allocation3 + $0x1d8] sm:$0xff] %vm2941, %v2868
    %3002 = vst.msk [vmem:[#allocation3 + $0x1e0] sm:$0xff] %vm2941, %v2870
    %3003 = vst.msk [vmem:[#allocation3 + $0x1e8] sm:$0xff] %vm2941, %v2872
    %3004 = vst.msk [vmem:[#allocation3 + $0x1f0] sm:$0xff] %vm2941, %v2874
    %3005 = vst.msk [vmem:[#allocation3 + $0x1f8] sm:$0xff] %vm2941, %v2876
    %v3006 = vld [vmem:[%s1209 + $0x2] sm:$0xff]
    %v3007 = vld [vmem:[%s1209 + $0xa] sm:$0xff]
    %v3008 = vld [vmem:[%s1209 + $0x1a] sm:$0xff]
    %v3009 = vld [vmem:[%s1209 + $0x22] sm:$0xff]
    %v3010 = vld [vmem:[%s1209 + $0x32] sm:$0xff]
    %v3011 = vld [vmem:[%s1209 + $0x3a] sm:$0xff]
    %v3012 = vld [vmem:[%s1209 + $0x4a] sm:$0xff]
    %v3013 = vld [vmem:[%s1209 + $0x52] sm:$0xff]
    %v3014 = vld [vmem:[%s1209 + $0x62] sm:$0xff]
    %v3015 = vld [vmem:[%s1209 + $0x6a] sm:$0xff]
    %v3016 = vld [vmem:[%s1209 + $0x7a] sm:$0xff]
    %v3017 = vld [vmem:[%s1209 + $0x82] sm:$0xff]
    %v3018 = vld [vmem:[%s1209 + $0x92] sm:$0xff]
    %v3019 = vld [vmem:[%s1209 + $0x9a] sm:$0xff]
    %v3020 = vld [vmem:[%s1209 + $0xaa] sm:$0xff]
    %v3021 = vld [vmem:[%s1209 + $0xb2] sm:$0xff]
    %v3022 = vld [vmem:[%s1209 + $0xc2] sm:$0xff]
    %v3023 = vld [vmem:[%s1209 + $0xca] sm:$0xff]
    %v3024 = vld [vmem:[%s1209 + $0xda] sm:$0xff]
    %v3025 = vld [vmem:[%s1209 + $0xe2] sm:$0xff]
    %v3026 = vld [vmem:[%s1209 + $0xf2] sm:$0xff]
    %v3027 = vld [vmem:[%s1209 + $0xfa] sm:$0xff]
    %v3028 = vld [vmem:[%s1209 + $0x10a] sm:$0xff]
    %v3029 = vld [vmem:[%s1209 + $0x112] sm:$0xff]
    %v3030 = vld [vmem:[%s1209 + $0x122] sm:$0xff]
    %v3031 = vld [vmem:[%s1209 + $0x12a] sm:$0xff]
    %v3032 = vld [vmem:[%s1209 + $0x13a] sm:$0xff]
    %v3033 = vld [vmem:[%s1209 + $0x142] sm:$0xff]
    %v3034 = vld [vmem:[%s1209 + $0x152] sm:$0xff]
    %v3035 = vld [vmem:[%s1209 + $0x15a] sm:$0xff]
    %v3036 = vld [vmem:[%s1209 + $0x16a] sm:$0xff]
    %v3037 = vld [vmem:[%s1209 + $0x172] sm:$0xff]
    %v3038 = vld [vmem:[%s1209 + $0x1b2] sm:$0xff]
    %v3039 = vld [vmem:[%s1209 + $0x1ba] sm:$0xff]
    %v3040 = vld [vmem:[%s1209 + $0x1ca] sm:$0xff]
    %v3041 = vld [vmem:[%s1209 + $0x1d2] sm:$0xff]
    %v3042 = vld [vmem:[%s1209 + $0x1e2] sm:$0xff]
    %v3043 = vld [vmem:[%s1209 + $0x1ea] sm:$0xff]
    %v3044 = vld [vmem:[%s1209 + $0x1fa] sm:$0xff]
    %v3045 = vld [vmem:[%s1209 + $0x202] sm:$0xff]
    %v3046 = vld [vmem:[%s1209 + $0x212] sm:$0xff]
    %v3047 = vld [vmem:[%s1209 + $0x21a] sm:$0xff]
    %v3048 = vld [vmem:[%s1209 + $0x22a] sm:$0xff]
    %v3049 = vld [vmem:[%s1209 + $0x232] sm:$0xff]
    %v3050 = vld [vmem:[%s1209 + $0x242] sm:$0xff]
    %v3051 = vld [vmem:[%s1209 + $0x24a] sm:$0xff]
    %v3052 = vld [vmem:[%s1209 + $0x25a] sm:$0xff]
    %v3053 = vld [vmem:[%s1209 + $0x262] sm:$0xff]
    %v3054 = vld [vmem:[%s1209 + $0x272] sm:$0xff]
    %v3055 = vld [vmem:[%s1209 + $0x27a] sm:$0xff]
    %v3056 = vld [vmem:[%s1209 + $0x28a] sm:$0xff]
    %v3057 = vld [vmem:[%s1209 + $0x292] sm:$0xff]
    %v3058 = vld [vmem:[%s1209 + $0x2a2] sm:$0xff]
    %v3059 = vld [vmem:[%s1209 + $0x2aa] sm:$0xff]
    %v3060 = vld [vmem:[%s1209 + $0x2ba] sm:$0xff]
    %v3061 = vld [vmem:[%s1209 + $0x2c2] sm:$0xff]
    %v3062 = vld [vmem:[%s1209 + $0x2d2] sm:$0xff]
    %v3063 = vld [vmem:[%s1209 + $0x2da] sm:$0xff]
    %v3064 = vld [vmem:[%s1209 + $0x2ea] sm:$0xff]
    %v3065 = vld [vmem:[%s1209 + $0x2f2] sm:$0xff]
    %v3066 = vld [vmem:[%s1209 + $0x302] sm:$0xff]
    %v3067 = vld [vmem:[%s1209 + $0x30a] sm:$0xff]
    %v3068 = vld [vmem:[%s1209 + $0x31a] sm:$0xff]
    %v3069 = vld [vmem:[%s1209 + $0x322] sm:$0xff]
    %3134 = vrot.lane.b32.xlu0 %v3006, 20
    %v3135 = vpop.permute.xlu0 %3134
    %3136 = vrot.lane.b32.xlu0 %v3007, 20
    %v3137 = vpop.permute.xlu0 %3136
    %3138 = vrot.lane.b32.xlu0 %v3008, 20
    %v3139 = vpop.permute.xlu0 %3138
    %3140 = vrot.lane.b32.xlu0 %v3009, 20
    %v3141 = vpop.permute.xlu0 %3140
    %3142 = vrot.lane.b32.xlu0 %v3010, 20
    %v3143 = vpop.permute.xlu0 %3142
    %3144 = vrot.lane.b32.xlu0 %v3011, 20
    %v3145 = vpop.permute.xlu0 %3144
    %3146 = vrot.lane.b32.xlu0 %v3012, 20
    %v3147 = vpop.permute.xlu0 %3146
    %3148 = vrot.lane.b32.xlu0 %v3013, 20
    %v3149 = vpop.permute.xlu0 %3148
    %3150 = vrot.lane.b32.xlu0 %v3014, 20
    %v3151 = vpop.permute.xlu0 %3150
    %3152 = vrot.lane.b32.xlu0 %v3015, 20
    %v3153 = vpop.permute.xlu0 %3152
    %3154 = vrot.lane.b32.xlu0 %v3016, 20
    %v3155 = vpop.permute.xlu0 %3154
    %3156 = vrot.lane.b32.xlu0 %v3017, 20
    %v3157 = vpop.permute.xlu0 %3156
    %3158 = vrot.lane.b32.xlu0 %v3018, 20
    %v3159 = vpop.permute.xlu0 %3158
    %3160 = vrot.lane.b32.xlu0 %v3019, 20
    %v3161 = vpop.permute.xlu0 %3160
    %3162 = vrot.lane.b32.xlu0 %v3020, 20
    %v3163 = vpop.permute.xlu0 %3162
    %3164 = vrot.lane.b32.xlu0 %v3021, 20
    %v3165 = vpop.permute.xlu0 %3164
    %3166 = vrot.lane.b32.xlu0 %v3022, 20
    %v3167 = vpop.permute.xlu0 %3166
    %3168 = vrot.lane.b32.xlu0 %v3023, 20
    %v3169 = vpop.permute.xlu0 %3168
    %3170 = vrot.lane.b32.xlu0 %v3024, 20
    %v3171 = vpop.permute.xlu0 %3170
    %3172 = vrot.lane.b32.xlu0 %v3025, 20
    %v3173 = vpop.permute.xlu0 %3172
    %3174 = vrot.lane.b32.xlu0 %v3026, 20
    %v3175 = vpop.permute.xlu0 %3174
    %3176 = vrot.lane.b32.xlu0 %v3027, 20
    %v3177 = vpop.permute.xlu0 %3176
    %3178 = vrot.lane.b32.xlu0 %v3028, 20
    %v3179 = vpop.permute.xlu0 %3178
    %3180 = vrot.lane.b32.xlu0 %v3029, 20
    %v3181 = vpop.permute.xlu0 %3180
    %3182 = vrot.lane.b32.xlu0 %v3030, 20
    %v3183 = vpop.permute.xlu0 %3182
    %3184 = vrot.lane.b32.xlu0 %v3031, 20
    %v3185 = vpop.permute.xlu0 %3184
    %3186 = vrot.lane.b32.xlu0 %v3032, 20
    %v3187 = vpop.permute.xlu0 %3186
    %3188 = vrot.lane.b32.xlu0 %v3033, 20
    %v3189 = vpop.permute.xlu0 %3188
    %3190 = vrot.lane.b32.xlu0 %v3034, 20
    %v3191 = vpop.permute.xlu0 %3190
    %3192 = vrot.lane.b32.xlu0 %v3035, 20
    %v3193 = vpop.permute.xlu0 %3192
    %3194 = vrot.lane.b32.xlu0 %v3036, 20
    %v3195 = vpop.permute.xlu0 %3194
    %3196 = vrot.lane.b32.xlu0 %v3037, 20
    %v3197 = vpop.permute.xlu0 %3196
    %3198 = vrot.lane.b32.xlu0 %v3038, 20
    %v3199 = vpop.permute.xlu0 %3198
    %3200 = vrot.lane.b32.xlu0 %v3039, 20
    %v3201 = vpop.permute.xlu0 %3200
    %3202 = vrot.lane.b32.xlu0 %v3040, 20
    %v3203 = vpop.permute.xlu0 %3202
    %3204 = vrot.lane.b32.xlu0 %v3041, 20
    %v3205 = vpop.permute.xlu0 %3204
    %3206 = vrot.lane.b32.xlu0 %v3042, 20
    %v3207 = vpop.permute.xlu0 %3206
    %3208 = vrot.lane.b32.xlu0 %v3043, 20
    %v3209 = vpop.permute.xlu0 %3208
    %3210 = vrot.lane.b32.xlu0 %v3044, 20
    %v3211 = vpop.permute.xlu0 %3210
    %3212 = vrot.lane.b32.xlu0 %v3045, 20
    %v3213 = vpop.permute.xlu0 %3212
    %3214 = vrot.lane.b32.xlu0 %v3046, 20
    %v3215 = vpop.permute.xlu0 %3214
    %3216 = vrot.lane.b32.xlu0 %v3047, 20
    %v3217 = vpop.permute.xlu0 %3216
    %3218 = vrot.lane.b32.xlu0 %v3048, 20
    %v3219 = vpop.permute.xlu0 %3218
    %3220 = vrot.lane.b32.xlu0 %v3049, 20
    %v3221 = vpop.permute.xlu0 %3220
    %3222 = vrot.lane.b32.xlu0 %v3050, 20
    %v3223 = vpop.permute.xlu0 %3222
    %3224 = vrot.lane.b32.xlu0 %v3051, 20
    %v3225 = vpop.permute.xlu0 %3224
    %3226 = vrot.lane.b32.xlu0 %v3052, 20
    %v3227 = vpop.permute.xlu0 %3226
    %3228 = vrot.lane.b32.xlu0 %v3053, 20
    %v3229 = vpop.permute.xlu0 %3228
    %3230 = vrot.lane.b32.xlu0 %v3054, 20
    %v3231 = vpop.permute.xlu0 %3230
    %3232 = vrot.lane.b32.xlu0 %v3055, 20
    %v3233 = vpop.permute.xlu0 %3232
    %3234 = vrot.lane.b32.xlu0 %v3056, 20
    %v3235 = vpop.permute.xlu0 %3234
    %3236 = vrot.lane.b32.xlu0 %v3057, 20
    %v3237 = vpop.permute.xlu0 %3236
    %3238 = vrot.lane.b32.xlu0 %v3058, 20
    %v3239 = vpop.permute.xlu0 %3238
    %3240 = vrot.lane.b32.xlu0 %v3059, 20
    %v3241 = vpop.permute.xlu0 %3240
    %3242 = vrot.lane.b32.xlu0 %v3060, 20
    %v3243 = vpop.permute.xlu0 %3242
    %3244 = vrot.lane.b32.xlu0 %v3061, 20
    %v3245 = vpop.permute.xlu0 %3244
    %3246 = vrot.lane.b32.xlu0 %v3062, 20
    %v3247 = vpop.permute.xlu0 %3246
    %3248 = vrot.lane.b32.xlu0 %v3063, 20
    %v3249 = vpop.permute.xlu0 %3248
    %3250 = vrot.lane.b32.xlu0 %v3064, 20
    %v3251 = vpop.permute.xlu0 %3250
    %3252 = vrot.lane.b32.xlu0 %v3065, 20
    %v3253 = vpop.permute.xlu0 %3252
    %3254 = vrot.lane.b32.xlu0 %v3066, 20
    %v3255 = vpop.permute.xlu0 %3254
    %3256 = vrot.lane.b32.xlu0 %v3067, 20
    %v3257 = vpop.permute.xlu0 %3256
    %3258 = vrot.lane.b32.xlu0 %v3068, 20
    %v3259 = vpop.permute.xlu0 %3258
    %3260 = vrot.lane.b32.xlu0 %v3069, 20
    %v3261 = vpop.permute.xlu0 %3260
    %vm3326 = vcmask 195744
    %3327 = vst.msk [vmem:[#allocation3] sm:$0xff] %vm3326, %v3135
    %3328 = vst.msk [vmem:[#allocation3 + $0x8] sm:$0xff] %vm3326, %v3137
    %3329 = vst.msk [vmem:[#allocation3 + $0x10] sm:$0xff] %vm3326, %v3139
    %3330 = vst.msk [vmem:[#allocation3 + $0x18] sm:$0xff] %vm3326, %v3141
    %3331 = vst.msk [vmem:[#allocation3 + $0x20] sm:$0xff] %vm3326, %v3143
    %3332 = vst.msk [vmem:[#allocation3 + $0x28] sm:$0xff] %vm3326, %v3145
    %3333 = vst.msk [vmem:[#allocation3 + $0x30] sm:$0xff] %vm3326, %v3147
    %3334 = vst.msk [vmem:[#allocation3 + $0x38] sm:$0xff] %vm3326, %v3149
    %3335 = vst.msk [vmem:[#allocation3 + $0x40] sm:$0xff] %vm3326, %v3151
    %3336 = vst.msk [vmem:[#allocation3 + $0x48] sm:$0xff] %vm3326, %v3153
    %3337 = vst.msk [vmem:[#allocation3 + $0x50] sm:$0xff] %vm3326, %v3155
    %3338 = vst.msk [vmem:[#allocation3 + $0x58] sm:$0xff] %vm3326, %v3157
    %3339 = vst.msk [vmem:[#allocation3 + $0x60] sm:$0xff] %vm3326, %v3159
    %3340 = vst.msk [vmem:[#allocation3 + $0x68] sm:$0xff] %vm3326, %v3161
    %3341 = vst.msk [vmem:[#allocation3 + $0x70] sm:$0xff] %vm3326, %v3163
    %3342 = vst.msk [vmem:[#allocation3 + $0x78] sm:$0xff] %vm3326, %v3165
    %3343 = vst.msk [vmem:[#allocation3 + $0x80] sm:$0xff] %vm3326, %v3167
    %3344 = vst.msk [vmem:[#allocation3 + $0x88] sm:$0xff] %vm3326, %v3169
    %3345 = vst.msk [vmem:[#allocation3 + $0x90] sm:$0xff] %vm3326, %v3171
    %3346 = vst.msk [vmem:[#allocation3 + $0x98] sm:$0xff] %vm3326, %v3173
    %3347 = vst.msk [vmem:[#allocation3 + $0xa0] sm:$0xff] %vm3326, %v3175
    %3348 = vst.msk [vmem:[#allocation3 + $0xa8] sm:$0xff] %vm3326, %v3177
    %3349 = vst.msk [vmem:[#allocation3 + $0xb0] sm:$0xff] %vm3326, %v3179
    %3350 = vst.msk [vmem:[#allocation3 + $0xb8] sm:$0xff] %vm3326, %v3181
    %3351 = vst.msk [vmem:[#allocation3 + $0xc0] sm:$0xff] %vm3326, %v3183
    %3352 = vst.msk [vmem:[#allocation3 + $0xc8] sm:$0xff] %vm3326, %v3185
    %3353 = vst.msk [vmem:[#allocation3 + $0xd0] sm:$0xff] %vm3326, %v3187
    %3354 = vst.msk [vmem:[#allocation3 + $0xd8] sm:$0xff] %vm3326, %v3189
    %3355 = vst.msk [vmem:[#allocation3 + $0xe0] sm:$0xff] %vm3326, %v3191
    %3356 = vst.msk [vmem:[#allocation3 + $0xe8] sm:$0xff] %vm3326, %v3193
    %3357 = vst.msk [vmem:[#allocation3 + $0xf0] sm:$0xff] %vm3326, %v3195
    %3358 = vst.msk [vmem:[#allocation3 + $0xf8] sm:$0xff] %vm3326, %v3197
    %3359 = vst.msk [vmem:[#allocation3 + $0x100] sm:$0xff] %vm3326, %v3199
    %3360 = vst.msk [vmem:[#allocation3 + $0x108] sm:$0xff] %vm3326, %v3201
    %3361 = vst.msk [vmem:[#allocation3 + $0x110] sm:$0xff] %vm3326, %v3203
    %3362 = vst.msk [vmem:[#allocation3 + $0x118] sm:$0xff] %vm3326, %v3205
    %3363 = vst.msk [vmem:[#allocation3 + $0x120] sm:$0xff] %vm3326, %v3207
    %3364 = vst.msk [vmem:[#allocation3 + $0x128] sm:$0xff] %vm3326, %v3209
    %3365 = vst.msk [vmem:[#allocation3 + $0x130] sm:$0xff] %vm3326, %v3211
    %3366 = vst.msk [vmem:[#allocation3 + $0x138] sm:$0xff] %vm3326, %v3213
    %3367 = vst.msk [vmem:[#allocation3 + $0x140] sm:$0xff] %vm3326, %v3215
    %3368 = vst.msk [vmem:[#allocation3 + $0x148] sm:$0xff] %vm3326, %v3217
    %3369 = vst.msk [vmem:[#allocation3 + $0x150] sm:$0xff] %vm3326, %v3219
    %3370 = vst.msk [vmem:[#allocation3 + $0x158] sm:$0xff] %vm3326, %v3221
    %3371 = vst.msk [vmem:[#allocation3 + $0x160] sm:$0xff] %vm3326, %v3223
    %3372 = vst.msk [vmem:[#allocation3 + $0x168] sm:$0xff] %vm3326, %v3225
    %3373 = vst.msk [vmem:[#allocation3 + $0x170] sm:$0xff] %vm3326, %v3227
    %3374 = vst.msk [vmem:[#allocation3 + $0x178] sm:$0xff] %vm3326, %v3229
    %3375 = vst.msk [vmem:[#allocation3 + $0x180] sm:$0xff] %vm3326, %v3231
    %3376 = vst.msk [vmem:[#allocation3 + $0x188] sm:$0xff] %vm3326, %v3233
    %3377 = vst.msk [vmem:[#allocation3 + $0x190] sm:$0xff] %vm3326, %v3235
    %3378 = vst.msk [vmem:[#allocation3 + $0x198] sm:$0xff] %vm3326, %v3237
    %3379 = vst.msk [vmem:[#allocation3 + $0x1a0] sm:$0xff] %vm3326, %v3239
    %3380 = vst.msk [vmem:[#allocation3 + $0x1a8] sm:$0xff] %vm3326, %v3241
    %3381 = vst.msk [vmem:[#allocation3 + $0x1b0] sm:$0xff] %vm3326, %v3243
    %3382 = vst.msk [vmem:[#allocation3 + $0x1b8] sm:$0xff] %vm3326, %v3245
    %3383 = vst.msk [vmem:[#allocation3 + $0x1c0] sm:$0xff] %vm3326, %v3247
    %3384 = vst.msk [vmem:[#allocation3 + $0x1c8] sm:$0xff] %vm3326, %v3249
    %3385 = vst.msk [vmem:[#allocation3 + $0x1d0] sm:$0xff] %vm3326, %v3251
    %3386 = vst.msk [vmem:[#allocation3 + $0x1d8] sm:$0xff] %vm3326, %v3253
    %3387 = vst.msk [vmem:[#allocation3 + $0x1e0] sm:$0xff] %vm3326, %v3255
    %3388 = vst.msk [vmem:[#allocation3 + $0x1e8] sm:$0xff] %vm3326, %v3257
    %3389 = vst.msk [vmem:[#allocation3 + $0x1f0] sm:$0xff] %vm3326, %v3259
    %3390 = vst.msk [vmem:[#allocation3 + $0x1f8] sm:$0xff] %vm3326, %v3261
    %s3391 = scalar_lea.vmem [#allocation2], 48
    %v3392 = vld [vmem:[%s3391] sm:$0xff]
    %v3393 = vld [vmem:[%s3391 + $0x8] sm:$0xff]
    %v3394 = vld [vmem:[%s3391 + $0x18] sm:$0xff]
    %v3395 = vld [vmem:[%s3391 + $0x20] sm:$0xff]
    %v3396 = vld [vmem:[%s3391 + $0x30] sm:$0xff]
    %v3397 = vld [vmem:[%s3391 + $0x38] sm:$0xff]
    %v3398 = vld [vmem:[%s3391 + $0x48] sm:$0xff]
    %v3399 = vld [vmem:[%s3391 + $0x50] sm:$0xff]
    %v3400 = vld [vmem:[%s3391 + $0x60] sm:$0xff]
    %v3401 = vld [vmem:[%s3391 + $0x68] sm:$0xff]
    %v3402 = vld [vmem:[%s3391 + $0x78] sm:$0xff]
    %v3403 = vld [vmem:[%s3391 + $0x80] sm:$0xff]
    %v3404 = vld [vmem:[%s3391 + $0x90] sm:$0xff]
    %v3405 = vld [vmem:[%s3391 + $0x98] sm:$0xff]
    %v3406 = vld [vmem:[%s3391 + $0xa8] sm:$0xff]
    %v3407 = vld [vmem:[%s3391 + $0xb0] sm:$0xff]
    %v3408 = vld [vmem:[%s3391 + $0xc0] sm:$0xff]
    %v3409 = vld [vmem:[%s3391 + $0xc8] sm:$0xff]
    %v3410 = vld [vmem:[%s3391 + $0xd8] sm:$0xff]
    %v3411 = vld [vmem:[%s3391 + $0xe0] sm:$0xff]
    %v3412 = vld [vmem:[%s3391 + $0xf0] sm:$0xff]
    %v3413 = vld [vmem:[%s3391 + $0xf8] sm:$0xff]
    %v3414 = vld [vmem:[%s3391 + $0x108] sm:$0xff]
    %v3415 = vld [vmem:[%s3391 + $0x110] sm:$0xff]
    %v3416 = vld [vmem:[%s3391 + $0x120] sm:$0xff]
    %v3417 = vld [vmem:[%s3391 + $0x128] sm:$0xff]
    %v3418 = vld [vmem:[%s3391 + $0x138] sm:$0xff]
    %v3419 = vld [vmem:[%s3391 + $0x140] sm:$0xff]
    %v3420 = vld [vmem:[%s3391 + $0x150] sm:$0xff]
    %v3421 = vld [vmem:[%s3391 + $0x158] sm:$0xff]
    %v3422 = vld [vmem:[%s3391 + $0x168] sm:$0xff]
    %v3423 = vld [vmem:[%s3391 + $0x170] sm:$0xff]
    %v3424 = vld [vmem:[%s3391 + $0x1b0] sm:$0xff]
    %v3425 = vld [vmem:[%s3391 + $0x1b8] sm:$0xff]
    %v3426 = vld [vmem:[%s3391 + $0x1c8] sm:$0xff]
    %v3427 = vld [vmem:[%s3391 + $0x1d0] sm:$0xff]
    %v3428 = vld [vmem:[%s3391 + $0x1e0] sm:$0xff]
    %v3429 = vld [vmem:[%s3391 + $0x1e8] sm:$0xff]
    %v3430 = vld [vmem:[%s3391 + $0x1f8] sm:$0xff]
    %v3431 = vld [vmem:[%s3391 + $0x200] sm:$0xff]
    %v3432 = vld [vmem:[%s3391 + $0x210] sm:$0xff]
    %v3433 = vld [vmem:[%s3391 + $0x218] sm:$0xff]
    %v3434 = vld [vmem:[%s3391 + $0x228] sm:$0xff]
    %v3435 = vld [vmem:[%s3391 + $0x230] sm:$0xff]
    %v3436 = vld [vmem:[%s3391 + $0x240] sm:$0xff]
    %v3437 = vld [vmem:[%s3391 + $0x248] sm:$0xff]
    %v3438 = vld [vmem:[%s3391 + $0x258] sm:$0xff]
    %v3439 = vld [vmem:[%s3391 + $0x260] sm:$0xff]
    %v3440 = vld [vmem:[%s3391 + $0x270] sm:$0xff]
    %v3441 = vld [vmem:[%s3391 + $0x278] sm:$0xff]
    %v3442 = vld [vmem:[%s3391 + $0x288] sm:$0xff]
    %v3443 = vld [vmem:[%s3391 + $0x290] sm:$0xff]
    %v3444 = vld [vmem:[%s3391 + $0x2a0] sm:$0xff]
    %v3445 = vld [vmem:[%s3391 + $0x2a8] sm:$0xff]
    %v3446 = vld [vmem:[%s3391 + $0x2b8] sm:$0xff]
    %v3447 = vld [vmem:[%s3391 + $0x2c0] sm:$0xff]
    %v3448 = vld [vmem:[%s3391 + $0x2d0] sm:$0xff]
    %v3449 = vld [vmem:[%s3391 + $0x2d8] sm:$0xff]
    %v3450 = vld [vmem:[%s3391 + $0x2e8] sm:$0xff]
    %v3451 = vld [vmem:[%s3391 + $0x2f0] sm:$0xff]
    %v3452 = vld [vmem:[%s3391 + $0x300] sm:$0xff]
    %v3453 = vld [vmem:[%s3391 + $0x308] sm:$0xff]
    %v3454 = vld [vmem:[%s3391 + $0x318] sm:$0xff]
    %v3455 = vld [vmem:[%s3391 + $0x320] sm:$0xff]
    %3520 = vrot.lane.b32.xlu0 %v3392, 24
    %v3521 = vpop.permute.xlu0 %3520
    %3522 = vrot.lane.b32.xlu0 %v3393, 24
    %v3523 = vpop.permute.xlu0 %3522
    %3524 = vrot.lane.b32.xlu0 %v3394, 24
    %v3525 = vpop.permute.xlu0 %3524
    %3526 = vrot.lane.b32.xlu0 %v3395, 24
    %v3527 = vpop.permute.xlu0 %3526
    %3528 = vrot.lane.b32.xlu0 %v3396, 24
    %v3529 = vpop.permute.xlu0 %3528
    %3530 = vrot.lane.b32.xlu0 %v3397, 24
    %v3531 = vpop.permute.xlu0 %3530
    %3532 = vrot.lane.b32.xlu0 %v3398, 24
    %v3533 = vpop.permute.xlu0 %3532
    %3534 = vrot.lane.b32.xlu0 %v3399, 24
    %v3535 = vpop.permute.xlu0 %3534
    %3536 = vrot.lane.b32.xlu0 %v3400, 24
    %v3537 = vpop.permute.xlu0 %3536
    %3538 = vrot.lane.b32.xlu0 %v3401, 24
    %v3539 = vpop.permute.xlu0 %3538
    %3540 = vrot.lane.b32.xlu0 %v3402, 24
    %v3541 = vpop.permute.xlu0 %3540
    %3542 = vrot.lane.b32.xlu0 %v3403, 24
    %v3543 = vpop.permute.xlu0 %3542
    %3544 = vrot.lane.b32.xlu0 %v3404, 24
    %v3545 = vpop.permute.xlu0 %3544
    %3546 = vrot.lane.b32.xlu0 %v3405, 24
    %v3547 = vpop.permute.xlu0 %3546
    %3548 = vrot.lane.b32.xlu0 %v3406, 24
    %v3549 = vpop.permute.xlu0 %3548
    %3550 = vrot.lane.b32.xlu0 %v3407, 24
    %v3551 = vpop.permute.xlu0 %3550
    %3552 = vrot.lane.b32.xlu0 %v3408, 24
    %v3553 = vpop.permute.xlu0 %3552
    %3554 = vrot.lane.b32.xlu0 %v3409, 24
    %v3555 = vpop.permute.xlu0 %3554
    %3556 = vrot.lane.b32.xlu0 %v3410, 24
    %v3557 = vpop.permute.xlu0 %3556
    %3558 = vrot.lane.b32.xlu0 %v3411, 24
    %v3559 = vpop.permute.xlu0 %3558
    %3560 = vrot.lane.b32.xlu0 %v3412, 24
    %v3561 = vpop.permute.xlu0 %3560
    %3562 = vrot.lane.b32.xlu0 %v3413, 24
    %v3563 = vpop.permute.xlu0 %3562
    %3564 = vrot.lane.b32.xlu0 %v3414, 24
    %v3565 = vpop.permute.xlu0 %3564
    %3566 = vrot.lane.b32.xlu0 %v3415, 24
    %v3567 = vpop.permute.xlu0 %3566
    %3568 = vrot.lane.b32.xlu0 %v3416, 24
    %v3569 = vpop.permute.xlu0 %3568
    %3570 = vrot.lane.b32.xlu0 %v3417, 24
    %v3571 = vpop.permute.xlu0 %3570
    %3572 = vrot.lane.b32.xlu0 %v3418, 24
    %v3573 = vpop.permute.xlu0 %3572
    %3574 = vrot.lane.b32.xlu0 %v3419, 24
    %v3575 = vpop.permute.xlu0 %3574
    %3576 = vrot.lane.b32.xlu0 %v3420, 24
    %v3577 = vpop.permute.xlu0 %3576
    %3578 = vrot.lane.b32.xlu0 %v3421, 24
    %v3579 = vpop.permute.xlu0 %3578
    %3580 = vrot.lane.b32.xlu0 %v3422, 24
    %v3581 = vpop.permute.xlu0 %3580
    %3582 = vrot.lane.b32.xlu0 %v3423, 24
    %v3583 = vpop.permute.xlu0 %3582
    %3584 = vrot.lane.b32.xlu0 %v3424, 24
    %v3585 = vpop.permute.xlu0 %3584
    %3586 = vrot.lane.b32.xlu0 %v3425, 24
    %v3587 = vpop.permute.xlu0 %3586
    %3588 = vrot.lane.b32.xlu0 %v3426, 24
    %v3589 = vpop.permute.xlu0 %3588
    %3590 = vrot.lane.b32.xlu0 %v3427, 24
    %v3591 = vpop.permute.xlu0 %3590
    %3592 = vrot.lane.b32.xlu0 %v3428, 24
    %v3593 = vpop.permute.xlu0 %3592
    %3594 = vrot.lane.b32.xlu0 %v3429, 24
    %v3595 = vpop.permute.xlu0 %3594
    %3596 = vrot.lane.b32.xlu0 %v3430, 24
    %v3597 = vpop.permute.xlu0 %3596
    %3598 = vrot.lane.b32.xlu0 %v3431, 24
    %v3599 = vpop.permute.xlu0 %3598
    %3600 = vrot.lane.b32.xlu0 %v3432, 24
    %v3601 = vpop.permute.xlu0 %3600
    %3602 = vrot.lane.b32.xlu0 %v3433, 24
    %v3603 = vpop.permute.xlu0 %3602
    %3604 = vrot.lane.b32.xlu0 %v3434, 24
    %v3605 = vpop.permute.xlu0 %3604
    %3606 = vrot.lane.b32.xlu0 %v3435, 24
    %v3607 = vpop.permute.xlu0 %3606
    %3608 = vrot.lane.b32.xlu0 %v3436, 24
    %v3609 = vpop.permute.xlu0 %3608
    %3610 = vrot.lane.b32.xlu0 %v3437, 24
    %v3611 = vpop.permute.xlu0 %3610
    %3612 = vrot.lane.b32.xlu0 %v3438, 24
    %v3613 = vpop.permute.xlu0 %3612
    %3614 = vrot.lane.b32.xlu0 %v3439, 24
    %v3615 = vpop.permute.xlu0 %3614
    %3616 = vrot.lane.b32.xlu0 %v3440, 24
    %v3617 = vpop.permute.xlu0 %3616
    %3618 = vrot.lane.b32.xlu0 %v3441, 24
    %v3619 = vpop.permute.xlu0 %3618
    %3620 = vrot.lane.b32.xlu0 %v3442, 24
    %v3621 = vpop.permute.xlu0 %3620
    %3622 = vrot.lane.b32.xlu0 %v3443, 24
    %v3623 = vpop.permute.xlu0 %3622
    %3624 = vrot.lane.b32.xlu0 %v3444, 24
    %v3625 = vpop.permute.xlu0 %3624
    %3626 = vrot.lane.b32.xlu0 %v3445, 24
    %v3627 = vpop.permute.xlu0 %3626
    %3628 = vrot.lane.b32.xlu0 %v3446, 24
    %v3629 = vpop.permute.xlu0 %3628
    %3630 = vrot.lane.b32.xlu0 %v3447, 24
    %v3631 = vpop.permute.xlu0 %3630
    %3632 = vrot.lane.b32.xlu0 %v3448, 24
    %v3633 = vpop.permute.xlu0 %3632
    %3634 = vrot.lane.b32.xlu0 %v3449, 24
    %v3635 = vpop.permute.xlu0 %3634
    %3636 = vrot.lane.b32.xlu0 %v3450, 24
    %v3637 = vpop.permute.xlu0 %3636
    %3638 = vrot.lane.b32.xlu0 %v3451, 24
    %v3639 = vpop.permute.xlu0 %3638
    %3640 = vrot.lane.b32.xlu0 %v3452, 24
    %v3641 = vpop.permute.xlu0 %3640
    %3642 = vrot.lane.b32.xlu0 %v3453, 24
    %v3643 = vpop.permute.xlu0 %3642
    %3644 = vrot.lane.b32.xlu0 %v3454, 24
    %v3645 = vpop.permute.xlu0 %3644
    %3646 = vrot.lane.b32.xlu0 %v3455, 24
    %v3647 = vpop.permute.xlu0 %3646
    %vm3712 = vcmask 228544
    %3713 = vst.msk [vmem:[#allocation3] sm:$0xff] %vm3712, %v3521
    %3714 = vst.msk [vmem:[#allocation3 + $0x8] sm:$0xff] %vm3712, %v3523
    %3715 = vst.msk [vmem:[#allocation3 + $0x10] sm:$0xff] %vm3712, %v3525
    %3716 = vst.msk [vmem:[#allocation3 + $0x18] sm:$0xff] %vm3712, %v3527
    %3717 = vst.msk [vmem:[#allocation3 + $0x20] sm:$0xff] %vm3712, %v3529
    %3718 = vst.msk [vmem:[#allocation3 + $0x28] sm:$0xff] %vm3712, %v3531
    %3719 = vst.msk [vmem:[#allocation3 + $0x30] sm:$0xff] %vm3712, %v3533
    %3720 = vst.msk [vmem:[#allocation3 + $0x38] sm:$0xff] %vm3712, %v3535
    %3721 = vst.msk [vmem:[#allocation3 + $0x40] sm:$0xff] %vm3712, %v3537
    %3722 = vst.msk [vmem:[#allocation3 + $0x48] sm:$0xff] %vm3712, %v3539
    %3723 = vst.msk [vmem:[#allocation3 + $0x50] sm:$0xff] %vm3712, %v3541
    %3724 = vst.msk [vmem:[#allocation3 + $0x58] sm:$0xff] %vm3712, %v3543
    %3725 = vst.msk [vmem:[#allocation3 + $0x60] sm:$0xff] %vm3712, %v3545
    %3726 = vst.msk [vmem:[#allocation3 + $0x68] sm:$0xff] %vm3712, %v3547
    %3727 = vst.msk [vmem:[#allocation3 + $0x70] sm:$0xff] %vm3712, %v3549
    %3728 = vst.msk [vmem:[#allocation3 + $0x78] sm:$0xff] %vm3712, %v3551
    %3729 = vst.msk [vmem:[#allocation3 + $0x80] sm:$0xff] %vm3712, %v3553
    %3730 = vst.msk [vmem:[#allocation3 + $0x88] sm:$0xff] %vm3712, %v3555
    %3731 = vst.msk [vmem:[#allocation3 + $0x90] sm:$0xff] %vm3712, %v3557
    %3732 = vst.msk [vmem:[#allocation3 + $0x98] sm:$0xff] %vm3712, %v3559
    %3733 = vst.msk [vmem:[#allocation3 + $0xa0] sm:$0xff] %vm3712, %v3561
    %3734 = vst.msk [vmem:[#allocation3 + $0xa8] sm:$0xff] %vm3712, %v3563
    %3735 = vst.msk [vmem:[#allocation3 + $0xb0] sm:$0xff] %vm3712, %v3565
    %3736 = vst.msk [vmem:[#allocation3 + $0xb8] sm:$0xff] %vm3712, %v3567
    %3737 = vst.msk [vmem:[#allocation3 + $0xc0] sm:$0xff] %vm3712, %v3569
    %3738 = vst.msk [vmem:[#allocation3 + $0xc8] sm:$0xff] %vm3712, %v3571
    %3739 = vst.msk [vmem:[#allocation3 + $0xd0] sm:$0xff] %vm3712, %v3573
    %3740 = vst.msk [vmem:[#allocation3 + $0xd8] sm:$0xff] %vm3712, %v3575
    %3741 = vst.msk [vmem:[#allocation3 + $0xe0] sm:$0xff] %vm3712, %v3577
    %3742 = vst.msk [vmem:[#allocation3 + $0xe8] sm:$0xff] %vm3712, %v3579
    %3743 = vst.msk [vmem:[#allocation3 + $0xf0] sm:$0xff] %vm3712, %v3581
    %3744 = vst.msk [vmem:[#allocation3 + $0xf8] sm:$0xff] %vm3712, %v3583
    %3745 = vst.msk [vmem:[#allocation3 + $0x100] sm:$0xff] %vm3712, %v3585
    %3746 = vst.msk [vmem:[#allocation3 + $0x108] sm:$0xff] %vm3712, %v3587
    %3747 = vst.msk [vmem:[#allocation3 + $0x110] sm:$0xff] %vm3712, %v3589
    %3748 = vst.msk [vmem:[#allocation3 + $0x118] sm:$0xff] %vm3712, %v3591
    %3749 = vst.msk [vmem:[#allocation3 + $0x120] sm:$0xff] %vm3712, %v3593
    %3750 = vst.msk [vmem:[#allocation3 + $0x128] sm:$0xff] %vm3712, %v3595
    %3751 = vst.msk [vmem:[#allocation3 + $0x130] sm:$0xff] %vm3712, %v3597
    %3752 = vst.msk [vmem:[#allocation3 + $0x138] sm:$0xff] %vm3712, %v3599
    %3753 = vst.msk [vmem:[#allocation3 + $0x140] sm:$0xff] %vm3712, %v3601
    %3754 = vst.msk [vmem:[#allocation3 + $0x148] sm:$0xff] %vm3712, %v3603
    %3755 = vst.msk [vmem:[#allocation3 + $0x150] sm:$0xff] %vm3712, %v3605
    %3756 = vst.msk [vmem:[#allocation3 + $0x158] sm:$0xff] %vm3712, %v3607
    %3757 = vst.msk [vmem:[#allocation3 + $0x160] sm:$0xff] %vm3712, %v3609
    %3758 = vst.msk [vmem:[#allocation3 + $0x168] sm:$0xff] %vm3712, %v3611
    %3759 = vst.msk [vmem:[#allocation3 + $0x170] sm:$0xff] %vm3712, %v3613
    %3760 = vst.msk [vmem:[#allocation3 + $0x178] sm:$0xff] %vm3712, %v3615
    %3761 = vst.msk [vmem:[#allocation3 + $0x180] sm:$0xff] %vm3712, %v3617
    %3762 = vst.msk [vmem:[#allocation3 + $0x188] sm:$0xff] %vm3712, %v3619
    %3763 = vst.msk [vmem:[#allocation3 + $0x190] sm:$0xff] %vm3712, %v3621
    %3764 = vst.msk [vmem:[#allocation3 + $0x198] sm:$0xff] %vm3712, %v3623
    %3765 = vst.msk [vmem:[#allocation3 + $0x1a0] sm:$0xff] %vm3712, %v3625
    %3766 = vst.msk [vmem:[#allocation3 + $0x1a8] sm:$0xff] %vm3712, %v3627
    %3767 = vst.msk [vmem:[#allocation3 + $0x1b0] sm:$0xff] %vm3712, %v3629
    %3768 = vst.msk [vmem:[#allocation3 + $0x1b8] sm:$0xff] %vm3712, %v3631
    %3769 = vst.msk [vmem:[#allocation3 + $0x1c0] sm:$0xff] %vm3712, %v3633
    %3770 = vst.msk [vmem:[#allocation3 + $0x1c8] sm:$0xff] %vm3712, %v3635
    %3771 = vst.msk [vmem:[#allocation3 + $0x1d0] sm:$0xff] %vm3712, %v3637
    %3772 = vst.msk [vmem:[#allocation3 + $0x1d8] sm:$0xff] %vm3712, %v3639
    %3773 = vst.msk [vmem:[#allocation3 + $0x1e0] sm:$0xff] %vm3712, %v3641
    %3774 = vst.msk [vmem:[#allocation3 + $0x1e8] sm:$0xff] %vm3712, %v3643
    %3775 = vst.msk [vmem:[#allocation3 + $0x1f0] sm:$0xff] %vm3712, %v3645
    %3776 = vst.msk [vmem:[#allocation3 + $0x1f8] sm:$0xff] %vm3712, %v3647
    %v3777 = vld [vmem:[%s3391 + $0x1] sm:$0xff]
    %v3778 = vld [vmem:[%s3391 + $0x9] sm:$0xff]
    %v3779 = vld [vmem:[%s3391 + $0x19] sm:$0xff]
    %v3780 = vld [vmem:[%s3391 + $0x21] sm:$0xff]
    %v3781 = vld [vmem:[%s3391 + $0x31] sm:$0xff]
    %v3782 = vld [vmem:[%s3391 + $0x39] sm:$0xff]
    %v3783 = vld [vmem:[%s3391 + $0x49] sm:$0xff]
    %v3784 = vld [vmem:[%s3391 + $0x51] sm:$0xff]
    %v3785 = vld [vmem:[%s3391 + $0x61] sm:$0xff]
    %v3786 = vld [vmem:[%s3391 + $0x69] sm:$0xff]
    %v3787 = vld [vmem:[%s3391 + $0x79] sm:$0xff]
    %v3788 = vld [vmem:[%s3391 + $0x81] sm:$0xff]
    %v3789 = vld [vmem:[%s3391 + $0x91] sm:$0xff]
    %v3790 = vld [vmem:[%s3391 + $0x99] sm:$0xff]
    %v3791 = vld [vmem:[%s3391 + $0xa9] sm:$0xff]
    %v3792 = vld [vmem:[%s3391 + $0xb1] sm:$0xff]
    %v3793 = vld [vmem:[%s3391 + $0xc1] sm:$0xff]
    %v3794 = vld [vmem:[%s3391 + $0xc9] sm:$0xff]
    %v3795 = vld [vmem:[%s3391 + $0xd9] sm:$0xff]
    %v3796 = vld [vmem:[%s3391 + $0xe1] sm:$0xff]
    %v3797 = vld [vmem:[%s3391 + $0xf1] sm:$0xff]
    %v3798 = vld [vmem:[%s3391 + $0xf9] sm:$0xff]
    %v3799 = vld [vmem:[%s3391 + $0x109] sm:$0xff]
    %v3800 = vld [vmem:[%s3391 + $0x111] sm:$0xff]
    %v3801 = vld [vmem:[%s3391 + $0x121] sm:$0xff]
    %v3802 = vld [vmem:[%s3391 + $0x129] sm:$0xff]
    %v3803 = vld [vmem:[%s3391 + $0x139] sm:$0xff]
    %v3804 = vld [vmem:[%s3391 + $0x141] sm:$0xff]
    %v3805 = vld [vmem:[%s3391 + $0x151] sm:$0xff]
    %v3806 = vld [vmem:[%s3391 + $0x159] sm:$0xff]
    %v3807 = vld [vmem:[%s3391 + $0x169] sm:$0xff]
    %v3808 = vld [vmem:[%s3391 + $0x171] sm:$0xff]
    %v3809 = vld [vmem:[%s3391 + $0x1b1] sm:$0xff]
    %v3810 = vld [vmem:[%s3391 + $0x1b9] sm:$0xff]
    %v3811 = vld [vmem:[%s3391 + $0x1c9] sm:$0xff]
    %v3812 = vld [vmem:[%s3391 + $0x1d1] sm:$0xff]
    %v3813 = vld [vmem:[%s3391 + $0x1e1] sm:$0xff]
    %v3814 = vld [vmem:[%s3391 + $0x1e9] sm:$0xff]
    %v3815 = vld [vmem:[%s3391 + $0x1f9] sm:$0xff]
    %v3816 = vld [vmem:[%s3391 + $0x201] sm:$0xff]
    %v3817 = vld [vmem:[%s3391 + $0x211] sm:$0xff]
    %v3818 = vld [vmem:[%s3391 + $0x219] sm:$0xff]
    %v3819 = vld [vmem:[%s3391 + $0x229] sm:$0xff]
    %v3820 = vld [vmem:[%s3391 + $0x231] sm:$0xff]
    %v3821 = vld [vmem:[%s3391 + $0x241] sm:$0xff]
    %v3822 = vld [vmem:[%s3391 + $0x249] sm:$0xff]
    %v3823 = vld [vmem:[%s3391 + $0x259] sm:$0xff]
    %v3824 = vld [vmem:[%s3391 + $0x261] sm:$0xff]
    %v3825 = vld [vmem:[%s3391 + $0x271] sm:$0xff]
    %v3826 = vld [vmem:[%s3391 + $0x279] sm:$0xff]
    %v3827 = vld [vmem:[%s3391 + $0x289] sm:$0xff]
    %v3828 = vld [vmem:[%s3391 + $0x291] sm:$0xff]
    %v3829 = vld [vmem:[%s3391 + $0x2a1] sm:$0xff]
    %v3830 = vld [vmem:[%s3391 + $0x2a9] sm:$0xff]
    %v3831 = vld [vmem:[%s3391 + $0x2b9] sm:$0xff]
    %v3832 = vld [vmem:[%s3391 + $0x2c1] sm:$0xff]
    %v3833 = vld [vmem:[%s3391 + $0x2d1] sm:$0xff]
    %v3834 = vld [vmem:[%s3391 + $0x2d9] sm:$0xff]
    %v3835 = vld [vmem:[%s3391 + $0x2e9] sm:$0xff]
    %v3836 = vld [vmem:[%s3391 + $0x2f1] sm:$0xff]
    %v3837 = vld [vmem:[%s3391 + $0x301] sm:$0xff]
    %v3838 = vld [vmem:[%s3391 + $0x309] sm:$0xff]
    %v3839 = vld [vmem:[%s3391 + $0x319] sm:$0xff]
    %v3840 = vld [vmem:[%s3391 + $0x321] sm:$0xff]
    %3905 = vrot.lane.b32.xlu0 %v3777, 28
    %v3906 = vpop.permute.xlu0 %3905
    %3907 = vrot.lane.b32.xlu0 %v3778, 28
    %v3908 = vpop.permute.xlu0 %3907
    %3909 = vrot.lane.b32.xlu0 %v3779, 28
    %v3910 = vpop.permute.xlu0 %3909
    %3911 = vrot.lane.b32.xlu0 %v3780, 28
    %v3912 = vpop.permute.xlu0 %3911
    %3913 = vrot.lane.b32.xlu0 %v3781, 28
    %v3914 = vpop.permute.xlu0 %3913
    %3915 = vrot.lane.b32.xlu0 %v3782, 28
    %v3916 = vpop.permute.xlu0 %3915
    %3917 = vrot.lane.b32.xlu0 %v3783, 28
    %v3918 = vpop.permute.xlu0 %3917
    %3919 = vrot.lane.b32.xlu0 %v3784, 28
    %v3920 = vpop.permute.xlu0 %3919
    %3921 = vrot.lane.b32.xlu0 %v3785, 28
    %v3922 = vpop.permute.xlu0 %3921
    %3923 = vrot.lane.b32.xlu0 %v3786, 28
    %v3924 = vpop.permute.xlu0 %3923
    %3925 = vrot.lane.b32.xlu0 %v3787, 28
    %v3926 = vpop.permute.xlu0 %3925
    %3927 = vrot.lane.b32.xlu0 %v3788, 28
    %v3928 = vpop.permute.xlu0 %3927
    %3929 = vrot.lane.b32.xlu0 %v3789, 28
    %v3930 = vpop.permute.xlu0 %3929
    %3931 = vrot.lane.b32.xlu0 %v3790, 28
    %v3932 = vpop.permute.xlu0 %3931
    %3933 = vrot.lane.b32.xlu0 %v3791, 28
    %v3934 = vpop.permute.xlu0 %3933
    %3935 = vrot.lane.b32.xlu0 %v3792, 28
    %v3936 = vpop.permute.xlu0 %3935
    %3937 = vrot.lane.b32.xlu0 %v3793, 28
    %v3938 = vpop.permute.xlu0 %3937
    %3939 = vrot.lane.b32.xlu0 %v3794, 28
    %v3940 = vpop.permute.xlu0 %3939
    %3941 = vrot.lane.b32.xlu0 %v3795, 28
    %v3942 = vpop.permute.xlu0 %3941
    %3943 = vrot.lane.b32.xlu0 %v3796, 28
    %v3944 = vpop.permute.xlu0 %3943
    %3945 = vrot.lane.b32.xlu0 %v3797, 28
    %v3946 = vpop.permute.xlu0 %3945
    %3947 = vrot.lane.b32.xlu0 %v3798, 28
    %v3948 = vpop.permute.xlu0 %3947
    %3949 = vrot.lane.b32.xlu0 %v3799, 28
    %v3950 = vpop.permute.xlu0 %3949
    %3951 = vrot.lane.b32.xlu0 %v3800, 28
    %v3952 = vpop.permute.xlu0 %3951
    %3953 = vrot.lane.b32.xlu0 %v3801, 28
    %v3954 = vpop.permute.xlu0 %3953
    %3955 = vrot.lane.b32.xlu0 %v3802, 28
    %v3956 = vpop.permute.xlu0 %3955
    %3957 = vrot.lane.b32.xlu0 %v3803, 28
    %v3958 = vpop.permute.xlu0 %3957
    %3959 = vrot.lane.b32.xlu0 %v3804, 28
    %v3960 = vpop.permute.xlu0 %3959
    %3961 = vrot.lane.b32.xlu0 %v3805, 28
    %v3962 = vpop.permute.xlu0 %3961
    %3963 = vrot.lane.b32.xlu0 %v3806, 28
    %v3964 = vpop.permute.xlu0 %3963
    %3965 = vrot.lane.b32.xlu0 %v3807, 28
    %v3966 = vpop.permute.xlu0 %3965
    %3967 = vrot.lane.b32.xlu0 %v3808, 28
    %v3968 = vpop.permute.xlu0 %3967
    %3969 = vrot.lane.b32.xlu0 %v3809, 28
    %v3970 = vpop.permute.xlu0 %3969
    %3971 = vrot.lane.b32.xlu0 %v3810, 28
    %v3972 = vpop.permute.xlu0 %3971
    %3973 = vrot.lane.b32.xlu0 %v3811, 28
    %v3974 = vpop.permute.xlu0 %3973
    %3975 = vrot.lane.b32.xlu0 %v3812, 28
    %v3976 = vpop.permute.xlu0 %3975
    %3977 = vrot.lane.b32.xlu0 %v3813, 28
    %v3978 = vpop.permute.xlu0 %3977
    %3979 = vrot.lane.b32.xlu0 %v3814, 28
    %v3980 = vpop.permute.xlu0 %3979
    %3981 = vrot.lane.b32.xlu0 %v3815, 28
    %v3982 = vpop.permute.xlu0 %3981
    %3983 = vrot.lane.b32.xlu0 %v3816, 28
    %v3984 = vpop.permute.xlu0 %3983
    %3985 = vrot.lane.b32.xlu0 %v3817, 28
    %v3986 = vpop.permute.xlu0 %3985
    %3987 = vrot.lane.b32.xlu0 %v3818, 28
    %v3988 = vpop.permute.xlu0 %3987
    %3989 = vrot.lane.b32.xlu0 %v3819, 28
    %v3990 = vpop.permute.xlu0 %3989
    %3991 = vrot.lane.b32.xlu0 %v3820, 28
    %v3992 = vpop.permute.xlu0 %3991
    %3993 = vrot.lane.b32.xlu0 %v3821, 28
    %v3994 = vpop.permute.xlu0 %3993
    %3995 = vrot.lane.b32.xlu0 %v3822, 28
    %v3996 = vpop.permute.xlu0 %3995
    %3997 = vrot.lane.b32.xlu0 %v3823, 28
    %v3998 = vpop.permute.xlu0 %3997
    %3999 = vrot.lane.b32.xlu0 %v3824, 28
    %v4000 = vpop.permute.xlu0 %3999
    %4001 = vrot.lane.b32.xlu0 %v3825, 28
    %v4002 = vpop.permute.xlu0 %4001
    %4003 = vrot.lane.b32.xlu0 %v3826, 28
    %v4004 = vpop.permute.xlu0 %4003
    %4005 = vrot.lane.b32.xlu0 %v3827, 28
    %v4006 = vpop.permute.xlu0 %4005
    %4007 = vrot.lane.b32.xlu0 %v3828, 28
    %v4008 = vpop.permute.xlu0 %4007
    %4009 = vrot.lane.b32.xlu0 %v3829, 28
    %v4010 = vpop.permute.xlu0 %4009
    %4011 = vrot.lane.b32.xlu0 %v3830, 28
    %v4012 = vpop.permute.xlu0 %4011
    %4013 = vrot.lane.b32.xlu0 %v3831, 28
    %v4014 = vpop.permute.xlu0 %4013
    %4015 = vrot.lane.b32.xlu0 %v3832, 28
    %v4016 = vpop.permute.xlu0 %4015
    %4017 = vrot.lane.b32.xlu0 %v3833, 28
    %v4018 = vpop.permute.xlu0 %4017
    %4019 = vrot.lane.b32.xlu0 %v3834, 28
    %v4020 = vpop.permute.xlu0 %4019
    %4021 = vrot.lane.b32.xlu0 %v3835, 28
    %v4022 = vpop.permute.xlu0 %4021
    %4023 = vrot.lane.b32.xlu0 %v3836, 28
    %v4024 = vpop.permute.xlu0 %4023
    %4025 = vrot.lane.b32.xlu0 %v3837, 28
    %v4026 = vpop.permute.xlu0 %4025
    %4027 = vrot.lane.b32.xlu0 %v3838, 28
    %v4028 = vpop.permute.xlu0 %4027
    %4029 = vrot.lane.b32.xlu0 %v3839, 28
    %v4030 = vpop.permute.xlu0 %4029
    %4031 = vrot.lane.b32.xlu0 %v3840, 28
    %v4032 = vpop.permute.xlu0 %4031
    %vm4097 = vcmask 261344
    %4098 = vst.msk [vmem:[#allocation3] sm:$0xff] %vm4097, %v3906
    %4099 = vst.msk [vmem:[#allocation3 + $0x8] sm:$0xff] %vm4097, %v3908
    %4100 = vst.msk [vmem:[#allocation3 + $0x10] sm:$0xff] %vm4097, %v3910
    %4101 = vst.msk [vmem:[#allocation3 + $0x18] sm:$0xff] %vm4097, %v3912
    %4102 = vst.msk [vmem:[#allocation3 + $0x20] sm:$0xff] %vm4097, %v3914
    %4103 = vst.msk [vmem:[#allocation3 + $0x28] sm:$0xff] %vm4097, %v3916
    %4104 = vst.msk [vmem:[#allocation3 + $0x30] sm:$0xff] %vm4097, %v3918
    %4105 = vst.msk [vmem:[#allocation3 + $0x38] sm:$0xff] %vm4097, %v3920
    %4106 = vst.msk [vmem:[#allocation3 + $0x40] sm:$0xff] %vm4097, %v3922
    %4107 = vst.msk [vmem:[#allocation3 + $0x48] sm:$0xff] %vm4097, %v3924
    %4108 = vst.msk [vmem:[#allocation3 + $0x50] sm:$0xff] %vm4097, %v3926
    %4109 = vst.msk [vmem:[#allocation3 + $0x58] sm:$0xff] %vm4097, %v3928
    %4110 = vst.msk [vmem:[#allocation3 + $0x60] sm:$0xff] %vm4097, %v3930
    %4111 = vst.msk [vmem:[#allocation3 + $0x68] sm:$0xff] %vm4097, %v3932
    %4112 = vst.msk [vmem:[#allocation3 + $0x70] sm:$0xff] %vm4097, %v3934
    %4113 = vst.msk [vmem:[#allocation3 + $0x78] sm:$0xff] %vm4097, %v3936
    %4114 = vst.msk [vmem:[#allocation3 + $0x80] sm:$0xff] %vm4097, %v3938
    %4115 = vst.msk [vmem:[#allocation3 + $0x88] sm:$0xff] %vm4097, %v3940
    %4116 = vst.msk [vmem:[#allocation3 + $0x90] sm:$0xff] %vm4097, %v3942
    %4117 = vst.msk [vmem:[#allocation3 + $0x98] sm:$0xff] %vm4097, %v3944
    %4118 = vst.msk [vmem:[#allocation3 + $0xa0] sm:$0xff] %vm4097, %v3946
    %4119 = vst.msk [vmem:[#allocation3 + $0xa8] sm:$0xff] %vm4097, %v3948
    %4120 = vst.msk [vmem:[#allocation3 + $0xb0] sm:$0xff] %vm4097, %v3950
    %4121 = vst.msk [vmem:[#allocation3 + $0xb8] sm:$0xff] %vm4097, %v3952
    %4122 = vst.msk [vmem:[#allocation3 + $0xc0] sm:$0xff] %vm4097, %v3954
    %4123 = vst.msk [vmem:[#allocation3 + $0xc8] sm:$0xff] %vm4097, %v3956
    %4124 = vst.msk [vmem:[#allocation3 + $0xd0] sm:$0xff] %vm4097, %v3958
    %4125 = vst.msk [vmem:[#allocation3 + $0xd8] sm:$0xff] %vm4097, %v3960
    %4126 = vst.msk [vmem:[#allocation3 + $0xe0] sm:$0xff] %vm4097, %v3962
    %4127 = vst.msk [vmem:[#allocation3 + $0xe8] sm:$0xff] %vm4097, %v3964
    %4128 = vst.msk [vmem:[#allocation3 + $0xf0] sm:$0xff] %vm4097, %v3966
    %4129 = vst.msk [vmem:[#allocation3 + $0xf8] sm:$0xff] %vm4097, %v3968
    %4130 = vst.msk [vmem:[#allocation3 + $0x100] sm:$0xff] %vm4097, %v3970
    %4131 = vst.msk [vmem:[#allocation3 + $0x108] sm:$0xff] %vm4097, %v3972
    %4132 = vst.msk [vmem:[#allocation3 + $0x110] sm:$0xff] %vm4097, %v3974
    %4133 = vst.msk [vmem:[#allocation3 + $0x118] sm:$0xff] %vm4097, %v3976
    %4134 = vst.msk [vmem:[#allocation3 + $0x120] sm:$0xff] %vm4097, %v3978
    %4135 = vst.msk [vmem:[#allocation3 + $0x128] sm:$0xff] %vm4097, %v3980
    %4136 = vst.msk [vmem:[#allocation3 + $0x130] sm:$0xff] %vm4097, %v3982
    %4137 = vst.msk [vmem:[#allocation3 + $0x138] sm:$0xff] %vm4097, %v3984
    %4138 = vst.msk [vmem:[#allocation3 + $0x140] sm:$0xff] %vm4097, %v3986
    %4139 = vst.msk [vmem:[#allocation3 + $0x148] sm:$0xff] %vm4097, %v3988
    %4140 = vst.msk [vmem:[#allocation3 + $0x150] sm:$0xff] %vm4097, %v3990
    %4141 = vst.msk [vmem:[#allocation3 + $0x158] sm:$0xff] %vm4097, %v3992
    %4142 = vst.msk [vmem:[#allocation3 + $0x160] sm:$0xff] %vm4097, %v3994
    %4143 = vst.msk [vmem:[#allocation3 + $0x168] sm:$0xff] %vm4097, %v3996
    %4144 = vst.msk [vmem:[#allocation3 + $0x170] sm:$0xff] %vm4097, %v3998
    %4145 = vst.msk [vmem:[#allocation3 + $0x178] sm:$0xff] %vm4097, %v4000
    %4146 = vst.msk [vmem:[#allocation3 + $0x180] sm:$0xff] %vm4097, %v4002
    %4147 = vst.msk [vmem:[#allocation3 + $0x188] sm:$0xff] %vm4097, %v4004
    %4148 = vst.msk [vmem:[#allocation3 + $0x190] sm:$0xff] %vm4097, %v4006
    %4149 = vst.msk [vmem:[#allocation3 + $0x198] sm:$0xff] %vm4097, %v4008
    %4150 = vst.msk [vmem:[#allocation3 + $0x1a0] sm:$0xff] %vm4097, %v4010
    %4151 = vst.msk [vmem:[#allocation3 + $0x1a8] sm:$0xff] %vm4097, %v4012
    %4152 = vst.msk [vmem:[#allocation3 + $0x1b0] sm:$0xff] %vm4097, %v4014
    %4153 = vst.msk [vmem:[#allocation3 + $0x1b8] sm:$0xff] %vm4097, %v4016
    %4154 = vst.msk [vmem:[#allocation3 + $0x1c0] sm:$0xff] %vm4097, %v4018
    %4155 = vst.msk [vmem:[#allocation3 + $0x1c8] sm:$0xff] %vm4097, %v4020
    %4156 = vst.msk [vmem:[#allocation3 + $0x1d0] sm:$0xff] %vm4097, %v4022
    %4157 = vst.msk [vmem:[#allocation3 + $0x1d8] sm:$0xff] %vm4097, %v4024
    %4158 = vst.msk [vmem:[#allocation3 + $0x1e0] sm:$0xff] %vm4097, %v4026
    %4159 = vst.msk [vmem:[#allocation3 + $0x1e8] sm:$0xff] %vm4097, %v4028
    %4160 = vst.msk [vmem:[#allocation3 + $0x1f0] sm:$0xff] %vm4097, %v4030
    %4161 = vst.msk [vmem:[#allocation3 + $0x1f8] sm:$0xff] %vm4097, %v4032
    %v4162 = vld [vmem:[%s3391 + $0x2] sm:$0xff]
    %v4163 = vld [vmem:[%s3391 + $0xa] sm:$0xff]
    %v4164 = vld [vmem:[%s3391 + $0x1a] sm:$0xff]
    %v4165 = vld [vmem:[%s3391 + $0x22] sm:$0xff]
    %v4166 = vld [vmem:[%s3391 + $0x32] sm:$0xff]
    %v4167 = vld [vmem:[%s3391 + $0x3a] sm:$0xff]
    %v4168 = vld [vmem:[%s3391 + $0x4a] sm:$0xff]
    %v4169 = vld [vmem:[%s3391 + $0x52] sm:$0xff]
    %v4170 = vld [vmem:[%s3391 + $0x62] sm:$0xff]
    %v4171 = vld [vmem:[%s3391 + $0x6a] sm:$0xff]
    %v4172 = vld [vmem:[%s3391 + $0x7a] sm:$0xff]
    %v4173 = vld [vmem:[%s3391 + $0x82] sm:$0xff]
    %v4174 = vld [vmem:[%s3391 + $0x92] sm:$0xff]
    %v4175 = vld [vmem:[%s3391 + $0x9a] sm:$0xff]
    %v4176 = vld [vmem:[%s3391 + $0xaa] sm:$0xff]
    %v4177 = vld [vmem:[%s3391 + $0xb2] sm:$0xff]
    %v4178 = vld [vmem:[%s3391 + $0xc2] sm:$0xff]
    %v4179 = vld [vmem:[%s3391 + $0xca] sm:$0xff]
    %v4180 = vld [vmem:[%s3391 + $0xda] sm:$0xff]
    %v4181 = vld [vmem:[%s3391 + $0xe2] sm:$0xff]
    %v4182 = vld [vmem:[%s3391 + $0xf2] sm:$0xff]
    %v4183 = vld [vmem:[%s3391 + $0xfa] sm:$0xff]
    %v4184 = vld [vmem:[%s3391 + $0x10a] sm:$0xff]
    %v4185 = vld [vmem:[%s3391 + $0x112] sm:$0xff]
    %v4186 = vld [vmem:[%s3391 + $0x122] sm:$0xff]
    %v4187 = vld [vmem:[%s3391 + $0x12a] sm:$0xff]
    %v4188 = vld [vmem:[%s3391 + $0x13a] sm:$0xff]
    %v4189 = vld [vmem:[%s3391 + $0x142] sm:$0xff]
    %v4190 = vld [vmem:[%s3391 + $0x152] sm:$0xff]
    %v4191 = vld [vmem:[%s3391 + $0x15a] sm:$0xff]
    %v4192 = vld [vmem:[%s3391 + $0x16a] sm:$0xff]
    %v4193 = vld [vmem:[%s3391 + $0x172] sm:$0xff]
    %v4194 = vld [vmem:[%s3391 + $0x1b2] sm:$0xff]
    %v4195 = vld [vmem:[%s3391 + $0x1ba] sm:$0xff]
    %v4196 = vld [vmem:[%s3391 + $0x1ca] sm:$0xff]
    %v4197 = vld [vmem:[%s3391 + $0x1d2] sm:$0xff]
    %v4198 = vld [vmem:[%s3391 + $0x1e2] sm:$0xff]
    %v4199 = vld [vmem:[%s3391 + $0x1ea] sm:$0xff]
    %v4200 = vld [vmem:[%s3391 + $0x1fa] sm:$0xff]
    %v4201 = vld [vmem:[%s3391 + $0x202] sm:$0xff]
    %v4202 = vld [vmem:[%s3391 + $0x212] sm:$0xff]
    %v4203 = vld [vmem:[%s3391 + $0x21a] sm:$0xff]
    %v4204 = vld [vmem:[%s3391 + $0x22a] sm:$0xff]
    %v4205 = vld [vmem:[%s3391 + $0x232] sm:$0xff]
    %v4206 = vld [vmem:[%s3391 + $0x242] sm:$0xff]
    %v4207 = vld [vmem:[%s3391 + $0x24a] sm:$0xff]
    %v4208 = vld [vmem:[%s3391 + $0x25a] sm:$0xff]
    %v4209 = vld [vmem:[%s3391 + $0x262] sm:$0xff]
    %v4210 = vld [vmem:[%s3391 + $0x272] sm:$0xff]
    %v4211 = vld [vmem:[%s3391 + $0x27a] sm:$0xff]
    %v4212 = vld [vmem:[%s3391 + $0x28a] sm:$0xff]
    %v4213 = vld [vmem:[%s3391 + $0x292] sm:$0xff]
    %v4214 = vld [vmem:[%s3391 + $0x2a2] sm:$0xff]
    %v4215 = vld [vmem:[%s3391 + $0x2aa] sm:$0xff]
    %v4216 = vld [vmem:[%s3391 + $0x2ba] sm:$0xff]
    %v4217 = vld [vmem:[%s3391 + $0x2c2] sm:$0xff]
    %v4218 = vld [vmem:[%s3391 + $0x2d2] sm:$0xff]
    %v4219 = vld [vmem:[%s3391 + $0x2da] sm:$0xff]
    %v4220 = vld [vmem:[%s3391 + $0x2ea] sm:$0xff]
    %v4221 = vld [vmem:[%s3391 + $0x2f2] sm:$0xff]
    %v4222 = vld [vmem:[%s3391 + $0x302] sm:$0xff]
    %v4223 = vld [vmem:[%s3391 + $0x30a] sm:$0xff]
    %v4224 = vld [vmem:[%s3391 + $0x31a] sm:$0xff]
    %v4225 = vld [vmem:[%s3391 + $0x322] sm:$0xff]
    %4290 = vrot.lane.b32.xlu0 %v4162, 32
    %v4291 = vpop.permute.xlu0 %4290
    %4292 = vrot.lane.b32.xlu0 %v4163, 32
    %v4293 = vpop.permute.xlu0 %4292
    %4294 = vrot.lane.b32.xlu0 %v4164, 32
    %v4295 = vpop.permute.xlu0 %4294
    %4296 = vrot.lane.b32.xlu0 %v4165, 32
    %v4297 = vpop.permute.xlu0 %4296
    %4298 = vrot.lane.b32.xlu0 %v4166, 32
    %v4299 = vpop.permute.xlu0 %4298
    %4300 = vrot.lane.b32.xlu0 %v4167, 32
    %v4301 = vpop.permute.xlu0 %4300
    %4302 = vrot.lane.b32.xlu0 %v4168, 32
    %v4303 = vpop.permute.xlu0 %4302
    %4304 = vrot.lane.b32.xlu0 %v4169, 32
    %v4305 = vpop.permute.xlu0 %4304
    %4306 = vrot.lane.b32.xlu0 %v4170, 32
    %v4307 = vpop.permute.xlu0 %4306
    %4308 = vrot.lane.b32.xlu0 %v4171, 32
    %v4309 = vpop.permute.xlu0 %4308
    %4310 = vrot.lane.b32.xlu0 %v4172, 32
    %v4311 = vpop.permute.xlu0 %4310
    %4312 = vrot.lane.b32.xlu0 %v4173, 32
    %v4313 = vpop.permute.xlu0 %4312
    %4314 = vrot.lane.b32.xlu0 %v4174, 32
    %v4315 = vpop.permute.xlu0 %4314
    %4316 = vrot.lane.b32.xlu0 %v4175, 32
    %v4317 = vpop.permute.xlu0 %4316
    %4318 = vrot.lane.b32.xlu0 %v4176, 32
    %v4319 = vpop.permute.xlu0 %4318
    %4320 = vrot.lane.b32.xlu0 %v4177, 32
    %v4321 = vpop.permute.xlu0 %4320
    %4322 = vrot.lane.b32.xlu0 %v4178, 32
    %v4323 = vpop.permute.xlu0 %4322
    %4324 = vrot.lane.b32.xlu0 %v4179, 32
    %v4325 = vpop.permute.xlu0 %4324
    %4326 = vrot.lane.b32.xlu0 %v4180, 32
    %v4327 = vpop.permute.xlu0 %4326
    %4328 = vrot.lane.b32.xlu0 %v4181, 32
    %v4329 = vpop.permute.xlu0 %4328
    %4330 = vrot.lane.b32.xlu0 %v4182, 32
    %v4331 = vpop.permute.xlu0 %4330
    %4332 = vrot.lane.b32.xlu0 %v4183, 32
    %v4333 = vpop.permute.xlu0 %4332
    %4334 = vrot.lane.b32.xlu0 %v4184, 32
    %v4335 = vpop.permute.xlu0 %4334
    %4336 = vrot.lane.b32.xlu0 %v4185, 32
    %v4337 = vpop.permute.xlu0 %4336
    %4338 = vrot.lane.b32.xlu0 %v4186, 32
    %v4339 = vpop.permute.xlu0 %4338
    %4340 = vrot.lane.b32.xlu0 %v4187, 32
    %v4341 = vpop.permute.xlu0 %4340
    %4342 = vrot.lane.b32.xlu0 %v4188, 32
    %v4343 = vpop.permute.xlu0 %4342
    %4344 = vrot.lane.b32.xlu0 %v4189, 32
    %v4345 = vpop.permute.xlu0 %4344
    %4346 = vrot.lane.b32.xlu0 %v4190, 32
    %v4347 = vpop.permute.xlu0 %4346
    %4348 = vrot.lane.b32.xlu0 %v4191, 32
    %v4349 = vpop.permute.xlu0 %4348
    %4350 = vrot.lane.b32.xlu0 %v4192, 32
    %v4351 = vpop.permute.xlu0 %4350
    %4352 = vrot.lane.b32.xlu0 %v4193, 32
    %v4353 = vpop.permute.xlu0 %4352
    %4354 = vrot.lane.b32.xlu0 %v4194, 32
    %v4355 = vpop.permute.xlu0 %4354
    %4356 = vrot.lane.b32.xlu0 %v4195, 32
    %v4357 = vpop.permute.xlu0 %4356
    %4358 = vrot.lane.b32.xlu0 %v4196, 32
    %v4359 = vpop.permute.xlu0 %4358
    %4360 = vrot.lane.b32.xlu0 %v4197, 32
    %v4361 = vpop.permute.xlu0 %4360
    %4362 = vrot.lane.b32.xlu0 %v4198, 32
    %v4363 = vpop.permute.xlu0 %4362
    %4364 = vrot.lane.b32.xlu0 %v4199, 32
    %v4365 = vpop.permute.xlu0 %4364
    %4366 = vrot.lane.b32.xlu0 %v4200, 32
    %v4367 = vpop.permute.xlu0 %4366
    %4368 = vrot.lane.b32.xlu0 %v4201, 32
    %v4369 = vpop.permute.xlu0 %4368
    %4370 = vrot.lane.b32.xlu0 %v4202, 32
    %v4371 = vpop.permute.xlu0 %4370
    %4372 = vrot.lane.b32.xlu0 %v4203, 32
    %v4373 = vpop.permute.xlu0 %4372
    %4374 = vrot.lane.b32.xlu0 %v4204, 32
    %v4375 = vpop.permute.xlu0 %4374
    %4376 = vrot.lane.b32.xlu0 %v4205, 32
    %v4377 = vpop.permute.xlu0 %4376
    %4378 = vrot.lane.b32.xlu0 %v4206, 32
    %v4379 = vpop.permute.xlu0 %4378
    %4380 = vrot.lane.b32.xlu0 %v4207, 32
    %v4381 = vpop.permute.xlu0 %4380
    %4382 = vrot.lane.b32.xlu0 %v4208, 32
    %v4383 = vpop.permute.xlu0 %4382
    %4384 = vrot.lane.b32.xlu0 %v4209, 32
    %v4385 = vpop.permute.xlu0 %4384
    %4386 = vrot.lane.b32.xlu0 %v4210, 32
    %v4387 = vpop.permute.xlu0 %4386
    %4388 = vrot.lane.b32.xlu0 %v4211, 32
    %v4389 = vpop.permute.xlu0 %4388
    %4390 = vrot.lane.b32.xlu0 %v4212, 32
    %v4391 = vpop.permute.xlu0 %4390
    %4392 = vrot.lane.b32.xlu0 %v4213, 32
    %v4393 = vpop.permute.xlu0 %4392
    %4394 = vrot.lane.b32.xlu0 %v4214, 32
    %v4395 = vpop.permute.xlu0 %4394
    %4396 = vrot.lane.b32.xlu0 %v4215, 32
    %v4397 = vpop.permute.xlu0 %4396
    %4398 = vrot.lane.b32.xlu0 %v4216, 32
    %v4399 = vpop.permute.xlu0 %4398
    %4400 = vrot.lane.b32.xlu0 %v4217, 32
    %v4401 = vpop.permute.xlu0 %4400
    %4402 = vrot.lane.b32.xlu0 %v4218, 32
    %v4403 = vpop.permute.xlu0 %4402
    %4404 = vrot.lane.b32.xlu0 %v4219, 32
    %v4405 = vpop.permute.xlu0 %4404
    %4406 = vrot.lane.b32.xlu0 %v4220, 32
    %v4407 = vpop.permute.xlu0 %4406
    %4408 = vrot.lane.b32.xlu0 %v4221, 32
    %v4409 = vpop.permute.xlu0 %4408
    %4410 = vrot.lane.b32.xlu0 %v4222, 32
    %v4411 = vpop.permute.xlu0 %4410
    %4412 = vrot.lane.b32.xlu0 %v4223, 32
    %v4413 = vpop.permute.xlu0 %4412
    %4414 = vrot.lane.b32.xlu0 %v4224, 32
    %v4415 = vpop.permute.xlu0 %4414
    %4416 = vrot.lane.b32.xlu0 %v4225, 32
    %v4417 = vpop.permute.xlu0 %4416
    %vm4482 = vcmask 294144
    %4483 = vst.msk [vmem:[#allocation3] sm:$0xff] %vm4482, %v4291
    %4484 = vst.msk [vmem:[#allocation3 + $0x8] sm:$0xff] %vm4482, %v4293
    %4485 = vst.msk [vmem:[#allocation3 + $0x10] sm:$0xff] %vm4482, %v4295
    %4486 = vst.msk [vmem:[#allocation3 + $0x18] sm:$0xff] %vm4482, %v4297
    %4487 = vst.msk [vmem:[#allocation3 + $0x20] sm:$0xff] %vm4482, %v4299
    %4488 = vst.msk [vmem:[#allocation3 + $0x28] sm:$0xff] %vm4482, %v4301
    %4489 = vst.msk [vmem:[#allocation3 + $0x30] sm:$0xff] %vm4482, %v4303
    %4490 = vst.msk [vmem:[#allocation3 + $0x38] sm:$0xff] %vm4482, %v4305
    %4491 = vst.msk [vmem:[#allocation3 + $0x40] sm:$0xff] %vm4482, %v4307
    %4492 = vst.msk [vmem:[#allocation3 + $0x48] sm:$0xff] %vm4482, %v4309
    %4493 = vst.msk [vmem:[#allocation3 + $0x50] sm:$0xff] %vm4482, %v4311
    %4494 = vst.msk [vmem:[#allocation3 + $0x58] sm:$0xff] %vm4482, %v4313
    %4495 = vst.msk [vmem:[#allocation3 + $0x60] sm:$0xff] %vm4482, %v4315
    %4496 = vst.msk [vmem:[#allocation3 + $0x68] sm:$0xff] %vm4482, %v4317
    %4497 = vst.msk [vmem:[#allocation3 + $0x70] sm:$0xff] %vm4482, %v4319
    %4498 = vst.msk [vmem:[#allocation3 + $0x78] sm:$0xff] %vm4482, %v4321
    %4499 = vst.msk [vmem:[#allocation3 + $0x80] sm:$0xff] %vm4482, %v4323
    %4500 = vst.msk [vmem:[#allocation3 + $0x88] sm:$0xff] %vm4482, %v4325
    %4501 = vst.msk [vmem:[#allocation3 + $0x90] sm:$0xff] %vm4482, %v4327
    %4502 = vst.msk [vmem:[#allocation3 + $0x98] sm:$0xff] %vm4482, %v4329
    %4503 = vst.msk [vmem:[#allocation3 + $0xa0] sm:$0xff] %vm4482, %v4331
    %4504 = vst.msk [vmem:[#allocation3 + $0xa8] sm:$0xff] %vm4482, %v4333
    %4505 = vst.msk [vmem:[#allocation3 + $0xb0] sm:$0xff] %vm4482, %v4335
    %4506 = vst.msk [vmem:[#allocation3 + $0xb8] sm:$0xff] %vm4482, %v4337
    %4507 = vst.msk [vmem:[#allocation3 + $0xc0] sm:$0xff] %vm4482, %v4339
    %4508 = vst.msk [vmem:[#allocation3 + $0xc8] sm:$0xff] %vm4482, %v4341
    %4509 = vst.msk [vmem:[#allocation3 + $0xd0] sm:$0xff] %vm4482, %v4343
    %4510 = vst.msk [vmem:[#allocation3 + $0xd8] sm:$0xff] %vm4482, %v4345
    %4511 = vst.msk [vmem:[#allocation3 + $0xe0] sm:$0xff] %vm4482, %v4347
    %4512 = vst.msk [vmem:[#allocation3 + $0xe8] sm:$0xff] %vm4482, %v4349
    %4513 = vst.msk [vmem:[#allocation3 + $0xf0] sm:$0xff] %vm4482, %v4351
    %4514 = vst.msk [vmem:[#allocation3 + $0xf8] sm:$0xff] %vm4482, %v4353
    %4515 = vst.msk [vmem:[#allocation3 + $0x100] sm:$0xff] %vm4482, %v4355
    %4516 = vst.msk [vmem:[#allocation3 + $0x108] sm:$0xff] %vm4482, %v4357
    %4517 = vst.msk [vmem:[#allocation3 + $0x110] sm:$0xff] %vm4482, %v4359
    %4518 = vst.msk [vmem:[#allocation3 + $0x118] sm:$0xff] %vm4482, %v4361
    %4519 = vst.msk [vmem:[#allocation3 + $0x120] sm:$0xff] %vm4482, %v4363
    %4520 = vst.msk [vmem:[#allocation3 + $0x128] sm:$0xff] %vm4482, %v4365
    %4521 = vst.msk [vmem:[#allocation3 + $0x130] sm:$0xff] %vm4482, %v4367
    %4522 = vst.msk [vmem:[#allocation3 + $0x138] sm:$0xff] %vm4482, %v4369
    %4523 = vst.msk [vmem:[#allocation3 + $0x140] sm:$0xff] %vm4482, %v4371
    %4524 = vst.msk [vmem:[#allocation3 + $0x148] sm:$0xff] %vm4482, %v4373
    %4525 = vst.msk [vmem:[#allocation3 + $0x150] sm:$0xff] %vm4482, %v4375
    %4526 = vst.msk [vmem:[#allocation3 + $0x158] sm:$0xff] %vm4482, %v4377
    %4527 = vst.msk [vmem:[#allocation3 + $0x160] sm:$0xff] %vm4482, %v4379
    %4528 = vst.msk [vmem:[#allocation3 + $0x168] sm:$0xff] %vm4482, %v4381
    %4529 = vst.msk [vmem:[#allocation3 + $0x170] sm:$0xff] %vm4482, %v4383
    %4530 = vst.msk [vmem:[#allocation3 + $0x178] sm:$0xff] %vm4482, %v4385
    %4531 = vst.msk [vmem:[#allocation3 + $0x180] sm:$0xff] %vm4482, %v4387
    %4532 = vst.msk [vmem:[#allocation3 + $0x188] sm:$0xff] %vm4482, %v4389
    %4533 = vst.msk [vmem:[#allocation3 + $0x190] sm:$0xff] %vm4482, %v4391
    %4534 = vst.msk [vmem:[#allocation3 + $0x198] sm:$0xff] %vm4482, %v4393
    %4535 = vst.msk [vmem:[#allocation3 + $0x1a0] sm:$0xff] %vm4482, %v4395
    %4536 = vst.msk [vmem:[#allocation3 + $0x1a8] sm:$0xff] %vm4482, %v4397
    %4537 = vst.msk [vmem:[#allocation3 + $0x1b0] sm:$0xff] %vm4482, %v4399
    %4538 = vst.msk [vmem:[#allocation3 + $0x1b8] sm:$0xff] %vm4482, %v4401
    %4539 = vst.msk [vmem:[#allocation3 + $0x1c0] sm:$0xff] %vm4482, %v4403
    %4540 = vst.msk [vmem:[#allocation3 + $0x1c8] sm:$0xff] %vm4482, %v4405
    %4541 = vst.msk [vmem:[#allocation3 + $0x1d0] sm:$0xff] %vm4482, %v4407
    %4542 = vst.msk [vmem:[#allocation3 + $0x1d8] sm:$0xff] %vm4482, %v4409
    %4543 = vst.msk [vmem:[#allocation3 + $0x1e0] sm:$0xff] %vm4482, %v4411
    %4544 = vst.msk [vmem:[#allocation3 + $0x1e8] sm:$0xff] %vm4482, %v4413
    %4545 = vst.msk [vmem:[#allocation3 + $0x1f0] sm:$0xff] %vm4482, %v4415
    %4546 = vst.msk [vmem:[#allocation3 + $0x1f8] sm:$0xff] %vm4482, %v4417
    %v4547 = vld [vmem:[#allocation3] sm:$0xff]
    %v4548 = vld [vmem:[#allocation3 + $0x8] sm:$0xff]
    %v4549 = vld [vmem:[#allocation3 + $0x10] sm:$0xff]
    %v4550 = vld [vmem:[#allocation3 + $0x18] sm:$0xff]
    %v4551 = vld [vmem:[#allocation3 + $0x20] sm:$0xff]
    %v4552 = vld [vmem:[#allocation3 + $0x28] sm:$0xff]
    %v4553 = vld [vmem:[#allocation3 + $0x30] sm:$0xff]
    %v4554 = vld [vmem:[#allocation3 + $0x38] sm:$0xff]
    %v4555 = vld [vmem:[#allocation3 + $0x40] sm:$0xff]
    %v4556 = vld [vmem:[#allocation3 + $0x48] sm:$0xff]
    %v4557 = vld [vmem:[#allocation3 + $0x50] sm:$0xff]
    %v4558 = vld [vmem:[#allocation3 + $0x58] sm:$0xff]
    %v4559 = vld [vmem:[#allocation3 + $0x60] sm:$0xff]
    %v4560 = vld [vmem:[#allocation3 + $0x68] sm:$0xff]
    %v4561 = vld [vmem:[#allocation3 + $0x70] sm:$0xff]
    %v4562 = vld [vmem:[#allocation3 + $0x78] sm:$0xff]
    %v4563 = vld [vmem:[#allocation3 + $0x80] sm:$0xff]
    %v4564 = vld [vmem:[#allocation3 + $0x88] sm:$0xff]
    %v4565 = vld [vmem:[#allocation3 + $0x90] sm:$0xff]
    %v4566 = vld [vmem:[#allocation3 + $0x98] sm:$0xff]
    %v4567 = vld [vmem:[#allocation3 + $0xa0] sm:$0xff]
    %v4568 = vld [vmem:[#allocation3 + $0xa8] sm:$0xff]
    %v4569 = vld [vmem:[#allocation3 + $0xb0] sm:$0xff]
    %v4570 = vld [vmem:[#allocation3 + $0xb8] sm:$0xff]
    %v4571 = vld [vmem:[#allocation3 + $0xc0] sm:$0xff]
    %v4572 = vld [vmem:[#allocation3 + $0xc8] sm:$0xff]
    %v4573 = vld [vmem:[#allocation3 + $0xd0] sm:$0xff]
    %v4574 = vld [vmem:[#allocation3 + $0xd8] sm:$0xff]
    %v4575 = vld [vmem:[#allocation3 + $0xe0] sm:$0xff]
    %v4576 = vld [vmem:[#allocation3 + $0xe8] sm:$0xff]
    %v4577 = vld [vmem:[#allocation3 + $0xf0] sm:$0xff]
    %v4578 = vld [vmem:[#allocation3 + $0xf8] sm:$0xff]
    %v4579 = vld [vmem:[#allocation3 + $0x100] sm:$0xff]
    %v4580 = vld [vmem:[#allocation3 + $0x108] sm:$0xff]
    %v4581 = vld [vmem:[#allocation3 + $0x110] sm:$0xff]
    %v4582 = vld [vmem:[#allocation3 + $0x118] sm:$0xff]
    %v4583 = vld [vmem:[#allocation3 + $0x120] sm:$0xff]
    %v4584 = vld [vmem:[#allocation3 + $0x128] sm:$0xff]
    %v4585 = vld [vmem:[#allocation3 + $0x130] sm:$0xff]
    %v4586 = vld [vmem:[#allocation3 + $0x138] sm:$0xff]
    %v4587 = vld [vmem:[#allocation3 + $0x140] sm:$0xff]
    %v4588 = vld [vmem:[#allocation3 + $0x148] sm:$0xff]
    %v4589 = vld [vmem:[#allocation3 + $0x150] sm:$0xff]
    %v4590 = vld [vmem:[#allocation3 + $0x158] sm:$0xff]
    %v4591 = vld [vmem:[#allocation3 + $0x160] sm:$0xff]
    %v4592 = vld [vmem:[#allocation3 + $0x168] sm:$0xff]
    %v4593 = vld [vmem:[#allocation3 + $0x170] sm:$0xff]
    %v4594 = vld [vmem:[#allocation3 + $0x178] sm:$0xff]
    %v4595 = vld [vmem:[#allocation3 + $0x180] sm:$0xff]
    %v4596 = vld [vmem:[#allocation3 + $0x188] sm:$0xff]
    %v4597 = vld [vmem:[#allocation3 + $0x190] sm:$0xff]
    %v4598 = vld [vmem:[#allocation3 + $0x198] sm:$0xff]
    %v4599 = vld [vmem:[#allocation3 + $0x1a0] sm:$0xff]
    %v4600 = vld [vmem:[#allocation3 + $0x1a8] sm:$0xff]
    %v4601 = vld [vmem:[#allocation3 + $0x1b0] sm:$0xff]
    %v4602 = vld [vmem:[#allocation3 + $0x1b8] sm:$0xff]
    %v4603 = vld [vmem:[#allocation3 + $0x1c0] sm:$0xff]
    %v4604 = vld [vmem:[#allocation3 + $0x1c8] sm:$0xff]
    %v4605 = vld [vmem:[#allocation3 + $0x1d0] sm:$0xff]
    %v4606 = vld [vmem:[#allocation3 + $0x1d8] sm:$0xff]
    %v4607 = vld [vmem:[#allocation3 + $0x1e0] sm:$0xff]
    %v4608 = vld [vmem:[#allocation3 + $0x1e8] sm:$0xff]
    %v4609 = vld [vmem:[#allocation3 + $0x1f0] sm:$0xff]
    %v4610 = vld [vmem:[#allocation3 + $0x1f8] sm:$0xff]
    %v4611 = vld [vmem:[#allocation9] sm:$0xff]
    %v4612 = vld [vmem:[#allocation9 + $0x8] sm:$0xff]
    %v4613 = vld [vmem:[#allocation9 + $0x10] sm:$0xff]
    %v4614 = vld [vmem:[#allocation9 + $0x18] sm:$0xff]
    %v4615 = vld [vmem:[#allocation9 + $0x20] sm:$0xff]
    %v4616 = vld [vmem:[#allocation9 + $0x28] sm:$0xff]
    %v4617 = vld [vmem:[#allocation9 + $0x30] sm:$0xff]
    %v4618 = vld [vmem:[#allocation9 + $0x38] sm:$0xff]
    %v4619 = vld [vmem:[#allocation9 + $0x40] sm:$0xff]
    %v4620 = vld [vmem:[#allocation9 + $0x48] sm:$0xff]
    %v4621 = vld [vmem:[#allocation9 + $0x50] sm:$0xff]
    %v4622 = vld [vmem:[#allocation9 + $0x58] sm:$0xff]
    %v4623 = vld [vmem:[#allocation9 + $0x60] sm:$0xff]
    %v4624 = vld [vmem:[#allocation9 + $0x68] sm:$0xff]
    %v4625 = vld [vmem:[#allocation9 + $0x70] sm:$0xff]
    %v4626 = vld [vmem:[#allocation9 + $0x78] sm:$0xff]
    %4627 = vmatprep.subr.mxu0 0.0
    %4628 = vmatpush1.msra.mxu0 %v4611
    %4629 = vmatprep.subr.mxu0 0.0
    %4630 = vmatpush1.msra.mxu0 %v4612
    %4631 = vmatprep.subr.mxu0 0.0
    %4632 = vmatpush1.msra.mxu0 %v4613
    %4633 = vmatprep.subr.mxu0 0.0
    %4634 = vmatpush1.msra.mxu0 %v4614
    %4635 = vmatprep.subr.mxu0 0.0
    %4636 = vmatpush1.msra.mxu0 %v4615
    %4637 = vmatprep.subr.mxu0 0.0
    %4638 = vmatpush1.msra.mxu0 %v4616
    %4639 = vmatprep.subr.mxu0 0.0
    %4640 = vmatpush1.msra.mxu0 %v4617
    %4641 = vmatprep.subr.mxu0 0.0
    %4642 = vmatpush1.msra.mxu0 %v4618
    %4643 = vmatprep.subr.mxu0 0.0
    %4644 = vmatpush1.msra.mxu0 %v4619
    %4645 = vmatprep.subr.mxu0 0.0
    %4646 = vmatpush1.msra.mxu0 %v4620
    %4647 = vmatprep.subr.mxu0 0.0
    %4648 = vmatpush1.msra.mxu0 %v4621
    %4649 = vmatprep.subr.mxu0 0.0
    %4650 = vmatpush1.msra.mxu0 %v4622
    %4651 = vmatprep.subr.mxu0 0.0
    %4652 = vmatpush1.msra.mxu0 %v4623
    %4653 = vmatprep.subr.mxu0 0.0
    %4654 = vmatpush1.msra.mxu0 %v4624
    %4655 = vmatprep.subr.mxu0 0.0
    %4656 = vmatpush1.msra.mxu0 %v4625
    %4657 = vmatprep.subr.mxu0 0.0
    %4658 = vmatpush1.msra.mxu0 %v4626
    %4659 = vmatprep.subr.mxu0 0.0
    %4660 = vmatpush1.msra.mxu0 0.0
    %4661 = vmatprep.subr.mxu0 0.0
    %4662 = vmatpush1.msra.mxu0 0.0
    %4663 = vmatprep.subr.mxu0 0.0
    %4664 = vmatpush1.msra.mxu0 0.0
    %4665 = vmatprep.subr.mxu0 0.0
    %4666 = vmatpush1.msra.mxu0 0.0
    %4667 = vmatprep.subr.mxu0 0.0
    %4668 = vmatpush1.msra.mxu0 0.0
    %4669 = vmatprep.subr.mxu0 0.0
    %4670 = vmatpush1.msra.mxu0 0.0
    %4671 = vmatprep.subr.mxu0 0.0
    %4672 = vmatpush1.msra.mxu0 0.0
    %4673 = vmatprep.subr.mxu0 0.0
    %4674 = vmatpush1.msra.mxu0 0.0
    %4675 = vmatprep.subr.mxu0 0.0
    %4676 = vmatpush1.msra.mxu0 0.0
    %4677 = vmatprep.subr.mxu0 0.0
    %4678 = vmatpush1.msra.mxu0 0.0
    %4679 = vmatprep.subr.mxu0 0.0
    %4680 = vmatpush1.msra.mxu0 0.0
    %4681 = vmatprep.subr.mxu0 0.0
    %4682 = vmatpush1.msra.mxu0 0.0
    %4683 = vmatprep.subr.mxu0 0.0
    %4684 = vmatpush1.msra.mxu0 0.0
    %4685 = vmatprep.subr.mxu0 0.0
    %4686 = vmatpush1.msra.mxu0 0.0
    %4687 = vmatprep.subr.mxu0 0.0
    %4688 = vmatpush1.msra.mxu0 0.0
    %4689 = vmatprep.subr.mxu0 0.0
    %4690 = vmatpush1.msra.mxu0 0.0
    %4691 = vmatprep.mubr.f32.mxu0 0.0
    %4692 = vmatmul.mubr.f32.gmra.mrb[0].mxu0 %v4547
    %v4693 = vpop.f32.mrb[0].mxu0
    %v4694 = vadd.f32 0.0, %v4693
    %v4695 = vpop.f32.mrb[0].mxu0
    %4696 = vmatprep.mubr.f32.mxu0 0.0
    %4697 = vmatmul.mubr.f32.gmra.mrb[0].mxu0 %v4548
    %v4698 = vpop.f32.mrb[0].mxu0
    %v4699 = vadd.f32 0.0, %v4698
    %v4700 = vpop.f32.mrb[0].mxu0
    %4701 = vmatprep.mubr.f32.mxu0 0.0
    %4702 = vmatmul.mubr.f32.gmra.mrb[0].mxu0 %v4549
    %v4703 = vpop.f32.mrb[0].mxu0
    %v4704 = vadd.f32 0.0, %v4703
    %v4705 = vpop.f32.mrb[0].mxu0
    %4706 = vmatprep.mubr.f32.mxu0 0.0
    %4707 = vmatmul.mubr.f32.gmra.mrb[0].mxu0 %v4550
    %v4708 = vpop.f32.mrb[0].mxu0
    %v4709 = vadd.f32 0.0, %v4708
    %v4710 = vpop.f32.mrb[0].mxu0
    %4711 = vmatprep.mubr.f32.mxu0 0.0
    %4712 = vmatmul.mubr.f32.gmra.mrb[0].mxu0 %v4551
    %v4713 = vpop.f32.mrb[0].mxu0
    %v4714 = vadd.f32 0.0, %v4713
    %v4715 = vpop.f32.mrb[0].mxu0
    %4716 = vmatprep.mubr.f32.mxu0 0.0
    %4717 = vmatmul.mubr.f32.gmra.mrb[0].mxu0 %v4552
    %v4718 = vpop.f32.mrb[0].mxu0
    %v4719 = vadd.f32 0.0, %v4718
    %v4720 = vpop.f32.mrb[0].mxu0
    %4721 = vmatprep.mubr.f32.mxu0 0.0
    %4722 = vmatmul.mubr.f32.gmra.mrb[0].mxu0 %v4553
    %v4723 = vpop.f32.mrb[0].mxu0
    %v4724 = vadd.f32 0.0, %v4723
    %v4725 = vpop.f32.mrb[0].mxu0
    %4726 = vmatprep.mubr.f32.mxu0 0.0
    %4727 = vmatmul.mubr.f32.gmra.mrb[0].mxu0 %v4554
    %v4728 = vpop.f32.mrb[0].mxu0
    %v4729 = vadd.f32 0.0, %v4728
    %v4730 = vpop.f32.mrb[0].mxu0
    %4731 = vmatprep.mubr.f32.mxu0 0.0
    %4732 = vmatmul.mubr.f32.gmra.mrb[0].mxu0 %v4555
    %v4733 = vpop.f32.mrb[0].mxu0
    %v4734 = vadd.f32 0.0, %v4733
    %v4735 = vpop.f32.mrb[0].mxu0
    %4736 = vmatprep.mubr.f32.mxu0 0.0
    %4737 = vmatmul.mubr.f32.gmra.mrb[0].mxu0 %v4556
    %v4738 = vpop.f32.mrb[0].mxu0
    %v4739 = vadd.f32 0.0, %v4738
    %v4740 = vpop.f32.mrb[0].mxu0
    %4741 = vmatprep.mubr.f32.mxu0 0.0
    %4742 = vmatmul.mubr.f32.gmra.mrb[0].mxu0 %v4557
    %v4743 = vpop.f32.mrb[0].mxu0
    %v4744 = vadd.f32 0.0, %v4743
    %v4745 = vpop.f32.mrb[0].mxu0
    %4746 = vmatprep.mubr.f32.mxu0 0.0
    %4747 = vmatmul.mubr.f32.gmra.mrb[0].mxu0 %v4558
    %v4748 = vpop.f32.mrb[0].mxu0
    %v4749 = vadd.f32 0.0, %v4748
    %v4750 = vpop.f32.mrb[0].mxu0
    %4751 = vmatprep.mubr.f32.mxu0 0.0
    %4752 = vmatmul.mubr.f32.gmra.mrb[0].mxu0 %v4559
    %v4753 = vpop.f32.mrb[0].mxu0
    %v4754 = vadd.f32 0.0, %v4753
    %v4755 = vpop.f32.mrb[0].mxu0
    %4756 = vmatprep.mubr.f32.mxu0 0.0
    %4757 = vmatmul.mubr.f32.gmra.mrb[0].mxu0 %v4560
    %v4758 = vpop.f32.mrb[0].mxu0
    %v4759 = vadd.f32 0.0, %v4758
    %v4760 = vpop.f32.mrb[0].mxu0
    %4761 = vmatprep.mubr.f32.mxu0 0.0
    %4762 = vmatmul.mubr.f32.gmra.mrb[0].mxu0 %v4561
    %v4763 = vpop.f32.mrb[0].mxu0
    %v4764 = vadd.f32 0.0, %v4763
    %v4765 = vpop.f32.mrb[0].mxu0
    %4766 = vmatprep.mubr.f32.mxu0 0.0
    %4767 = vmatmul.mubr.f32.gmra.mrb[0].mxu0 %v4562
    %v4768 = vpop.f32.mrb[0].mxu0
    %v4769 = vadd.f32 0.0, %v4768
    %v4770 = vpop.f32.mrb[0].mxu0
    %4771 = vmatprep.mubr.f32.mxu0 0.0
    %4772 = vmatmul.mubr.f32.gmra.mrb[0].mxu0 %v4563
    %v4773 = vpop.f32.mrb[0].mxu0
    %v4774 = vadd.f32 0.0, %v4773
    %v4775 = vpop.f32.mrb[0].mxu0
    %4776 = vmatprep.mubr.f32.mxu0 0.0
    %4777 = vmatmul.mubr.f32.gmra.mrb[0].mxu0 %v4564
    %v4778 = vpop.f32.mrb[0].mxu0
    %v4779 = vadd.f32 0.0, %v4778
    %v4780 = vpop.f32.mrb[0].mxu0
    %4781 = vmatprep.mubr.f32.mxu0 0.0
    %4782 = vmatmul.mubr.f32.gmra.mrb[0].mxu0 %v4565
    %v4783 = vpop.f32.mrb[0].mxu0
    %v4784 = vadd.f32 0.0, %v4783
    %v4785 = vpop.f32.mrb[0].mxu0
    %4786 = vmatprep.mubr.f32.mxu0 0.0
    %4787 = vmatmul.mubr.f32.gmra.mrb[0].mxu0 %v4566
    %v4788 = vpop.f32.mrb[0].mxu0
    %v4789 = vadd.f32 0.0, %v4788
    %v4790 = vpop.f32.mrb[0].mxu0
    %4791 = vmatprep.mubr.f32.mxu0 0.0
    %4792 = vmatmul.mubr.f32.gmra.mrb[0].mxu0 %v4567
    %v4793 = vpop.f32.mrb[0].mxu0
    %v4794 = vadd.f32 0.0, %v4793
    %v4795 = vpop.f32.mrb[0].mxu0
    %4796 = vmatprep.mubr.f32.mxu0 0.0
    %4797 = vmatmul.mubr.f32.gmra.mrb[0].mxu0 %v4568
    %v4798 = vpop.f32.mrb[0].mxu0
    %v4799 = vadd.f32 0.0, %v4798
    %v4800 = vpop.f32.mrb[0].mxu0
    %4801 = vmatprep.mubr.f32.mxu0 0.0
    %4802 = vmatmul.mubr.f32.gmra.mrb[0].mxu0 %v4569
    %v4803 = vpop.f32.mrb[0].mxu0
    %v4804 = vadd.f32 0.0, %v4803
    %v4805 = vpop.f32.mrb[0].mxu0
    %4806 = vmatprep.mubr.f32.mxu0 0.0
    %4807 = vmatmul.mubr.f32.gmra.mrb[0].mxu0 %v4570
    %v4808 = vpop.f32.mrb[0].mxu0
    %v4809 = vadd.f32 0.0, %v4808
    %v4810 = vpop.f32.mrb[0].mxu0
    %4811 = vmatprep.mubr.f32.mxu0 0.0
    %4812 = vmatmul.mubr.f32.gmra.mrb[0].mxu0 %v4571
    %v4813 = vpop.f32.mrb[0].mxu0
    %v4814 = vadd.f32 0.0, %v4813
    %v4815 = vpop.f32.mrb[0].mxu0
    %4816 = vmatprep.mubr.f32.mxu0 0.0
    %4817 = vmatmul.mubr.f32.gmra.mrb[0].mxu0 %v4572
    %v4818 = vpop.f32.mrb[0].mxu0
    %v4819 = vadd.f32 0.0, %v4818
    %v4820 = vpop.f32.mrb[0].mxu0
    %4821 = vmatprep.mubr.f32.mxu0 0.0
    %4822 = vmatmul.mubr.f32.gmra.mrb[0].mxu0 %v4573
    %v4823 = vpop.f32.mrb[0].mxu0
    %v4824 = vadd.f32 0.0, %v4823
    %v4825 = vpop.f32.mrb[0].mxu0
    %4826 = vmatprep.mubr.f32.mxu0 0.0
    %4827 = vmatmul.mubr.f32.gmra.mrb[0].mxu0 %v4574
    %v4828 = vpop.f32.mrb[0].mxu0
    %v4829 = vadd.f32 0.0, %v4828
    %v4830 = vpop.f32.mrb[0].mxu0
    %4831 = vmatprep.mubr.f32.mxu0 0.0
    %4832 = vmatmul.mubr.f32.gmra.mrb[0].mxu0 %v4575
    %v4833 = vpop.f32.mrb[0].mxu0
    %v4834 = vadd.f32 0.0, %v4833
    %v4835 = vpop.f32.mrb[0].mxu0
    %4836 = vmatprep.mubr.f32.mxu0 0.0
    %4837 = vmatmul.mubr.f32.gmra.mrb[0].mxu0 %v4576
    %v4838 = vpop.f32.mrb[0].mxu0
    %v4839 = vadd.f32 0.0, %v4838
    %v4840 = vpop.f32.mrb[0].mxu0
    %4841 = vmatprep.mubr.f32.mxu0 0.0
    %4842 = vmatmul.mubr.f32.gmra.mrb[0].mxu0 %v4577
    %v4843 = vpop.f32.mrb[0].mxu0
    %v4844 = vadd.f32 0.0, %v4843
    %v4845 = vpop.f32.mrb[0].mxu0
    %4846 = vmatprep.mubr.f32.mxu0 0.0
    %4847 = vmatmul.mubr.f32.gmra.mrb[0].mxu0 %v4578
    %v4848 = vpop.f32.mrb[0].mxu0
    %v4849 = vadd.f32 0.0, %v4848
    %v4850 = vpop.f32.mrb[0].mxu0
    %4851 = vmatprep.mubr.f32.mxu0 0.0
    %4852 = vmatmul.mubr.f32.gmra.mrb[0].mxu0 %v4579
    %v4853 = vpop.f32.mrb[0].mxu0
    %v4854 = vadd.f32 0.0, %v4853
    %v4855 = vpop.f32.mrb[0].mxu0
    %4856 = vmatprep.mubr.f32.mxu0 0.0
    %4857 = vmatmul.mubr.f32.gmra.mrb[0].mxu0 %v4580
    %v4858 = vpop.f32.mrb[0].mxu0
    %v4859 = vadd.f32 0.0, %v4858
    %v4860 = vpop.f32.mrb[0].mxu0
    %4861 = vmatprep.mubr.f32.mxu0 0.0
    %4862 = vmatmul.mubr.f32.gmra.mrb[0].mxu0 %v4581
    %v4863 = vpop.f32.mrb[0].mxu0
    %v4864 = vadd.f32 0.0, %v4863
    %v4865 = vpop.f32.mrb[0].mxu0
    %4866 = vmatprep.mubr.f32.mxu0 0.0
    %4867 = vmatmul.mubr.f32.gmra.mrb[0].mxu0 %v4582
    %v4868 = vpop.f32.mrb[0].mxu0
    %v4869 = vadd.f32 0.0, %v4868
    %v4870 = vpop.f32.mrb[0].mxu0
    %4871 = vmatprep.mubr.f32.mxu0 0.0
    %4872 = vmatmul.mubr.f32.gmra.mrb[0].mxu0 %v4583
    %v4873 = vpop.f32.mrb[0].mxu0
    %v4874 = vadd.f32 0.0, %v4873
    %v4875 = vpop.f32.mrb[0].mxu0
    %4876 = vmatprep.mubr.f32.mxu0 0.0
    %4877 = vmatmul.mubr.f32.gmra.mrb[0].mxu0 %v4584
    %v4878 = vpop.f32.mrb[0].mxu0
    %v4879 = vadd.f32 0.0, %v4878
    %v4880 = vpop.f32.mrb[0].mxu0
    %4881 = vmatprep.mubr.f32.mxu0 0.0
    %4882 = vmatmul.mubr.f32.gmra.mrb[0].mxu0 %v4585
    %v4883 = vpop.f32.mrb[0].mxu0
    %v4884 = vadd.f32 0.0, %v4883
    %v4885 = vpop.f32.mrb[0].mxu0
    %4886 = vmatprep.mubr.f32.mxu0 0.0
    %4887 = vmatmul.mubr.f32.gmra.mrb[0].mxu0 %v4586
    %v4888 = vpop.f32.mrb[0].mxu0
    %v4889 = vadd.f32 0.0, %v4888
    %v4890 = vpop.f32.mrb[0].mxu0
    %4891 = vmatprep.mubr.f32.mxu0 0.0
    %4892 = vmatmul.mubr.f32.gmra.mrb[0].mxu0 %v4587
    %v4893 = vpop.f32.mrb[0].mxu0
    %v4894 = vadd.f32 0.0, %v4893
    %v4895 = vpop.f32.mrb[0].mxu0
    %4896 = vmatprep.mubr.f32.mxu0 0.0
    %4897 = vmatmul.mubr.f32.gmra.mrb[0].mxu0 %v4588
    %v4898 = vpop.f32.mrb[0].mxu0
    %v4899 = vadd.f32 0.0, %v4898
    %v4900 = vpop.f32.mrb[0].mxu0
    %4901 = vmatprep.mubr.f32.mxu0 0.0
    %4902 = vmatmul.mubr.f32.gmra.mrb[0].mxu0 %v4589
    %v4903 = vpop.f32.mrb[0].mxu0
    %v4904 = vadd.f32 0.0, %v4903
    %v4905 = vpop.f32.mrb[0].mxu0
    %4906 = vmatprep.mubr.f32.mxu0 0.0
    %4907 = vmatmul.mubr.f32.gmra.mrb[0].mxu0 %v4590
    %v4908 = vpop.f32.mrb[0].mxu0
    %v4909 = vadd.f32 0.0, %v4908
    %v4910 = vpop.f32.mrb[0].mxu0
    %4911 = vmatprep.mubr.f32.mxu0 0.0
    %4912 = vmatmul.mubr.f32.gmra.mrb[0].mxu0 %v4591
    %v4913 = vpop.f32.mrb[0].mxu0
    %v4914 = vadd.f32 0.0, %v4913
    %v4915 = vpop.f32.mrb[0].mxu0
    %4916 = vmatprep.mubr.f32.mxu0 0.0
    %4917 = vmatmul.mubr.f32.gmra.mrb[0].mxu0 %v4592
    %v4918 = vpop.f32.mrb[0].mxu0
    %v4919 = vadd.f32 0.0, %v4918
    %v4920 = vpop.f32.mrb[0].mxu0
    %4921 = vmatprep.mubr.f32.mxu0 0.0
    %4922 = vmatmul.mubr.f32.gmra.mrb[0].mxu0 %v4593
    %v4923 = vpop.f32.mrb[0].mxu0
    %v4924 = vadd.f32 0.0, %v4923
    %v4925 = vpop.f32.mrb[0].mxu0
    %4926 = vmatprep.mubr.f32.mxu0 0.0
    %4927 = vmatmul.mubr.f32.gmra.mrb[0].mxu0 %v4594
    %v4928 = vpop.f32.mrb[0].mxu0
    %v4929 = vadd.f32 0.0, %v4928
    %v4930 = vpop.f32.mrb[0].mxu0
    %4931 = vmatprep.mubr.f32.mxu0 0.0
    %4932 = vmatmul.mubr.f32.gmra.mrb[0].mxu0 %v4595
    %v4933 = vpop.f32.mrb[0].mxu0
    %v4934 = vadd.f32 0.0, %v4933
    %v4935 = vpop.f32.mrb[0].mxu0
    %4936 = vmatprep.mubr.f32.mxu0 0.0
    %4937 = vmatmul.mubr.f32.gmra.mrb[0].mxu0 %v4596
    %v4938 = vpop.f32.mrb[0].mxu0
    %v4939 = vadd.f32 0.0, %v4938
    %v4940 = vpop.f32.mrb[0].mxu0
    %4941 = vmatprep.mubr.f32.mxu0 0.0
    %4942 = vmatmul.mubr.f32.gmra.mrb[0].mxu0 %v4597
    %v4943 = vpop.f32.mrb[0].mxu0
    %v4944 = vadd.f32 0.0, %v4943
    %v4945 = vpop.f32.mrb[0].mxu0
    %4946 = vmatprep.mubr.f32.mxu0 0.0
    %4947 = vmatmul.mubr.f32.gmra.mrb[0].mxu0 %v4598
    %v4948 = vpop.f32.mrb[0].mxu0
    %v4949 = vadd.f32 0.0, %v4948
    %v4950 = vpop.f32.mrb[0].mxu0
    %4951 = vmatprep.mubr.f32.mxu0 0.0
    %4952 = vmatmul.mubr.f32.gmra.mrb[0].mxu0 %v4599
    %v4953 = vpop.f32.mrb[0].mxu0
    %v4954 = vadd.f32 0.0, %v4953
    %v4955 = vpop.f32.mrb[0].mxu0
    %4956 = vmatprep.mubr.f32.mxu0 0.0
    %4957 = vmatmul.mubr.f32.gmra.mrb[0].mxu0 %v4600
    %v4958 = vpop.f32.mrb[0].mxu0
    %v4959 = vadd.f32 0.0, %v4958
    %v4960 = vpop.f32.mrb[0].mxu0
    %4961 = vmatprep.mubr.f32.mxu0 0.0
    %4962 = vmatmul.mubr.f32.gmra.mrb[0].mxu0 %v4601
    %v4963 = vpop.f32.mrb[0].mxu0
    %v4964 = vadd.f32 0.0, %v4963
    %v4965 = vpop.f32.mrb[0].mxu0
    %4966 = vmatprep.mubr.f32.mxu0 0.0
    %4967 = vmatmul.mubr.f32.gmra.mrb[0].mxu0 %v4602
    %v4968 = vpop.f32.mrb[0].mxu0
    %v4969 = vadd.f32 0.0, %v4968
    %v4970 = vpop.f32.mrb[0].mxu0
    %4971 = vmatprep.mubr.f32.mxu0 0.0
    %4972 = vmatmul.mubr.f32.gmra.mrb[0].mxu0 %v4603
    %v4973 = vpop.f32.mrb[0].mxu0
    %v4974 = vadd.f32 0.0, %v4973
    %v4975 = vpop.f32.mrb[0].mxu0
    %4976 = vmatprep.mubr.f32.mxu0 0.0
    %4977 = vmatmul.mubr.f32.gmra.mrb[0].mxu0 %v4604
    %v4978 = vpop.f32.mrb[0].mxu0
    %v4979 = vadd.f32 0.0, %v4978
    %v4980 = vpop.f32.mrb[0].mxu0
    %4981 = vmatprep.mubr.f32.mxu0 0.0
    %4982 = vmatmul.mubr.f32.gmra.mrb[0].mxu0 %v4605
    %v4983 = vpop.f32.mrb[0].mxu0
    %v4984 = vadd.f32 0.0, %v4983
    %v4985 = vpop.f32.mrb[0].mxu0
    %4986 = vmatprep.mubr.f32.mxu0 0.0
    %4987 = vmatmul.mubr.f32.gmra.mrb[0].mxu0 %v4606
    %v4988 = vpop.f32.mrb[0].mxu0
    %v4989 = vadd.f32 0.0, %v4988
    %v4990 = vpop.f32.mrb[0].mxu0
    %4991 = vmatprep.mubr.f32.mxu0 0.0
    %4992 = vmatmul.mubr.f32.gmra.mrb[0].mxu0 %v4607
    %v4993 = vpop.f32.mrb[0].mxu0
    %v4994 = vadd.f32 0.0, %v4993
    %v4995 = vpop.f32.mrb[0].mxu0
    %4996 = vmatprep.mubr.f32.mxu0 0.0
    %4997 = vmatmul.mubr.f32.gmra.mrb[0].mxu0 %v4608
    %v4998 = vpop.f32.mrb[0].mxu0
    %v4999 = vadd.f32 0.0, %v4998
    %v5000 = vpop.f32.mrb[0].mxu0
    %5001 = vmatprep.mubr.f32.mxu0 0.0
    %5002 = vmatmul.mubr.f32.gmra.mrb[0].mxu0 %v4609
    %v5003 = vpop.f32.mrb[0].mxu0
    %v5004 = vadd.f32 0.0, %v5003
    %v5005 = vpop.f32.mrb[0].mxu0
    %5006 = vmatprep.mubr.f32.mxu0 0.0
    %5007 = vmatmul.mubr.f32.gmra.mrb[0].mxu0 %v4610
    %v5008 = vpop.f32.mrb[0].mxu0
    %v5009 = vadd.f32 0.0, %v5008
    %v5010 = vpop.f32.mrb[0].mxu0
    %5011 = vdwg.mxu0
    %v5012 = vadd.f32 %v4694, %v4699
    %v5013 = vadd.f32 %v5012, %v4704
    %v5014 = vadd.f32 %v5013, %v4709
    %v5015 = vadd.f32 %v5014, %v4714
    %v5016 = vadd.f32 %v5015, %v4719
    %v5017 = vadd.f32 %v5016, %v4724
    %v5018 = vadd.f32 %v5017, %v4729
    %v5019 = vadd.f32 %v5018, %v4734
    %v5020 = vadd.f32 %v5019, %v4739
    %v5021 = vadd.f32 %v5020, %v4744
    %v5022 = vadd.f32 %v5021, %v4749
    %v5023 = vadd.f32 %v5022, %v4754
    %v5024 = vadd.f32 %v5023, %v4759
    %v5025 = vadd.f32 %v5024, %v4764
    %v5026 = vadd.f32 %v5025, %v4769
    %v5027 = vadd.f32 %v5026, %v4774
    %v5028 = vadd.f32 %v5027, %v4779
    %v5029 = vadd.f32 %v5028, %v4784
    %v5030 = vadd.f32 %v5029, %v4789
    %v5031 = vadd.f32 %v5030, %v4794
    %v5032 = vadd.f32 %v5031, %v4799
    %v5033 = vadd.f32 %v5032, %v4804
    %v5034 = vadd.f32 %v5033, %v4809
    %v5035 = vadd.f32 %v5034, %v4814
    %v5036 = vadd.f32 %v5035, %v4819
    %v5037 = vadd.f32 %v5036, %v4824
    %v5038 = vadd.f32 %v5037, %v4829
    %v5039 = vadd.f32 %v5038, %v4834
    %v5040 = vadd.f32 %v5039, %v4839
    %v5041 = vadd.f32 %v5040, %v4844
    %v5042 = vadd.f32 %v5041, %v4849
    %v5043 = vadd.f32 %v5042, %v4854
    %v5044 = vadd.f32 %v5043, %v4859
    %v5045 = vadd.f32 %v5044, %v4864
    %v5046 = vadd.f32 %v5045, %v4869
    %v5047 = vadd.f32 %v5046, %v4874
    %v5048 = vadd.f32 %v5047, %v4879
    %v5049 = vadd.f32 %v5048, %v4884
    %v5050 = vadd.f32 %v5049, %v4889
    %v5051 = vadd.f32 %v5050, %v4894
    %v5052 = vadd.f32 %v5051, %v4899
    %v5053 = vadd.f32 %v5052, %v4904
    %v5054 = vadd.f32 %v5053, %v4909
    %v5055 = vadd.f32 %v5054, %v4914
    %v5056 = vadd.f32 %v5055, %v4919
    %v5057 = vadd.f32 %v5056, %v4924
    %v5058 = vadd.f32 %v5057, %v4929
    %v5059 = vadd.f32 %v5058, %v4934
    %v5060 = vadd.f32 %v5059, %v4939
    %v5061 = vadd.f32 %v5060, %v4944
    %v5062 = vadd.f32 %v5061, %v4949
    %v5063 = vadd.f32 %v5062, %v4954
    %v5064 = vadd.f32 %v5063, %v4959
    %v5065 = vadd.f32 %v5064, %v4964
    %v5066 = vadd.f32 %v5065, %v4969
    %v5067 = vadd.f32 %v5066, %v4974
    %v5068 = vadd.f32 %v5067, %v4979
    %v5069 = vadd.f32 %v5068, %v4984
    %v5070 = vadd.f32 %v5069, %v4989
    %v5071 = vadd.f32 %v5070, %v4994
    %v5072 = vadd.f32 %v5071, %v4999
    %v5073 = vadd.f32 %v5072, %v5004
    %v5074 = vadd.f32 %v5073, %v5009
    %v5075 = vrot.slane %v5074, 4
    %v5076 = vadd.f32 %v5074, %v5075
    %v5077 = vrot.slane %v5076, 2
    %v5078 = vadd.f32 %v5076, %v5077
    %v5079 = vrot.slane %v5078, 1
    %v5080 = vadd.f32 %v5078, %v5079
    %v5081 = vmul.f32 %v5080, %v628
    %v5082 = vsub.f32 %v4694, %v5081
    %v5083 = vsub.f32 %v4699, %v5081
    %v5084 = vsub.f32 %v4704, %v5081
    %v5085 = vsub.f32 %v4709, %v5081
    %v5086 = vsub.f32 %v4714, %v5081
    %v5087 = vsub.f32 %v4719, %v5081
    %v5088 = vsub.f32 %v4724, %v5081
    %v5089 = vsub.f32 %v4729, %v5081
    %v5090 = vsub.f32 %v4734, %v5081
    %v5091 = vsub.f32 %v4739, %v5081
    %v5092 = vsub.f32 %v4744, %v5081
    %v5093 = vsub.f32 %v4749, %v5081
    %v5094 = vsub.f32 %v4754, %v5081
    %v5095 = vsub.f32 %v4759, %v5081
    %v5096 = vsub.f32 %v4764, %v5081
    %v5097 = vsub.f32 %v4769, %v5081
    %v5098 = vsub.f32 %v4774, %v5081
    %v5099 = vsub.f32 %v4779, %v5081
    %v5100 = vsub.f32 %v4784, %v5081
    %v5101 = vsub.f32 %v4789, %v5081
    %v5102 = vsub.f32 %v4794, %v5081
    %v5103 = vsub.f32 %v4799, %v5081
    %v5104 = vsub.f32 %v4804, %v5081
    %v5105 = vsub.f32 %v4809, %v5081
    %v5106 = vsub.f32 %v4814, %v5081
    %v5107 = vsub.f32 %v4819, %v5081
    %v5108 = vsub.f32 %v4824, %v5081
    %v5109 = vsub.f32 %v4829, %v5081
    %v5110 = vsub.f32 %v4834, %v5081
    %v5111 = vsub.f32 %v4839, %v5081
    %v5112 = vsub.f32 %v4844, %v5081
    %v5113 = vsub.f32 %v4849, %v5081
    %v5114 = vsub.f32 %v4854, %v5081
    %v5115 = vsub.f32 %v4859, %v5081
    %v5116 = vsub.f32 %v4864, %v5081
    %v5117 = vsub.f32 %v4869, %v5081
    %v5118 = vsub.f32 %v4874, %v5081
    %v5119 = vsub.f32 %v4879, %v5081
    %v5120 = vsub.f32 %v4884, %v5081
    %v5121 = vsub.f32 %v4889, %v5081
    %v5122 = vsub.f32 %v4894, %v5081
    %v5123 = vsub.f32 %v4899, %v5081
    %v5124 = vsub.f32 %v4904, %v5081
    %v5125 = vsub.f32 %v4909, %v5081
    %v5126 = vsub.f32 %v4914, %v5081
    %v5127 = vsub.f32 %v4919, %v5081
    %v5128 = vsub.f32 %v4924, %v5081
    %v5129 = vsub.f32 %v4929, %v5081
    %v5130 = vsub.f32 %v4934, %v5081
    %v5131 = vsub.f32 %v4939, %v5081
    %v5132 = vsub.f32 %v4944, %v5081
    %v5133 = vsub.f32 %v4949, %v5081
    %v5134 = vsub.f32 %v4954, %v5081
    %v5135 = vsub.f32 %v4959, %v5081
    %v5136 = vsub.f32 %v4964, %v5081
    %v5137 = vsub.f32 %v4969, %v5081
    %v5138 = vsub.f32 %v4974, %v5081
    %v5139 = vsub.f32 %v4979, %v5081
    %v5140 = vsub.f32 %v4984, %v5081
    %v5141 = vsub.f32 %v4989, %v5081
    %v5142 = vsub.f32 %v4994, %v5081
    %v5143 = vsub.f32 %v4999, %v5081
    %v5144 = vsub.f32 %v5004, %v5081
    %v5145 = vsub.f32 %v5009, %v5081
    %v5146 = vmul.f32 %v5082, %v5082
    %v5147 = vmul.f32 %v5083, %v5083
    %v5148 = vmul.f32 %v5084, %v5084
    %v5149 = vmul.f32 %v5085, %v5085
    %v5150 = vmul.f32 %v5086, %v5086
    %v5151 = vmul.f32 %v5087, %v5087
    %v5152 = vmul.f32 %v5088, %v5088
    %v5153 = vmul.f32 %v5089, %v5089
    %v5154 = vmul.f32 %v5090, %v5090
    %v5155 = vmul.f32 %v5091, %v5091
    %v5156 = vmul.f32 %v5092, %v5092
    %v5157 = vmul.f32 %v5093, %v5093
    %v5158 = vmul.f32 %v5094, %v5094
    %v5159 = vmul.f32 %v5095, %v5095
    %v5160 = vmul.f32 %v5096, %v5096
    %v5161 = vmul.f32 %v5097, %v5097
    %v5162 = vmul.f32 %v5098, %v5098
    %v5163 = vmul.f32 %v5099, %v5099
    %v5164 = vmul.f32 %v5100, %v5100
    %v5165 = vmul.f32 %v5101, %v5101
    %v5166 = vmul.f32 %v5102, %v5102
    %v5167 = vmul.f32 %v5103, %v5103
    %v5168 = vmul.f32 %v5104, %v5104
    %v5169 = vmul.f32 %v5105, %v5105
    %v5170 = vmul.f32 %v5106, %v5106
    %v5171 = vmul.f32 %v5107, %v5107
    %v5172 = vmul.f32 %v5108, %v5108
    %v5173 = vmul.f32 %v5109, %v5109
    %v5174 = vmul.f32 %v5110, %v5110
    %v5175 = vmul.f32 %v5111, %v5111
    %v5176 = vmul.f32 %v5112, %v5112
    %v5177 = vmul.f32 %v5113, %v5113
    %v5178 = vmul.f32 %v5114, %v5114
    %v5179 = vmul.f32 %v5115, %v5115
    %v5180 = vmul.f32 %v5116, %v5116
    %v5181 = vmul.f32 %v5117, %v5117
    %v5182 = vmul.f32 %v5118, %v5118
    %v5183 = vmul.f32 %v5119, %v5119
    %v5184 = vmul.f32 %v5120, %v5120
    %v5185 = vmul.f32 %v5121, %v5121
    %v5186 = vmul.f32 %v5122, %v5122
    %v5187 = vmul.f32 %v5123, %v5123
    %v5188 = vmul.f32 %v5124, %v5124
    %v5189 = vmul.f32 %v5125, %v5125
    %v5190 = vmul.f32 %v5126, %v5126
    %v5191 = vmul.f32 %v5127, %v5127
    %v5192 = vmul.f32 %v5128, %v5128
    %v5193 = vmul.f32 %v5129, %v5129
    %v5194 = vmul.f32 %v5130, %v5130
    %v5195 = vmul.f32 %v5131, %v5131
    %v5196 = vmul.f32 %v5132, %v5132
    %v5197 = vmul.f32 %v5133, %v5133
    %v5198 = vmul.f32 %v5134, %v5134
    %v5199 = vmul.f32 %v5135, %v5135
    %v5200 = vmul.f32 %v5136, %v5136
    %v5201 = vmul.f32 %v5137, %v5137
    %v5202 = vmul.f32 %v5138, %v5138
    %v5203 = vmul.f32 %v5139, %v5139
    %v5204 = vmul.f32 %v5140, %v5140
    %v5205 = vmul.f32 %v5141, %v5141
    %v5206 = vmul.f32 %v5142, %v5142
    %v5207 = vmul.f32 %v5143, %v5143
    %v5208 = vmul.f32 %v5144, %v5144
    %v5209 = vmul.f32 %v5145, %v5145
    %v5210 = vadd.f32 %v5146, %v5147
    %v5211 = vadd.f32 %v5210, %v5148
    %v5212 = vadd.f32 %v5211, %v5149
    %v5213 = vadd.f32 %v5212, %v5150
    %v5214 = vadd.f32 %v5213, %v5151
    %v5215 = vadd.f32 %v5214, %v5152
    %v5216 = vadd.f32 %v5215, %v5153
    %v5217 = vadd.f32 %v5216, %v5154
    %v5218 = vadd.f32 %v5217, %v5155
    %v5219 = vadd.f32 %v5218, %v5156
    %v5220 = vadd.f32 %v5219, %v5157
    %v5221 = vadd.f32 %v5220, %v5158
    %v5222 = vadd.f32 %v5221, %v5159
    %v5223 = vadd.f32 %v5222, %v5160
    %v5224 = vadd.f32 %v5223, %v5161
    %v5225 = vadd.f32 %v5224, %v5162
    %v5226 = vadd.f32 %v5225, %v5163
    %v5227 = vadd.f32 %v5226, %v5164
    %v5228 = vadd.f32 %v5227, %v5165
    %v5229 = vadd.f32 %v5228, %v5166
    %v5230 = vadd.f32 %v5229, %v5167
    %v5231 = vadd.f32 %v5230, %v5168
    %v5232 = vadd.f32 %v5231, %v5169
    %v5233 = vadd.f32 %v5232, %v5170
    %v5234 = vadd.f32 %v5233, %v5171
    %v5235 = vadd.f32 %v5234, %v5172
    %v5236 = vadd.f32 %v5235, %v5173
    %v5237 = vadd.f32 %v5236, %v5174
    %v5238 = vadd.f32 %v5237, %v5175
    %v5239 = vadd.f32 %v5238, %v5176
    %v5240 = vadd.f32 %v5239, %v5177
    %v5241 = vadd.f32 %v5240, %v5178
    %v5242 = vadd.f32 %v5241, %v5179
    %v5243 = vadd.f32 %v5242, %v5180
    %v5244 = vadd.f32 %v5243, %v5181
    %v5245 = vadd.f32 %v5244, %v5182
    %v5246 = vadd.f32 %v5245, %v5183
    %v5247 = vadd.f32 %v5246, %v5184
    %v5248 = vadd.f32 %v5247, %v5185
    %v5249 = vadd.f32 %v5248, %v5186
    %v5250 = vadd.f32 %v5249, %v5187
    %v5251 = vadd.f32 %v5250, %v5188
    %v5252 = vadd.f32 %v5251, %v5189
    %v5253 = vadd.f32 %v5252, %v5190
    %v5254 = vadd.f32 %v5253, %v5191
    %v5255 = vadd.f32 %v5254, %v5192
    %v5256 = vadd.f32 %v5255, %v5193
    %v5257 = vadd.f32 %v5256, %v5194
    %v5258 = vadd.f32 %v5257, %v5195
    %v5259 = vadd.f32 %v5258, %v5196
    %v5260 = vadd.f32 %v5259, %v5197
    %v5261 = vadd.f32 %v5260, %v5198
    %v5262 = vadd.f32 %v5261, %v5199
    %v5263 = vadd.f32 %v5262, %v5200
    %v5264 = vadd.f32 %v5263, %v5201
    %v5265 = vadd.f32 %v5264, %v5202
    %v5266 = vadd.f32 %v5265, %v5203
    %v5267 = vadd.f32 %v5266, %v5204
    %v5268 = vadd.f32 %v5267, %v5205
    %v5269 = vadd.f32 %v5268, %v5206
    %v5270 = vadd.f32 %v5269, %v5207
    %v5271 = vadd.f32 %v5270, %v5208
    %v5272 = vadd.f32 %v5271, %v5209
    %v5273 = vrot.slane %v5272, 4
    %v5274 = vadd.f32 %v5272, %v5273
    %v5275 = vrot.slane %v5274, 2
    %v5276 = vadd.f32 %v5274, %v5275
    %v5277 = vrot.slane %v5276, 1
    %v5278 = vadd.f32 %v5276, %v5277
    %v5279 = vmul.f32 %v5278, %v628
    %v5280 = vadd.f32 %v5279, 1e-05
    %v5281 = vrsqrt.pop %v5280
    %v5282 = vmul.f32 %v5082, %v5281
    %v5283 = vmul.f32 %v5083, %v5281
    %v5284 = vmul.f32 %v5084, %v5281
    %v5285 = vmul.f32 %v5085, %v5281
    %v5286 = vmul.f32 %v5086, %v5281
    %v5287 = vmul.f32 %v5087, %v5281
    %v5288 = vmul.f32 %v5088, %v5281
    %v5289 = vmul.f32 %v5089, %v5281
    %v5290 = vmul.f32 %v5090, %v5281
    %v5291 = vmul.f32 %v5091, %v5281
    %v5292 = vmul.f32 %v5092, %v5281
    %v5293 = vmul.f32 %v5093, %v5281
    %v5294 = vmul.f32 %v5094, %v5281
    %v5295 = vmul.f32 %v5095, %v5281
    %v5296 = vmul.f32 %v5096, %v5281
    %v5297 = vmul.f32 %v5097, %v5281
    %v5298 = vmul.f32 %v5098, %v5281
    %v5299 = vmul.f32 %v5099, %v5281
    %v5300 = vmul.f32 %v5100, %v5281
    %v5301 = vmul.f32 %v5101, %v5281
    %v5302 = vmul.f32 %v5102, %v5281
    %v5303 = vmul.f32 %v5103, %v5281
    %v5304 = vmul.f32 %v5104, %v5281
    %v5305 = vmul.f32 %v5105, %v5281
    %v5306 = vmul.f32 %v5106, %v5281
    %v5307 = vmul.f32 %v5107, %v5281
    %v5308 = vmul.f32 %v5108, %v5281
    %v5309 = vmul.f32 %v5109, %v5281
    %v5310 = vmul.f32 %v5110, %v5281
    %v5311 = vmul.f32 %v5111, %v5281
    %v5312 = vmul.f32 %v5112, %v5281
    %v5313 = vmul.f32 %v5113, %v5281
    %v5314 = vmul.f32 %v5114, %v5281
    %v5315 = vmul.f32 %v5115, %v5281
    %v5316 = vmul.f32 %v5116, %v5281
    %v5317 = vmul.f32 %v5117, %v5281
    %v5318 = vmul.f32 %v5118, %v5281
    %v5319 = vmul.f32 %v5119, %v5281
    %v5320 = vmul.f32 %v5120, %v5281
    %v5321 = vmul.f32 %v5121, %v5281
    %v5322 = vmul.f32 %v5122, %v5281
    %v5323 = vmul.f32 %v5123, %v5281
    %v5324 = vmul.f32 %v5124, %v5281
    %v5325 = vmul.f32 %v5125, %v5281
    %v5326 = vmul.f32 %v5126, %v5281
    %v5327 = vmul.f32 %v5127, %v5281
    %v5328 = vmul.f32 %v5128, %v5281
    %v5329 = vmul.f32 %v5129, %v5281
    %v5330 = vmul.f32 %v5130, %v5281
    %v5331 = vmul.f32 %v5131, %v5281
    %v5332 = vmul.f32 %v5132, %v5281
    %v5333 = vmul.f32 %v5133, %v5281
    %v5334 = vmul.f32 %v5134, %v5281
    %v5335 = vmul.f32 %v5135, %v5281
    %v5336 = vmul.f32 %v5136, %v5281
    %v5337 = vmul.f32 %v5137, %v5281
    %v5338 = vmul.f32 %v5138, %v5281
    %v5339 = vmul.f32 %v5139, %v5281
    %v5340 = vmul.f32 %v5140, %v5281
    %v5341 = vmul.f32 %v5141, %v5281
    %v5342 = vmul.f32 %v5142, %v5281
    %v5343 = vmul.f32 %v5143, %v5281
    %v5344 = vmul.f32 %v5144, %v5281
    %v5345 = vmul.f32 %v5145, %v5281
    %v5346 = vld [vmem:[%s5] sm:$0x1]
    %v5348 = vlaneseq
    %v5349 = vshrl.u32 %v5348, 7
    %v5350 = vsub.s32 0, %v5349
    %v5351 = vrot.slane %v5346, %v5350
    %v5353 = vmul.f32 %v5282, %v5351
    %v5354 = vmul.f32 %v5283, %v5351
    %v5355 = vmul.f32 %v5284, %v5351
    %v5356 = vmul.f32 %v5285, %v5351
    %v5357 = vmul.f32 %v5286, %v5351
    %v5358 = vmul.f32 %v5287, %v5351
    %v5359 = vmul.f32 %v5288, %v5351
    %v5360 = vmul.f32 %v5289, %v5351
    %v5361 = vmul.f32 %v5290, %v5351
    %v5362 = vmul.f32 %v5291, %v5351
    %v5363 = vmul.f32 %v5292, %v5351
    %v5364 = vmul.f32 %v5293, %v5351
    %v5365 = vmul.f32 %v5294, %v5351
    %v5366 = vmul.f32 %v5295, %v5351
    %v5367 = vmul.f32 %v5296, %v5351
    %v5368 = vmul.f32 %v5297, %v5351
    %v5369 = vmul.f32 %v5298, %v5351
    %v5370 = vmul.f32 %v5299, %v5351
    %v5371 = vmul.f32 %v5300, %v5351
    %v5372 = vmul.f32 %v5301, %v5351
    %v5373 = vmul.f32 %v5302, %v5351
    %v5374 = vmul.f32 %v5303, %v5351
    %v5375 = vmul.f32 %v5304, %v5351
    %v5376 = vmul.f32 %v5305, %v5351
    %v5377 = vmul.f32 %v5306, %v5351
    %v5378 = vmul.f32 %v5307, %v5351
    %v5379 = vmul.f32 %v5308, %v5351
    %v5380 = vmul.f32 %v5309, %v5351
    %v5381 = vmul.f32 %v5310, %v5351
    %v5382 = vmul.f32 %v5311, %v5351
    %v5383 = vmul.f32 %v5312, %v5351
    %v5384 = vmul.f32 %v5313, %v5351
    %v5385 = vmul.f32 %v5314, %v5351
    %v5386 = vmul.f32 %v5315, %v5351
    %v5387 = vmul.f32 %v5316, %v5351
    %v5388 = vmul.f32 %v5317, %v5351
    %v5389 = vmul.f32 %v5318, %v5351
    %v5390 = vmul.f32 %v5319, %v5351
    %v5391 = vmul.f32 %v5320, %v5351
    %v5392 = vmul.f32 %v5321, %v5351
    %v5393 = vmul.f32 %v5322, %v5351
    %v5394 = vmul.f32 %v5323, %v5351
    %v5395 = vmul.f32 %v5324, %v5351
    %v5396 = vmul.f32 %v5325, %v5351
    %v5397 = vmul.f32 %v5326, %v5351
    %v5398 = vmul.f32 %v5327, %v5351
    %v5399 = vmul.f32 %v5328, %v5351
    %v5400 = vmul.f32 %v5329, %v5351
    %v5401 = vmul.f32 %v5330, %v5351
    %v5402 = vmul.f32 %v5331, %v5351
    %v5403 = vmul.f32 %v5332, %v5351
    %v5404 = vmul.f32 %v5333, %v5351
    %v5405 = vmul.f32 %v5334, %v5351
    %v5406 = vmul.f32 %v5335, %v5351
    %v5407 = vmul.f32 %v5336, %v5351
    %v5408 = vmul.f32 %v5337, %v5351
    %v5409 = vmul.f32 %v5338, %v5351
    %v5410 = vmul.f32 %v5339, %v5351
    %v5411 = vmul.f32 %v5340, %v5351
    %v5412 = vmul.f32 %v5341, %v5351
    %v5413 = vmul.f32 %v5342, %v5351
    %v5414 = vmul.f32 %v5343, %v5351
    %v5415 = vmul.f32 %v5344, %v5351
    %v5416 = vmul.f32 %v5345, %v5351
    %v5417 = vld [vmem:[%s6] sm:$0x1]
    %v5419 = vlaneseq
    %v5420 = vshrl.u32 %v5419, 7
    %v5421 = vsub.s32 0, %v5420
    %v5422 = vrot.slane %v5417, %v5421
    %v5424 = vadd.f32 %v5353, %v5422
    %v5425 = vadd.f32 %v5354, %v5422
    %v5426 = vadd.f32 %v5355, %v5422
    %v5427 = vadd.f32 %v5356, %v5422
    %v5428 = vadd.f32 %v5357, %v5422
    %v5429 = vadd.f32 %v5358, %v5422
    %v5430 = vadd.f32 %v5359, %v5422
    %v5431 = vadd.f32 %v5360, %v5422
    %v5432 = vadd.f32 %v5361, %v5422
    %v5433 = vadd.f32 %v5362, %v5422
    %v5434 = vadd.f32 %v5363, %v5422
    %v5435 = vadd.f32 %v5364, %v5422
    %v5436 = vadd.f32 %v5365, %v5422
    %v5437 = vadd.f32 %v5366, %v5422
    %v5438 = vadd.f32 %v5367, %v5422
    %v5439 = vadd.f32 %v5368, %v5422
    %v5440 = vadd.f32 %v5369, %v5422
    %v5441 = vadd.f32 %v5370, %v5422
    %v5442 = vadd.f32 %v5371, %v5422
    %v5443 = vadd.f32 %v5372, %v5422
    %v5444 = vadd.f32 %v5373, %v5422
    %v5445 = vadd.f32 %v5374, %v5422
    %v5446 = vadd.f32 %v5375, %v5422
    %v5447 = vadd.f32 %v5376, %v5422
    %v5448 = vadd.f32 %v5377, %v5422
    %v5449 = vadd.f32 %v5378, %v5422
    %v5450 = vadd.f32 %v5379, %v5422
    %v5451 = vadd.f32 %v5380, %v5422
    %v5452 = vadd.f32 %v5381, %v5422
    %v5453 = vadd.f32 %v5382, %v5422
    %v5454 = vadd.f32 %v5383, %v5422
    %v5455 = vadd.f32 %v5384, %v5422
    %v5456 = vadd.f32 %v5385, %v5422
    %v5457 = vadd.f32 %v5386, %v5422
    %v5458 = vadd.f32 %v5387, %v5422
    %v5459 = vadd.f32 %v5388, %v5422
    %v5460 = vadd.f32 %v5389, %v5422
    %v5461 = vadd.f32 %v5390, %v5422
    %v5462 = vadd.f32 %v5391, %v5422
    %v5463 = vadd.f32 %v5392, %v5422
    %v5464 = vadd.f32 %v5393, %v5422
    %v5465 = vadd.f32 %v5394, %v5422
    %v5466 = vadd.f32 %v5395, %v5422
    %v5467 = vadd.f32 %v5396, %v5422
    %v5468 = vadd.f32 %v5397, %v5422
    %v5469 = vadd.f32 %v5398, %v5422
    %v5470 = vadd.f32 %v5399, %v5422
    %v5471 = vadd.f32 %v5400, %v5422
    %v5472 = vadd.f32 %v5401, %v5422
    %v5473 = vadd.f32 %v5402, %v5422
    %v5474 = vadd.f32 %v5403, %v5422
    %v5475 = vadd.f32 %v5404, %v5422
    %v5476 = vadd.f32 %v5405, %v5422
    %v5477 = vadd.f32 %v5406, %v5422
    %v5478 = vadd.f32 %v5407, %v5422
    %v5479 = vadd.f32 %v5408, %v5422
    %v5480 = vadd.f32 %v5409, %v5422
    %v5481 = vadd.f32 %v5410, %v5422
    %v5482 = vadd.f32 %v5411, %v5422
    %v5483 = vadd.f32 %v5412, %v5422
    %v5484 = vadd.f32 %v5413, %v5422
    %v5485 = vadd.f32 %v5414, %v5422
    %v5486 = vadd.f32 %v5415, %v5422
    %v5487 = vadd.f32 %v5416, %v5422
    %v5488 = vmax.f32 %v5424, 0.0
    %v5489 = vmax.f32 %v5425, 0.0
    %v5490 = vmax.f32 %v5426, 0.0
    %v5491 = vmax.f32 %v5427, 0.0
    %v5492 = vmax.f32 %v5428, 0.0
    %v5493 = vmax.f32 %v5429, 0.0
    %v5494 = vmax.f32 %v5430, 0.0
    %v5495 = vmax.f32 %v5431, 0.0
    %v5496 = vmax.f32 %v5432, 0.0
    %v5497 = vmax.f32 %v5433, 0.0
    %v5498 = vmax.f32 %v5434, 0.0
    %v5499 = vmax.f32 %v5435, 0.0
    %v5500 = vmax.f32 %v5436, 0.0
    %v5501 = vmax.f32 %v5437, 0.0
    %v5502 = vmax.f32 %v5438, 0.0
    %v5503 = vmax.f32 %v5439, 0.0
    %v5504 = vmax.f32 %v5440, 0.0
    %v5505 = vmax.f32 %v5441, 0.0
    %v5506 = vmax.f32 %v5442, 0.0
    %v5507 = vmax.f32 %v5443, 0.0
    %v5508 = vmax.f32 %v5444, 0.0
    %v5509 = vmax.f32 %v5445, 0.0
    %v5510 = vmax.f32 %v5446, 0.0
    %v5511 = vmax.f32 %v5447, 0.0
    %v5512 = vmax.f32 %v5448, 0.0
    %v5513 = vmax.f32 %v5449, 0.0
    %v5514 = vmax.f32 %v5450, 0.0
    %v5515 = vmax.f32 %v5451, 0.0
    %v5516 = vmax.f32 %v5452, 0.0
    %v5517 = vmax.f32 %v5453, 0.0
    %v5518 = vmax.f32 %v5454, 0.0
    %v5519 = vmax.f32 %v5455, 0.0
    %v5520 = vmax.f32 %v5456, 0.0
    %v5521 = vmax.f32 %v5457, 0.0
    %v5522 = vmax.f32 %v5458, 0.0
    %v5523 = vmax.f32 %v5459, 0.0
    %v5524 = vmax.f32 %v5460, 0.0
    %v5525 = vmax.f32 %v5461, 0.0
    %v5526 = vmax.f32 %v5462, 0.0
    %v5527 = vmax.f32 %v5463, 0.0
    %v5528 = vmax.f32 %v5464, 0.0
    %v5529 = vmax.f32 %v5465, 0.0
    %v5530 = vmax.f32 %v5466, 0.0
    %v5531 = vmax.f32 %v5467, 0.0
    %v5532 = vmax.f32 %v5468, 0.0
    %v5533 = vmax.f32 %v5469, 0.0
    %v5534 = vmax.f32 %v5470, 0.0
    %v5535 = vmax.f32 %v5471, 0.0
    %v5536 = vmax.f32 %v5472, 0.0
    %v5537 = vmax.f32 %v5473, 0.0
    %v5538 = vmax.f32 %v5474, 0.0
    %v5539 = vmax.f32 %v5475, 0.0
    %v5540 = vmax.f32 %v5476, 0.0
    %v5541 = vmax.f32 %v5477, 0.0
    %v5542 = vmax.f32 %v5478, 0.0
    %v5543 = vmax.f32 %v5479, 0.0
    %v5544 = vmax.f32 %v5480, 0.0
    %v5545 = vmax.f32 %v5481, 0.0
    %v5546 = vmax.f32 %v5482, 0.0
    %v5547 = vmax.f32 %v5483, 0.0
    %v5548 = vmax.f32 %v5484, 0.0
    %v5549 = vmax.f32 %v5485, 0.0
    %v5550 = vmax.f32 %v5486, 0.0
    %v5551 = vmax.f32 %v5487, 0.0
    %v5552 = vld [vmem:[#allocation10] sm:$0xff]
    %v5553 = vld [vmem:[#allocation10 + $0x8] sm:$0xff]
    %v5554 = vld [vmem:[#allocation10 + $0x10] sm:$0xff]
    %v5555 = vld [vmem:[#allocation10 + $0x18] sm:$0xff]
    %v5556 = vld [vmem:[#allocation10 + $0x20] sm:$0xff]
    %v5557 = vld [vmem:[#allocation10 + $0x28] sm:$0xff]
    %v5558 = vld [vmem:[#allocation10 + $0x30] sm:$0xff]
    %v5559 = vld [vmem:[#allocation10 + $0x38] sm:$0xff]
    %v5560 = vld [vmem:[#allocation10 + $0x40] sm:$0xff]
    %v5561 = vld [vmem:[#allocation10 + $0x48] sm:$0xff]
    %v5562 = vld [vmem:[#allocation10 + $0x50] sm:$0xff]
    %v5563 = vld [vmem:[#allocation10 + $0x58] sm:$0xff]
    %v5564 = vld [vmem:[#allocation10 + $0x60] sm:$0xff]
    %v5565 = vld [vmem:[#allocation10 + $0x68] sm:$0xff]
    %v5566 = vld [vmem:[#allocation10 + $0x70] sm:$0xff]
    %v5567 = vld [vmem:[#allocation10 + $0x78] sm:$0xff]
    %5568 = vmatprep.subr.mxu0 0.0
    %5569 = vmatpush1.msra.mxu0 %v5552
    %5570 = vmatprep.subr.mxu0 0.0
    %5571 = vmatpush1.msra.mxu0 %v5553
    %5572 = vmatprep.subr.mxu0 0.0
    %5573 = vmatpush1.msra.mxu0 %v5554
    %5574 = vmatprep.subr.mxu0 0.0
    %5575 = vmatpush1.msra.mxu0 %v5555
    %5576 = vmatprep.subr.mxu0 0.0
    %5577 = vmatpush1.msra.mxu0 %v5556
    %5578 = vmatprep.subr.mxu0 0.0
    %5579 = vmatpush1.msra.mxu0 %v5557
    %5580 = vmatprep.subr.mxu0 0.0
    %5581 = vmatpush1.msra.mxu0 %v5558
    %5582 = vmatprep.subr.mxu0 0.0
    %5583 = vmatpush1.msra.mxu0 %v5559
    %5584 = vmatprep.subr.mxu0 0.0
    %5585 = vmatpush1.msra.mxu0 %v5560
    %5586 = vmatprep.subr.mxu0 0.0
    %5587 = vmatpush1.msra.mxu0 %v5561
    %5588 = vmatprep.subr.mxu0 0.0
    %5589 = vmatpush1.msra.mxu0 %v5562
    %5590 = vmatprep.subr.mxu0 0.0
    %5591 = vmatpush1.msra.mxu0 %v5563
    %5592 = vmatprep.subr.mxu0 0.0
    %5593 = vmatpush1.msra.mxu0 %v5564
    %5594 = vmatprep.subr.mxu0 0.0
    %5595 = vmatpush1.msra.mxu0 %v5565
    %5596 = vmatprep.subr.mxu0 0.0
    %5597 = vmatpush1.msra.mxu0 %v5566
    %5598 = vmatprep.subr.mxu0 0.0
    %5599 = vmatpush1.msra.mxu0 %v5567
    %5600 = vmatprep.subr.mxu0 0.0
    %5601 = vmatpush1.msra.mxu0 0.0
    %5602 = vmatprep.subr.mxu0 0.0
    %5603 = vmatpush1.msra.mxu0 0.0
    %5604 = vmatprep.subr.mxu0 0.0
    %5605 = vmatpush1.msra.mxu0 0.0
    %5606 = vmatprep.subr.mxu0 0.0
    %5607 = vmatpush1.msra.mxu0 0.0
    %5608 = vmatprep.subr.mxu0 0.0
    %5609 = vmatpush1.msra.mxu0 0.0
    %5610 = vmatprep.subr.mxu0 0.0
    %5611 = vmatpush1.msra.mxu0 0.0
    %5612 = vmatprep.subr.mxu0 0.0
    %5613 = vmatpush1.msra.mxu0 0.0
    %5614 = vmatprep.subr.mxu0 0.0
    %5615 = vmatpush1.msra.mxu0 0.0
    %5616 = vmatprep.subr.mxu0 0.0
    %5617 = vmatpush1.msra.mxu0 0.0
    %5618 = vmatprep.subr.mxu0 0.0
    %5619 = vmatpush1.msra.mxu0 0.0
    %5620 = vmatprep.subr.mxu0 0.0
    %5621 = vmatpush1.msra.mxu0 0.0
    %5622 = vmatprep.subr.mxu0 0.0
    %5623 = vmatpush1.msra.mxu0 0.0
    %5624 = vmatprep.subr.mxu0 0.0
    %5625 = vmatpush1.msra.mxu0 0.0
    %5626 = vmatprep.subr.mxu0 0.0
    %5627 = vmatpush1.msra.mxu0 0.0
    %5628 = vmatprep.subr.mxu0 0.0
    %5629 = vmatpush1.msra.mxu0 0.0
    %5630 = vmatprep.subr.mxu0 0.0
    %5631 = vmatpush1.msra.mxu0 0.0
    %5632 = vmatprep.mubr.f32.mxu0 0.0
    %5633 = vmatmul.mubr.f32.gmra.mrb[0].mxu0 %v5488
    %v5634 = vpop.f32.mrb[0].mxu0
    %v5635 = vadd.f32 0.0, %v5634
    %v5636 = vpop.f32.mrb[0].mxu0
    %5637 = vmatprep.mubr.f32.mxu0 0.0
    %5638 = vmatmul.mubr.f32.gmra.mrb[0].mxu0 %v5489
    %v5639 = vpop.f32.mrb[0].mxu0
    %v5640 = vadd.f32 0.0, %v5639
    %v5641 = vpop.f32.mrb[0].mxu0
    %5642 = vmatprep.mubr.f32.mxu0 0.0
    %5643 = vmatmul.mubr.f32.gmra.mrb[0].mxu0 %v5490
    %v5644 = vpop.f32.mrb[0].mxu0
    %v5645 = vadd.f32 0.0, %v5644
    %v5646 = vpop.f32.mrb[0].mxu0
    %5647 = vmatprep.mubr.f32.mxu0 0.0
    %5648 = vmatmul.mubr.f32.gmra.mrb[0].mxu0 %v5491
    %v5649 = vpop.f32.mrb[0].mxu0
    %v5650 = vadd.f32 0.0, %v5649
    %v5651 = vpop.f32.mrb[0].mxu0
    %5652 = vmatprep.mubr.f32.mxu0 0.0
    %5653 = vmatmul.mubr.f32.gmra.mrb[0].mxu0 %v5492
    %v5654 = vpop.f32.mrb[0].mxu0
    %v5655 = vadd.f32 0.0, %v5654
    %v5656 = vpop.f32.mrb[0].mxu0
    %5657 = vmatprep.mubr.f32.mxu0 0.0
    %5658 = vmatmul.mubr.f32.gmra.mrb[0].mxu0 %v5493
    %v5659 = vpop.f32.mrb[0].mxu0
    %v5660 = vadd.f32 0.0, %v5659
    %v5661 = vpop.f32.mrb[0].mxu0
    %5662 = vmatprep.mubr.f32.mxu0 0.0
    %5663 = vmatmul.mubr.f32.gmra.mrb[0].mxu0 %v5494
    %v5664 = vpop.f32.mrb[0].mxu0
    %v5665 = vadd.f32 0.0, %v5664
    %v5666 = vpop.f32.mrb[0].mxu0
    %5667 = vmatprep.mubr.f32.mxu0 0.0
    %5668 = vmatmul.mubr.f32.gmra.mrb[0].mxu0 %v5495
    %v5669 = vpop.f32.mrb[0].mxu0
    %v5670 = vadd.f32 0.0, %v5669
    %v5671 = vpop.f32.mrb[0].mxu0
    %5672 = vmatprep.mubr.f32.mxu0 0.0
    %5673 = vmatmul.mubr.f32.gmra.mrb[0].mxu0 %v5496
    %v5674 = vpop.f32.mrb[0].mxu0
    %v5675 = vadd.f32 0.0, %v5674
    %v5676 = vpop.f32.mrb[0].mxu0
    %5677 = vmatprep.mubr.f32.mxu0 0.0
    %5678 = vmatmul.mubr.f32.gmra.mrb[0].mxu0 %v5497
    %v5679 = vpop.f32.mrb[0].mxu0
    %v5680 = vadd.f32 0.0, %v5679
    %v5681 = vpop.f32.mrb[0].mxu0
    %5682 = vmatprep.mubr.f32.mxu0 0.0
    %5683 = vmatmul.mubr.f32.gmra.mrb[0].mxu0 %v5498
    %v5684 = vpop.f32.mrb[0].mxu0
    %v5685 = vadd.f32 0.0, %v5684
    %v5686 = vpop.f32.mrb[0].mxu0
    %5687 = vmatprep.mubr.f32.mxu0 0.0
    %5688 = vmatmul.mubr.f32.gmra.mrb[0].mxu0 %v5499
    %v5689 = vpop.f32.mrb[0].mxu0
    %v5690 = vadd.f32 0.0, %v5689
    %v5691 = vpop.f32.mrb[0].mxu0
    %5692 = vmatprep.mubr.f32.mxu0 0.0
    %5693 = vmatmul.mubr.f32.gmra.mrb[0].mxu0 %v5500
    %v5694 = vpop.f32.mrb[0].mxu0
    %v5695 = vadd.f32 0.0, %v5694
    %v5696 = vpop.f32.mrb[0].mxu0
    %5697 = vmatprep.mubr.f32.mxu0 0.0
    %5698 = vmatmul.mubr.f32.gmra.mrb[0].mxu0 %v5501
    %v5699 = vpop.f32.mrb[0].mxu0
    %v5700 = vadd.f32 0.0, %v5699
    %v5701 = vpop.f32.mrb[0].mxu0
    %5702 = vmatprep.mubr.f32.mxu0 0.0
    %5703 = vmatmul.mubr.f32.gmra.mrb[0].mxu0 %v5502
    %v5704 = vpop.f32.mrb[0].mxu0
    %v5705 = vadd.f32 0.0, %v5704
    %v5706 = vpop.f32.mrb[0].mxu0
    %5707 = vmatprep.mubr.f32.mxu0 0.0
    %5708 = vmatmul.mubr.f32.gmra.mrb[0].mxu0 %v5503
    %v5709 = vpop.f32.mrb[0].mxu0
    %v5710 = vadd.f32 0.0, %v5709
    %v5711 = vpop.f32.mrb[0].mxu0
    %5712 = vmatprep.mubr.f32.mxu0 0.0
    %5713 = vmatmul.mubr.f32.gmra.mrb[0].mxu0 %v5504
    %v5714 = vpop.f32.mrb[0].mxu0
    %v5715 = vadd.f32 0.0, %v5714
    %v5716 = vpop.f32.mrb[0].mxu0
    %5717 = vmatprep.mubr.f32.mxu0 0.0
    %5718 = vmatmul.mubr.f32.gmra.mrb[0].mxu0 %v5505
    %v5719 = vpop.f32.mrb[0].mxu0
    %v5720 = vadd.f32 0.0, %v5719
    %v5721 = vpop.f32.mrb[0].mxu0
    %5722 = vmatprep.mubr.f32.mxu0 0.0
    %5723 = vmatmul.mubr.f32.gmra.mrb[0].mxu0 %v5506
    %v5724 = vpop.f32.mrb[0].mxu0
    %v5725 = vadd.f32 0.0, %v5724
    %v5726 = vpop.f32.mrb[0].mxu0
    %5727 = vmatprep.mubr.f32.mxu0 0.0
    %5728 = vmatmul.mubr.f32.gmra.mrb[0].mxu0 %v5507
    %v5729 = vpop.f32.mrb[0].mxu0
    %v5730 = vadd.f32 0.0, %v5729
    %v5731 = vpop.f32.mrb[0].mxu0
    %5732 = vmatprep.mubr.f32.mxu0 0.0
    %5733 = vmatmul.mubr.f32.gmra.mrb[0].mxu0 %v5508
    %v5734 = vpop.f32.mrb[0].mxu0
    %v5735 = vadd.f32 0.0, %v5734
    %v5736 = vpop.f32.mrb[0].mxu0
    %5737 = vmatprep.mubr.f32.mxu0 0.0
    %5738 = vmatmul.mubr.f32.gmra.mrb[0].mxu0 %v5509
    %v5739 = vpop.f32.mrb[0].mxu0
    %v5740 = vadd.f32 0.0, %v5739
    %v5741 = vpop.f32.mrb[0].mxu0
    %5742 = vmatprep.mubr.f32.mxu0 0.0
    %5743 = vmatmul.mubr.f32.gmra.mrb[0].mxu0 %v5510
    %v5744 = vpop.f32.mrb[0].mxu0
    %v5745 = vadd.f32 0.0, %v5744
    %v5746 = vpop.f32.mrb[0].mxu0
    %5747 = vmatprep.mubr.f32.mxu0 0.0
    %5748 = vmatmul.mubr.f32.gmra.mrb[0].mxu0 %v5511
    %v5749 = vpop.f32.mrb[0].mxu0
    %v5750 = vadd.f32 0.0, %v5749
    %v5751 = vpop.f32.mrb[0].mxu0
    %5752 = vmatprep.mubr.f32.mxu0 0.0
    %5753 = vmatmul.mubr.f32.gmra.mrb[0].mxu0 %v5512
    %v5754 = vpop.f32.mrb[0].mxu0
    %v5755 = vadd.f32 0.0, %v5754
    %v5756 = vpop.f32.mrb[0].mxu0
    %5757 = vmatprep.mubr.f32.mxu0 0.0
    %5758 = vmatmul.mubr.f32.gmra.mrb[0].mxu0 %v5513
    %v5759 = vpop.f32.mrb[0].mxu0
    %v5760 = vadd.f32 0.0, %v5759
    %v5761 = vpop.f32.mrb[0].mxu0
    %5762 = vmatprep.mubr.f32.mxu0 0.0
    %5763 = vmatmul.mubr.f32.gmra.mrb[0].mxu0 %v5514
    %v5764 = vpop.f32.mrb[0].mxu0
    %v5765 = vadd.f32 0.0, %v5764
    %v5766 = vpop.f32.mrb[0].mxu0
    %5767 = vmatprep.mubr.f32.mxu0 0.0
    %5768 = vmatmul.mubr.f32.gmra.mrb[0].mxu0 %v5515
    %v5769 = vpop.f32.mrb[0].mxu0
    %v5770 = vadd.f32 0.0, %v5769
    %v5771 = vpop.f32.mrb[0].mxu0
    %5772 = vmatprep.mubr.f32.mxu0 0.0
    %5773 = vmatmul.mubr.f32.gmra.mrb[0].mxu0 %v5516
    %v5774 = vpop.f32.mrb[0].mxu0
    %v5775 = vadd.f32 0.0, %v5774
    %v5776 = vpop.f32.mrb[0].mxu0
    %5777 = vmatprep.mubr.f32.mxu0 0.0
    %5778 = vmatmul.mubr.f32.gmra.mrb[0].mxu0 %v5517
    %v5779 = vpop.f32.mrb[0].mxu0
    %v5780 = vadd.f32 0.0, %v5779
    %v5781 = vpop.f32.mrb[0].mxu0
    %5782 = vmatprep.mubr.f32.mxu0 0.0
    %5783 = vmatmul.mubr.f32.gmra.mrb[0].mxu0 %v5518
    %v5784 = vpop.f32.mrb[0].mxu0
    %v5785 = vadd.f32 0.0, %v5784
    %v5786 = vpop.f32.mrb[0].mxu0
    %5787 = vmatprep.mubr.f32.mxu0 0.0
    %5788 = vmatmul.mubr.f32.gmra.mrb[0].mxu0 %v5519
    %v5789 = vpop.f32.mrb[0].mxu0
    %v5790 = vadd.f32 0.0, %v5789
    %v5791 = vpop.f32.mrb[0].mxu0
    %5792 = vmatprep.mubr.f32.mxu0 0.0
    %5793 = vmatmul.mubr.f32.gmra.mrb[0].mxu0 %v5520
    %v5794 = vpop.f32.mrb[0].mxu0
    %v5795 = vadd.f32 0.0, %v5794
    %v5796 = vpop.f32.mrb[0].mxu0
    %5797 = vmatprep.mubr.f32.mxu0 0.0
    %5798 = vmatmul.mubr.f32.gmra.mrb[0].mxu0 %v5521
    %v5799 = vpop.f32.mrb[0].mxu0
    %v5800 = vadd.f32 0.0, %v5799
    %v5801 = vpop.f32.mrb[0].mxu0
    %5802 = vmatprep.mubr.f32.mxu0 0.0
    %5803 = vmatmul.mubr.f32.gmra.mrb[0].mxu0 %v5522
    %v5804 = vpop.f32.mrb[0].mxu0
    %v5805 = vadd.f32 0.0, %v5804
    %v5806 = vpop.f32.mrb[0].mxu0
    %5807 = vmatprep.mubr.f32.mxu0 0.0
    %5808 = vmatmul.mubr.f32.gmra.mrb[0].mxu0 %v5523
    %v5809 = vpop.f32.mrb[0].mxu0
    %v5810 = vadd.f32 0.0, %v5809
    %v5811 = vpop.f32.mrb[0].mxu0
    %5812 = vmatprep.mubr.f32.mxu0 0.0
    %5813 = vmatmul.mubr.f32.gmra.mrb[0].mxu0 %v5524
    %v5814 = vpop.f32.mrb[0].mxu0
    %v5815 = vadd.f32 0.0, %v5814
    %v5816 = vpop.f32.mrb[0].mxu0
    %5817 = vmatprep.mubr.f32.mxu0 0.0
    %5818 = vmatmul.mubr.f32.gmra.mrb[0].mxu0 %v5525
    %v5819 = vpop.f32.mrb[0].mxu0
    %v5820 = vadd.f32 0.0, %v5819
    %v5821 = vpop.f32.mrb[0].mxu0
    %5822 = vmatprep.mubr.f32.mxu0 0.0
    %5823 = vmatmul.mubr.f32.gmra.mrb[0].mxu0 %v5526
    %v5824 = vpop.f32.mrb[0].mxu0
    %v5825 = vadd.f32 0.0, %v5824
    %v5826 = vpop.f32.mrb[0].mxu0
    %5827 = vmatprep.mubr.f32.mxu0 0.0
    %5828 = vmatmul.mubr.f32.gmra.mrb[0].mxu0 %v5527
    %v5829 = vpop.f32.mrb[0].mxu0
    %v5830 = vadd.f32 0.0, %v5829
    %v5831 = vpop.f32.mrb[0].mxu0
    %5832 = vmatprep.mubr.f32.mxu0 0.0
    %5833 = vmatmul.mubr.f32.gmra.mrb[0].mxu0 %v5528
    %v5834 = vpop.f32.mrb[0].mxu0
    %v5835 = vadd.f32 0.0, %v5834
    %v5836 = vpop.f32.mrb[0].mxu0
    %5837 = vmatprep.mubr.f32.mxu0 0.0
    %5838 = vmatmul.mubr.f32.gmra.mrb[0].mxu0 %v5529
    %v5839 = vpop.f32.mrb[0].mxu0
    %v5840 = vadd.f32 0.0, %v5839
    %v5841 = vpop.f32.mrb[0].mxu0
    %5842 = vmatprep.mubr.f32.mxu0 0.0
    %5843 = vmatmul.mubr.f32.gmra.mrb[0].mxu0 %v5530
    %v5844 = vpop.f32.mrb[0].mxu0
    %v5845 = vadd.f32 0.0, %v5844
    %v5846 = vpop.f32.mrb[0].mxu0
    %5847 = vmatprep.mubr.f32.mxu0 0.0
    %5848 = vmatmul.mubr.f32.gmra.mrb[0].mxu0 %v5531
    %v5849 = vpop.f32.mrb[0].mxu0
    %v5850 = vadd.f32 0.0, %v5849
    %v5851 = vpop.f32.mrb[0].mxu0
    %5852 = vmatprep.mubr.f32.mxu0 0.0
    %5853 = vmatmul.mubr.f32.gmra.mrb[0].mxu0 %v5532
    %v5854 = vpop.f32.mrb[0].mxu0
    %v5855 = vadd.f32 0.0, %v5854
    %v5856 = vpop.f32.mrb[0].mxu0
    %5857 = vmatprep.mubr.f32.mxu0 0.0
    %5858 = vmatmul.mubr.f32.gmra.mrb[0].mxu0 %v5533
    %v5859 = vpop.f32.mrb[0].mxu0
    %v5860 = vadd.f32 0.0, %v5859
    %v5861 = vpop.f32.mrb[0].mxu0
    %5862 = vmatprep.mubr.f32.mxu0 0.0
    %5863 = vmatmul.mubr.f32.gmra.mrb[0].mxu0 %v5534
    %v5864 = vpop.f32.mrb[0].mxu0
    %v5865 = vadd.f32 0.0, %v5864
    %v5866 = vpop.f32.mrb[0].mxu0
    %5867 = vmatprep.mubr.f32.mxu0 0.0
    %5868 = vmatmul.mubr.f32.gmra.mrb[0].mxu0 %v5535
    %v5869 = vpop.f32.mrb[0].mxu0
    %v5870 = vadd.f32 0.0, %v5869
    %v5871 = vpop.f32.mrb[0].mxu0
    %5872 = vmatprep.mubr.f32.mxu0 0.0
    %5873 = vmatmul.mubr.f32.gmra.mrb[0].mxu0 %v5536
    %v5874 = vpop.f32.mrb[0].mxu0
    %v5875 = vadd.f32 0.0, %v5874
    %v5876 = vpop.f32.mrb[0].mxu0
    %5877 = vmatprep.mubr.f32.mxu0 0.0
    %5878 = vmatmul.mubr.f32.gmra.mrb[0].mxu0 %v5537
    %v5879 = vpop.f32.mrb[0].mxu0
    %v5880 = vadd.f32 0.0, %v5879
    %v5881 = vpop.f32.mrb[0].mxu0
    %5882 = vmatprep.mubr.f32.mxu0 0.0
    %5883 = vmatmul.mubr.f32.gmra.mrb[0].mxu0 %v5538
    %v5884 = vpop.f32.mrb[0].mxu0
    %v5885 = vadd.f32 0.0, %v5884
    %v5886 = vpop.f32.mrb[0].mxu0
    %5887 = vmatprep.mubr.f32.mxu0 0.0
    %5888 = vmatmul.mubr.f32.gmra.mrb[0].mxu0 %v5539
    %v5889 = vpop.f32.mrb[0].mxu0
    %v5890 = vadd.f32 0.0, %v5889
    %v5891 = vpop.f32.mrb[0].mxu0
    %5892 = vmatprep.mubr.f32.mxu0 0.0
    %5893 = vmatmul.mubr.f32.gmra.mrb[0].mxu0 %v5540
    %v5894 = vpop.f32.mrb[0].mxu0
    %v5895 = vadd.f32 0.0, %v5894
    %v5896 = vpop.f32.mrb[0].mxu0
    %5897 = vmatprep.mubr.f32.mxu0 0.0
    %5898 = vmatmul.mubr.f32.gmra.mrb[0].mxu0 %v5541
    %v5899 = vpop.f32.mrb[0].mxu0
    %v5900 = vadd.f32 0.0, %v5899
    %v5901 = vpop.f32.mrb[0].mxu0
    %5902 = vmatprep.mubr.f32.mxu0 0.0
    %5903 = vmatmul.mubr.f32.gmra.mrb[0].mxu0 %v5542
    %v5904 = vpop.f32.mrb[0].mxu0
    %v5905 = vadd.f32 0.0, %v5904
    %v5906 = vpop.f32.mrb[0].mxu0
    %5907 = vmatprep.mubr.f32.mxu0 0.0
    %5908 = vmatmul.mubr.f32.gmra.mrb[0].mxu0 %v5543
    %v5909 = vpop.f32.mrb[0].mxu0
    %v5910 = vadd.f32 0.0, %v5909
    %v5911 = vpop.f32.mrb[0].mxu0
    %5912 = vmatprep.mubr.f32.mxu0 0.0
    %5913 = vmatmul.mubr.f32.gmra.mrb[0].mxu0 %v5544
    %v5914 = vpop.f32.mrb[0].mxu0
    %v5915 = vadd.f32 0.0, %v5914
    %v5916 = vpop.f32.mrb[0].mxu0
    %5917 = vmatprep.mubr.f32.mxu0 0.0
    %5918 = vmatmul.mubr.f32.gmra.mrb[0].mxu0 %v5545
    %v5919 = vpop.f32.mrb[0].mxu0
    %v5920 = vadd.f32 0.0, %v5919
    %v5921 = vpop.f32.mrb[0].mxu0
    %5922 = vmatprep.mubr.f32.mxu0 0.0
    %5923 = vmatmul.mubr.f32.gmra.mrb[0].mxu0 %v5546
    %v5924 = vpop.f32.mrb[0].mxu0
    %v5925 = vadd.f32 0.0, %v5924
    %v5926 = vpop.f32.mrb[0].mxu0
    %5927 = vmatprep.mubr.f32.mxu0 0.0
    %5928 = vmatmul.mubr.f32.gmra.mrb[0].mxu0 %v5547
    %v5929 = vpop.f32.mrb[0].mxu0
    %v5930 = vadd.f32 0.0, %v5929
    %v5931 = vpop.f32.mrb[0].mxu0
    %5932 = vmatprep.mubr.f32.mxu0 0.0
    %5933 = vmatmul.mubr.f32.gmra.mrb[0].mxu0 %v5548
    %v5934 = vpop.f32.mrb[0].mxu0
    %v5935 = vadd.f32 0.0, %v5934
    %v5936 = vpop.f32.mrb[0].mxu0
    %5937 = vmatprep.mubr.f32.mxu0 0.0
    %5938 = vmatmul.mubr.f32.gmra.mrb[0].mxu0 %v5549
    %v5939 = vpop.f32.mrb[0].mxu0
    %v5940 = vadd.f32 0.0, %v5939
    %v5941 = vpop.f32.mrb[0].mxu0
    %5942 = vmatprep.mubr.f32.mxu0 0.0
    %5943 = vmatmul.mubr.f32.gmra.mrb[0].mxu0 %v5550
    %v5944 = vpop.f32.mrb[0].mxu0
    %v5945 = vadd.f32 0.0, %v5944
    %v5946 = vpop.f32.mrb[0].mxu0
    %5947 = vmatprep.mubr.f32.mxu0 0.0
    %5948 = vmatmul.mubr.f32.gmra.mrb[0].mxu0 %v5551
    %v5949 = vpop.f32.mrb[0].mxu0
    %v5950 = vadd.f32 0.0, %v5949
    %v5951 = vpop.f32.mrb[0].mxu0
    %5952 = vdwg.mxu0
    %v5953 = vadd.f32 %v5635, %v5640
    %v5954 = vadd.f32 %v5953, %v5645
    %v5955 = vadd.f32 %v5954, %v5650
    %v5956 = vadd.f32 %v5955, %v5655
    %v5957 = vadd.f32 %v5956, %v5660
    %v5958 = vadd.f32 %v5957, %v5665
    %v5959 = vadd.f32 %v5958, %v5670
    %v5960 = vadd.f32 %v5959, %v5675
    %v5961 = vadd.f32 %v5960, %v5680
    %v5962 = vadd.f32 %v5961, %v5685
    %v5963 = vadd.f32 %v5962, %v5690
    %v5964 = vadd.f32 %v5963, %v5695
    %v5965 = vadd.f32 %v5964, %v5700
    %v5966 = vadd.f32 %v5965, %v5705
    %v5967 = vadd.f32 %v5966, %v5710
    %v5968 = vadd.f32 %v5967, %v5715
    %v5969 = vadd.f32 %v5968, %v5720
    %v5970 = vadd.f32 %v5969, %v5725
    %v5971 = vadd.f32 %v5970, %v5730
    %v5972 = vadd.f32 %v5971, %v5735
    %v5973 = vadd.f32 %v5972, %v5740
    %v5974 = vadd.f32 %v5973, %v5745
    %v5975 = vadd.f32 %v5974, %v5750
    %v5976 = vadd.f32 %v5975, %v5755
    %v5977 = vadd.f32 %v5976, %v5760
    %v5978 = vadd.f32 %v5977, %v5765
    %v5979 = vadd.f32 %v5978, %v5770
    %v5980 = vadd.f32 %v5979, %v5775
    %v5981 = vadd.f32 %v5980, %v5780
    %v5982 = vadd.f32 %v5981, %v5785
    %v5983 = vadd.f32 %v5982, %v5790
    %v5984 = vadd.f32 %v5983, %v5795
    %v5985 = vadd.f32 %v5984, %v5800
    %v5986 = vadd.f32 %v5985, %v5805
    %v5987 = vadd.f32 %v5986, %v5810
    %v5988 = vadd.f32 %v5987, %v5815
    %v5989 = vadd.f32 %v5988, %v5820
    %v5990 = vadd.f32 %v5989, %v5825
    %v5991 = vadd.f32 %v5990, %v5830
    %v5992 = vadd.f32 %v5991, %v5835
    %v5993 = vadd.f32 %v5992, %v5840
    %v5994 = vadd.f32 %v5993, %v5845
    %v5995 = vadd.f32 %v5994, %v5850
    %v5996 = vadd.f32 %v5995, %v5855
    %v5997 = vadd.f32 %v5996, %v5860
    %v5998 = vadd.f32 %v5997, %v5865
    %v5999 = vadd.f32 %v5998, %v5870
    %v6000 = vadd.f32 %v5999, %v5875
    %v6001 = vadd.f32 %v6000, %v5880
    %v6002 = vadd.f32 %v6001, %v5885
    %v6003 = vadd.f32 %v6002, %v5890
    %v6004 = vadd.f32 %v6003, %v5895
    %v6005 = vadd.f32 %v6004, %v5900
    %v6006 = vadd.f32 %v6005, %v5905
    %v6007 = vadd.f32 %v6006, %v5910
    %v6008 = vadd.f32 %v6007, %v5915
    %v6009 = vadd.f32 %v6008, %v5920
    %v6010 = vadd.f32 %v6009, %v5925
    %v6011 = vadd.f32 %v6010, %v5930
    %v6012 = vadd.f32 %v6011, %v5935
    %v6013 = vadd.f32 %v6012, %v5940
    %v6014 = vadd.f32 %v6013, %v5945
    %v6015 = vadd.f32 %v6014, %v5950
    %v6016 = vrot.slane %v6015, 4
    %v6017 = vadd.f32 %v6015, %v6016
    %v6018 = vrot.slane %v6017, 2
    %v6019 = vadd.f32 %v6017, %v6018
    %v6020 = vrot.slane %v6019, 1
    %v6021 = vadd.f32 %v6019, %v6020
    %v6022 = vmul.f32 %v6021, %v628
    %v6023 = vsub.f32 %v5635, %v6022
    %v6024 = vsub.f32 %v5640, %v6022
    %v6025 = vsub.f32 %v5645, %v6022
    %v6026 = vsub.f32 %v5650, %v6022
    %v6027 = vsub.f32 %v5655, %v6022
    %v6028 = vsub.f32 %v5660, %v6022
    %v6029 = vsub.f32 %v5665, %v6022
    %v6030 = vsub.f32 %v5670, %v6022
    %v6031 = vsub.f32 %v5675, %v6022
    %v6032 = vsub.f32 %v5680, %v6022
    %v6033 = vsub.f32 %v5685, %v6022
    %v6034 = vsub.f32 %v5690, %v6022
    %v6035 = vsub.f32 %v5695, %v6022
    %v6036 = vsub.f32 %v5700, %v6022
    %v6037 = vsub.f32 %v5705, %v6022
    %v6038 = vsub.f32 %v5710, %v6022
    %v6039 = vsub.f32 %v5715, %v6022
    %v6040 = vsub.f32 %v5720, %v6022
    %v6041 = vsub.f32 %v5725, %v6022
    %v6042 = vsub.f32 %v5730, %v6022
    %v6043 = vsub.f32 %v5735, %v6022
    %v6044 = vsub.f32 %v5740, %v6022
    %v6045 = vsub.f32 %v5745, %v6022
    %v6046 = vsub.f32 %v5750, %v6022
    %v6047 = vsub.f32 %v5755, %v6022
    %v6048 = vsub.f32 %v5760, %v6022
    %v6049 = vsub.f32 %v5765, %v6022
    %v6050 = vsub.f32 %v5770, %v6022
    %v6051 = vsub.f32 %v5775, %v6022
    %v6052 = vsub.f32 %v5780, %v6022
    %v6053 = vsub.f32 %v5785, %v6022
    %v6054 = vsub.f32 %v5790, %v6022
    %v6055 = vsub.f32 %v5795, %v6022
    %v6056 = vsub.f32 %v5800, %v6022
    %v6057 = vsub.f32 %v5805, %v6022
    %v6058 = vsub.f32 %v5810, %v6022
    %v6059 = vsub.f32 %v5815, %v6022
    %v6060 = vsub.f32 %v5820, %v6022
    %v6061 = vsub.f32 %v5825, %v6022
    %v6062 = vsub.f32 %v5830, %v6022
    %v6063 = vsub.f32 %v5835, %v6022
    %v6064 = vsub.f32 %v5840, %v6022
    %v6065 = vsub.f32 %v5845, %v6022
    %v6066 = vsub.f32 %v5850, %v6022
    %v6067 = vsub.f32 %v5855, %v6022
    %v6068 = vsub.f32 %v5860, %v6022
    %v6069 = vsub.f32 %v5865, %v6022
    %v6070 = vsub.f32 %v5870, %v6022
    %v6071 = vsub.f32 %v5875, %v6022
    %v6072 = vsub.f32 %v5880, %v6022
    %v6073 = vsub.f32 %v5885, %v6022
    %v6074 = vsub.f32 %v5890, %v6022
    %v6075 = vsub.f32 %v5895, %v6022
    %v6076 = vsub.f32 %v5900, %v6022
    %v6077 = vsub.f32 %v5905, %v6022
    %v6078 = vsub.f32 %v5910, %v6022
    %v6079 = vsub.f32 %v5915, %v6022
    %v6080 = vsub.f32 %v5920, %v6022
    %v6081 = vsub.f32 %v5925, %v6022
    %v6082 = vsub.f32 %v5930, %v6022
    %v6083 = vsub.f32 %v5935, %v6022
    %v6084 = vsub.f32 %v5940, %v6022
    %v6085 = vsub.f32 %v5945, %v6022
    %v6086 = vsub.f32 %v5950, %v6022
    %v6087 = vmul.f32 %v6023, %v6023
    %v6088 = vmul.f32 %v6024, %v6024
    %v6089 = vmul.f32 %v6025, %v6025
    %v6090 = vmul.f32 %v6026, %v6026
    %v6091 = vmul.f32 %v6027, %v6027
    %v6092 = vmul.f32 %v6028, %v6028
    %v6093 = vmul.f32 %v6029, %v6029
    %v6094 = vmul.f32 %v6030, %v6030
    %v6095 = vmul.f32 %v6031, %v6031
    %v6096 = vmul.f32 %v6032, %v6032
    %v6097 = vmul.f32 %v6033, %v6033
    %v6098 = vmul.f32 %v6034, %v6034
    %v6099 = vmul.f32 %v6035, %v6035
    %v6100 = vmul.f32 %v6036, %v6036
    %v6101 = vmul.f32 %v6037, %v6037
    %v6102 = vmul.f32 %v6038, %v6038
    %v6103 = vmul.f32 %v6039, %v6039
    %v6104 = vmul.f32 %v6040, %v6040
    %v6105 = vmul.f32 %v6041, %v6041
    %v6106 = vmul.f32 %v6042, %v6042
    %v6107 = vmul.f32 %v6043, %v6043
    %v6108 = vmul.f32 %v6044, %v6044
    %v6109 = vmul.f32 %v6045, %v6045
    %v6110 = vmul.f32 %v6046, %v6046
    %v6111 = vmul.f32 %v6047, %v6047
    %v6112 = vmul.f32 %v6048, %v6048
    %v6113 = vmul.f32 %v6049, %v6049
    %v6114 = vmul.f32 %v6050, %v6050
    %v6115 = vmul.f32 %v6051, %v6051
    %v6116 = vmul.f32 %v6052, %v6052
    %v6117 = vmul.f32 %v6053, %v6053
    %v6118 = vmul.f32 %v6054, %v6054
    %v6119 = vmul.f32 %v6055, %v6055
    %v6120 = vmul.f32 %v6056, %v6056
    %v6121 = vmul.f32 %v6057, %v6057
    %v6122 = vmul.f32 %v6058, %v6058
    %v6123 = vmul.f32 %v6059, %v6059
    %v6124 = vmul.f32 %v6060, %v6060
    %v6125 = vmul.f32 %v6061, %v6061
    %v6126 = vmul.f32 %v6062, %v6062
    %v6127 = vmul.f32 %v6063, %v6063
    %v6128 = vmul.f32 %v6064, %v6064
    %v6129 = vmul.f32 %v6065, %v6065
    %v6130 = vmul.f32 %v6066, %v6066
    %v6131 = vmul.f32 %v6067, %v6067
    %v6132 = vmul.f32 %v6068, %v6068
    %v6133 = vmul.f32 %v6069, %v6069
    %v6134 = vmul.f32 %v6070, %v6070
    %v6135 = vmul.f32 %v6071, %v6071
    %v6136 = vmul.f32 %v6072, %v6072
    %v6137 = vmul.f32 %v6073, %v6073
    %v6138 = vmul.f32 %v6074, %v6074
    %v6139 = vmul.f32 %v6075, %v6075
    %v6140 = vmul.f32 %v6076, %v6076
    %v6141 = vmul.f32 %v6077, %v6077
    %v6142 = vmul.f32 %v6078, %v6078
    %v6143 = vmul.f32 %v6079, %v6079
    %v6144 = vmul.f32 %v6080, %v6080
    %v6145 = vmul.f32 %v6081, %v6081
    %v6146 = vmul.f32 %v6082, %v6082
    %v6147 = vmul.f32 %v6083, %v6083
    %v6148 = vmul.f32 %v6084, %v6084
    %v6149 = vmul.f32 %v6085, %v6085
    %v6150 = vmul.f32 %v6086, %v6086
    %v6151 = vadd.f32 %v6087, %v6088
    %v6152 = vadd.f32 %v6151, %v6089
    %v6153 = vadd.f32 %v6152, %v6090
    %v6154 = vadd.f32 %v6153, %v6091
    %v6155 = vadd.f32 %v6154, %v6092
    %v6156 = vadd.f32 %v6155, %v6093
    %v6157 = vadd.f32 %v6156, %v6094
    %v6158 = vadd.f32 %v6157, %v6095
    %v6159 = vadd.f32 %v6158, %v6096
    %v6160 = vadd.f32 %v6159, %v6097
    %v6161 = vadd.f32 %v6160, %v6098
    %v6162 = vadd.f32 %v6161, %v6099
    %v6163 = vadd.f32 %v6162, %v6100
    %v6164 = vadd.f32 %v6163, %v6101
    %v6165 = vadd.f32 %v6164, %v6102
    %v6166 = vadd.f32 %v6165, %v6103
    %v6167 = vadd.f32 %v6166, %v6104
    %v6168 = vadd.f32 %v6167, %v6105
    %v6169 = vadd.f32 %v6168, %v6106
    %v6170 = vadd.f32 %v6169, %v6107
    %v6171 = vadd.f32 %v6170, %v6108
    %v6172 = vadd.f32 %v6171, %v6109
    %v6173 = vadd.f32 %v6172, %v6110
    %v6174 = vadd.f32 %v6173, %v6111
    %v6175 = vadd.f32 %v6174, %v6112
    %v6176 = vadd.f32 %v6175, %v6113
    %v6177 = vadd.f32 %v6176, %v6114
    %v6178 = vadd.f32 %v6177, %v6115
    %v6179 = vadd.f32 %v6178, %v6116
    %v6180 = vadd.f32 %v6179, %v6117
    %v6181 = vadd.f32 %v6180, %v6118
    %v6182 = vadd.f32 %v6181, %v6119
    %v6183 = vadd.f32 %v6182, %v6120
    %v6184 = vadd.f32 %v6183, %v6121
    %v6185 = vadd.f32 %v6184, %v6122
    %v6186 = vadd.f32 %v6185, %v6123
    %v6187 = vadd.f32 %v6186, %v6124
    %v6188 = vadd.f32 %v6187, %v6125
    %v6189 = vadd.f32 %v6188, %v6126
    %v6190 = vadd.f32 %v6189, %v6127
    %v6191 = vadd.f32 %v6190, %v6128
    %v6192 = vadd.f32 %v6191, %v6129
    %v6193 = vadd.f32 %v6192, %v6130
    %v6194 = vadd.f32 %v6193, %v6131
    %v6195 = vadd.f32 %v6194, %v6132
    %v6196 = vadd.f32 %v6195, %v6133
    %v6197 = vadd.f32 %v6196, %v6134
    %v6198 = vadd.f32 %v6197, %v6135
    %v6199 = vadd.f32 %v6198, %v6136
    %v6200 = vadd.f32 %v6199, %v6137
    %v6201 = vadd.f32 %v6200, %v6138
    %v6202 = vadd.f32 %v6201, %v6139
    %v6203 = vadd.f32 %v6202, %v6140
    %v6204 = vadd.f32 %v6203, %v6141
    %v6205 = vadd.f32 %v6204, %v6142
    %v6206 = vadd.f32 %v6205, %v6143
    %v6207 = vadd.f32 %v6206, %v6144
    %v6208 = vadd.f32 %v6207, %v6145
    %v6209 = vadd.f32 %v6208, %v6146
    %v6210 = vadd.f32 %v6209, %v6147
    %v6211 = vadd.f32 %v6210, %v6148
    %v6212 = vadd.f32 %v6211, %v6149
    %v6213 = vadd.f32 %v6212, %v6150
    %v6214 = vrot.slane %v6213, 4
    %v6215 = vadd.f32 %v6213, %v6214
    %v6216 = vrot.slane %v6215, 2
    %v6217 = vadd.f32 %v6215, %v6216
    %v6218 = vrot.slane %v6217, 1
    %v6219 = vadd.f32 %v6217, %v6218
    %v6220 = vmul.f32 %v6219, %v628
    %v6221 = vadd.f32 %v6220, 1e-05
    %v6222 = vrsqrt.pop %v6221
    %v6223 = vmul.f32 %v6023, %v6222
    %v6224 = vmul.f32 %v6024, %v6222
    %v6225 = vmul.f32 %v6025, %v6222
    %v6226 = vmul.f32 %v6026, %v6222
    %v6227 = vmul.f32 %v6027, %v6222
    %v6228 = vmul.f32 %v6028, %v6222
    %v6229 = vmul.f32 %v6029, %v6222
    %v6230 = vmul.f32 %v6030, %v6222
    %v6231 = vmul.f32 %v6031, %v6222
    %v6232 = vmul.f32 %v6032, %v6222
    %v6233 = vmul.f32 %v6033, %v6222
    %v6234 = vmul.f32 %v6034, %v6222
    %v6235 = vmul.f32 %v6035, %v6222
    %v6236 = vmul.f32 %v6036, %v6222
    %v6237 = vmul.f32 %v6037, %v6222
    %v6238 = vmul.f32 %v6038, %v6222
    %v6239 = vmul.f32 %v6039, %v6222
    %v6240 = vmul.f32 %v6040, %v6222
    %v6241 = vmul.f32 %v6041, %v6222
    %v6242 = vmul.f32 %v6042, %v6222
    %v6243 = vmul.f32 %v6043, %v6222
    %v6244 = vmul.f32 %v6044, %v6222
    %v6245 = vmul.f32 %v6045, %v6222
    %v6246 = vmul.f32 %v6046, %v6222
    %v6247 = vmul.f32 %v6047, %v6222
    %v6248 = vmul.f32 %v6048, %v6222
    %v6249 = vmul.f32 %v6049, %v6222
    %v6250 = vmul.f32 %v6050, %v6222
    %v6251 = vmul.f32 %v6051, %v6222
    %v6252 = vmul.f32 %v6052, %v6222
    %v6253 = vmul.f32 %v6053, %v6222
    %v6254 = vmul.f32 %v6054, %v6222
    %v6255 = vmul.f32 %v6055, %v6222
    %v6256 = vmul.f32 %v6056, %v6222
    %v6257 = vmul.f32 %v6057, %v6222
    %v6258 = vmul.f32 %v6058, %v6222
    %v6259 = vmul.f32 %v6059, %v6222
    %v6260 = vmul.f32 %v6060, %v6222
    %v6261 = vmul.f32 %v6061, %v6222
    %v6262 = vmul.f32 %v6062, %v6222
    %v6263 = vmul.f32 %v6063, %v6222
    %v6264 = vmul.f32 %v6064, %v6222
    %v6265 = vmul.f32 %v6065, %v6222
    %v6266 = vmul.f32 %v6066, %v6222
    %v6267 = vmul.f32 %v6067, %v6222
    %v6268 = vmul.f32 %v6068, %v6222
    %v6269 = vmul.f32 %v6069, %v6222
    %v6270 = vmul.f32 %v6070, %v6222
    %v6271 = vmul.f32 %v6071, %v6222
    %v6272 = vmul.f32 %v6072, %v6222
    %v6273 = vmul.f32 %v6073, %v6222
    %v6274 = vmul.f32 %v6074, %v6222
    %v6275 = vmul.f32 %v6075, %v6222
    %v6276 = vmul.f32 %v6076, %v6222
    %v6277 = vmul.f32 %v6077, %v6222
    %v6278 = vmul.f32 %v6078, %v6222
    %v6279 = vmul.f32 %v6079, %v6222
    %v6280 = vmul.f32 %v6080, %v6222
    %v6281 = vmul.f32 %v6081, %v6222
    %v6282 = vmul.f32 %v6082, %v6222
    %v6283 = vmul.f32 %v6083, %v6222
    %v6284 = vmul.f32 %v6084, %v6222
    %v6285 = vmul.f32 %v6085, %v6222
    %v6286 = vmul.f32 %v6086, %v6222
    %v6287 = vld [vmem:[%s8] sm:$0x1]
    %v6289 = vlaneseq
    %v6290 = vshrl.u32 %v6289, 7
    %v6291 = vsub.s32 0, %v6290
    %v6292 = vrot.slane %v6287, %v6291
    %v6294 = vmul.f32 %v6223, %v6292
    %v6295 = vmul.f32 %v6224, %v6292
    %v6296 = vmul.f32 %v6225, %v6292
    %v6297 = vmul.f32 %v6226, %v6292
    %v6298 = vmul.f32 %v6227, %v6292
    %v6299 = vmul.f32 %v6228, %v6292
    %v6300 = vmul.f32 %v6229, %v6292
    %v6301 = vmul.f32 %v6230, %v6292
    %v6302 = vmul.f32 %v6231, %v6292
    %v6303 = vmul.f32 %v6232, %v6292
    %v6304 = vmul.f32 %v6233, %v6292
    %v6305 = vmul.f32 %v6234, %v6292
    %v6306 = vmul.f32 %v6235, %v6292
    %v6307 = vmul.f32 %v6236, %v6292
    %v6308 = vmul.f32 %v6237, %v6292
    %v6309 = vmul.f32 %v6238, %v6292
    %v6310 = vmul.f32 %v6239, %v6292
    %v6311 = vmul.f32 %v6240, %v6292
    %v6312 = vmul.f32 %v6241, %v6292
    %v6313 = vmul.f32 %v6242, %v6292
    %v6314 = vmul.f32 %v6243, %v6292
    %v6315 = vmul.f32 %v6244, %v6292
    %v6316 = vmul.f32 %v6245, %v6292
    %v6317 = vmul.f32 %v6246, %v6292
    %v6318 = vmul.f32 %v6247, %v6292
    %v6319 = vmul.f32 %v6248, %v6292
    %v6320 = vmul.f32 %v6249, %v6292
    %v6321 = vmul.f32 %v6250, %v6292
    %v6322 = vmul.f32 %v6251, %v6292
    %v6323 = vmul.f32 %v6252, %v6292
    %v6324 = vmul.f32 %v6253, %v6292
    %v6325 = vmul.f32 %v6254, %v6292
    %v6326 = vmul.f32 %v6255, %v6292
    %v6327 = vmul.f32 %v6256, %v6292
    %v6328 = vmul.f32 %v6257, %v6292
    %v6329 = vmul.f32 %v6258, %v6292
    %v6330 = vmul.f32 %v6259, %v6292
    %v6331 = vmul.f32 %v6260, %v6292
    %v6332 = vmul.f32 %v6261, %v6292
    %v6333 = vmul.f32 %v6262, %v6292
    %v6334 = vmul.f32 %v6263, %v6292
    %v6335 = vmul.f32 %v6264, %v6292
    %v6336 = vmul.f32 %v6265, %v6292
    %v6337 = vmul.f32 %v6266, %v6292
    %v6338 = vmul.f32 %v6267, %v6292
    %v6339 = vmul.f32 %v6268, %v6292
    %v6340 = vmul.f32 %v6269, %v6292
    %v6341 = vmul.f32 %v6270, %v6292
    %v6342 = vmul.f32 %v6271, %v6292
    %v6343 = vmul.f32 %v6272, %v6292
    %v6344 = vmul.f32 %v6273, %v6292
    %v6345 = vmul.f32 %v6274, %v6292
    %v6346 = vmul.f32 %v6275, %v6292
    %v6347 = vmul.f32 %v6276, %v6292
    %v6348 = vmul.f32 %v6277, %v6292
    %v6349 = vmul.f32 %v6278, %v6292
    %v6350 = vmul.f32 %v6279, %v6292
    %v6351 = vmul.f32 %v6280, %v6292
    %v6352 = vmul.f32 %v6281, %v6292
    %v6353 = vmul.f32 %v6282, %v6292
    %v6354 = vmul.f32 %v6283, %v6292
    %v6355 = vmul.f32 %v6284, %v6292
    %v6356 = vmul.f32 %v6285, %v6292
    %v6357 = vmul.f32 %v6286, %v6292
    %v6358 = vld [vmem:[%s9] sm:$0x1]
    %v6360 = vlaneseq
    %v6361 = vshrl.u32 %v6360, 7
    %v6362 = vsub.s32 0, %v6361
    %v6363 = vrot.slane %v6358, %v6362
    %v6365 = vadd.f32 %v6294, %v6363
    %v6366 = vadd.f32 %v6295, %v6363
    %v6367 = vadd.f32 %v6296, %v6363
    %v6368 = vadd.f32 %v6297, %v6363
    %v6369 = vadd.f32 %v6298, %v6363
    %v6370 = vadd.f32 %v6299, %v6363
    %v6371 = vadd.f32 %v6300, %v6363
    %v6372 = vadd.f32 %v6301, %v6363
    %v6373 = vadd.f32 %v6302, %v6363
    %v6374 = vadd.f32 %v6303, %v6363
    %v6375 = vadd.f32 %v6304, %v6363
    %v6376 = vadd.f32 %v6305, %v6363
    %v6377 = vadd.f32 %v6306, %v6363
    %v6378 = vadd.f32 %v6307, %v6363
    %v6379 = vadd.f32 %v6308, %v6363
    %v6380 = vadd.f32 %v6309, %v6363
    %v6381 = vadd.f32 %v6310, %v6363
    %v6382 = vadd.f32 %v6311, %v6363
    %v6383 = vadd.f32 %v6312, %v6363
    %v6384 = vadd.f32 %v6313, %v6363
    %v6385 = vadd.f32 %v6314, %v6363
    %v6386 = vadd.f32 %v6315, %v6363
    %v6387 = vadd.f32 %v6316, %v6363
    %v6388 = vadd.f32 %v6317, %v6363
    %v6389 = vadd.f32 %v6318, %v6363
    %v6390 = vadd.f32 %v6319, %v6363
    %v6391 = vadd.f32 %v6320, %v6363
    %v6392 = vadd.f32 %v6321, %v6363
    %v6393 = vadd.f32 %v6322, %v6363
    %v6394 = vadd.f32 %v6323, %v6363
    %v6395 = vadd.f32 %v6324, %v6363
    %v6396 = vadd.f32 %v6325, %v6363
    %v6397 = vadd.f32 %v6326, %v6363
    %v6398 = vadd.f32 %v6327, %v6363
    %v6399 = vadd.f32 %v6328, %v6363
    %v6400 = vadd.f32 %v6329, %v6363
    %v6401 = vadd.f32 %v6330, %v6363
    %v6402 = vadd.f32 %v6331, %v6363
    %v6403 = vadd.f32 %v6332, %v6363
    %v6404 = vadd.f32 %v6333, %v6363
    %v6405 = vadd.f32 %v6334, %v6363
    %v6406 = vadd.f32 %v6335, %v6363
    %v6407 = vadd.f32 %v6336, %v6363
    %v6408 = vadd.f32 %v6337, %v6363
    %v6409 = vadd.f32 %v6338, %v6363
    %v6410 = vadd.f32 %v6339, %v6363
    %v6411 = vadd.f32 %v6340, %v6363
    %v6412 = vadd.f32 %v6341, %v6363
    %v6413 = vadd.f32 %v6342, %v6363
    %v6414 = vadd.f32 %v6343, %v6363
    %v6415 = vadd.f32 %v6344, %v6363
    %v6416 = vadd.f32 %v6345, %v6363
    %v6417 = vadd.f32 %v6346, %v6363
    %v6418 = vadd.f32 %v6347, %v6363
    %v6419 = vadd.f32 %v6348, %v6363
    %v6420 = vadd.f32 %v6349, %v6363
    %v6421 = vadd.f32 %v6350, %v6363
    %v6422 = vadd.f32 %v6351, %v6363
    %v6423 = vadd.f32 %v6352, %v6363
    %v6424 = vadd.f32 %v6353, %v6363
    %v6425 = vadd.f32 %v6354, %v6363
    %v6426 = vadd.f32 %v6355, %v6363
    %v6427 = vadd.f32 %v6356, %v6363
    %v6428 = vadd.f32 %v6357, %v6363
    %v6429 = vld [vmem:[#allocation4] sm:$0xff]
    %v6430 = vld [vmem:[#allocation4 + $0x8] sm:$0xff]
    %v6431 = vld [vmem:[#allocation4 + $0x10] sm:$0xff]
    %v6432 = vld [vmem:[#allocation4 + $0x18] sm:$0xff]
    %v6433 = vld [vmem:[#allocation4 + $0x20] sm:$0xff]
    %v6434 = vld [vmem:[#allocation4 + $0x28] sm:$0xff]
    %v6435 = vld [vmem:[#allocation4 + $0x30] sm:$0xff]
    %v6436 = vld [vmem:[#allocation4 + $0x38] sm:$0xff]
    %v6437 = vld [vmem:[#allocation4 + $0x40] sm:$0xff]
    %v6438 = vld [vmem:[#allocation4 + $0x48] sm:$0xff]
    %v6439 = vld [vmem:[#allocation4 + $0x50] sm:$0xff]
    %v6440 = vld [vmem:[#allocation4 + $0x58] sm:$0xff]
    %v6441 = vld [vmem:[#allocation4 + $0x60] sm:$0xff]
    %v6442 = vld [vmem:[#allocation4 + $0x68] sm:$0xff]
    %v6443 = vld [vmem:[#allocation4 + $0x70] sm:$0xff]
    %v6444 = vld [vmem:[#allocation4 + $0x78] sm:$0xff]
    %v6445 = vld [vmem:[#allocation4 + $0x80] sm:$0xff]
    %v6446 = vld [vmem:[#allocation4 + $0x88] sm:$0xff]
    %v6447 = vld [vmem:[#allocation4 + $0x90] sm:$0xff]
    %v6448 = vld [vmem:[#allocation4 + $0x98] sm:$0xff]
    %v6449 = vld [vmem:[#allocation4 + $0xa0] sm:$0xff]
    %v6450 = vld [vmem:[#allocation4 + $0xa8] sm:$0xff]
    %v6451 = vld [vmem:[#allocation4 + $0xb0] sm:$0xff]
    %v6452 = vld [vmem:[#allocation4 + $0xb8] sm:$0xff]
    %v6453 = vld [vmem:[#allocation4 + $0xc0] sm:$0xff]
    %v6454 = vld [vmem:[#allocation4 + $0xc8] sm:$0xff]
    %v6455 = vld [vmem:[#allocation4 + $0xd0] sm:$0xff]
    %v6456 = vld [vmem:[#allocation4 + $0xd8] sm:$0xff]
    %v6457 = vld [vmem:[#allocation4 + $0xe0] sm:$0xff]
    %v6458 = vld [vmem:[#allocation4 + $0xe8] sm:$0xff]
    %v6459 = vld [vmem:[#allocation4 + $0xf0] sm:$0xff]
    %v6460 = vld [vmem:[#allocation4 + $0xf8] sm:$0xff]
    %v6461 = vld [vmem:[#allocation4 + $0x100] sm:$0xff]
    %v6462 = vld [vmem:[#allocation4 + $0x108] sm:$0xff]
    %v6463 = vld [vmem:[#allocation4 + $0x110] sm:$0xff]
    %v6464 = vld [vmem:[#allocation4 + $0x118] sm:$0xff]
    %v6465 = vld [vmem:[#allocation4 + $0x120] sm:$0xff]
    %v6466 = vld [vmem:[#allocation4 + $0x128] sm:$0xff]
    %v6467 = vld [vmem:[#allocation4 + $0x130] sm:$0xff]
    %v6468 = vld [vmem:[#allocation4 + $0x138] sm:$0xff]
    %v6469 = vld [vmem:[#allocation4 + $0x140] sm:$0xff]
    %v6470 = vld [vmem:[#allocation4 + $0x148] sm:$0xff]
    %v6471 = vld [vmem:[#allocation4 + $0x150] sm:$0xff]
    %v6472 = vld [vmem:[#allocation4 + $0x158] sm:$0xff]
    %v6473 = vld [vmem:[#allocation4 + $0x160] sm:$0xff]
    %v6474 = vld [vmem:[#allocation4 + $0x168] sm:$0xff]
    %v6475 = vld [vmem:[#allocation4 + $0x170] sm:$0xff]
    %v6476 = vld [vmem:[#allocation4 + $0x178] sm:$0xff]
    %v6477 = vld [vmem:[#allocation4 + $0x180] sm:$0xff]
    %v6478 = vld [vmem:[#allocation4 + $0x188] sm:$0xff]
    %v6479 = vld [vmem:[#allocation4 + $0x190] sm:$0xff]
    %v6480 = vld [vmem:[#allocation4 + $0x198] sm:$0xff]
    %v6481 = vld [vmem:[#allocation4 + $0x1a0] sm:$0xff]
    %v6482 = vld [vmem:[#allocation4 + $0x1a8] sm:$0xff]
    %v6483 = vld [vmem:[#allocation4 + $0x1b0] sm:$0xff]
    %v6484 = vld [vmem:[#allocation4 + $0x1b8] sm:$0xff]
    %v6485 = vld [vmem:[#allocation4 + $0x1c0] sm:$0xff]
    %v6486 = vld [vmem:[#allocation4 + $0x1c8] sm:$0xff]
    %v6487 = vld [vmem:[#allocation4 + $0x1d0] sm:$0xff]
    %v6488 = vld [vmem:[#allocation4 + $0x1d8] sm:$0xff]
    %v6489 = vld [vmem:[#allocation4 + $0x1e0] sm:$0xff]
    %v6490 = vld [vmem:[#allocation4 + $0x1e8] sm:$0xff]
    %v6491 = vld [vmem:[#allocation4 + $0x1f0] sm:$0xff]
    %v6492 = vld [vmem:[#allocation4 + $0x1f8] sm:$0xff]
    %v6493 = vld [vmem:[%s10] sm:$0x1]
    %v6495 = vlaneseq
    %v6496 = vshrl.u32 %v6495, 7
    %v6497 = vsub.s32 0, %v6496
    %v6498 = vrot.slane %v6493, %v6497
    %v6500 = vmul.f32 %v6429, %v6498
    %v6501 = vmul.f32 %v6430, %v6498
    %v6502 = vmul.f32 %v6431, %v6498
    %v6503 = vmul.f32 %v6432, %v6498
    %v6504 = vmul.f32 %v6433, %v6498
    %v6505 = vmul.f32 %v6434, %v6498
    %v6506 = vmul.f32 %v6435, %v6498
    %v6507 = vmul.f32 %v6436, %v6498
    %v6508 = vmul.f32 %v6437, %v6498
    %v6509 = vmul.f32 %v6438, %v6498
    %v6510 = vmul.f32 %v6439, %v6498
    %v6511 = vmul.f32 %v6440, %v6498
    %v6512 = vmul.f32 %v6441, %v6498
    %v6513 = vmul.f32 %v6442, %v6498
    %v6514 = vmul.f32 %v6443, %v6498
    %v6515 = vmul.f32 %v6444, %v6498
    %v6516 = vmul.f32 %v6445, %v6498
    %v6517 = vmul.f32 %v6446, %v6498
    %v6518 = vmul.f32 %v6447, %v6498
    %v6519 = vmul.f32 %v6448, %v6498
    %v6520 = vmul.f32 %v6449, %v6498
    %v6521 = vmul.f32 %v6450, %v6498
    %v6522 = vmul.f32 %v6451, %v6498
    %v6523 = vmul.f32 %v6452, %v6498
    %v6524 = vmul.f32 %v6453, %v6498
    %v6525 = vmul.f32 %v6454, %v6498
    %v6526 = vmul.f32 %v6455, %v6498
    %v6527 = vmul.f32 %v6456, %v6498
    %v6528 = vmul.f32 %v6457, %v6498
    %v6529 = vmul.f32 %v6458, %v6498
    %v6530 = vmul.f32 %v6459, %v6498
    %v6531 = vmul.f32 %v6460, %v6498
    %v6532 = vmul.f32 %v6461, %v6498
    %v6533 = vmul.f32 %v6462, %v6498
    %v6534 = vmul.f32 %v6463, %v6498
    %v6535 = vmul.f32 %v6464, %v6498
    %v6536 = vmul.f32 %v6465, %v6498
    %v6537 = vmul.f32 %v6466, %v6498
    %v6538 = vmul.f32 %v6467, %v6498
    %v6539 = vmul.f32 %v6468, %v6498
    %v6540 = vmul.f32 %v6469, %v6498
    %v6541 = vmul.f32 %v6470, %v6498
    %v6542 = vmul.f32 %v6471, %v6498
    %v6543 = vmul.f32 %v6472, %v6498
    %v6544 = vmul.f32 %v6473, %v6498
    %v6545 = vmul.f32 %v6474, %v6498
    %v6546 = vmul.f32 %v6475, %v6498
    %v6547 = vmul.f32 %v6476, %v6498
    %v6548 = vmul.f32 %v6477, %v6498
    %v6549 = vmul.f32 %v6478, %v6498
    %v6550 = vmul.f32 %v6479, %v6498
    %v6551 = vmul.f32 %v6480, %v6498
    %v6552 = vmul.f32 %v6481, %v6498
    %v6553 = vmul.f32 %v6482, %v6498
    %v6554 = vmul.f32 %v6483, %v6498
    %v6555 = vmul.f32 %v6484, %v6498
    %v6556 = vmul.f32 %v6485, %v6498
    %v6557 = vmul.f32 %v6486, %v6498
    %v6558 = vmul.f32 %v6487, %v6498
    %v6559 = vmul.f32 %v6488, %v6498
    %v6560 = vmul.f32 %v6489, %v6498
    %v6561 = vmul.f32 %v6490, %v6498
    %v6562 = vmul.f32 %v6491, %v6498
    %v6563 = vmul.f32 %v6492, %v6498
    %6564 = vadd.xlane.f32.xlu0 %v6500
    %v6565 = vpop.xlane.xlu0 %6564
    %6566 = vadd.xlane.f32.xlu0 %v6501
    %v6567 = vpop.xlane.xlu0 %6566
    %6568 = vadd.xlane.f32.xlu0 %v6502
    %v6569 = vpop.xlane.xlu0 %6568
    %6570 = vadd.xlane.f32.xlu0 %v6503
    %v6571 = vpop.xlane.xlu0 %6570
    %6572 = vadd.xlane.f32.xlu0 %v6504
    %v6573 = vpop.xlane.xlu0 %6572
    %6574 = vadd.xlane.f32.xlu0 %v6505
    %v6575 = vpop.xlane.xlu0 %6574
    %6576 = vadd.xlane.f32.xlu0 %v6506
    %v6577 = vpop.xlane.xlu0 %6576
    %6578 = vadd.xlane.f32.xlu0 %v6507
    %v6579 = vpop.xlane.xlu0 %6578
    %6580 = vadd.xlane.f32.xlu0 %v6508
    %v6581 = vpop.xlane.xlu0 %6580
    %6582 = vadd.xlane.f32.xlu0 %v6509
    %v6583 = vpop.xlane.xlu0 %6582
    %6584 = vadd.xlane.f32.xlu0 %v6510
    %v6585 = vpop.xlane.xlu0 %6584
    %6586 = vadd.xlane.f32.xlu0 %v6511
    %v6587 = vpop.xlane.xlu0 %6586
    %6588 = vadd.xlane.f32.xlu0 %v6512
    %v6589 = vpop.xlane.xlu0 %6588
    %6590 = vadd.xlane.f32.xlu0 %v6513
    %v6591 = vpop.xlane.xlu0 %6590
    %6592 = vadd.xlane.f32.xlu0 %v6514
    %v6593 = vpop.xlane.xlu0 %6592
    %6594 = vadd.xlane.f32.xlu0 %v6515
    %v6595 = vpop.xlane.xlu0 %6594
    %6596 = vadd.xlane.f32.xlu0 %v6516
    %v6597 = vpop.xlane.xlu0 %6596
    %6598 = vadd.xlane.f32.xlu0 %v6517
    %v6599 = vpop.xlane.xlu0 %6598
    %6600 = vadd.xlane.f32.xlu0 %v6518
    %v6601 = vpop.xlane.xlu0 %6600
    %6602 = vadd.xlane.f32.xlu0 %v6519
    %v6603 = vpop.xlane.xlu0 %6602
    %6604 = vadd.xlane.f32.xlu0 %v6520
    %v6605 = vpop.xlane.xlu0 %6604
    %6606 = vadd.xlane.f32.xlu0 %v6521
    %v6607 = vpop.xlane.xlu0 %6606
    %6608 = vadd.xlane.f32.xlu0 %v6522
    %v6609 = vpop.xlane.xlu0 %6608
    %6610 = vadd.xlane.f32.xlu0 %v6523
    %v6611 = vpop.xlane.xlu0 %6610
    %6612 = vadd.xlane.f32.xlu0 %v6524
    %v6613 = vpop.xlane.xlu0 %6612
    %6614 = vadd.xlane.f32.xlu0 %v6525
    %v6615 = vpop.xlane.xlu0 %6614
    %6616 = vadd.xlane.f32.xlu0 %v6526
    %v6617 = vpop.xlane.xlu0 %6616
    %6618 = vadd.xlane.f32.xlu0 %v6527
    %v6619 = vpop.xlane.xlu0 %6618
    %6620 = vadd.xlane.f32.xlu0 %v6528
    %v6621 = vpop.xlane.xlu0 %6620
    %6622 = vadd.xlane.f32.xlu0 %v6529
    %v6623 = vpop.xlane.xlu0 %6622
    %6624 = vadd.xlane.f32.xlu0 %v6530
    %v6625 = vpop.xlane.xlu0 %6624
    %6626 = vadd.xlane.f32.xlu0 %v6531
    %v6627 = vpop.xlane.xlu0 %6626
    %6628 = vadd.xlane.f32.xlu0 %v6532
    %v6629 = vpop.xlane.xlu0 %6628
    %6630 = vadd.xlane.f32.xlu0 %v6533
    %v6631 = vpop.xlane.xlu0 %6630
    %6632 = vadd.xlane.f32.xlu0 %v6534
    %v6633 = vpop.xlane.xlu0 %6632
    %6634 = vadd.xlane.f32.xlu0 %v6535
    %v6635 = vpop.xlane.xlu0 %6634
    %6636 = vadd.xlane.f32.xlu0 %v6536
    %v6637 = vpop.xlane.xlu0 %6636
    %6638 = vadd.xlane.f32.xlu0 %v6537
    %v6639 = vpop.xlane.xlu0 %6638
    %6640 = vadd.xlane.f32.xlu0 %v6538
    %v6641 = vpop.xlane.xlu0 %6640
    %6642 = vadd.xlane.f32.xlu0 %v6539
    %v6643 = vpop.xlane.xlu0 %6642
    %6644 = vadd.xlane.f32.xlu0 %v6540
    %v6645 = vpop.xlane.xlu0 %6644
    %6646 = vadd.xlane.f32.xlu0 %v6541
    %v6647 = vpop.xlane.xlu0 %6646
    %6648 = vadd.xlane.f32.xlu0 %v6542
    %v6649 = vpop.xlane.xlu0 %6648
    %6650 = vadd.xlane.f32.xlu0 %v6543
    %v6651 = vpop.xlane.xlu0 %6650
    %6652 = vadd.xlane.f32.xlu0 %v6544
    %v6653 = vpop.xlane.xlu0 %6652
    %6654 = vadd.xlane.f32.xlu0 %v6545
    %v6655 = vpop.xlane.xlu0 %6654
    %6656 = vadd.xlane.f32.xlu0 %v6546
    %v6657 = vpop.xlane.xlu0 %6656
    %6658 = vadd.xlane.f32.xlu0 %v6547
    %v6659 = vpop.xlane.xlu0 %6658
    %6660 = vadd.xlane.f32.xlu0 %v6548
    %v6661 = vpop.xlane.xlu0 %6660
    %6662 = vadd.xlane.f32.xlu0 %v6549
    %v6663 = vpop.xlane.xlu0 %6662
    %6664 = vadd.xlane.f32.xlu0 %v6550
    %v6665 = vpop.xlane.xlu0 %6664
    %6666 = vadd.xlane.f32.xlu0 %v6551
    %v6667 = vpop.xlane.xlu0 %6666
    %6668 = vadd.xlane.f32.xlu0 %v6552
    %v6669 = vpop.xlane.xlu0 %6668
    %6670 = vadd.xlane.f32.xlu0 %v6553
    %v6671 = vpop.xlane.xlu0 %6670
    %6672 = vadd.xlane.f32.xlu0 %v6554
    %v6673 = vpop.xlane.xlu0 %6672
    %6674 = vadd.xlane.f32.xlu0 %v6555
    %v6675 = vpop.xlane.xlu0 %6674
    %6676 = vadd.xlane.f32.xlu0 %v6556
    %v6677 = vpop.xlane.xlu0 %6676
    %6678 = vadd.xlane.f32.xlu0 %v6557
    %v6679 = vpop.xlane.xlu0 %6678
    %6680 = vadd.xlane.f32.xlu0 %v6558
    %v6681 = vpop.xlane.xlu0 %6680
    %6682 = vadd.xlane.f32.xlu0 %v6559
    %v6683 = vpop.xlane.xlu0 %6682
    %6684 = vadd.xlane.f32.xlu0 %v6560
    %v6685 = vpop.xlane.xlu0 %6684
    %6686 = vadd.xlane.f32.xlu0 %v6561
    %v6687 = vpop.xlane.xlu0 %6686
    %6688 = vadd.xlane.f32.xlu0 %v6562
    %v6689 = vpop.xlane.xlu0 %6688
    %6690 = vadd.xlane.f32.xlu0 %v6563
    %v6691 = vpop.xlane.xlu0 %6690
    %v6692 = vsub.f32 0.0, %v6565
    %v6693 = vsub.f32 0.0, %v6567
    %v6694 = vsub.f32 0.0, %v6569
    %v6695 = vsub.f32 0.0, %v6571
    %v6696 = vsub.f32 0.0, %v6573
    %v6697 = vsub.f32 0.0, %v6575
    %v6698 = vsub.f32 0.0, %v6577
    %v6699 = vsub.f32 0.0, %v6579
    %v6700 = vsub.f32 0.0, %v6581
    %v6701 = vsub.f32 0.0, %v6583
    %v6702 = vsub.f32 0.0, %v6585
    %v6703 = vsub.f32 0.0, %v6587
    %v6704 = vsub.f32 0.0, %v6589
    %v6705 = vsub.f32 0.0, %v6591
    %v6706 = vsub.f32 0.0, %v6593
    %v6707 = vsub.f32 0.0, %v6595
    %v6708 = vsub.f32 0.0, %v6597
    %v6709 = vsub.f32 0.0, %v6599
    %v6710 = vsub.f32 0.0, %v6601
    %v6711 = vsub.f32 0.0, %v6603
    %v6712 = vsub.f32 0.0, %v6605
    %v6713 = vsub.f32 0.0, %v6607
    %v6714 = vsub.f32 0.0, %v6609
    %v6715 = vsub.f32 0.0, %v6611
    %v6716 = vsub.f32 0.0, %v6613
    %v6717 = vsub.f32 0.0, %v6615
    %v6718 = vsub.f32 0.0, %v6617
    %v6719 = vsub.f32 0.0, %v6619
    %v6720 = vsub.f32 0.0, %v6621
    %v6721 = vsub.f32 0.0, %v6623
    %v6722 = vsub.f32 0.0, %v6625
    %v6723 = vsub.f32 0.0, %v6627
    %v6724 = vsub.f32 0.0, %v6629
    %v6725 = vsub.f32 0.0, %v6631
    %v6726 = vsub.f32 0.0, %v6633
    %v6727 = vsub.f32 0.0, %v6635
    %v6728 = vsub.f32 0.0, %v6637
    %v6729 = vsub.f32 0.0, %v6639
    %v6730 = vsub.f32 0.0, %v6641
    %v6731 = vsub.f32 0.0, %v6643
    %v6732 = vsub.f32 0.0, %v6645
    %v6733 = vsub.f32 0.0, %v6647
    %v6734 = vsub.f32 0.0, %v6649
    %v6735 = vsub.f32 0.0, %v6651
    %v6736 = vsub.f32 0.0, %v6653
    %v6737 = vsub.f32 0.0, %v6655
    %v6738 = vsub.f32 0.0, %v6657
    %v6739 = vsub.f32 0.0, %v6659
    %v6740 = vsub.f32 0.0, %v6661
    %v6741 = vsub.f32 0.0, %v6663
    %v6742 = vsub.f32 0.0, %v6665
    %v6743 = vsub.f32 0.0, %v6667
    %v6744 = vsub.f32 0.0, %v6669
    %v6745 = vsub.f32 0.0, %v6671
    %v6746 = vsub.f32 0.0, %v6673
    %v6747 = vsub.f32 0.0, %v6675
    %v6748 = vsub.f32 0.0, %v6677
    %v6749 = vsub.f32 0.0, %v6679
    %v6750 = vsub.f32 0.0, %v6681
    %v6751 = vsub.f32 0.0, %v6683
    %v6752 = vsub.f32 0.0, %v6685
    %v6753 = vsub.f32 0.0, %v6687
    %v6754 = vsub.f32 0.0, %v6689
    %v6755 = vsub.f32 0.0, %v6691
    %v6756 = vmul.f32 %v6692, 1.442695
    %v6757 = vpow.pop %v6756
    %v6758 = vmul.f32 %v6693, 1.442695
    %v6759 = vpow.pop %v6758
    %v6760 = vmul.f32 %v6694, 1.442695
    %v6761 = vpow.pop %v6760
    %v6762 = vmul.f32 %v6695, 1.442695
    %v6763 = vpow.pop %v6762
    %v6764 = vmul.f32 %v6696, 1.442695
    %v6765 = vpow.pop %v6764
    %v6766 = vmul.f32 %v6697, 1.442695
    %v6767 = vpow.pop %v6766
    %v6768 = vmul.f32 %v6698, 1.442695
    %v6769 = vpow.pop %v6768
    %v6770 = vmul.f32 %v6699, 1.442695
    %v6771 = vpow.pop %v6770
    %v6772 = vmul.f32 %v6700, 1.442695
    %v6773 = vpow.pop %v6772
    %v6774 = vmul.f32 %v6701, 1.442695
    %v6775 = vpow.pop %v6774
    %v6776 = vmul.f32 %v6702, 1.442695
    %v6777 = vpow.pop %v6776
    %v6778 = vmul.f32 %v6703, 1.442695
    %v6779 = vpow.pop %v6778
    %v6780 = vmul.f32 %v6704, 1.442695
    %v6781 = vpow.pop %v6780
    %v6782 = vmul.f32 %v6705, 1.442695
    %v6783 = vpow.pop %v6782
    %v6784 = vmul.f32 %v6706, 1.442695
    %v6785 = vpow.pop %v6784
    %v6786 = vmul.f32 %v6707, 1.442695
    %v6787 = vpow.pop %v6786
    %v6788 = vmul.f32 %v6708, 1.442695
    %v6789 = vpow.pop %v6788
    %v6790 = vmul.f32 %v6709, 1.442695
    %v6791 = vpow.pop %v6790
    %v6792 = vmul.f32 %v6710, 1.442695
    %v6793 = vpow.pop %v6792
    %v6794 = vmul.f32 %v6711, 1.442695
    %v6795 = vpow.pop %v6794
    %v6796 = vmul.f32 %v6712, 1.442695
    %v6797 = vpow.pop %v6796
    %v6798 = vmul.f32 %v6713, 1.442695
    %v6799 = vpow.pop %v6798
    %v6800 = vmul.f32 %v6714, 1.442695
    %v6801 = vpow.pop %v6800
    %v6802 = vmul.f32 %v6715, 1.442695
    %v6803 = vpow.pop %v6802
    %v6804 = vmul.f32 %v6716, 1.442695
    %v6805 = vpow.pop %v6804
    %v6806 = vmul.f32 %v6717, 1.442695
    %v6807 = vpow.pop %v6806
    %v6808 = vmul.f32 %v6718, 1.442695
    %v6809 = vpow.pop %v6808
    %v6810 = vmul.f32 %v6719, 1.442695
    %v6811 = vpow.pop %v6810
    %v6812 = vmul.f32 %v6720, 1.442695
    %v6813 = vpow.pop %v6812
    %v6814 = vmul.f32 %v6721, 1.442695
    %v6815 = vpow.pop %v6814
    %v6816 = vmul.f32 %v6722, 1.442695
    %v6817 = vpow.pop %v6816
    %v6818 = vmul.f32 %v6723, 1.442695
    %v6819 = vpow.pop %v6818
    %v6820 = vmul.f32 %v6724, 1.442695
    %v6821 = vpow.pop %v6820
    %v6822 = vmul.f32 %v6725, 1.442695
    %v6823 = vpow.pop %v6822
    %v6824 = vmul.f32 %v6726, 1.442695
    %v6825 = vpow.pop %v6824
    %v6826 = vmul.f32 %v6727, 1.442695
    %v6827 = vpow.pop %v6826
    %v6828 = vmul.f32 %v6728, 1.442695
    %v6829 = vpow.pop %v6828
    %v6830 = vmul.f32 %v6729, 1.442695
    %v6831 = vpow.pop %v6830
    %v6832 = vmul.f32 %v6730, 1.442695
    %v6833 = vpow.pop %v6832
    %v6834 = vmul.f32 %v6731, 1.442695
    %v6835 = vpow.pop %v6834
    %v6836 = vmul.f32 %v6732, 1.442695
    %v6837 = vpow.pop %v6836
    %v6838 = vmul.f32 %v6733, 1.442695
    %v6839 = vpow.pop %v6838
    %v6840 = vmul.f32 %v6734, 1.442695
    %v6841 = vpow.pop %v6840
    %v6842 = vmul.f32 %v6735, 1.442695
    %v6843 = vpow.pop %v6842
    %v6844 = vmul.f32 %v6736, 1.442695
    %v6845 = vpow.pop %v6844
    %v6846 = vmul.f32 %v6737, 1.442695
    %v6847 = vpow.pop %v6846
    %v6848 = vmul.f32 %v6738, 1.442695
    %v6849 = vpow.pop %v6848
    %v6850 = vmul.f32 %v6739, 1.442695
    %v6851 = vpow.pop %v6850
    %v6852 = vmul.f32 %v6740, 1.442695
    %v6853 = vpow.pop %v6852
    %v6854 = vmul.f32 %v6741, 1.442695
    %v6855 = vpow.pop %v6854
    %v6856 = vmul.f32 %v6742, 1.442695
    %v6857 = vpow.pop %v6856
    %v6858 = vmul.f32 %v6743, 1.442695
    %v6859 = vpow.pop %v6858
    %v6860 = vmul.f32 %v6744, 1.442695
    %v6861 = vpow.pop %v6860
    %v6862 = vmul.f32 %v6745, 1.442695
    %v6863 = vpow.pop %v6862
    %v6864 = vmul.f32 %v6746, 1.442695
    %v6865 = vpow.pop %v6864
    %v6866 = vmul.f32 %v6747, 1.442695
    %v6867 = vpow.pop %v6866
    %v6868 = vmul.f32 %v6748, 1.442695
    %v6869 = vpow.pop %v6868
    %v6870 = vmul.f32 %v6749, 1.442695
    %v6871 = vpow.pop %v6870
    %v6872 = vmul.f32 %v6750, 1.442695
    %v6873 = vpow.pop %v6872
    %v6874 = vmul.f32 %v6751, 1.442695
    %v6875 = vpow.pop %v6874
    %v6876 = vmul.f32 %v6752, 1.442695
    %v6877 = vpow.pop %v6876
    %v6878 = vmul.f32 %v6753, 1.442695
    %v6879 = vpow.pop %v6878
    %v6880 = vmul.f32 %v6754, 1.442695
    %v6881 = vpow.pop %v6880
    %v6882 = vmul.f32 %v6755, 1.442695
    %v6883 = vpow.pop %v6882
    %v6884 = vadd.f32 %v6757, 1.0
    %v6885 = vadd.f32 %v6759, 1.0
    %v6886 = vadd.f32 %v6761, 1.0
    %v6887 = vadd.f32 %v6763, 1.0
    %v6888 = vadd.f32 %v6765, 1.0
    %v6889 = vadd.f32 %v6767, 1.0
    %v6890 = vadd.f32 %v6769, 1.0
    %v6891 = vadd.f32 %v6771, 1.0
    %v6892 = vadd.f32 %v6773, 1.0
    %v6893 = vadd.f32 %v6775, 1.0
    %v6894 = vadd.f32 %v6777, 1.0
    %v6895 = vadd.f32 %v6779, 1.0
    %v6896 = vadd.f32 %v6781, 1.0
    %v6897 = vadd.f32 %v6783, 1.0
    %v6898 = vadd.f32 %v6785, 1.0
    %v6899 = vadd.f32 %v6787, 1.0
    %v6900 = vadd.f32 %v6789, 1.0
    %v6901 = vadd.f32 %v6791, 1.0
    %v6902 = vadd.f32 %v6793, 1.0
    %v6903 = vadd.f32 %v6795, 1.0
    %v6904 = vadd.f32 %v6797, 1.0
    %v6905 = vadd.f32 %v6799, 1.0
    %v6906 = vadd.f32 %v6801, 1.0
    %v6907 = vadd.f32 %v6803, 1.0
    %v6908 = vadd.f32 %v6805, 1.0
    %v6909 = vadd.f32 %v6807, 1.0
    %v6910 = vadd.f32 %v6809, 1.0
    %v6911 = vadd.f32 %v6811, 1.0
    %v6912 = vadd.f32 %v6813, 1.0
    %v6913 = vadd.f32 %v6815, 1.0
    %v6914 = vadd.f32 %v6817, 1.0
    %v6915 = vadd.f32 %v6819, 1.0
    %v6916 = vadd.f32 %v6821, 1.0
    %v6917 = vadd.f32 %v6823, 1.0
    %v6918 = vadd.f32 %v6825, 1.0
    %v6919 = vadd.f32 %v6827, 1.0
    %v6920 = vadd.f32 %v6829, 1.0
    %v6921 = vadd.f32 %v6831, 1.0
    %v6922 = vadd.f32 %v6833, 1.0
    %v6923 = vadd.f32 %v6835, 1.0
    %v6924 = vadd.f32 %v6837, 1.0
    %v6925 = vadd.f32 %v6839, 1.0
    %v6926 = vadd.f32 %v6841, 1.0
    %v6927 = vadd.f32 %v6843, 1.0
    %v6928 = vadd.f32 %v6845, 1.0
    %v6929 = vadd.f32 %v6847, 1.0
    %v6930 = vadd.f32 %v6849, 1.0
    %v6931 = vadd.f32 %v6851, 1.0
    %v6932 = vadd.f32 %v6853, 1.0
    %v6933 = vadd.f32 %v6855, 1.0
    %v6934 = vadd.f32 %v6857, 1.0
    %v6935 = vadd.f32 %v6859, 1.0
    %v6936 = vadd.f32 %v6861, 1.0
    %v6937 = vadd.f32 %v6863, 1.0
    %v6938 = vadd.f32 %v6865, 1.0
    %v6939 = vadd.f32 %v6867, 1.0
    %v6940 = vadd.f32 %v6869, 1.0
    %v6941 = vadd.f32 %v6871, 1.0
    %v6942 = vadd.f32 %v6873, 1.0
    %v6943 = vadd.f32 %v6875, 1.0
    %v6944 = vadd.f32 %v6877, 1.0
    %v6945 = vadd.f32 %v6879, 1.0
    %v6946 = vadd.f32 %v6881, 1.0
    %v6947 = vadd.f32 %v6883, 1.0
    %v6948 = vrcp.pop %v6884
    %v6949 = vmul.f32 1.0, %v6948
    %v6950 = vrcp.pop %v6885
    %v6951 = vmul.f32 1.0, %v6950
    %v6952 = vrcp.pop %v6886
    %v6953 = vmul.f32 1.0, %v6952
    %v6954 = vrcp.pop %v6887
    %v6955 = vmul.f32 1.0, %v6954
    %v6956 = vrcp.pop %v6888
    %v6957 = vmul.f32 1.0, %v6956
    %v6958 = vrcp.pop %v6889
    %v6959 = vmul.f32 1.0, %v6958
    %v6960 = vrcp.pop %v6890
    %v6961 = vmul.f32 1.0, %v6960
    %v6962 = vrcp.pop %v6891
    %v6963 = vmul.f32 1.0, %v6962
    %v6964 = vrcp.pop %v6892
    %v6965 = vmul.f32 1.0, %v6964
    %v6966 = vrcp.pop %v6893
    %v6967 = vmul.f32 1.0, %v6966
    %v6968 = vrcp.pop %v6894
    %v6969 = vmul.f32 1.0, %v6968
    %v6970 = vrcp.pop %v6895
    %v6971 = vmul.f32 1.0, %v6970
    %v6972 = vrcp.pop %v6896
    %v6973 = vmul.f32 1.0, %v6972
    %v6974 = vrcp.pop %v6897
    %v6975 = vmul.f32 1.0, %v6974
    %v6976 = vrcp.pop %v6898
    %v6977 = vmul.f32 1.0, %v6976
    %v6978 = vrcp.pop %v6899
    %v6979 = vmul.f32 1.0, %v6978
    %v6980 = vrcp.pop %v6900
    %v6981 = vmul.f32 1.0, %v6980
    %v6982 = vrcp.pop %v6901
    %v6983 = vmul.f32 1.0, %v6982
    %v6984 = vrcp.pop %v6902
    %v6985 = vmul.f32 1.0, %v6984
    %v6986 = vrcp.pop %v6903
    %v6987 = vmul.f32 1.0, %v6986
    %v6988 = vrcp.pop %v6904
    %v6989 = vmul.f32 1.0, %v6988
    %v6990 = vrcp.pop %v6905
    %v6991 = vmul.f32 1.0, %v6990
    %v6992 = vrcp.pop %v6906
    %v6993 = vmul.f32 1.0, %v6992
    %v6994 = vrcp.pop %v6907
    %v6995 = vmul.f32 1.0, %v6994
    %v6996 = vrcp.pop %v6908
    %v6997 = vmul.f32 1.0, %v6996
    %v6998 = vrcp.pop %v6909
    %v6999 = vmul.f32 1.0, %v6998
    %v7000 = vrcp.pop %v6910
    %v7001 = vmul.f32 1.0, %v7000
    %v7002 = vrcp.pop %v6911
    %v7003 = vmul.f32 1.0, %v7002
    %v7004 = vrcp.pop %v6912
    %v7005 = vmul.f32 1.0, %v7004
    %v7006 = vrcp.pop %v6913
    %v7007 = vmul.f32 1.0, %v7006
    %v7008 = vrcp.pop %v6914
    %v7009 = vmul.f32 1.0, %v7008
    %v7010 = vrcp.pop %v6915
    %v7011 = vmul.f32 1.0, %v7010
    %v7012 = vrcp.pop %v6916
    %v7013 = vmul.f32 1.0, %v7012
    %v7014 = vrcp.pop %v6917
    %v7015 = vmul.f32 1.0, %v7014
    %v7016 = vrcp.pop %v6918
    %v7017 = vmul.f32 1.0, %v7016
    %v7018 = vrcp.pop %v6919
    %v7019 = vmul.f32 1.0, %v7018
    %v7020 = vrcp.pop %v6920
    %v7021 = vmul.f32 1.0, %v7020
    %v7022 = vrcp.pop %v6921
    %v7023 = vmul.f32 1.0, %v7022
    %v7024 = vrcp.pop %v6922
    %v7025 = vmul.f32 1.0, %v7024
    %v7026 = vrcp.pop %v6923
    %v7027 = vmul.f32 1.0, %v7026
    %v7028 = vrcp.pop %v6924
    %v7029 = vmul.f32 1.0, %v7028
    %v7030 = vrcp.pop %v6925
    %v7031 = vmul.f32 1.0, %v7030
    %v7032 = vrcp.pop %v6926
    %v7033 = vmul.f32 1.0, %v7032
    %v7034 = vrcp.pop %v6927
    %v7035 = vmul.f32 1.0, %v7034
    %v7036 = vrcp.pop %v6928
    %v7037 = vmul.f32 1.0, %v7036
    %v7038 = vrcp.pop %v6929
    %v7039 = vmul.f32 1.0, %v7038
    %v7040 = vrcp.pop %v6930
    %v7041 = vmul.f32 1.0, %v7040
    %v7042 = vrcp.pop %v6931
    %v7043 = vmul.f32 1.0, %v7042
    %v7044 = vrcp.pop %v6932
    %v7045 = vmul.f32 1.0, %v7044
    %v7046 = vrcp.pop %v6933
    %v7047 = vmul.f32 1.0, %v7046
    %v7048 = vrcp.pop %v6934
    %v7049 = vmul.f32 1.0, %v7048
    %v7050 = vrcp.pop %v6935
    %v7051 = vmul.f32 1.0, %v7050
    %v7052 = vrcp.pop %v6936
    %v7053 = vmul.f32 1.0, %v7052
    %v7054 = vrcp.pop %v6937
    %v7055 = vmul.f32 1.0, %v7054
    %v7056 = vrcp.pop %v6938
    %v7057 = vmul.f32 1.0, %v7056
    %v7058 = vrcp.pop %v6939
    %v7059 = vmul.f32 1.0, %v7058
    %v7060 = vrcp.pop %v6940
    %v7061 = vmul.f32 1.0, %v7060
    %v7062 = vrcp.pop %v6941
    %v7063 = vmul.f32 1.0, %v7062
    %v7064 = vrcp.pop %v6942
    %v7065 = vmul.f32 1.0, %v7064
    %v7066 = vrcp.pop %v6943
    %v7067 = vmul.f32 1.0, %v7066
    %v7068 = vrcp.pop %v6944
    %v7069 = vmul.f32 1.0, %v7068
    %v7070 = vrcp.pop %v6945
    %v7071 = vmul.f32 1.0, %v7070
    %v7072 = vrcp.pop %v6946
    %v7073 = vmul.f32 1.0, %v7072
    %v7074 = vrcp.pop %v6947
    %v7075 = vmul.f32 1.0, %v7074
    %v7076 = vadd.f32 %v6949, %v6951
    %v7077 = vadd.f32 %v7076, %v6953
    %v7078 = vadd.f32 %v7077, %v6955
    %v7079 = vadd.f32 %v7078, %v6957
    %v7080 = vadd.f32 %v7079, %v6959
    %v7081 = vadd.f32 %v7080, %v6961
    %v7082 = vadd.f32 %v7081, %v6963
    %v7083 = vadd.f32 %v7082, %v6965
    %v7084 = vadd.f32 %v7083, %v6967
    %v7085 = vadd.f32 %v7084, %v6969
    %v7086 = vadd.f32 %v7085, %v6971
    %v7087 = vadd.f32 %v7086, %v6973
    %v7088 = vadd.f32 %v7087, %v6975
    %v7089 = vadd.f32 %v7088, %v6977
    %v7090 = vadd.f32 %v7089, %v6979
    %v7091 = vadd.f32 %v7090, %v6981
    %v7092 = vadd.f32 %v7091, %v6983
    %v7093 = vadd.f32 %v7092, %v6985
    %v7094 = vadd.f32 %v7093, %v6987
    %v7095 = vadd.f32 %v7094, %v6989
    %v7096 = vadd.f32 %v7095, %v6991
    %v7097 = vadd.f32 %v7096, %v6993
    %v7098 = vadd.f32 %v7097, %v6995
    %v7099 = vadd.f32 %v7098, %v6997
    %v7100 = vadd.f32 %v7099, %v6999
    %v7101 = vadd.f32 %v7100, %v7001
    %v7102 = vadd.f32 %v7101, %v7003
    %v7103 = vadd.f32 %v7102, %v7005
    %v7104 = vadd.f32 %v7103, %v7007
    %v7105 = vadd.f32 %v7104, %v7009
    %v7106 = vadd.f32 %v7105, %v7011
    %v7107 = vrot.slane %v7106, 4
    %v7108 = vadd.f32 %v7106, %v7107
    %v7109 = vrot.slane %v7108, 2
    %v7110 = vadd.f32 %v7108, %v7109
    %v7111 = vrot.slane %v7110, 1
    %v7112 = vadd.f32 %v7110, %v7111
    %v7113 = vadd.f32 %v7013, %v7015
    %v7114 = vadd.f32 %v7113, %v7017
    %v7115 = vadd.f32 %v7114, %v7019
    %v7116 = vadd.f32 %v7115, %v7021
    %v7117 = vadd.f32 %v7116, %v7023
    %v7118 = vadd.f32 %v7117, %v7025
    %v7119 = vadd.f32 %v7118, %v7027
    %v7120 = vadd.f32 %v7119, %v7029
    %v7121 = vadd.f32 %v7120, %v7031
    %v7122 = vadd.f32 %v7121, %v7033
    %v7123 = vadd.f32 %v7122, %v7035
    %v7124 = vadd.f32 %v7123, %v7037
    %v7125 = vadd.f32 %v7124, %v7039
    %v7126 = vadd.f32 %v7125, %v7041
    %v7127 = vadd.f32 %v7126, %v7043
    %v7128 = vadd.f32 %v7127, %v7045
    %v7129 = vadd.f32 %v7128, %v7047
    %v7130 = vadd.f32 %v7129, %v7049
    %v7131 = vadd.f32 %v7130, %v7051
    %v7132 = vadd.f32 %v7131, %v7053
    %v7133 = vadd.f32 %v7132, %v7055
    %v7134 = vadd.f32 %v7133, %v7057
    %v7135 = vadd.f32 %v7134, %v7059
    %v7136 = vadd.f32 %v7135, %v7061
    %v7137 = vadd.f32 %v7136, %v7063
    %v7138 = vadd.f32 %v7137, %v7065
    %v7139 = vadd.f32 %v7138, %v7067
    %v7140 = vadd.f32 %v7139, %v7069
    %v7141 = vadd.f32 %v7140, %v7071
    %v7142 = vadd.f32 %v7141, %v7073
    %v7143 = vadd.f32 %v7142, %v7075
    %v7144 = vrot.slane %v7143, 4
    %v7145 = vadd.f32 %v7143, %v7144
    %v7146 = vrot.slane %v7145, 2
    %v7147 = vadd.f32 %v7145, %v7146
    %v7148 = vrot.slane %v7147, 1
    %v7149 = vadd.f32 %v7147, %v7148
    %v7150 = vrcp.pop 256.0
    %v7151 = vmul.f32 %v7112, %v7150
    %v7152 = vmul.f32 %v7149, %v7150
    %v7153 = vmul.f32 %v6949, %v6949
    %v7154 = vmul.f32 %v6951, %v6951
    %v7155 = vmul.f32 %v6953, %v6953
    %v7156 = vmul.f32 %v6955, %v6955
    %v7157 = vmul.f32 %v6957, %v6957
    %v7158 = vmul.f32 %v6959, %v6959
    %v7159 = vmul.f32 %v6961, %v6961
    %v7160 = vmul.f32 %v6963, %v6963
    %v7161 = vmul.f32 %v6965, %v6965
    %v7162 = vmul.f32 %v6967, %v6967
    %v7163 = vmul.f32 %v6969, %v6969
    %v7164 = vmul.f32 %v6971, %v6971
    %v7165 = vmul.f32 %v6973, %v6973
    %v7166 = vmul.f32 %v6975, %v6975
    %v7167 = vmul.f32 %v6977, %v6977
    %v7168 = vmul.f32 %v6979, %v6979
    %v7169 = vmul.f32 %v6981, %v6981
    %v7170 = vmul.f32 %v6983, %v6983
    %v7171 = vmul.f32 %v6985, %v6985
    %v7172 = vmul.f32 %v6987, %v6987
    %v7173 = vmul.f32 %v6989, %v6989
    %v7174 = vmul.f32 %v6991, %v6991
    %v7175 = vmul.f32 %v6993, %v6993
    %v7176 = vmul.f32 %v6995, %v6995
    %v7177 = vmul.f32 %v6997, %v6997
    %v7178 = vmul.f32 %v6999, %v6999
    %v7179 = vmul.f32 %v7001, %v7001
    %v7180 = vmul.f32 %v7003, %v7003
    %v7181 = vmul.f32 %v7005, %v7005
    %v7182 = vmul.f32 %v7007, %v7007
    %v7183 = vmul.f32 %v7009, %v7009
    %v7184 = vmul.f32 %v7011, %v7011
    %v7185 = vmul.f32 %v7013, %v7013
    %v7186 = vmul.f32 %v7015, %v7015
    %v7187 = vmul.f32 %v7017, %v7017
    %v7188 = vmul.f32 %v7019, %v7019
    %v7189 = vmul.f32 %v7021, %v7021
    %v7190 = vmul.f32 %v7023, %v7023
    %v7191 = vmul.f32 %v7025, %v7025
    %v7192 = vmul.f32 %v7027, %v7027
    %v7193 = vmul.f32 %v7029, %v7029
    %v7194 = vmul.f32 %v7031, %v7031
    %v7195 = vmul.f32 %v7033, %v7033
    %v7196 = vmul.f32 %v7035, %v7035
    %v7197 = vmul.f32 %v7037, %v7037
    %v7198 = vmul.f32 %v7039, %v7039
    %v7199 = vmul.f32 %v7041, %v7041
    %v7200 = vmul.f32 %v7043, %v7043
    %v7201 = vmul.f32 %v7045, %v7045
    %v7202 = vmul.f32 %v7047, %v7047
    %v7203 = vmul.f32 %v7049, %v7049
    %v7204 = vmul.f32 %v7051, %v7051
    %v7205 = vmul.f32 %v7053, %v7053
    %v7206 = vmul.f32 %v7055, %v7055
    %v7207 = vmul.f32 %v7057, %v7057
    %v7208 = vmul.f32 %v7059, %v7059
    %v7209 = vmul.f32 %v7061, %v7061
    %v7210 = vmul.f32 %v7063, %v7063
    %v7211 = vmul.f32 %v7065, %v7065
    %v7212 = vmul.f32 %v7067, %v7067
    %v7213 = vmul.f32 %v7069, %v7069
    %v7214 = vmul.f32 %v7071, %v7071
    %v7215 = vmul.f32 %v7073, %v7073
    %v7216 = vmul.f32 %v7075, %v7075
    %v7217 = vsub.f32 %v7153, %v7151
    %v7218 = vsub.f32 %v7154, %v7151
    %v7219 = vsub.f32 %v7155, %v7151
    %v7220 = vsub.f32 %v7156, %v7151
    %v7221 = vsub.f32 %v7157, %v7151
    %v7222 = vsub.f32 %v7158, %v7151
    %v7223 = vsub.f32 %v7159, %v7151
    %v7224 = vsub.f32 %v7160, %v7151
    %v7225 = vsub.f32 %v7161, %v7151
    %v7226 = vsub.f32 %v7162, %v7151
    %v7227 = vsub.f32 %v7163, %v7151
    %v7228 = vsub.f32 %v7164, %v7151
    %v7229 = vsub.f32 %v7165, %v7151
    %v7230 = vsub.f32 %v7166, %v7151
    %v7231 = vsub.f32 %v7167, %v7151
    %v7232 = vsub.f32 %v7168, %v7151
    %v7233 = vsub.f32 %v7169, %v7151
    %v7234 = vsub.f32 %v7170, %v7151
    %v7235 = vsub.f32 %v7171, %v7151
    %v7236 = vsub.f32 %v7172, %v7151
    %v7237 = vsub.f32 %v7173, %v7151
    %v7238 = vsub.f32 %v7174, %v7151
    %v7239 = vsub.f32 %v7175, %v7151
    %v7240 = vsub.f32 %v7176, %v7151
    %v7241 = vsub.f32 %v7177, %v7151
    %v7242 = vsub.f32 %v7178, %v7151
    %v7243 = vsub.f32 %v7179, %v7151
    %v7244 = vsub.f32 %v7180, %v7151
    %v7245 = vsub.f32 %v7181, %v7151
    %v7246 = vsub.f32 %v7182, %v7151
    %v7247 = vsub.f32 %v7183, %v7151
    %v7248 = vsub.f32 %v7184, %v7151
    %v7249 = vsub.f32 %v7185, %v7152
    %v7250 = vsub.f32 %v7186, %v7152
    %v7251 = vsub.f32 %v7187, %v7152
    %v7252 = vsub.f32 %v7188, %v7152
    %v7253 = vsub.f32 %v7189, %v7152
    %v7254 = vsub.f32 %v7190, %v7152
    %v7255 = vsub.f32 %v7191, %v7152
    %v7256 = vsub.f32 %v7192, %v7152
    %v7257 = vsub.f32 %v7193, %v7152
    %v7258 = vsub.f32 %v7194, %v7152
    %v7259 = vsub.f32 %v7195, %v7152
    %v7260 = vsub.f32 %v7196, %v7152
    %v7261 = vsub.f32 %v7197, %v7152
    %v7262 = vsub.f32 %v7198, %v7152
    %v7263 = vsub.f32 %v7199, %v7152
    %v7264 = vsub.f32 %v7200, %v7152
    %v7265 = vsub.f32 %v7201, %v7152
    %v7266 = vsub.f32 %v7202, %v7152
    %v7267 = vsub.f32 %v7203, %v7152
    %v7268 = vsub.f32 %v7204, %v7152
    %v7269 = vsub.f32 %v7205, %v7152
    %v7270 = vsub.f32 %v7206, %v7152
    %v7271 = vsub.f32 %v7207, %v7152
    %v7272 = vsub.f32 %v7208, %v7152
    %v7273 = vsub.f32 %v7209, %v7152
    %v7274 = vsub.f32 %v7210, %v7152
    %v7275 = vsub.f32 %v7211, %v7152
    %v7276 = vsub.f32 %v7212, %v7152
    %v7277 = vsub.f32 %v7213, %v7152
    %v7278 = vsub.f32 %v7214, %v7152
    %v7279 = vsub.f32 %v7215, %v7152
    %v7280 = vsub.f32 %v7216, %v7152
    %vm7281 = vcmp.gt.f32.partialorder %v7217, 0.0
    %vm7282 = vcmp.gt.f32.partialorder %v7218, 0.0
    %vm7283 = vcmp.gt.f32.partialorder %v7219, 0.0
    %vm7284 = vcmp.gt.f32.partialorder %v7220, 0.0
    %vm7285 = vcmp.gt.f32.partialorder %v7221, 0.0
    %vm7286 = vcmp.gt.f32.partialorder %v7222, 0.0
    %vm7287 = vcmp.gt.f32.partialorder %v7223, 0.0
    %vm7288 = vcmp.gt.f32.partialorder %v7224, 0.0
    %vm7289 = vcmp.gt.f32.partialorder %v7225, 0.0
    %vm7290 = vcmp.gt.f32.partialorder %v7226, 0.0
    %vm7291 = vcmp.gt.f32.partialorder %v7227, 0.0
    %vm7292 = vcmp.gt.f32.partialorder %v7228, 0.0
    %vm7293 = vcmp.gt.f32.partialorder %v7229, 0.0
    %vm7294 = vcmp.gt.f32.partialorder %v7230, 0.0
    %vm7295 = vcmp.gt.f32.partialorder %v7231, 0.0
    %vm7296 = vcmp.gt.f32.partialorder %v7232, 0.0
    %vm7297 = vcmp.gt.f32.partialorder %v7233, 0.0
    %vm7298 = vcmp.gt.f32.partialorder %v7234, 0.0
    %vm7299 = vcmp.gt.f32.partialorder %v7235, 0.0
    %vm7300 = vcmp.gt.f32.partialorder %v7236, 0.0
    %vm7301 = vcmp.gt.f32.partialorder %v7237, 0.0
    %vm7302 = vcmp.gt.f32.partialorder %v7238, 0.0
    %vm7303 = vcmp.gt.f32.partialorder %v7239, 0.0
    %vm7304 = vcmp.gt.f32.partialorder %v7240, 0.0
    %vm7305 = vcmp.gt.f32.partialorder %v7241, 0.0
    %vm7306 = vcmp.gt.f32.partialorder %v7242, 0.0
    %vm7307 = vcmp.gt.f32.partialorder %v7243, 0.0
    %vm7308 = vcmp.gt.f32.partialorder %v7244, 0.0
    %vm7309 = vcmp.gt.f32.partialorder %v7245, 0.0
    %vm7310 = vcmp.gt.f32.partialorder %v7246, 0.0
    %vm7311 = vcmp.gt.f32.partialorder %v7247, 0.0
    %vm7312 = vcmp.gt.f32.partialorder %v7248, 0.0
    %vm7313 = vcmp.gt.f32.partialorder %v7249, 0.0
    %vm7314 = vcmp.gt.f32.partialorder %v7250, 0.0
    %vm7315 = vcmp.gt.f32.partialorder %v7251, 0.0
    %vm7316 = vcmp.gt.f32.partialorder %v7252, 0.0
    %vm7317 = vcmp.gt.f32.partialorder %v7253, 0.0
    %vm7318 = vcmp.gt.f32.partialorder %v7254, 0.0
    %vm7319 = vcmp.gt.f32.partialorder %v7255, 0.0
    %vm7320 = vcmp.gt.f32.partialorder %v7256, 0.0
    %vm7321 = vcmp.gt.f32.partialorder %v7257, 0.0
    %vm7322 = vcmp.gt.f32.partialorder %v7258, 0.0
    %vm7323 = vcmp.gt.f32.partialorder %v7259, 0.0
    %vm7324 = vcmp.gt.f32.partialorder %v7260, 0.0
    %vm7325 = vcmp.gt.f32.partialorder %v7261, 0.0
    %vm7326 = vcmp.gt.f32.partialorder %v7262, 0.0
    %vm7327 = vcmp.gt.f32.partialorder %v7263, 0.0
    %vm7328 = vcmp.gt.f32.partialorder %v7264, 0.0
    %vm7329 = vcmp.gt.f32.partialorder %v7265, 0.0
    %vm7330 = vcmp.gt.f32.partialorder %v7266, 0.0
    %vm7331 = vcmp.gt.f32.partialorder %v7267, 0.0
    %vm7332 = vcmp.gt.f32.partialorder %v7268, 0.0
    %vm7333 = vcmp.gt.f32.partialorder %v7269, 0.0
    %vm7334 = vcmp.gt.f32.partialorder %v7270, 0.0
    %vm7335 = vcmp.gt.f32.partialorder %v7271, 0.0
    %vm7336 = vcmp.gt.f32.partialorder %v7272, 0.0
    %vm7337 = vcmp.gt.f32.partialorder %v7273, 0.0
    %vm7338 = vcmp.gt.f32.partialorder %v7274, 0.0
    %vm7339 = vcmp.gt.f32.partialorder %v7275, 0.0
    %vm7340 = vcmp.gt.f32.partialorder %v7276, 0.0
    %vm7341 = vcmp.gt.f32.partialorder %v7277, 0.0
    %vm7342 = vcmp.gt.f32.partialorder %v7278, 0.0
    %vm7343 = vcmp.gt.f32.partialorder %v7279, 0.0
    %vm7344 = vcmp.gt.f32.partialorder %v7280, 0.0
    %v7345 = vsel %vm7281, 1.0, 0.0
    %v7346 = vsel %vm7282, 1.0, 0.0
    %v7347 = vsel %vm7283, 1.0, 0.0
    %v7348 = vsel %vm7284, 1.0, 0.0
    %v7349 = vsel %vm7285, 1.0, 0.0
    %v7350 = vsel %vm7286, 1.0, 0.0
    %v7351 = vsel %vm7287, 1.0, 0.0
    %v7352 = vsel %vm7288, 1.0, 0.0
    %v7353 = vsel %vm7289, 1.0, 0.0
    %v7354 = vsel %vm7290, 1.0, 0.0
    %v7355 = vsel %vm7291, 1.0, 0.0
    %v7356 = vsel %vm7292, 1.0, 0.0
    %v7357 = vsel %vm7293, 1.0, 0.0
    %v7358 = vsel %vm7294, 1.0, 0.0
    %v7359 = vsel %vm7295, 1.0, 0.0
    %v7360 = vsel %vm7296, 1.0, 0.0
    %v7361 = vsel %vm7297, 1.0, 0.0
    %v7362 = vsel %vm7298, 1.0, 0.0
    %v7363 = vsel %vm7299, 1.0, 0.0
    %v7364 = vsel %vm7300, 1.0, 0.0
    %v7365 = vsel %vm7301, 1.0, 0.0
    %v7366 = vsel %vm7302, 1.0, 0.0
    %v7367 = vsel %vm7303, 1.0, 0.0
    %v7368 = vsel %vm7304, 1.0, 0.0
    %v7369 = vsel %vm7305, 1.0, 0.0
    %v7370 = vsel %vm7306, 1.0, 0.0
    %v7371 = vsel %vm7307, 1.0, 0.0
    %v7372 = vsel %vm7308, 1.0, 0.0
    %v7373 = vsel %vm7309, 1.0, 0.0
    %v7374 = vsel %vm7310, 1.0, 0.0
    %v7375 = vsel %vm7311, 1.0, 0.0
    %v7376 = vsel %vm7312, 1.0, 0.0
    %v7377 = vsel %vm7313, 1.0, 0.0
    %v7378 = vsel %vm7314, 1.0, 0.0
    %v7379 = vsel %vm7315, 1.0, 0.0
    %v7380 = vsel %vm7316, 1.0, 0.0
    %v7381 = vsel %vm7317, 1.0, 0.0
    %v7382 = vsel %vm7318, 1.0, 0.0
    %v7383 = vsel %vm7319, 1.0, 0.0
    %v7384 = vsel %vm7320, 1.0, 0.0
    %v7385 = vsel %vm7321, 1.0, 0.0
    %v7386 = vsel %vm7322, 1.0, 0.0
    %v7387 = vsel %vm7323, 1.0, 0.0
    %v7388 = vsel %vm7324, 1.0, 0.0
    %v7389 = vsel %vm7325, 1.0, 0.0
    %v7390 = vsel %vm7326, 1.0, 0.0
    %v7391 = vsel %vm7327, 1.0, 0.0
    %v7392 = vsel %vm7328, 1.0, 0.0
    %v7393 = vsel %vm7329, 1.0, 0.0
    %v7394 = vsel %vm7330, 1.0, 0.0
    %v7395 = vsel %vm7331, 1.0, 0.0
    %v7396 = vsel %vm7332, 1.0, 0.0
    %v7397 = vsel %vm7333, 1.0, 0.0
    %v7398 = vsel %vm7334, 1.0, 0.0
    %v7399 = vsel %vm7335, 1.0, 0.0
    %v7400 = vsel %vm7336, 1.0, 0.0
    %v7401 = vsel %vm7337, 1.0, 0.0
    %v7402 = vsel %vm7338, 1.0, 0.0
    %v7403 = vsel %vm7339, 1.0, 0.0
    %v7404 = vsel %vm7340, 1.0, 0.0
    %v7405 = vsel %vm7341, 1.0, 0.0
    %v7406 = vsel %vm7342, 1.0, 0.0
    %v7407 = vsel %vm7343, 1.0, 0.0
    %v7408 = vsel %vm7344, 1.0, 0.0
    %v7409 = vmul.f32 %v6429, %v7345
    %v7410 = vmul.f32 %v6430, %v7346
    %v7411 = vmul.f32 %v6431, %v7347
    %v7412 = vmul.f32 %v6432, %v7348
    %v7413 = vmul.f32 %v6433, %v7349
    %v7414 = vmul.f32 %v6434, %v7350
    %v7415 = vmul.f32 %v6435, %v7351
    %v7416 = vmul.f32 %v6436, %v7352
    %v7417 = vmul.f32 %v6437, %v7353
    %v7418 = vmul.f32 %v6438, %v7354
    %v7419 = vmul.f32 %v6439, %v7355
    %v7420 = vmul.f32 %v6440, %v7356
    %v7421 = vmul.f32 %v6441, %v7357
    %v7422 = vmul.f32 %v6442, %v7358
    %v7423 = vmul.f32 %v6443, %v7359
    %v7424 = vmul.f32 %v6444, %v7360
    %v7425 = vmul.f32 %v6445, %v7361
    %v7426 = vmul.f32 %v6446, %v7362
    %v7427 = vmul.f32 %v6447, %v7363
    %v7428 = vmul.f32 %v6448, %v7364
    %v7429 = vmul.f32 %v6449, %v7365
    %v7430 = vmul.f32 %v6450, %v7366
    %v7431 = vmul.f32 %v6451, %v7367
    %v7432 = vmul.f32 %v6452, %v7368
    %v7433 = vmul.f32 %v6453, %v7369
    %v7434 = vmul.f32 %v6454, %v7370
    %v7435 = vmul.f32 %v6455, %v7371
    %v7436 = vmul.f32 %v6456, %v7372
    %v7437 = vmul.f32 %v6457, %v7373
    %v7438 = vmul.f32 %v6458, %v7374
    %v7439 = vmul.f32 %v6459, %v7375
    %v7440 = vmul.f32 %v6460, %v7376
    %v7441 = vmul.f32 %v6461, %v7377
    %v7442 = vmul.f32 %v6462, %v7378
    %v7443 = vmul.f32 %v6463, %v7379
    %v7444 = vmul.f32 %v6464, %v7380
    %v7445 = vmul.f32 %v6465, %v7381
    %v7446 = vmul.f32 %v6466, %v7382
    %v7447 = vmul.f32 %v6467, %v7383
    %v7448 = vmul.f32 %v6468, %v7384
    %v7449 = vmul.f32 %v6469, %v7385
    %v7450 = vmul.f32 %v6470, %v7386
    %v7451 = vmul.f32 %v6471, %v7387
    %v7452 = vmul.f32 %v6472, %v7388
    %v7453 = vmul.f32 %v6473, %v7389
    %v7454 = vmul.f32 %v6474, %v7390
    %v7455 = vmul.f32 %v6475, %v7391
    %v7456 = vmul.f32 %v6476, %v7392
    %v7457 = vmul.f32 %v6477, %v7393
    %v7458 = vmul.f32 %v6478, %v7394
    %v7459 = vmul.f32 %v6479, %v7395
    %v7460 = vmul.f32 %v6480, %v7396
    %v7461 = vmul.f32 %v6481, %v7397
    %v7462 = vmul.f32 %v6482, %v7398
    %v7463 = vmul.f32 %v6483, %v7399
    %v7464 = vmul.f32 %v6484, %v7400
    %v7465 = vmul.f32 %v6485, %v7401
    %v7466 = vmul.f32 %v6486, %v7402
    %v7467 = vmul.f32 %v6487, %v7403
    %v7468 = vmul.f32 %v6488, %v7404
    %v7469 = vmul.f32 %v6489, %v7405
    %v7470 = vmul.f32 %v6490, %v7406
    %v7471 = vmul.f32 %v6491, %v7407
    %v7472 = vmul.f32 %v6492, %v7408
    %v7473 = vadd.f32 %v6365, %v7409
    %v7474 = vadd.f32 %v6366, %v7410
    %v7475 = vadd.f32 %v6367, %v7411
    %v7476 = vadd.f32 %v6368, %v7412
    %v7477 = vadd.f32 %v6369, %v7413
    %v7478 = vadd.f32 %v6370, %v7414
    %v7479 = vadd.f32 %v6371, %v7415
    %v7480 = vadd.f32 %v6372, %v7416
    %v7481 = vadd.f32 %v6373, %v7417
    %v7482 = vadd.f32 %v6374, %v7418
    %v7483 = vadd.f32 %v6375, %v7419
    %v7484 = vadd.f32 %v6376, %v7420
    %v7485 = vadd.f32 %v6377, %v7421
    %v7486 = vadd.f32 %v6378, %v7422
    %v7487 = vadd.f32 %v6379, %v7423
    %v7488 = vadd.f32 %v6380, %v7424
    %v7489 = vadd.f32 %v6381, %v7425
    %v7490 = vadd.f32 %v6382, %v7426
    %v7491 = vadd.f32 %v6383, %v7427
    %v7492 = vadd.f32 %v6384, %v7428
    %v7493 = vadd.f32 %v6385, %v7429
    %v7494 = vadd.f32 %v6386, %v7430
    %v7495 = vadd.f32 %v6387, %v7431
    %v7496 = vadd.f32 %v6388, %v7432
    %v7497 = vadd.f32 %v6389, %v7433
    %v7498 = vadd.f32 %v6390, %v7434
    %v7499 = vadd.f32 %v6391, %v7435
    %v7500 = vadd.f32 %v6392, %v7436
    %v7501 = vadd.f32 %v6393, %v7437
    %v7502 = vadd.f32 %v6394, %v7438
    %v7503 = vadd.f32 %v6395, %v7439
    %v7504 = vadd.f32 %v6396, %v7440
    %v7505 = vadd.f32 %v6397, %v7441
    %v7506 = vadd.f32 %v6398, %v7442
    %v7507 = vadd.f32 %v6399, %v7443
    %v7508 = vadd.f32 %v6400, %v7444
    %v7509 = vadd.f32 %v6401, %v7445
    %v7510 = vadd.f32 %v6402, %v7446
    %v7511 = vadd.f32 %v6403, %v7447
    %v7512 = vadd.f32 %v6404, %v7448
    %v7513 = vadd.f32 %v6405, %v7449
    %v7514 = vadd.f32 %v6406, %v7450
    %v7515 = vadd.f32 %v6407, %v7451
    %v7516 = vadd.f32 %v6408, %v7452
    %v7517 = vadd.f32 %v6409, %v7453
    %v7518 = vadd.f32 %v6410, %v7454
    %v7519 = vadd.f32 %v6411, %v7455
    %v7520 = vadd.f32 %v6412, %v7456
    %v7521 = vadd.f32 %v6413, %v7457
    %v7522 = vadd.f32 %v6414, %v7458
    %v7523 = vadd.f32 %v6415, %v7459
    %v7524 = vadd.f32 %v6416, %v7460
    %v7525 = vadd.f32 %v6417, %v7461
    %v7526 = vadd.f32 %v6418, %v7462
    %v7527 = vadd.f32 %v6419, %v7463
    %v7528 = vadd.f32 %v6420, %v7464
    %v7529 = vadd.f32 %v6421, %v7465
    %v7530 = vadd.f32 %v6422, %v7466
    %v7531 = vadd.f32 %v6423, %v7467
    %v7532 = vadd.f32 %v6424, %v7468
    %v7533 = vadd.f32 %v6425, %v7469
    %v7534 = vadd.f32 %v6426, %v7470
    %v7535 = vadd.f32 %v6427, %v7471
    %v7536 = vadd.f32 %v6428, %v7472
    %v7537 = vmax.f32 %v7473, 0.0
    %v7538 = vmax.f32 %v7474, 0.0
    %v7539 = vmax.f32 %v7475, 0.0
    %v7540 = vmax.f32 %v7476, 0.0
    %v7541 = vmax.f32 %v7477, 0.0
    %v7542 = vmax.f32 %v7478, 0.0
    %v7543 = vmax.f32 %v7479, 0.0
    %v7544 = vmax.f32 %v7480, 0.0
    %v7545 = vmax.f32 %v7481, 0.0
    %v7546 = vmax.f32 %v7482, 0.0
    %v7547 = vmax.f32 %v7483, 0.0
    %v7548 = vmax.f32 %v7484, 0.0
    %v7549 = vmax.f32 %v7485, 0.0
    %v7550 = vmax.f32 %v7486, 0.0
    %v7551 = vmax.f32 %v7487, 0.0
    %v7552 = vmax.f32 %v7488, 0.0
    %v7553 = vmax.f32 %v7489, 0.0
    %v7554 = vmax.f32 %v7490, 0.0
    %v7555 = vmax.f32 %v7491, 0.0
    %v7556 = vmax.f32 %v7492, 0.0
    %v7557 = vmax.f32 %v7493, 0.0
    %v7558 = vmax.f32 %v7494, 0.0
    %v7559 = vmax.f32 %v7495, 0.0
    %v7560 = vmax.f32 %v7496, 0.0
    %v7561 = vmax.f32 %v7497, 0.0
    %v7562 = vmax.f32 %v7498, 0.0
    %v7563 = vmax.f32 %v7499, 0.0
    %v7564 = vmax.f32 %v7500, 0.0
    %v7565 = vmax.f32 %v7501, 0.0
    %v7566 = vmax.f32 %v7502, 0.0
    %v7567 = vmax.f32 %v7503, 0.0
    %v7568 = vmax.f32 %v7504, 0.0
    %v7569 = vmax.f32 %v7505, 0.0
    %v7570 = vmax.f32 %v7506, 0.0
    %v7571 = vmax.f32 %v7507, 0.0
    %v7572 = vmax.f32 %v7508, 0.0
    %v7573 = vmax.f32 %v7509, 0.0
    %v7574 = vmax.f32 %v7510, 0.0
    %v7575 = vmax.f32 %v7511, 0.0
    %v7576 = vmax.f32 %v7512, 0.0
    %v7577 = vmax.f32 %v7513, 0.0
    %v7578 = vmax.f32 %v7514, 0.0
    %v7579 = vmax.f32 %v7515, 0.0
    %v7580 = vmax.f32 %v7516, 0.0
    %v7581 = vmax.f32 %v7517, 0.0
    %v7582 = vmax.f32 %v7518, 0.0
    %v7583 = vmax.f32 %v7519, 0.0
    %v7584 = vmax.f32 %v7520, 0.0
    %v7585 = vmax.f32 %v7521, 0.0
    %v7586 = vmax.f32 %v7522, 0.0
    %v7587 = vmax.f32 %v7523, 0.0
    %v7588 = vmax.f32 %v7524, 0.0
    %v7589 = vmax.f32 %v7525, 0.0
    %v7590 = vmax.f32 %v7526, 0.0
    %v7591 = vmax.f32 %v7527, 0.0
    %v7592 = vmax.f32 %v7528, 0.0
    %v7593 = vmax.f32 %v7529, 0.0
    %v7594 = vmax.f32 %v7530, 0.0
    %v7595 = vmax.f32 %v7531, 0.0
    %v7596 = vmax.f32 %v7532, 0.0
    %v7597 = vmax.f32 %v7533, 0.0
    %v7598 = vmax.f32 %v7534, 0.0
    %v7599 = vmax.f32 %v7535, 0.0
    %v7600 = vmax.f32 %v7536, 0.0
    %7601 = vst [vmem:[#allocation12] sm:$0xff] %v7537
    %7602 = vst [vmem:[#allocation12 + $0x8] sm:$0xff] %v7538
    %7603 = vst [vmem:[#allocation12 + $0x10] sm:$0xff] %v7539
    %7604 = vst [vmem:[#allocation12 + $0x18] sm:$0xff] %v7540
    %7605 = vst [vmem:[#allocation12 + $0x20] sm:$0xff] %v7541
    %7606 = vst [vmem:[#allocation12 + $0x28] sm:$0xff] %v7542
    %7607 = vst [vmem:[#allocation12 + $0x30] sm:$0xff] %v7543
    %7608 = vst [vmem:[#allocation12 + $0x38] sm:$0xff] %v7544
    %7609 = vst [vmem:[#allocation12 + $0x40] sm:$0xff] %v7545
    %7610 = vst [vmem:[#allocation12 + $0x48] sm:$0xff] %v7546
    %7611 = vst [vmem:[#allocation12 + $0x50] sm:$0xff] %v7547
    %7612 = vst [vmem:[#allocation12 + $0x58] sm:$0xff] %v7548
    %7613 = vst [vmem:[#allocation12 + $0x60] sm:$0xff] %v7549
    %7614 = vst [vmem:[#allocation12 + $0x68] sm:$0xff] %v7550
    %7615 = vst [vmem:[#allocation12 + $0x70] sm:$0xff] %v7551
    %7616 = vst [vmem:[#allocation12 + $0x78] sm:$0xff] %v7552
    %7617 = vst [vmem:[#allocation12 + $0x80] sm:$0xff] %v7553
    %7618 = vst [vmem:[#allocation12 + $0x88] sm:$0xff] %v7554
    %7619 = vst [vmem:[#allocation12 + $0x90] sm:$0xff] %v7555
    %7620 = vst [vmem:[#allocation12 + $0x98] sm:$0xff] %v7556
    %7621 = vst [vmem:[#allocation12 + $0xa0] sm:$0xff] %v7557
    %7622 = vst [vmem:[#allocation12 + $0xa8] sm:$0xff] %v7558
    %7623 = vst [vmem:[#allocation12 + $0xb0] sm:$0xff] %v7559
    %7624 = vst [vmem:[#allocation12 + $0xb8] sm:$0xff] %v7560
    %7625 = vst [vmem:[#allocation12 + $0xc0] sm:$0xff] %v7561
    %7626 = vst [vmem:[#allocation12 + $0xc8] sm:$0xff] %v7562
    %7627 = vst [vmem:[#allocation12 + $0xd0] sm:$0xff] %v7563
    %7628 = vst [vmem:[#allocation12 + $0xd8] sm:$0xff] %v7564
    %7629 = vst [vmem:[#allocation12 + $0xe0] sm:$0xff] %v7565
    %7630 = vst [vmem:[#allocation12 + $0xe8] sm:$0xff] %v7566
    %7631 = vst [vmem:[#allocation12 + $0xf0] sm:$0xff] %v7567
    %7632 = vst [vmem:[#allocation12 + $0xf8] sm:$0xff] %v7568
    %7633 = vst [vmem:[#allocation12 + $0x100] sm:$0xff] %v7569
    %7634 = vst [vmem:[#allocation12 + $0x108] sm:$0xff] %v7570
    %7635 = vst [vmem:[#allocation12 + $0x110] sm:$0xff] %v7571
    %7636 = vst [vmem:[#allocation12 + $0x118] sm:$0xff] %v7572
    %7637 = vst [vmem:[#allocation12 + $0x120] sm:$0xff] %v7573
    %7638 = vst [vmem:[#allocation12 + $0x128] sm:$0xff] %v7574
    %7639 = vst [vmem:[#allocation12 + $0x130] sm:$0xff] %v7575
    %7640 = vst [vmem:[#allocation12 + $0x138] sm:$0xff] %v7576
    %7641 = vst [vmem:[#allocation12 + $0x140] sm:$0xff] %v7577
    %7642 = vst [vmem:[#allocation12 + $0x148] sm:$0xff] %v7578
    %7643 = vst [vmem:[#allocation12 + $0x150] sm:$0xff] %v7579
    %7644 = vst [vmem:[#allocation12 + $0x158] sm:$0xff] %v7580
    %7645 = vst [vmem:[#allocation12 + $0x160] sm:$0xff] %v7581
    %7646 = vst [vmem:[#allocation12 + $0x168] sm:$0xff] %v7582
    %7647 = vst [vmem:[#allocation12 + $0x170] sm:$0xff] %v7583
    %7648 = vst [vmem:[#allocation12 + $0x178] sm:$0xff] %v7584
    %7649 = vst [vmem:[#allocation12 + $0x180] sm:$0xff] %v7585
    %7650 = vst [vmem:[#allocation12 + $0x188] sm:$0xff] %v7586
    %7651 = vst [vmem:[#allocation12 + $0x190] sm:$0xff] %v7587
    %7652 = vst [vmem:[#allocation12 + $0x198] sm:$0xff] %v7588
    %7653 = vst [vmem:[#allocation12 + $0x1a0] sm:$0xff] %v7589
    %7654 = vst [vmem:[#allocation12 + $0x1a8] sm:$0xff] %v7590
    %7655 = vst [vmem:[#allocation12 + $0x1b0] sm:$0xff] %v7591
    %7656 = vst [vmem:[#allocation12 + $0x1b8] sm:$0xff] %v7592
    %7657 = vst [vmem:[#allocation12 + $0x1c0] sm:$0xff] %v7593
    %7658 = vst [vmem:[#allocation12 + $0x1c8] sm:$0xff] %v7594
    %7659 = vst [vmem:[#allocation12 + $0x1d0] sm:$0xff] %v7595
    %7660 = vst [vmem:[#allocation12 + $0x1d8] sm:$0xff] %v7596
    %7661 = vst [vmem:[#allocation12 + $0x1e0] sm:$0xff] %v7597
    %7662 = vst [vmem:[#allocation12 + $0x1e8] sm:$0xff] %v7598
    %7663 = vst [vmem:[#allocation12 + $0x1f0] sm:$0xff] %v7599
    %7664 = vst [vmem:[#allocation12 + $0x1f8] sm:$0xff] %v7600
    // Predicated region
    $region62: #{tpu_custom_call.1} parent=1 // pred_check
      _
    $region63: #{tpu_custom_call.1} parent=1 // pred_check_branch
      %7666 = sbr.rel (0) target = $region65
    $region64: #{tpu_custom_call.1} parent=1 // pred_region
      %s7668 = ssub.s32 8192, 8192
      %7669 = vsyncadd [#allocation6], %s7668
      %s7670 = sshll.u32 [#allocation12], 4
      %s7671 = int_to_ptr.vmem [resolvable:$true] %s7670
      %7676 = dma.vmem_to_hbm [thread:$0]  %s7671, 8192, %s11, [#allocation6], 128, 128, 8
    $region65: #{tpu_custom_call.1} parent=1 // pred_fallthru
      _
    // Predicated region
    $region66: #{tpu_custom_call.1} parent=1 // pred_check
      _
    $region67: #{tpu_custom_call.1} parent=1 // pred_check_branch
      %7678 = sbr.rel (0) target = $region69
    $region68: #{tpu_custom_call.1} parent=1 // pred_region
      %7679 = dma.done [#allocation6], 8192
    $region69: #{tpu_custom_call.1} parent=1 // pred_fallthru
      _
    %7680 = vsyncpa [#allocation5], 1
    %7681 = vsyncpa [#allocation8], 1
    %7682 = vsyncpa [#allocation11], 1
    %7683 = vsyncpa [#allocation6], 1

</llo_original>
